<compile_context>
chip_gen: v7x
topology: tpu7x:2x2x1
jax: 0.10.0
libtpu: 0.0.40
codegen_flags: <defaults>
</compile_context>

<pallas_src>
import functools

import jax
import jax.numpy as jnp
from jax.experimental import pallas as pl
from jax.experimental.pallas import tpu as pltpu


def _round_up(a, b):
    return -(-a // b) * b


def _flow_head_kernel(xf_ref, w1_ref, b1_ref, w2_ref, b2_ref, o_ref,
                      acc1_ref, hpad_ref, y_ref, *, H, W, Wp):
    """Fused conv3x3 -> ReLU -> conv3x3 for one batch element.

    xf_ref  : (1, (H+3)*Wp, Cin) bf16  flat zero-padded input          VMEM
    w1_ref  : (9, Cin, Chid)    bf16   conv1 weights (tap-major)       VMEM
    b1_ref  : (1, Chid)         f32    conv1 bias                      VMEM
    w2_ref  : (Chid, 18)        bf16   conv2 weights packed (tap,chan) VMEM
    b2_ref  : (1, 2)            f32    conv2 bias                      VMEM
    o_ref   : (1, Hw, 2)        f32    wide output                     VMEM
    acc1_ref: (Hw, Chid)        f32    conv1 accumulator               scratch
    hpad_ref: (Npad, Chid)      bf16   zero-halo'd hidden activation   scratch
    y_ref   : (Npad, 18)        f32    packed conv2 partial products   scratch
    """
    Hw = H * Wp
    L = (-(Wp + 1)) % 8          # leading pad: hidden interior store is 8-aligned
    head = L + Wp + 1            # flat row of hidden pixel (0, 0)
    Chid = w1_ref.shape[-1]
    Npad = hpad_ref.shape[0]

    def conv1_tap(t):
        dy, dx = divmod(t, 3)
        patch = xf_ref[0, pl.ds(dy * Wp + dx, Hw), :]          # (Hw, Cin) bf16
        return jnp.dot(patch, w1_ref[t], preferred_element_type=jnp.float32)

    # ---- conv1: 9 bf16 MXU matmuls, pairwise-combined to halve acc traffic.
    acc1_ref[...] = conv1_tap(0) + conv1_tap(1)
    acc1_ref[...] += conv1_tap(2) + conv1_tap(3)
    acc1_ref[...] += conv1_tap(4) + conv1_tap(5)
    acc1_ref[...] += conv1_tap(6) + conv1_tap(7)

    # Fused: last tap + bias + ReLU + junk-column mask + bf16 cast.
    hid = acc1_ref[...] + conv1_tap(8) + b1_ref[...]
    hid = jnp.maximum(hid, 0.0)
    col = jax.lax.broadcasted_iota(jnp.int32, (Hw, 1), 0) % Wp   # (Hw, 1)
    hid = jnp.where(col < W, hid, 0.0)

    # Refresh the zero halo every grid step (cheap, keeps megacore-split grids
    # correct), then one aligned contiguous store of the bf16 hidden interior.
    hpad_ref[pl.ds(0, head), :] = jnp.zeros((head, Chid), hpad_ref.dtype)
    tail0 = head + Hw
    tail_n = Npad - tail0
    hpad_ref[pl.ds(tail0, tail_n), :] = jnp.zeros((tail_n, Chid), hpad_ref.dtype)
    hpad_ref[pl.ds(head, Hw), :] = hid.astype(hpad_ref.dtype)

    # ---- conv2: ONE packed bf16 MXU matmul over the whole padded hidden,
    # then 9 shifted (Hw, 2) slice-adds on the VPU.
    y_ref[...] = jnp.dot(hpad_ref[...], w2_ref[...],
                         preferred_element_type=jnp.float32)

    out = None
    for t in range(9):
        dy, dx = divmod(t, 3)
        win = y_ref[pl.ds(L + dy * Wp + dx, Hw), pl.ds(2 * t, 2)]   # (Hw, 2)
        out = win if out is None else out + win
    out = out + b2_ref[...]
    o_ref[...] = out[None, :, :].astype(o_ref.dtype)


def _vmem_estimate(NXF, Cin, Chid, Hw, Npad):
    """Rough per-grid-step VMEM residency (bytes), incl. lane/sublane padding."""
    f32, bf16, lane, sub = 4, 2, 128, 8
    est = 0
    est += 2 * _round_up(NXF, sub) * _round_up(Cin, lane) * bf16        # xf (2 bufs)
    est += 2 * 9 * _round_up(Cin, sub) * _round_up(Chid, lane) * bf16   # w1
    est += 2 * sub * _round_up(Chid, lane) * f32                        # b1
    est += 2 * _round_up(Chid, sub) * lane * bf16                       # w2 packed
    est += 2 * sub * lane * f32                                         # b2
    est += 2 * _round_up(Hw, sub) * lane * f32                          # out (2 bufs)
    est += _round_up(Hw, sub) * _round_up(Chid, lane) * f32             # acc1
    est += Npad * _round_up(Chid, lane) * bf16                          # hpad
    est += Npad * lane * f32                                            # y
    return est


def flow_head(x_nchw, params):
    """FlowHead.forward: conv2(relu(conv1(x))). Input NCHW like PyTorch."""
    B, Cin, H, W = x_nchw.shape
    Chid = params["w1"].shape[-1]
    Wp = _round_up(W + 2, 8)         # wide row width, sublane-aligned
    Hw = H * Wp                      # wide output rows
    NXF = (H + 3) * Wp               # flat padded-input rows
    L = (-(Wp + 1)) % 8
    Npad = _round_up(L + (H + 3) * Wp, 8)   # padded-hidden rows (+ lead align)

    # NCHW -> NHWC, pad once (1px halo + spare bottom/right so shifted flat tap
    # windows never run off the buffer), flatten spatial dims, cast to bf16.
    x = jnp.transpose(x_nchw, (0, 2, 3, 1))
    xf = jnp.pad(x, ((0, 0), (1, 2), (1, Wp - W - 1), (0, 0)))
    xf = xf.reshape(B, NXF, Cin).astype(jnp.bfloat16)

    # Weights: conv1 tap-major (9, Cin, Chid); conv2 packed lane-dense
    # (Chid, 18) with column index = 2*tap + out_channel.  Biases stay f32.
    w1p = params["w1"].reshape(9, Cin, Chid).astype(jnp.bfloat16)
    w2p = (params["w2"].reshape(9, Chid, 2).transpose(1, 0, 2)
           .reshape(Chid, 18).astype(jnp.bfloat16))
    b1 = params["b1"].reshape(1, Chid).astype(jnp.float32)
    b2 = params["b2"].reshape(1, 2).astype(jnp.float32)

    kernel = functools.partial(_flow_head_kernel, H=H, W=W, Wp=Wp)

    est = _vmem_estimate(NXF, Cin, Chid, Hw, Npad)
    vmem_limit = int(min(96 * 2**20, max(32 * 2**20, 2 * est)))

    # TODO(synk): at production dims add a row-tile grid axis (with a 1-row
    # hidden halo per tile) to bound VMEM on v5e/v7x and feed both v7x
    # TensorCores when B is small, and emit a lane-dense (B, 2, Hw) output.
    out_wide = pl.pallas_call(
        kernel,
        out_shape=jax.ShapeDtypeStruct((B, Hw, 2), jnp.float32),
        grid_spec=pltpu.PrefetchScalarGridSpec(
            num_scalar_prefetch=0,
            grid=(B,),
            in_specs=[
                pl.BlockSpec((1, NXF, Cin), lambda b: (b, 0, 0)),
                pl.BlockSpec((9, Cin, Chid), lambda b: (0, 0, 0)),
                pl.BlockSpec((1, Chid), lambda b: (0, 0)),
                pl.BlockSpec((Chid, 18), lambda b: (0, 0)),
                pl.BlockSpec((1, 2), lambda b: (0, 0)),
            ],
            out_specs=pl.BlockSpec((1, Hw, 2), lambda b: (b, 0, 0)),
            scratch_shapes=[
                pltpu.VMEM((Hw, Chid), jnp.float32),      # conv1 f32 accumulator
                pltpu.VMEM((Npad, Chid), jnp.bfloat16),   # zero-halo'd hidden
                pltpu.VMEM((Npad, 18), jnp.float32),      # packed conv2 products
            ],
        ),
        compiler_params=pltpu.CompilerParams(
            dimension_semantics=("parallel",),
            vmem_limit_bytes=vmem_limit),
    )(xf, w1p, b1, w2p, b2)

    # (B, Hw, 2) wide -> drop the junk columns -> NCHW (cheap XLA glue).
    y = out_wide.reshape(B, H, Wp, 2)[:, :, :W, :]
    return jnp.transpose(y, (0, 3, 1, 2))


def init_params(key, input_dim, hidden_dim, dtype=jnp.float32):
    k1, k2, k3, k4 = jax.random.split(key, 4)
    # Weights are created directly in HWIO layout (equivalent to nn.Conv2d's
    # OIHW parameters, just stored transposed).
    w1 = jax.random.normal(k1, (3, 3, input_dim, hidden_dim), dtype) * 0.05
    b1 = jax.random.normal(k2, (hidden_dim,), dtype) * 0.05
    w2 = jax.random.normal(k3, (3, 3, hidden_dim, 2), dtype) * 0.05
    b2 = jax.random.normal(k4, (2,), dtype) * 0.05
    return {"w1": w1, "b1": b1, "w2": w2, "b2": b2}


def _reference(x_nchw, params):
    """Pure-JAX reference with the SAME bf16 quantization points as the kernel
    (bf16 inputs/weights/hidden, f32 accumulation and biases)."""
    x = jnp.transpose(x_nchw, (0, 2, 3, 1)).astype(jnp.bfloat16)
    w1 = params["w1"].astype(jnp.bfloat16)
    w2 = params["w2"].astype(jnp.bfloat16)
    dn = ("NHWC", "HWIO", "NHWC")
    h = jax.lax.conv_general_dilated(x, w1, (1, 1), "SAME",
                                     dimension_numbers=dn,
                                     preferred_element_type=jnp.float32)
    h = jnp.maximum(h + params["b1"], 0.0).astype(jnp.bfloat16)
    y = jax.lax.conv_general_dilated(h, w2, (1, 1), "SAME",
                                     dimension_numbers=dn,
                                     preferred_element_type=jnp.float32)
    y = y + params["b2"]
    return jnp.transpose(y, (0, 3, 1, 2))


if __name__ == "__main__":
    key = jax.random.PRNGKey(0)
    k_x, k_p = jax.random.split(key)

    # Small shapes consistent with the module (input_dim, hidden_dim scaled down).
    B, C_IN, C_HID, H, W = 2, 32, 64, 16, 16

    x = jax.random.normal(k_x, (B, C_IN, H, W), jnp.float32)  # NCHW, like PyTorch
    params = init_params(k_p, C_IN, C_HID)

    out = jax.block_until_ready(flow_head(x, params))
    ref = jax.block_until_ready(_reference(x, params))

    assert out.shape == (B, 2, H, W), out.shape
    assert jnp.allclose(out, ref, rtol=2e-2, atol=2e-2), (
        float(jnp.max(jnp.abs(out - ref))))
    print("KERNEL_OK")
</pallas_src>

<mosaic_0001>
module attributes {stable_mosaic.version = 11 : i64} {
  func.func @_flow_head_kernel(%arg0: i32, %arg1: memref<1x456x32xbf16, #tpu.memory_space<vmem>>, %arg2: memref<9x32x64xbf16, #tpu.memory_space<vmem>>, %arg3: memref<1x64xf32, #tpu.memory_space<vmem>>, %arg4: memref<64x18xbf16, #tpu.memory_space<vmem>>, %arg5: memref<1x2xf32, #tpu.memory_space<vmem>>, %arg6: memref<1x384x2xf32, #tpu.memory_space<vmem>>, %arg7: memref<384x64xf32, #tpu.memory_space<vmem>>, %arg8: memref<464x64xbf16, #tpu.memory_space<vmem>>, %arg9: memref<464x18xf32, #tpu.memory_space<vmem>>) attributes {dimension_semantics = [#tpu.dimension_semantics<parallel>], iteration_bounds = array<i64: 2>, scalar_prefetch = 0 : i64, scratch_operands = 3 : i64, tpu.core_type = #tpu.core_type<tc>, window_params = [{transform_indices = @transform_0, window_bounds = array<i64: 1, 456, 32>}, {pipeline_mode = #tpu.pipeline_mode<synchronous>, transform_indices = @transform_1, window_bounds = array<i64: 9, 32, 64>}, {pipeline_mode = #tpu.pipeline_mode<synchronous>, transform_indices = @transform_2, window_bounds = array<i64: 1, 64>}, {pipeline_mode = #tpu.pipeline_mode<synchronous>, transform_indices = @transform_3, window_bounds = array<i64: 64, 18>}, {pipeline_mode = #tpu.pipeline_mode<synchronous>, transform_indices = @transform_4, window_bounds = array<i64: 1, 2>}, {transform_indices = @transform_5, window_bounds = array<i64: 1, 384, 2>}]} {
    %c0 = arith.constant 0 : index
    %c0_0 = arith.constant 0 : index
    %c0_1 = arith.constant 0 : index
    %0 = vector.load %arg1[%c0, %c0_0, %c0_1] : memref<1x456x32xbf16, #tpu.memory_space<vmem>>, vector<1x384x32xbf16>
    %1 = vector.shape_cast %0 : vector<1x384x32xbf16> to vector<384x32xbf16>
    %c0_2 = arith.constant 0 : index
    %c0_3 = arith.constant 0 : index
    %c0_4 = arith.constant 0 : index
    %2 = vector.load %arg2[%c0_2, %c0_3, %c0_4] : memref<9x32x64xbf16, #tpu.memory_space<vmem>>, vector<1x32x64xbf16>
    %3 = vector.shape_cast %2 : vector<1x32x64xbf16> to vector<32x64xbf16>
    %cst = arith.constant dense<0.000000e+00> : vector<384x64xf32>
    %4 = tpu.matmul %1, %3, %cst {dimension_numbers = #tpu.dot_dimension_numbers<[1], [0], [0], [1], [0, 0, 1, 1], [], []>} : vector<384x32xbf16>, vector<32x64xbf16>, vector<384x64xf32> -> vector<384x64xf32>
    %c0_5 = arith.constant 0 : index
    %c1 = arith.constant 1 : index
    %c0_6 = arith.constant 0 : index
    %5 = vector.load %arg1[%c0_5, %c1, %c0_6] : memref<1x456x32xbf16, #tpu.memory_space<vmem>>, vector<1x384x32xbf16>
    %6 = vector.shape_cast %5 : vector<1x384x32xbf16> to vector<384x32xbf16>
    %c1_7 = arith.constant 1 : index
    %c0_8 = arith.constant 0 : index
    %c0_9 = arith.constant 0 : index
    %7 = vector.load %arg2[%c1_7, %c0_8, %c0_9] : memref<9x32x64xbf16, #tpu.memory_space<vmem>>, vector<1x32x64xbf16>
    %8 = vector.shape_cast %7 : vector<1x32x64xbf16> to vector<32x64xbf16>
    %cst_10 = arith.constant dense<0.000000e+00> : vector<384x64xf32>
    %9 = tpu.matmul %6, %8, %cst_10 {dimension_numbers = #tpu.dot_dimension_numbers<[1], [0], [0], [1], [0, 0, 1, 1], [], []>} : vector<384x32xbf16>, vector<32x64xbf16>, vector<384x64xf32> -> vector<384x64xf32>
    %10 = arith.addf %4, %9 : vector<384x64xf32>
    %c0_11 = arith.constant 0 : index
    %c0_12 = arith.constant 0 : index
    %11 = vector.load %arg7[%c0_11, %c0_12] : memref<384x64xf32, #tpu.memory_space<vmem>>, vector<384x64xf32>
    tpu.vector_store %arg7[%c0_11, %c0_12], %10 {strides = array<i32>} : memref<384x64xf32, #tpu.memory_space<vmem>>, vector<384x64xf32>,
    %c0_13 = arith.constant 0 : index
    %c0_14 = arith.constant 0 : index
    %12 = vector.load %arg7[%c0_13, %c0_14] : memref<384x64xf32, #tpu.memory_space<vmem>>, vector<384x64xf32>
    %c0_15 = arith.constant 0 : index
    %c2 = arith.constant 2 : index
    %c0_16 = arith.constant 0 : index
    %13 = vector.load %arg1[%c0_15, %c2, %c0_16] : memref<1x456x32xbf16, #tpu.memory_space<vmem>>, vector<1x384x32xbf16>
    %14 = vector.shape_cast %13 : vector<1x384x32xbf16> to vector<384x32xbf16>
    %c2_17 = arith.constant 2 : index
    %c0_18 = arith.constant 0 : index
    %c0_19 = arith.constant 0 : index
    %15 = vector.load %arg2[%c2_17, %c0_18, %c0_19] : memref<9x32x64xbf16, #tpu.memory_space<vmem>>, vector<1x32x64xbf16>
    %16 = vector.shape_cast %15 : vector<1x32x64xbf16> to vector<32x64xbf16>
    %cst_20 = arith.constant dense<0.000000e+00> : vector<384x64xf32>
    %17 = tpu.matmul %14, %16, %cst_20 {dimension_numbers = #tpu.dot_dimension_numbers<[1], [0], [0], [1], [0, 0, 1, 1], [], []>} : vector<384x32xbf16>, vector<32x64xbf16>, vector<384x64xf32> -> vector<384x64xf32>
    %c0_21 = arith.constant 0 : index
    %c24 = arith.constant 24 : index
    %c0_22 = arith.constant 0 : index
    %18 = vector.load %arg1[%c0_21, %c24, %c0_22] : memref<1x456x32xbf16, #tpu.memory_space<vmem>>, vector<1x384x32xbf16>
    %19 = vector.shape_cast %18 : vector<1x384x32xbf16> to vector<384x32xbf16>
    %c3 = arith.constant 3 : index
    %c0_23 = arith.constant 0 : index
    %c0_24 = arith.constant 0 : index
    %20 = vector.load %arg2[%c3, %c0_23, %c0_24] : memref<9x32x64xbf16, #tpu.memory_space<vmem>>, vector<1x32x64xbf16>
    %21 = vector.shape_cast %20 : vector<1x32x64xbf16> to vector<32x64xbf16>
    %cst_25 = arith.constant dense<0.000000e+00> : vector<384x64xf32>
    %22 = tpu.matmul %19, %21, %cst_25 {dimension_numbers = #tpu.dot_dimension_numbers<[1], [0], [0], [1], [0, 0, 1, 1], [], []>} : vector<384x32xbf16>, vector<32x64xbf16>, vector<384x64xf32> -> vector<384x64xf32>
    %23 = arith.addf %17, %22 : vector<384x64xf32>
    %24 = arith.addf %12, %23 : vector<384x64xf32>
    %c0_26 = arith.constant 0 : index
    %c0_27 = arith.constant 0 : index
    %25 = vector.load %arg7[%c0_26, %c0_27] : memref<384x64xf32, #tpu.memory_space<vmem>>, vector<384x64xf32>
    tpu.vector_store %arg7[%c0_26, %c0_27], %24 {strides = array<i32>} : memref<384x64xf32, #tpu.memory_space<vmem>>, vector<384x64xf32>,
    %c0_28 = arith.constant 0 : index
    %c0_29 = arith.constant 0 : index
    %26 = vector.load %arg7[%c0_28, %c0_29] : memref<384x64xf32, #tpu.memory_space<vmem>>, vector<384x64xf32>
    %c0_30 = arith.constant 0 : index
    %c25 = arith.constant 25 : index
    %c0_31 = arith.constant 0 : index
    %27 = vector.load %arg1[%c0_30, %c25, %c0_31] : memref<1x456x32xbf16, #tpu.memory_space<vmem>>, vector<1x384x32xbf16>
    %28 = vector.shape_cast %27 : vector<1x384x32xbf16> to vector<384x32xbf16>
    %c4 = arith.constant 4 : index
    %c0_32 = arith.constant 0 : index
    %c0_33 = arith.constant 0 : index
    %29 = vector.load %arg2[%c4, %c0_32, %c0_33] : memref<9x32x64xbf16, #tpu.memory_space<vmem>>, vector<1x32x64xbf16>
    %30 = vector.shape_cast %29 : vector<1x32x64xbf16> to vector<32x64xbf16>
    %cst_34 = arith.constant dense<0.000000e+00> : vector<384x64xf32>
    %31 = tpu.matmul %28, %30, %cst_34 {dimension_numbers = #tpu.dot_dimension_numbers<[1], [0], [0], [1], [0, 0, 1, 1], [], []>} : vector<384x32xbf16>, vector<32x64xbf16>, vector<384x64xf32> -> vector<384x64xf32>
    %c0_35 = arith.constant 0 : index
    %c26 = arith.constant 26 : index
    %c0_36 = arith.constant 0 : index
    %32 = vector.load %arg1[%c0_35, %c26, %c0_36] : memref<1x456x32xbf16, #tpu.memory_space<vmem>>, vector<1x384x32xbf16>
    %33 = vector.shape_cast %32 : vector<1x384x32xbf16> to vector<384x32xbf16>
    %c5 = arith.constant 5 : index
    %c0_37 = arith.constant 0 : index
    %c0_38 = arith.constant 0 : index
    %34 = vector.load %arg2[%c5, %c0_37, %c0_38] : memref<9x32x64xbf16, #tpu.memory_space<vmem>>, vector<1x32x64xbf16>
    %35 = vector.shape_cast %34 : vector<1x32x64xbf16> to vector<32x64xbf16>
    %cst_39 = arith.constant dense<0.000000e+00> : vector<384x64xf32>
    %36 = tpu.matmul %33, %35, %cst_39 {dimension_numbers = #tpu.dot_dimension_numbers<[1], [0], [0], [1], [0, 0, 1, 1], [], []>} : vector<384x32xbf16>, vector<32x64xbf16>, vector<384x64xf32> -> vector<384x64xf32>
    %37 = arith.addf %31, %36 : vector<384x64xf32>
    %38 = arith.addf %26, %37 : vector<384x64xf32>
    %c0_40 = arith.constant 0 : index
    %c0_41 = arith.constant 0 : index
    %39 = vector.load %arg7[%c0_40, %c0_41] : memref<384x64xf32, #tpu.memory_space<vmem>>, vector<384x64xf32>
    tpu.vector_store %arg7[%c0_40, %c0_41], %38 {strides = array<i32>} : memref<384x64xf32, #tpu.memory_space<vmem>>, vector<384x64xf32>,
    %c0_42 = arith.constant 0 : index
    %c0_43 = arith.constant 0 : index
    %40 = vector.load %arg7[%c0_42, %c0_43] : memref<384x64xf32, #tpu.memory_space<vmem>>, vector<384x64xf32>
    %c0_44 = arith.constant 0 : index
    %c48 = arith.constant 48 : index
    %c0_45 = arith.constant 0 : index
    %41 = vector.load %arg1[%c0_44, %c48, %c0_45] : memref<1x456x32xbf16, #tpu.memory_space<vmem>>, vector<1x384x32xbf16>
    %42 = vector.shape_cast %41 : vector<1x384x32xbf16> to vector<384x32xbf16>
    %c6 = arith.constant 6 : index
    %c0_46 = arith.constant 0 : index
    %c0_47 = arith.constant 0 : index
    %43 = vector.load %arg2[%c6, %c0_46, %c0_47] : memref<9x32x64xbf16, #tpu.memory_space<vmem>>, vector<1x32x64xbf16>
    %44 = vector.shape_cast %43 : vector<1x32x64xbf16> to vector<32x64xbf16>
    %cst_48 = arith.constant dense<0.000000e+00> : vector<384x64xf32>
    %45 = tpu.matmul %42, %44, %cst_48 {dimension_numbers = #tpu.dot_dimension_numbers<[1], [0], [0], [1], [0, 0, 1, 1], [], []>} : vector<384x32xbf16>, vector<32x64xbf16>, vector<384x64xf32> -> vector<384x64xf32>
    %c0_49 = arith.constant 0 : index
    %c49 = arith.constant 49 : index
    %c0_50 = arith.constant 0 : index
    %46 = vector.load %arg1[%c0_49, %c49, %c0_50] : memref<1x456x32xbf16, #tpu.memory_space<vmem>>, vector<1x384x32xbf16>
    %47 = vector.shape_cast %46 : vector<1x384x32xbf16> to vector<384x32xbf16>
    %c7 = arith.constant 7 : index
    %c0_51 = arith.constant 0 : index
    %c0_52 = arith.constant 0 : index
    %48 = vector.load %arg2[%c7, %c0_51, %c0_52] : memref<9x32x64xbf16, #tpu.memory_space<vmem>>, vector<1x32x64xbf16>
    %49 = vector.shape_cast %48 : vector<1x32x64xbf16> to vector<32x64xbf16>
    %cst_53 = arith.constant dense<0.000000e+00> : vector<384x64xf32>
    %50 = tpu.matmul %47, %49, %cst_53 {dimension_numbers = #tpu.dot_dimension_numbers<[1], [0], [0], [1], [0, 0, 1, 1], [], []>} : vector<384x32xbf16>, vector<32x64xbf16>, vector<384x64xf32> -> vector<384x64xf32>
    %51 = arith.addf %45, %50 : vector<384x64xf32>
    %52 = arith.addf %40, %51 : vector<384x64xf32>
    %c0_54 = arith.constant 0 : index
    %c0_55 = arith.constant 0 : index
    %53 = vector.load %arg7[%c0_54, %c0_55] : memref<384x64xf32, #tpu.memory_space<vmem>>, vector<384x64xf32>
    tpu.vector_store %arg7[%c0_54, %c0_55], %52 {strides = array<i32>} : memref<384x64xf32, #tpu.memory_space<vmem>>, vector<384x64xf32>,
    %c0_56 = arith.constant 0 : index
    %c0_57 = arith.constant 0 : index
    %54 = vector.load %arg7[%c0_56, %c0_57] : memref<384x64xf32, #tpu.memory_space<vmem>>, vector<384x64xf32>
    %c0_58 = arith.constant 0 : index
    %c50 = arith.constant 50 : index
    %c0_59 = arith.constant 0 : index
    %55 = vector.load %arg1[%c0_58, %c50, %c0_59] : memref<1x456x32xbf16, #tpu.memory_space<vmem>>, vector<1x384x32xbf16>
    %56 = vector.shape_cast %55 : vector<1x384x32xbf16> to vector<384x32xbf16>
    %c8 = arith.constant 8 : index
    %c0_60 = arith.constant 0 : index
    %c0_61 = arith.constant 0 : index
    %57 = vector.load %arg2[%c8, %c0_60, %c0_61] : memref<9x32x64xbf16, #tpu.memory_space<vmem>>, vector<1x32x64xbf16>
    %58 = vector.shape_cast %57 : vector<1x32x64xbf16> to vector<32x64xbf16>
    %cst_62 = arith.constant dense<0.000000e+00> : vector<384x64xf32>
    %59 = tpu.matmul %56, %58, %cst_62 {dimension_numbers = #tpu.dot_dimension_numbers<[1], [0], [0], [1], [0, 0, 1, 1], [], []>} : vector<384x32xbf16>, vector<32x64xbf16>, vector<384x64xf32> -> vector<384x64xf32>
    %60 = arith.addf %54, %59 : vector<384x64xf32>
    %c0_63 = arith.constant 0 : index
    %c0_64 = arith.constant 0 : index
    %61 = vector.load %arg3[%c0_63, %c0_64] : memref<1x64xf32, #tpu.memory_space<vmem>>, vector<1x64xf32>
    %62 = vector.broadcast %61 : vector<1x64xf32> to vector<384x64xf32>
    %63 = arith.addf %60, %62 : vector<384x64xf32>
    %cst_65 = arith.constant 0.000000e+00 : f32
    %64 = vector.broadcast %cst_65 : f32 to vector<384x64xf32>
    %65 = arith.maximumf %63, %64 : vector<384x64xf32>
    %66 = tpu.iota {dimensions = array<i32: 0>} : vector<384x1xi32>
    %c24_i32 = arith.constant 24 : i32
    %c0_i32 = arith.constant 0 : i32
    %67 = arith.cmpi eq, %c24_i32, %c0_i32 : i32
    %c1_i32 = arith.constant 1 : i32
    %68 = arith.select %67, %c1_i32, %c24_i32 : i32
    %69 = vector.broadcast %68 : i32 to vector<384x1xi32>
    %70 = arith.remsi %66, %69 : vector<384x1xi32>
    %c0_i32_66 = arith.constant 0 : i32
    %71 = vector.broadcast %c0_i32_66 : i32 to vector<384x1xi32>
    %72 = arith.cmpi ne, %70, %71 : vector<384x1xi32>
    %c0_i32_67 = arith.constant 0 : i32
    %73 = vector.broadcast %c0_i32_67 : i32 to vector<384x1xi32>
    %74 = arith.cmpi slt, %70, %73 : vector<384x1xi32>
    %c0_i32_68 = arith.constant 0 : i32
    %75 = arith.cmpi slt, %68, %c0_i32_68 : i32
    %76 = vector.broadcast %75 : i1 to vector<384x1xi1>
    %77 = vector.broadcast %76 : vector<384x1xi1> to vector<384x1xi1>
    %78 = arith.xori %74, %77 : vector<384x1xi1>
    %79 = arith.andi %78, %72 : vector<384x1xi1>
    %80 = vector.broadcast %68 : i32 to vector<384x1xi32>
    %81 = arith.addi %70, %80 : vector<384x1xi32>
    %82 = arith.select %79, %81, %70 : vector<384x1xi1>, vector<384x1xi32>
    %c16_i32 = arith.constant 16 : i32
    %83 = vector.broadcast %c16_i32 : i32 to vector<384x1xi32>
    %84 = arith.cmpi slt, %82, %83 : vector<384x1xi32>
    %cst_69 = arith.constant 0.000000e+00 : f32
    %85 = vector.shape_cast %84 : vector<384x1xi1> to vector<384x1xi1>
    %86 = vector.broadcast %85 : vector<384x1xi1> to vector<384x64xi1>
    %87 = vector.broadcast %cst_69 : f32 to vector<384x64xf32>
    %88 = arith.select %86, %65, %87 : vector<384x64xi1>, vector<384x64xf32>
    %cst_70 = arith.constant 0.000000e+00 : bf16
    %89 = vector.broadcast %cst_70 : bf16 to vector<32x64xbf16>
    %c0_71 = arith.constant 0 : index
    %c0_72 = arith.constant 0 : index
    %90 = vector.load %arg8[%c0_71, %c0_72] : memref<464x64xbf16, #tpu.memory_space<vmem>>, vector<32x64xbf16>
    tpu.vector_store %arg8[%c0_71, %c0_72], %89 {strides = array<i32>} : memref<464x64xbf16, #tpu.memory_space<vmem>>, vector<32x64xbf16>,
    %cst_73 = arith.constant 0.000000e+00 : bf16
    %91 = vector.broadcast %cst_73 : bf16 to vector<48x64xbf16>
    %c416 = arith.constant 416 : index
    %c0_74 = arith.constant 0 : index
    %92 = vector.load %arg8[%c416, %c0_74] : memref<464x64xbf16, #tpu.memory_space<vmem>>, vector<48x64xbf16>
    tpu.vector_store %arg8[%c416, %c0_74], %91 {strides = array<i32>} : memref<464x64xbf16, #tpu.memory_space<vmem>>, vector<48x64xbf16>,
    %93 = arith.truncf %88 : vector<384x64xf32> to vector<384x64xbf16>
    %c32 = arith.constant 32 : index
    %c0_75 = arith.constant 0 : index
    %94 = vector.load %arg8[%c32, %c0_75] : memref<464x64xbf16, #tpu.memory_space<vmem>>, vector<384x64xbf16>
    tpu.vector_store %arg8[%c32, %c0_75], %93 {strides = array<i32>} : memref<464x64xbf16, #tpu.memory_space<vmem>>, vector<384x64xbf16>,
    %c0_76 = arith.constant 0 : index
    %c0_77 = arith.constant 0 : index
    %95 = vector.load %arg8[%c0_76, %c0_77] : memref<464x64xbf16, #tpu.memory_space<vmem>>, vector<464x64xbf16>
    %c0_78 = arith.constant 0 : index
    %c0_79 = arith.constant 0 : index
    %96 = vector.load %arg4[%c0_78, %c0_79] : memref<64x18xbf16, #tpu.memory_space<vmem>>, vector<64x18xbf16>
    %cst_80 = arith.constant dense<0.000000e+00> : vector<464x18xf32>
    %97 = tpu.matmul %95, %96, %cst_80 {dimension_numbers = #tpu.dot_dimension_numbers<[1], [0], [0], [1], [0, 0, 1, 1], [], []>} : vector<464x64xbf16>, vector<64x18xbf16>, vector<464x18xf32> -> vector<464x18xf32>
    %c0_81 = arith.constant 0 : index
    %c0_82 = arith.constant 0 : index
    %98 = vector.load %arg9[%c0_81, %c0_82] : memref<464x18xf32, #tpu.memory_space<vmem>>, vector<464x18xf32>
    tpu.vector_store %arg9[%c0_81, %c0_82], %97 {strides = array<i32>} : memref<464x18xf32, #tpu.memory_space<vmem>>, vector<464x18xf32>,
    %c7_83 = arith.constant 7 : index
    %c0_84 = arith.constant 0 : index
    %99 = vector.load %arg9[%c7_83, %c0_84] : memref<464x18xf32, #tpu.memory_space<vmem>>, vector<384x2xf32>
    %c8_85 = arith.constant 8 : index
    %c2_86 = arith.constant 2 : index
    %100 = vector.load %arg9[%c8_85, %c2_86] : memref<464x18xf32, #tpu.memory_space<vmem>>, vector<384x2xf32>
    %101 = arith.addf %99, %100 : vector<384x2xf32>
    %c9 = arith.constant 9 : index
    %c4_87 = arith.constant 4 : index
    %102 = vector.load %arg9[%c9, %c4_87] : memref<464x18xf32, #tpu.memory_space<vmem>>, vector<384x2xf32>
    %103 = arith.addf %101, %102 : vector<384x2xf32>
    %c31 = arith.constant 31 : index
    %c6_88 = arith.constant 6 : index
    %104 = vector.load %arg9[%c31, %c6_88] : memref<464x18xf32, #tpu.memory_space<vmem>>, vector<384x2xf32>
    %105 = arith.addf %103, %104 : vector<384x2xf32>
    %c32_89 = arith.constant 32 : index
    %c8_90 = arith.constant 8 : index
    %106 = vector.load %arg9[%c32_89, %c8_90] : memref<464x18xf32, #tpu.memory_space<vmem>>, vector<384x2xf32>
    %107 = arith.addf %105, %106 : vector<384x2xf32>
    %c33 = arith.constant 33 : index
    %c10 = arith.constant 10 : index
    %108 = vector.load %arg9[%c33, %c10] : memref<464x18xf32, #tpu.memory_space<vmem>>, vector<384x2xf32>
    %109 = arith.addf %107, %108 : vector<384x2xf32>
    %c55 = arith.constant 55 : index
    %c12 = arith.constant 12 : index
    %110 = vector.load %arg9[%c55, %c12] : memref<464x18xf32, #tpu.memory_space<vmem>>, vector<384x2xf32>
    %111 = arith.addf %109, %110 : vector<384x2xf32>
    %c56 = arith.constant 56 : index
    %c14 = arith.constant 14 : index
    %112 = vector.load %arg9[%c56, %c14] : memref<464x18xf32, #tpu.memory_space<vmem>>, vector<384x2xf32>
    %113 = arith.addf %111, %112 : vector<384x2xf32>
    %c57 = arith.constant 57 : index
    %c16 = arith.constant 16 : index
    %114 = vector.load %arg9[%c57, %c16] : memref<464x18xf32, #tpu.memory_space<vmem>>, vector<384x2xf32>
    %115 = arith.addf %113, %114 : vector<384x2xf32>
    %c0_91 = arith.constant 0 : index
    %c0_92 = arith.constant 0 : index
    %116 = vector.load %arg5[%c0_91, %c0_92] : memref<1x2xf32, #tpu.memory_space<vmem>>, vector<1x2xf32>
    %117 = vector.broadcast %116 : vector<1x2xf32> to vector<384x2xf32>
    %118 = arith.addf %115, %117 : vector<384x2xf32>
    %119 = vector.shape_cast %118 : vector<384x2xf32> to vector<1x384x2xf32>
    %c0_93 = arith.constant 0 : index
    %c0_94 = arith.constant 0 : index
    %c0_95 = arith.constant 0 : index
    %120 = vector.load %arg6[%c0_93, %c0_94, %c0_95] : memref<1x384x2xf32, #tpu.memory_space<vmem>>, vector<1x384x2xf32>
    tpu.vector_store %arg6[%c0_93, %c0_94, %c0_95], %119 {strides = array<i32>} : memref<1x384x2xf32, #tpu.memory_space<vmem>>, vector<1x384x2xf32>,
    return
  }
  func.func @transform_0(%arg0: i32) -> (i32, i32, i32) {
    %c0_i32 = arith.constant 0 : i32
    %c0_i32_0 = arith.constant 0 : i32
    %c0_i32_1 = arith.constant 0 : i32
    return %arg0, %c0_i32, %c0_i32_0 : i32, i32, i32
  }
  func.func @transform_1(%arg0: i32) -> (i32, i32, i32) {
    %c0_i32 = arith.constant 0 : i32
    %c0_i32_0 = arith.constant 0 : i32
    %c0_i32_1 = arith.constant 0 : i32
    %c0_i32_2 = arith.constant 0 : i32
    return %c0_i32, %c0_i32_0, %c0_i32_1 : i32, i32, i32
  }
  func.func @transform_2(%arg0: i32) -> (i32, i32) {
    %c0_i32 = arith.constant 0 : i32
    %c0_i32_0 = arith.constant 0 : i32
    %c0_i32_1 = arith.constant 0 : i32
    return %c0_i32, %c0_i32_0 : i32, i32
  }
  func.func @transform_3(%arg0: i32) -> (i32, i32) {
    %c0_i32 = arith.constant 0 : i32
    %c0_i32_0 = arith.constant 0 : i32
    %c0_i32_1 = arith.constant 0 : i32
    return %c0_i32, %c0_i32_0 : i32, i32
  }
  func.func @transform_4(%arg0: i32) -> (i32, i32) {
    %c0_i32 = arith.constant 0 : i32
    %c0_i32_0 = arith.constant 0 : i32
    %c0_i32_1 = arith.constant 0 : i32
    return %c0_i32, %c0_i32_0 : i32, i32
  }
  func.func @transform_5(%arg0: i32) -> (i32, i32, i32) {
    %c0_i32 = arith.constant 0 : i32
    %c0_i32_0 = arith.constant 0 : i32
    %c0_i32_1 = arith.constant 0 : i32
    return %arg0, %c0_i32, %c0_i32_0 : i32, i32, i32
  }
}

</mosaic_0001>

<llo_original>
// kernel: tpu_custom_call.1
$region0: #{tpu_custom_call.1}
  #allocation0 [shape = 'u32[]', space=smem, size = 0x4, offset = 0x4, fixed_abs, tag = 'smem constant byte address 0x4 - core index']
  #allocation1 [shape = 'u32[144,128]{1,0:T(1,128)}', space=vmem, size = 0x12000, scoped, tag = 'internal scratch']
  #allocation2 [shape = 'f32[384,64]{1,0:T(8,128)}', space=vmem, size = 0x30000, scoped, tag = 'scratch operand']
  #allocation3 [shape = 'bf16[464,64]{1,0:T(16,128)(2,1)}', space=vmem, size = 0x1d000, scoped, tag = 'scratch operand']
  #allocation4 [shape = 'f32[464,18]{1,0:T(8,128)}', space=vmem, size = 0x3a000, scoped, tag = 'scratch operand']
  %s0 = inlined_call_operand.vmem [shape: bf16[2,456,32], index: 0, kind: input, shape index: {}]
  %s1 = inlined_call_operand.vmem [shape: bf16[9,32,64], index: 1, kind: input, shape index: {}]
  %s2 = inlined_call_operand.vmem [shape: f32[1,64], index: 2, kind: input, shape index: {}]
  %s3 = inlined_call_operand.vmem [shape: bf16[64,18], index: 3, kind: input, shape index: {}]
  %s4 = inlined_call_operand.vmem [shape: f32[1,2], index: 4, kind: input, shape index: {}]
  %s5 = inlined_call_operand.vmem [shape: f32[2,384,2], index: 5, kind: output, shape index: {}]
  %s6 = sld [smem:[#allocation0]]
  $region53: #{tpu_custom_call.1} parent=0
    _
  %s8 = ssub.s32 1, %s6
  %s9 = scalar_select 0, %s8, %s6
  loop: start=0, step=1, limit=4
  $region2: #{tpu_custom_call.1} parent=0 // loop_pre_header
    _
  $region3: #{tpu_custom_call.1} parent=0 // loop_header
    %s11 = sphi 0, %s15
    %p12 = scmp.ge.s32.totalorder %s11, 4
    %s21 = sphi 0, %s23
    %s24 = sphi 0, %s21
    %s25 = sphi 0, %s24
    %s41 = sphi 0, %s25
    %s45 = sphi 0, %s45
    %s47 = sphi 0, %s45
    %s48 = sphi 0, %s47
    %s62 = sphi 0, %s48
    %s66 = sphi 0, %s66
    %s68 = sphi 0, %s66
    %s69 = sphi 0, %s68
    %s83 = sphi 0, %s69
    %s87 = sphi 0, %s87
    %s89 = sphi 0, %s87
    %s90 = sphi 0, %s89
    %s104 = sphi 0, %s90
    %s108 = sphi 0, %s108
    %s110 = sphi 0, %s108
    %s111 = sphi 0, %s110
    %s125 = sphi 0, %s111
    %s131 = sphi 0, %s133
    %s134 = sphi 0, %s131
    %s135 = sphi 0, %s134
    %s151 = sphi 0, %s135
  $region4: #{tpu_custom_call.1} parent=0 // loop_header_branch
    %14 = sbr.rel (%p12) target = $region8
  $region5: #{tpu_custom_call.1} parent=0 // loop_body
    %s16 = ssub.s32 %s11, 1
    %s17 = ssub.s32 %s11, 2
    %s18 = sadd.s32 %s11, 1
    %s19 = ssub.s32 %s11, %s18
    %p20 = scmp.eq.s32.totalorder %s19, 0
    %s22 = sadd.s32 %s21, 1
    %s23 = scalar_select %p20, %s21, %s22
    %p26 = pneg %p20
    %p27 = scmp.eq.s32.totalorder %s11, 1
    %p28 = por %p26, %p27
    %p29 = scmp.ne.s32.totalorder %s21, %s24
    %p30 = scmp.eq.s32.totalorder %s11, 0
    %p31 = por %p29, %p30
    %p32 = scmp.ne.s32.totalorder %s21, %s24
    %p33 = scmp.eq.s32.totalorder %s16, 1
    %p34 = por %p32, %p33
    %p35 = scmp.ne.s32.totalorder %s24, %s25
    %p36 = scmp.eq.s32.totalorder %s16, 0
    %p37 = por %p35, %p36
    %p38 = scmp.ne.s32.totalorder %s24, %s25
    %p39 = scmp.eq.s32.totalorder %s17, 1
    %p40 = por %p38, %p39
    %p42 = scmp.ne.s32.totalorder %s25, %s41
    %p43 = scmp.eq.s32.totalorder %s17, 0
    %p44 = por %p42, %p43
    %s46 = sadd.s32 %s45, 1
    %p49 = scmp.eq.s32.totalorder %s11, 1
    %p50 = scmp.ne.s32.totalorder %s45, %s47
    %p51 = scmp.eq.s32.totalorder %s11, 0
    %p52 = por %p50, %p51
    %p53 = scmp.ne.s32.totalorder %s45, %s47
    %p54 = scmp.eq.s32.totalorder %s16, 1
    %p55 = por %p53, %p54
    %p56 = scmp.ne.s32.totalorder %s47, %s48
    %p57 = scmp.eq.s32.totalorder %s16, 0
    %p58 = por %p56, %p57
    %p59 = scmp.ne.s32.totalorder %s47, %s48
    %p60 = scmp.eq.s32.totalorder %s17, 1
    %p61 = por %p59, %p60
    %p63 = scmp.ne.s32.totalorder %s48, %s62
    %p64 = scmp.eq.s32.totalorder %s17, 0
    %p65 = por %p63, %p64
    %s67 = sadd.s32 %s66, 1
    %p70 = scmp.eq.s32.totalorder %s11, 1
    %p71 = scmp.ne.s32.totalorder %s66, %s68
    %p72 = scmp.eq.s32.totalorder %s11, 0
    %p73 = por %p71, %p72
    %p74 = scmp.ne.s32.totalorder %s66, %s68
    %p75 = scmp.eq.s32.totalorder %s16, 1
    %p76 = por %p74, %p75
    %p77 = scmp.ne.s32.totalorder %s68, %s69
    %p78 = scmp.eq.s32.totalorder %s16, 0
    %p79 = por %p77, %p78
    %p80 = scmp.ne.s32.totalorder %s68, %s69
    %p81 = scmp.eq.s32.totalorder %s17, 1
    %p82 = por %p80, %p81
    %p84 = scmp.ne.s32.totalorder %s69, %s83
    %p85 = scmp.eq.s32.totalorder %s17, 0
    %p86 = por %p84, %p85
    %s88 = sadd.s32 %s87, 1
    %p91 = scmp.eq.s32.totalorder %s11, 1
    %p92 = scmp.ne.s32.totalorder %s87, %s89
    %p93 = scmp.eq.s32.totalorder %s11, 0
    %p94 = por %p92, %p93
    %p95 = scmp.ne.s32.totalorder %s87, %s89
    %p96 = scmp.eq.s32.totalorder %s16, 1
    %p97 = por %p95, %p96
    %p98 = scmp.ne.s32.totalorder %s89, %s90
    %p99 = scmp.eq.s32.totalorder %s16, 0
    %p100 = por %p98, %p99
    %p101 = scmp.ne.s32.totalorder %s89, %s90
    %p102 = scmp.eq.s32.totalorder %s17, 1
    %p103 = por %p101, %p102
    %p105 = scmp.ne.s32.totalorder %s90, %s104
    %p106 = scmp.eq.s32.totalorder %s17, 0
    %p107 = por %p105, %p106
    %s109 = sadd.s32 %s108, 1
    %p112 = scmp.eq.s32.totalorder %s11, 1
    %p113 = scmp.ne.s32.totalorder %s108, %s110
    %p114 = scmp.eq.s32.totalorder %s11, 0
    %p115 = por %p113, %p114
    %p116 = scmp.ne.s32.totalorder %s108, %s110
    %p117 = scmp.eq.s32.totalorder %s16, 1
    %p118 = por %p116, %p117
    %p119 = scmp.ne.s32.totalorder %s110, %s111
    %p120 = scmp.eq.s32.totalorder %s16, 0
    %p121 = por %p119, %p120
    %p122 = scmp.ne.s32.totalorder %s110, %s111
    %p123 = scmp.eq.s32.totalorder %s17, 1
    %p124 = por %p122, %p123
    %p126 = scmp.ne.s32.totalorder %s111, %s125
    %p127 = scmp.eq.s32.totalorder %s17, 0
    %p128 = por %p126, %p127
    %s129 = ssub.s32 %s11, %s18
    %p130 = scmp.eq.s32.totalorder %s129, 0
    %s132 = sadd.s32 %s131, 1
    %s133 = scalar_select %p130, %s131, %s132
    %p136 = pneg %p130
    %p137 = scmp.eq.s32.totalorder %s11, 1
    %p138 = por %p136, %p137
    %p139 = scmp.ne.s32.totalorder %s131, %s134
    %p140 = scmp.eq.s32.totalorder %s11, 0
    %p141 = por %p139, %p140
    %p142 = scmp.ne.s32.totalorder %s131, %s134
    %p143 = scmp.eq.s32.totalorder %s16, 1
    %p144 = por %p142, %p143
    %p145 = scmp.ne.s32.totalorder %s134, %s135
    %p146 = scmp.eq.s32.totalorder %s16, 0
    %p147 = por %p145, %p146
    %p148 = scmp.ne.s32.totalorder %s134, %s135
    %p149 = scmp.eq.s32.totalorder %s17, 1
    %p150 = por %p148, %p149
    %p152 = scmp.ne.s32.totalorder %s135, %s151
    %p153 = scmp.eq.s32.totalorder %s17, 0
    %p154 = por %p152, %p153
    %p155 = scmp.le.s32.totalorder 1, %s11
    %p156 = scmp.lt.s32.totalorder %s11, 3
    %p157 = pnand %p155, %p156
    %p158 = pneg %p157
    // Predicated region
    $region9: #{tpu_custom_call.1} parent=5 // pred_check
      _
    $region10: #{tpu_custom_call.1} parent=5 // pred_check_branch
      %160 = sbr.rel (%p157) target = $region12
    $region11: #{tpu_custom_call.1} parent=5 // pred_region
      %s161 = ssub.s32 %s11, 1
      // Predicated region
      $region13: #{tpu_custom_call.1} parent=11 // pred_check
        %p162 = pneg %p58
      $region14: #{tpu_custom_call.1} parent=11 // pred_check_branch
        %164 = sbr.rel (%p162) target = $region16
      $region15: #{tpu_custom_call.1} parent=11 // pred_region
        _
      $region16: #{tpu_custom_call.1} parent=11 // pred_fallthru
        _
      // Predicated region
      $region17: #{tpu_custom_call.1} parent=11 // pred_check
        %p165 = pneg %p79
      $region18: #{tpu_custom_call.1} parent=11 // pred_check_branch
        %167 = sbr.rel (%p165) target = $region20
      $region19: #{tpu_custom_call.1} parent=11 // pred_region
        _
      $region20: #{tpu_custom_call.1} parent=11 // pred_fallthru
        _
      // Predicated region
      $region21: #{tpu_custom_call.1} parent=11 // pred_check
        %p168 = pneg %p100
      $region22: #{tpu_custom_call.1} parent=11 // pred_check_branch
        %170 = sbr.rel (%p168) target = $region24
      $region23: #{tpu_custom_call.1} parent=11 // pred_region
        _
      $region24: #{tpu_custom_call.1} parent=11 // pred_fallthru
        _
      // Predicated region
      $region25: #{tpu_custom_call.1} parent=11 // pred_check
        %p171 = pneg %p121
      $region26: #{tpu_custom_call.1} parent=11 // pred_check_branch
        %173 = sbr.rel (%p171) target = $region28
      $region27: #{tpu_custom_call.1} parent=11 // pred_region
        _
      $region28: #{tpu_custom_call.1} parent=11 // pred_fallthru
        _
    $region12: #{tpu_custom_call.1} parent=5 // pred_fallthru
      _
    %p174 = scmp.lt.s32.totalorder %s11, 2
    // Predicated region
    $region29: #{tpu_custom_call.1} parent=5 // pred_check
      %p175 = pneg %p174
    $region30: #{tpu_custom_call.1} parent=5 // pred_check_branch
      %177 = sbr.rel (%p175) target = $region32
    $region31: #{tpu_custom_call.1} parent=5 // pred_region
      // Predicated region
      $region33: #{tpu_custom_call.1} parent=31 // pred_check
        %p178 = pneg %p31
      $region34: #{tpu_custom_call.1} parent=31 // pred_check_branch
        %180 = sbr.rel (%p178) target = $region36
      $region35: #{tpu_custom_call.1} parent=31 // pred_region
        %p181 = scmp.lt.s32.totalorder %s11, 1
        %s182 = scalar_select %p181, %s11, 1
        %s183 = smul.addr %s182, 57
        %s184 = smul.addr %s183, 4
        %s185 = scalar_lea.vmem %s0, %s184
      $region36: #{tpu_custom_call.1} parent=31 // pred_fallthru
        _
    $region32: #{tpu_custom_call.1} parent=5 // pred_fallthru
      _
    %p186 = scmp.le.s32.totalorder 1, %s11
    %p187 = scmp.lt.s32.totalorder %s11, 3
    %p188 = pnand %p186, %p187
    %p189 = pneg %p188
    // Predicated region
    $region37: #{tpu_custom_call.1} parent=5 // pred_check
      _
    $region38: #{tpu_custom_call.1} parent=5 // pred_check_branch
      %191 = sbr.rel (%p188) target = $region40
    $region39: #{tpu_custom_call.1} parent=5 // pred_region
      %s192 = ssub.s32 %s11, 1
      %p193 = scmp.lt.s32.totalorder %s16, 1
      %s194 = scalar_select %p193, %s16, 1
      %s195 = smul.addr %s194, 57
      %s196 = smul.addr %s195, 4
      %s197 = scalar_lea.vmem %s0, %s196
      %p198 = pneg %p37
      %p199 = pneg %p34
      %p200 = pneg %p58
      %p201 = pneg %p55
      %p202 = pneg %p79
      %p203 = pneg %p76
      %p204 = pneg %p100
      %p205 = pneg %p97
      %p206 = pneg %p121
      %p207 = pneg %p118
      %p208 = pneg %p147
      %p209 = pneg %p144
      %p210 = scmp.lt.s32.totalorder %s16, 1
      %s211 = scalar_select %p210, %s16, 1
      %s212 = smul.addr %s211, 48
      %s213 = smul.addr %s212, 8
      %s214 = scalar_lea.vmem %s5, %s213
      %p215 = scmp.lt.s32.totalorder %s16, 1
      %s216 = scalar_select %p215, %s16, 1
      %s217 = smul.addr %s216, 57
      %s218 = smul.addr %s217, 4
      %s219 = scalar_lea.vmem %s0, %s218
      %p220 = scmp.lt.s32.totalorder %s16, 1
      %s221 = scalar_select %p220, %s16, 1
      %s222 = smul.addr %s221, 48
      %s223 = smul.addr %s222, 8
      %s224 = scalar_lea.vmem %s5, %s223
      %v226 = vld [vmem:[%s219] sm:$0xf]
      %v227 = vld [vmem:[%s219 + $0x4] sm:$0xf]
      %v228 = vld [vmem:[%s219 + $0x8] sm:$0xf]
      %v229 = vld [vmem:[%s219 + $0xc] sm:$0xf]
      %v230 = vld [vmem:[%s219 + $0x10] sm:$0xf]
      %v231 = vld [vmem:[%s219 + $0x14] sm:$0xf]
      %v232 = vld [vmem:[%s219 + $0x18] sm:$0xf]
      %v233 = vld [vmem:[%s219 + $0x1c] sm:$0xf]
      %v234 = vld [vmem:[%s219 + $0x20] sm:$0xf]
      %v235 = vld [vmem:[%s219 + $0x24] sm:$0xf]
      %v236 = vld [vmem:[%s219 + $0x28] sm:$0xf]
      %v237 = vld [vmem:[%s219 + $0x2c] sm:$0xf]
      %v238 = vld [vmem:[%s219 + $0x30] sm:$0xf]
      %v239 = vld [vmem:[%s219 + $0x34] sm:$0xf]
      %v240 = vld [vmem:[%s219 + $0x38] sm:$0xf]
      %v241 = vld [vmem:[%s219 + $0x3c] sm:$0xf]
      %v242 = vld [vmem:[%s219 + $0x40] sm:$0xf]
      %v243 = vld [vmem:[%s219 + $0x44] sm:$0xf]
      %v244 = vld [vmem:[%s219 + $0x48] sm:$0xf]
      %v245 = vld [vmem:[%s219 + $0x4c] sm:$0xf]
      %v246 = vld [vmem:[%s219 + $0x50] sm:$0xf]
      %v247 = vld [vmem:[%s219 + $0x54] sm:$0xf]
      %v248 = vld [vmem:[%s219 + $0x58] sm:$0xf]
      %v249 = vld [vmem:[%s219 + $0x5c] sm:$0xf]
      %v250 = vld [vmem:[%s219 + $0x60] sm:$0xf]
      %v251 = vld [vmem:[%s219 + $0x64] sm:$0xf]
      %v252 = vld [vmem:[%s219 + $0x68] sm:$0xf]
      %v253 = vld [vmem:[%s219 + $0x6c] sm:$0xf]
      %v254 = vld [vmem:[%s219 + $0x70] sm:$0xf]
      %v255 = vld [vmem:[%s219 + $0x74] sm:$0xf]
      %v256 = vld [vmem:[%s219 + $0x78] sm:$0xf]
      %v257 = vld [vmem:[%s219 + $0x7c] sm:$0xf]
      %v258 = vld [vmem:[%s219 + $0x80] sm:$0xf]
      %v259 = vld [vmem:[%s219 + $0x84] sm:$0xf]
      %v260 = vld [vmem:[%s219 + $0x88] sm:$0xf]
      %v261 = vld [vmem:[%s219 + $0x8c] sm:$0xf]
      %v262 = vld [vmem:[%s219 + $0x90] sm:$0xf]
      %v263 = vld [vmem:[%s219 + $0x94] sm:$0xf]
      %v264 = vld [vmem:[%s219 + $0x98] sm:$0xf]
      %v265 = vld [vmem:[%s219 + $0x9c] sm:$0xf]
      %v266 = vld [vmem:[%s219 + $0xa0] sm:$0xf]
      %v267 = vld [vmem:[%s219 + $0xa4] sm:$0xf]
      %v268 = vld [vmem:[%s219 + $0xa8] sm:$0xf]
      %v269 = vld [vmem:[%s219 + $0xac] sm:$0xf]
      %v270 = vld [vmem:[%s219 + $0xb0] sm:$0xf]
      %v271 = vld [vmem:[%s219 + $0xb4] sm:$0xf]
      %v272 = vld [vmem:[%s219 + $0xb8] sm:$0xf]
      %v273 = vld [vmem:[%s219 + $0xbc] sm:$0xf]
      %v274 = vld [vmem:[%s1] sm:$0xf]
      %v275 = vld [vmem:[%s1 + $0x4] sm:$0xf]
      %v276 = vld [vmem:[%s1 + $0x8] sm:$0xf]
      %v277 = vld [vmem:[%s1 + $0xc] sm:$0xf]
      %v278 = vld [vmem:[%s219 + $0xc0] sm:$0x1]
      %s279 = scalar_lea.vmem %s1, 16
      %v280 = vld [vmem:[%s279] sm:$0xf]
      %v281 = vld [vmem:[%s279 + $0x4] sm:$0xf]
      %v282 = vld [vmem:[%s279 + $0x8] sm:$0xf]
      %v283 = vld [vmem:[%s279 + $0xc] sm:$0xf]
      %v333 = vunpack.c.l.b16 %v226
      %v334 = vunpack.c.l.b16 %v227
      %v335 = vunpack.c.l.b16 %v228
      %v336 = vunpack.c.l.b16 %v229
      %v337 = vunpack.c.l.b16 %v230
      %v338 = vunpack.c.l.b16 %v231
      %v339 = vunpack.c.l.b16 %v232
      %v340 = vunpack.c.l.b16 %v233
      %v341 = vunpack.c.l.b16 %v234
      %v342 = vunpack.c.l.b16 %v235
      %v343 = vunpack.c.l.b16 %v236
      %v344 = vunpack.c.l.b16 %v237
      %v345 = vunpack.c.l.b16 %v238
      %v346 = vunpack.c.l.b16 %v239
      %v347 = vunpack.c.l.b16 %v240
      %v348 = vunpack.c.l.b16 %v241
      %v349 = vunpack.c.l.b16 %v242
      %v350 = vunpack.c.l.b16 %v243
      %v351 = vunpack.c.l.b16 %v244
      %v352 = vunpack.c.l.b16 %v245
      %v353 = vunpack.c.l.b16 %v246
      %v354 = vunpack.c.l.b16 %v247
      %v355 = vunpack.c.l.b16 %v248
      %v356 = vunpack.c.l.b16 %v249
      %v357 = vunpack.c.l.b16 %v250
      %v358 = vunpack.c.l.b16 %v251
      %v359 = vunpack.c.l.b16 %v252
      %v360 = vunpack.c.l.b16 %v253
      %v361 = vunpack.c.l.b16 %v254
      %v362 = vunpack.c.l.b16 %v255
      %v363 = vunpack.c.l.b16 %v256
      %v364 = vunpack.c.l.b16 %v257
      %v365 = vunpack.c.l.b16 %v258
      %v366 = vunpack.c.l.b16 %v259
      %v367 = vunpack.c.l.b16 %v260
      %v368 = vunpack.c.l.b16 %v261
      %v369 = vunpack.c.l.b16 %v262
      %v370 = vunpack.c.l.b16 %v263
      %v371 = vunpack.c.l.b16 %v264
      %v372 = vunpack.c.l.b16 %v265
      %v373 = vunpack.c.l.b16 %v266
      %v374 = vunpack.c.l.b16 %v267
      %v375 = vunpack.c.l.b16 %v268
      %v376 = vunpack.c.l.b16 %v269
      %v377 = vunpack.c.l.b16 %v270
      %v378 = vunpack.c.l.b16 %v271
      %v379 = vunpack.c.l.b16 %v272
      %v380 = vunpack.c.l.b16 %v273
      %v381 = vunpack.c.l.b16 %v278
      %v382 = vpack.c.b16 %v334, %v333
      %v383 = vpack.c.b16 %v336, %v335
      %v384 = vpack.c.b16 %v338, %v337
      %v385 = vpack.c.b16 %v340, %v339
      %v386 = vpack.c.b16 %v342, %v341
      %v387 = vpack.c.b16 %v344, %v343
      %v388 = vpack.c.b16 %v346, %v345
      %v389 = vpack.c.b16 %v348, %v347
      %v390 = vpack.c.b16 %v350, %v349
      %v391 = vpack.c.b16 %v352, %v351
      %v392 = vpack.c.b16 %v354, %v353
      %v393 = vpack.c.b16 %v356, %v355
      %v394 = vpack.c.b16 %v358, %v357
      %v395 = vpack.c.b16 %v360, %v359
      %v396 = vpack.c.b16 %v362, %v361
      %v397 = vpack.c.b16 %v364, %v363
      %v398 = vpack.c.b16 %v366, %v365
      %v399 = vpack.c.b16 %v368, %v367
      %v400 = vpack.c.b16 %v370, %v369
      %v401 = vpack.c.b16 %v372, %v371
      %v402 = vpack.c.b16 %v374, %v373
      %v403 = vpack.c.b16 %v376, %v375
      %v404 = vpack.c.b16 %v378, %v377
      %v405 = vpack.c.b16 %v380, %v379
      %v406 = vpack.c.b16 %v381, %v381
      %vm407 = vsmask.f32 7424
      %v409 = vshrl.u32 %v382, 16
      %v411 = vshll.u32 %v382, 16
      %v413 = vrot.slane %v411, 1
      %v414 = vor.u32 %v409, %v413
      %v416 = vshll.u32 %v383, 16
      %v418 = vrot.slane %v416, 1
      %v419 = vsel %vm407, %v414, %v418
      %v420 = vshrl.u32 %v383, 16
      %v422 = vor.u32 %v420, %v418
      %v424 = vshll.u32 %v384, 16
      %v426 = vrot.slane %v424, 1
      %v427 = vsel %vm407, %v422, %v426
      %v428 = vshrl.u32 %v384, 16
      %v430 = vor.u32 %v428, %v426
      %v432 = vshll.u32 %v385, 16
      %v434 = vrot.slane %v432, 1
      %v435 = vsel %vm407, %v430, %v434
      %v436 = vshrl.u32 %v385, 16
      %v438 = vor.u32 %v436, %v434
      %v440 = vshll.u32 %v386, 16
      %v442 = vrot.slane %v440, 1
      %v443 = vsel %vm407, %v438, %v442
      %v444 = vshrl.u32 %v386, 16
      %v446 = vor.u32 %v444, %v442
      %v448 = vshll.u32 %v387, 16
      %v450 = vrot.slane %v448, 1
      %v451 = vsel %vm407, %v446, %v450
      %v452 = vshrl.u32 %v387, 16
      %v454 = vor.u32 %v452, %v450
      %v456 = vshll.u32 %v388, 16
      %v458 = vrot.slane %v456, 1
      %v459 = vsel %vm407, %v454, %v458
      %v460 = vshrl.u32 %v388, 16
      %v462 = vor.u32 %v460, %v458
      %v464 = vshll.u32 %v389, 16
      %v466 = vrot.slane %v464, 1
      %v467 = vsel %vm407, %v462, %v466
      %v468 = vshrl.u32 %v389, 16
      %v470 = vor.u32 %v468, %v466
      %v472 = vshll.u32 %v390, 16
      %v474 = vrot.slane %v472, 1
      %v475 = vsel %vm407, %v470, %v474
      %v476 = vshrl.u32 %v390, 16
      %v478 = vor.u32 %v476, %v474
      %v480 = vshll.u32 %v391, 16
      %v482 = vrot.slane %v480, 1
      %v483 = vsel %vm407, %v478, %v482
      %v484 = vshrl.u32 %v391, 16
      %v486 = vor.u32 %v484, %v482
      %v488 = vshll.u32 %v392, 16
      %v490 = vrot.slane %v488, 1
      %v491 = vsel %vm407, %v486, %v490
      %v492 = vshrl.u32 %v392, 16
      %v494 = vor.u32 %v492, %v490
      %v496 = vshll.u32 %v393, 16
      %v498 = vrot.slane %v496, 1
      %v499 = vsel %vm407, %v494, %v498
      %v500 = vshrl.u32 %v393, 16
      %v502 = vor.u32 %v500, %v498
      %v504 = vshll.u32 %v394, 16
      %v506 = vrot.slane %v504, 1
      %v507 = vsel %vm407, %v502, %v506
      %v508 = vshrl.u32 %v394, 16
      %v510 = vor.u32 %v508, %v506
      %v512 = vshll.u32 %v395, 16
      %v514 = vrot.slane %v512, 1
      %v515 = vsel %vm407, %v510, %v514
      %v516 = vshrl.u32 %v395, 16
      %v518 = vor.u32 %v516, %v514
      %v520 = vshll.u32 %v396, 16
      %v522 = vrot.slane %v520, 1
      %v523 = vsel %vm407, %v518, %v522
      %v524 = vshrl.u32 %v396, 16
      %v526 = vor.u32 %v524, %v522
      %v528 = vshll.u32 %v397, 16
      %v530 = vrot.slane %v528, 1
      %v531 = vsel %vm407, %v526, %v530
      %v532 = vshrl.u32 %v397, 16
      %v534 = vor.u32 %v532, %v530
      %v536 = vshll.u32 %v398, 16
      %v538 = vrot.slane %v536, 1
      %v539 = vsel %vm407, %v534, %v538
      %v540 = vshrl.u32 %v398, 16
      %v542 = vor.u32 %v540, %v538
      %v544 = vshll.u32 %v399, 16
      %v546 = vrot.slane %v544, 1
      %v547 = vsel %vm407, %v542, %v546
      %v548 = vshrl.u32 %v399, 16
      %v550 = vor.u32 %v548, %v546
      %v552 = vshll.u32 %v400, 16
      %v554 = vrot.slane %v552, 1
      %v555 = vsel %vm407, %v550, %v554
      %v556 = vshrl.u32 %v400, 16
      %v558 = vor.u32 %v556, %v554
      %v560 = vshll.u32 %v401, 16
      %v562 = vrot.slane %v560, 1
      %v563 = vsel %vm407, %v558, %v562
      %v564 = vshrl.u32 %v401, 16
      %v566 = vor.u32 %v564, %v562
      %v568 = vshll.u32 %v402, 16
      %v570 = vrot.slane %v568, 1
      %v571 = vsel %vm407, %v566, %v570
      %v572 = vshrl.u32 %v402, 16
      %v574 = vor.u32 %v572, %v570
      %v576 = vshll.u32 %v403, 16
      %v578 = vrot.slane %v576, 1
      %v579 = vsel %vm407, %v574, %v578
      %v580 = vshrl.u32 %v403, 16
      %v582 = vor.u32 %v580, %v578
      %v584 = vshll.u32 %v404, 16
      %v586 = vrot.slane %v584, 1
      %v587 = vsel %vm407, %v582, %v586
      %v588 = vshrl.u32 %v404, 16
      %v590 = vor.u32 %v588, %v586
      %v592 = vshll.u32 %v405, 16
      %v594 = vrot.slane %v592, 1
      %v595 = vsel %vm407, %v590, %v594
      %v596 = vshrl.u32 %v405, 16
      %v598 = vor.u32 %v596, %v594
      %v600 = vshll.u32 %v406, 16
      %v602 = vrot.slane %v600, 1
      %v603 = vsel %vm407, %v598, %v602
      %v608 = vunpack.c.l.b16 %v280
      %v609 = vunpack.c.l.b16 %v281
      %v610 = vunpack.c.l.b16 %v282
      %v611 = vunpack.c.l.b16 %v283
      %v612 = vpack.c.b16 %v609, %v608
      %v613 = vpack.c.b16 %v611, %v610
      %vm616 = vcmask 261120
      %v618 = vsel %vm616, %v419, 0
      %v621 = vsel %vm616, %v427, 0
      %v624 = vsel %vm616, %v435, 0
      %v627 = vsel %vm616, %v443, 0
      %v630 = vsel %vm616, %v451, 0
      %v633 = vsel %vm616, %v459, 0
      %v636 = vsel %vm616, %v467, 0
      %v639 = vsel %vm616, %v475, 0
      %v642 = vsel %vm616, %v483, 0
      %v645 = vsel %vm616, %v491, 0
      %v648 = vsel %vm616, %v499, 0
      %v651 = vsel %vm616, %v507, 0
      %v654 = vsel %vm616, %v515, 0
      %v657 = vsel %vm616, %v523, 0
      %v660 = vsel %vm616, %v531, 0
      %v663 = vsel %vm616, %v539, 0
      %v666 = vsel %vm616, %v547, 0
      %v669 = vsel %vm616, %v555, 0
      %v672 = vsel %vm616, %v563, 0
      %v675 = vsel %vm616, %v571, 0
      %v678 = vsel %vm616, %v579, 0
      %v681 = vsel %vm616, %v587, 0
      %v684 = vsel %vm616, %v595, 0
      %v687 = vsel %vm616, %v603, 0
      %689 = vmatprep.subr.bf16.mxu0 0
      %690 = vmatpush1.bf16.msra.mxu0 %v612
      %691 = vmatprep.subr.bf16.mxu0 0
      %692 = vmatpush1.bf16.msra.mxu0 %v613
      %693 = vmatprep.subr.bf16.mxu0 0
      %694 = vmatpush1.bf16.msra.mxu0 0
      %695 = vmatprep.subr.bf16.mxu0 0
      %696 = vmatpush1.bf16.msra.mxu0 0
      %697 = vmatprep.subr.bf16.mxu0 0
      %698 = vmatpush1.bf16.msra.mxu0 0
      %699 = vmatprep.subr.bf16.mxu0 0
      %700 = vmatpush1.bf16.msra.mxu0 0
      %701 = vmatprep.subr.bf16.mxu0 0
      %702 = vmatpush1.bf16.msra.mxu0 0
      %703 = vmatprep.subr.bf16.mxu0 0
      %704 = vmatpush1.bf16.msra.mxu0 0
      %705 = vmatprep.subr.bf16.mxu0 0
      %706 = vmatpush1.bf16.msra.mxu0 0
      %707 = vmatprep.subr.bf16.mxu0 0
      %708 = vmatpush1.bf16.msra.mxu0 0
      %709 = vmatprep.subr.bf16.mxu0 0
      %710 = vmatpush1.bf16.msra.mxu0 0
      %711 = vmatprep.subr.bf16.mxu0 0
      %712 = vmatpush1.bf16.msra.mxu0 0
      %713 = vmatprep.subr.bf16.mxu0 0
      %714 = vmatpush1.bf16.msra.mxu0 0
      %715 = vmatprep.subr.bf16.mxu0 0
      %716 = vmatpush1.bf16.msra.mxu0 0
      %717 = vmatprep.subr.bf16.mxu0 0
      %718 = vmatpush1.bf16.msra.mxu0 0
      %719 = vmatprep.subr.bf16.mxu0 0
      %720 = vmatpush1.bf16.msra.mxu0 0
      %721 = vmatprep.mubr.bf16.mxu0 0
      %722 = vmatmul.mubr.bf16.gmra.mrb[0].mxu0 %v618
      %v723 = vpop.f32.mrb[0].mxu0
      %v724 = vadd.f32 0.0, %v723
      %v725 = vpop.f32.mrb[0].mxu0
      %v726 = vpop.f32.mrb[0].mxu0
      %v727 = vadd.f32 0.0, %v726
      %v728 = vpop.f32.mrb[0].mxu0
      %729 = vmatprep.mubr.bf16.mxu0 0
      %730 = vmatmul.mubr.bf16.gmra.mrb[0].mxu0 %v621
      %v731 = vpop.f32.mrb[0].mxu0
      %v732 = vadd.f32 0.0, %v731
      %v733 = vpop.f32.mrb[0].mxu0
      %v734 = vpop.f32.mrb[0].mxu0
      %v735 = vadd.f32 0.0, %v734
      %v736 = vpop.f32.mrb[0].mxu0
      %737 = vmatprep.mubr.bf16.mxu0 0
      %738 = vmatmul.mubr.bf16.gmra.mrb[0].mxu0 %v624
      %v739 = vpop.f32.mrb[0].mxu0
      %v740 = vadd.f32 0.0, %v739
      %v741 = vpop.f32.mrb[0].mxu0
      %v742 = vpop.f32.mrb[0].mxu0
      %v743 = vadd.f32 0.0, %v742
      %v744 = vpop.f32.mrb[0].mxu0
      %745 = vmatprep.mubr.bf16.mxu0 0
      %746 = vmatmul.mubr.bf16.gmra.mrb[0].mxu0 %v627
      %v747 = vpop.f32.mrb[0].mxu0
      %v748 = vadd.f32 0.0, %v747
      %v749 = vpop.f32.mrb[0].mxu0
      %v750 = vpop.f32.mrb[0].mxu0
      %v751 = vadd.f32 0.0, %v750
      %v752 = vpop.f32.mrb[0].mxu0
      %753 = vmatprep.mubr.bf16.mxu0 0
      %754 = vmatmul.mubr.bf16.gmra.mrb[0].mxu0 %v630
      %v755 = vpop.f32.mrb[0].mxu0
      %v756 = vadd.f32 0.0, %v755
      %v757 = vpop.f32.mrb[0].mxu0
      %v758 = vpop.f32.mrb[0].mxu0
      %v759 = vadd.f32 0.0, %v758
      %v760 = vpop.f32.mrb[0].mxu0
      %761 = vmatprep.mubr.bf16.mxu0 0
      %762 = vmatmul.mubr.bf16.gmra.mrb[0].mxu0 %v633
      %v763 = vpop.f32.mrb[0].mxu0
      %v764 = vadd.f32 0.0, %v763
      %v765 = vpop.f32.mrb[0].mxu0
      %v766 = vpop.f32.mrb[0].mxu0
      %v767 = vadd.f32 0.0, %v766
      %v768 = vpop.f32.mrb[0].mxu0
      %769 = vmatprep.mubr.bf16.mxu0 0
      %770 = vmatmul.mubr.bf16.gmra.mrb[0].mxu0 %v636
      %v771 = vpop.f32.mrb[0].mxu0
      %v772 = vadd.f32 0.0, %v771
      %v773 = vpop.f32.mrb[0].mxu0
      %v774 = vpop.f32.mrb[0].mxu0
      %v775 = vadd.f32 0.0, %v774
      %v776 = vpop.f32.mrb[0].mxu0
      %777 = vmatprep.mubr.bf16.mxu0 0
      %778 = vmatmul.mubr.bf16.gmra.mrb[0].mxu0 %v639
      %v779 = vpop.f32.mrb[0].mxu0
      %v780 = vadd.f32 0.0, %v779
      %v781 = vpop.f32.mrb[0].mxu0
      %v782 = vpop.f32.mrb[0].mxu0
      %v783 = vadd.f32 0.0, %v782
      %v784 = vpop.f32.mrb[0].mxu0
      %785 = vmatprep.mubr.bf16.mxu0 0
      %786 = vmatmul.mubr.bf16.gmra.mrb[0].mxu0 %v642
      %v787 = vpop.f32.mrb[0].mxu0
      %v788 = vadd.f32 0.0, %v787
      %v789 = vpop.f32.mrb[0].mxu0
      %v790 = vpop.f32.mrb[0].mxu0
      %v791 = vadd.f32 0.0, %v790
      %v792 = vpop.f32.mrb[0].mxu0
      %793 = vmatprep.mubr.bf16.mxu0 0
      %794 = vmatmul.mubr.bf16.gmra.mrb[0].mxu0 %v645
      %v795 = vpop.f32.mrb[0].mxu0
      %v796 = vadd.f32 0.0, %v795
      %v797 = vpop.f32.mrb[0].mxu0
      %v798 = vpop.f32.mrb[0].mxu0
      %v799 = vadd.f32 0.0, %v798
      %v800 = vpop.f32.mrb[0].mxu0
      %801 = vmatprep.mubr.bf16.mxu0 0
      %802 = vmatmul.mubr.bf16.gmra.mrb[0].mxu0 %v648
      %v803 = vpop.f32.mrb[0].mxu0
      %v804 = vadd.f32 0.0, %v803
      %v805 = vpop.f32.mrb[0].mxu0
      %v806 = vpop.f32.mrb[0].mxu0
      %v807 = vadd.f32 0.0, %v806
      %v808 = vpop.f32.mrb[0].mxu0
      %809 = vmatprep.mubr.bf16.mxu0 0
      %810 = vmatmul.mubr.bf16.gmra.mrb[0].mxu0 %v651
      %v811 = vpop.f32.mrb[0].mxu0
      %v812 = vadd.f32 0.0, %v811
      %v813 = vpop.f32.mrb[0].mxu0
      %v814 = vpop.f32.mrb[0].mxu0
      %v815 = vadd.f32 0.0, %v814
      %v816 = vpop.f32.mrb[0].mxu0
      %817 = vmatprep.mubr.bf16.mxu0 0
      %818 = vmatmul.mubr.bf16.gmra.mrb[0].mxu0 %v654
      %v819 = vpop.f32.mrb[0].mxu0
      %v820 = vadd.f32 0.0, %v819
      %v821 = vpop.f32.mrb[0].mxu0
      %v822 = vpop.f32.mrb[0].mxu0
      %v823 = vadd.f32 0.0, %v822
      %v824 = vpop.f32.mrb[0].mxu0
      %825 = vmatprep.mubr.bf16.mxu0 0
      %826 = vmatmul.mubr.bf16.gmra.mrb[0].mxu0 %v657
      %v827 = vpop.f32.mrb[0].mxu0
      %v828 = vadd.f32 0.0, %v827
      %v829 = vpop.f32.mrb[0].mxu0
      %v830 = vpop.f32.mrb[0].mxu0
      %v831 = vadd.f32 0.0, %v830
      %v832 = vpop.f32.mrb[0].mxu0
      %833 = vmatprep.mubr.bf16.mxu0 0
      %834 = vmatmul.mubr.bf16.gmra.mrb[0].mxu0 %v660
      %v835 = vpop.f32.mrb[0].mxu0
      %v836 = vadd.f32 0.0, %v835
      %v837 = vpop.f32.mrb[0].mxu0
      %v838 = vpop.f32.mrb[0].mxu0
      %v839 = vadd.f32 0.0, %v838
      %v840 = vpop.f32.mrb[0].mxu0
      %841 = vmatprep.mubr.bf16.mxu0 0
      %842 = vmatmul.mubr.bf16.gmra.mrb[0].mxu0 %v663
      %v843 = vpop.f32.mrb[0].mxu0
      %v844 = vadd.f32 0.0, %v843
      %v845 = vpop.f32.mrb[0].mxu0
      %v846 = vpop.f32.mrb[0].mxu0
      %v847 = vadd.f32 0.0, %v846
      %v848 = vpop.f32.mrb[0].mxu0
      %849 = vmatprep.mubr.bf16.mxu0 0
      %850 = vmatmul.mubr.bf16.gmra.mrb[0].mxu0 %v666
      %v851 = vpop.f32.mrb[0].mxu0
      %v852 = vadd.f32 0.0, %v851
      %v853 = vpop.f32.mrb[0].mxu0
      %v854 = vpop.f32.mrb[0].mxu0
      %v855 = vadd.f32 0.0, %v854
      %v856 = vpop.f32.mrb[0].mxu0
      %857 = vmatprep.mubr.bf16.mxu0 0
      %858 = vmatmul.mubr.bf16.gmra.mrb[0].mxu0 %v669
      %v859 = vpop.f32.mrb[0].mxu0
      %v860 = vadd.f32 0.0, %v859
      %v861 = vpop.f32.mrb[0].mxu0
      %v862 = vpop.f32.mrb[0].mxu0
      %v863 = vadd.f32 0.0, %v862
      %v864 = vpop.f32.mrb[0].mxu0
      %865 = vmatprep.mubr.bf16.mxu0 0
      %866 = vmatmul.mubr.bf16.gmra.mrb[0].mxu0 %v672
      %v867 = vpop.f32.mrb[0].mxu0
      %v868 = vadd.f32 0.0, %v867
      %v869 = vpop.f32.mrb[0].mxu0
      %v870 = vpop.f32.mrb[0].mxu0
      %v871 = vadd.f32 0.0, %v870
      %v872 = vpop.f32.mrb[0].mxu0
      %873 = vmatprep.mubr.bf16.mxu0 0
      %874 = vmatmul.mubr.bf16.gmra.mrb[0].mxu0 %v675
      %v875 = vpop.f32.mrb[0].mxu0
      %v876 = vadd.f32 0.0, %v875
      %v877 = vpop.f32.mrb[0].mxu0
      %v878 = vpop.f32.mrb[0].mxu0
      %v879 = vadd.f32 0.0, %v878
      %v880 = vpop.f32.mrb[0].mxu0
      %881 = vmatprep.mubr.bf16.mxu0 0
      %882 = vmatmul.mubr.bf16.gmra.mrb[0].mxu0 %v678
      %v883 = vpop.f32.mrb[0].mxu0
      %v884 = vadd.f32 0.0, %v883
      %v885 = vpop.f32.mrb[0].mxu0
      %v886 = vpop.f32.mrb[0].mxu0
      %v887 = vadd.f32 0.0, %v886
      %v888 = vpop.f32.mrb[0].mxu0
      %889 = vmatprep.mubr.bf16.mxu0 0
      %890 = vmatmul.mubr.bf16.gmra.mrb[0].mxu0 %v681
      %v891 = vpop.f32.mrb[0].mxu0
      %v892 = vadd.f32 0.0, %v891
      %v893 = vpop.f32.mrb[0].mxu0
      %v894 = vpop.f32.mrb[0].mxu0
      %v895 = vadd.f32 0.0, %v894
      %v896 = vpop.f32.mrb[0].mxu0
      %897 = vmatprep.mubr.bf16.mxu0 0
      %898 = vmatmul.mubr.bf16.gmra.mrb[0].mxu0 %v684
      %v899 = vpop.f32.mrb[0].mxu0
      %v900 = vadd.f32 0.0, %v899
      %v901 = vpop.f32.mrb[0].mxu0
      %v902 = vpop.f32.mrb[0].mxu0
      %v903 = vadd.f32 0.0, %v902
      %v904 = vpop.f32.mrb[0].mxu0
      %905 = vmatprep.mubr.bf16.mxu0 0
      %906 = vmatmul.mubr.bf16.gmra.mrb[0].mxu0 %v687
      %v907 = vpop.f32.mrb[0].mxu0
      %v908 = vadd.f32 0.0, %v907
      %v909 = vpop.f32.mrb[0].mxu0
      %v910 = vpop.f32.mrb[0].mxu0
      %v911 = vadd.f32 0.0, %v910
      %v912 = vpop.f32.mrb[0].mxu0
      %913 = vdwg.mxu0
      %v918 = vunpack.c.l.b16 %v274
      %v919 = vunpack.c.l.b16 %v275
      %v920 = vunpack.c.l.b16 %v276
      %v921 = vunpack.c.l.b16 %v277
      %v922 = vpack.c.b16 %v919, %v918
      %v923 = vpack.c.b16 %v921, %v920
      %v926 = vsel %vm616, %v382, 0
      %v928 = vsel %vm616, %v383, 0
      %v930 = vsel %vm616, %v384, 0
      %v932 = vsel %vm616, %v385, 0
      %v934 = vsel %vm616, %v386, 0
      %v936 = vsel %vm616, %v387, 0
      %v938 = vsel %vm616, %v388, 0
      %v940 = vsel %vm616, %v389, 0
      %v942 = vsel %vm616, %v390, 0
      %v944 = vsel %vm616, %v391, 0
      %v946 = vsel %vm616, %v392, 0
      %v948 = vsel %vm616, %v393, 0
      %v950 = vsel %vm616, %v394, 0
      %v952 = vsel %vm616, %v395, 0
      %v954 = vsel %vm616, %v396, 0
      %v956 = vsel %vm616, %v397, 0
      %v958 = vsel %vm616, %v398, 0
      %v960 = vsel %vm616, %v399, 0
      %v962 = vsel %vm616, %v400, 0
      %v964 = vsel %vm616, %v401, 0
      %v966 = vsel %vm616, %v402, 0
      %v968 = vsel %vm616, %v403, 0
      %v970 = vsel %vm616, %v404, 0
      %v972 = vsel %vm616, %v405, 0
      %974 = vmatprep.subr.bf16.mxu0 0
      %975 = vmatpush1.bf16.msra.mxu0 %v922
      %976 = vmatprep.subr.bf16.mxu0 0
      %977 = vmatpush1.bf16.msra.mxu0 %v923
      %978 = vmatprep.subr.bf16.mxu0 0
      %979 = vmatpush1.bf16.msra.mxu0 0
      %980 = vmatprep.subr.bf16.mxu0 0
      %981 = vmatpush1.bf16.msra.mxu0 0
      %982 = vmatprep.subr.bf16.mxu0 0
      %983 = vmatpush1.bf16.msra.mxu0 0
      %984 = vmatprep.subr.bf16.mxu0 0
      %985 = vmatpush1.bf16.msra.mxu0 0
      %986 = vmatprep.subr.bf16.mxu0 0
      %987 = vmatpush1.bf16.msra.mxu0 0
      %988 = vmatprep.subr.bf16.mxu0 0
      %989 = vmatpush1.bf16.msra.mxu0 0
      %990 = vmatprep.subr.bf16.mxu0 0
      %991 = vmatpush1.bf16.msra.mxu0 0
      %992 = vmatprep.subr.bf16.mxu0 0
      %993 = vmatpush1.bf16.msra.mxu0 0
      %994 = vmatprep.subr.bf16.mxu0 0
      %995 = vmatpush1.bf16.msra.mxu0 0
      %996 = vmatprep.subr.bf16.mxu0 0
      %997 = vmatpush1.bf16.msra.mxu0 0
      %998 = vmatprep.subr.bf16.mxu0 0
      %999 = vmatpush1.bf16.msra.mxu0 0
      %1000 = vmatprep.subr.bf16.mxu0 0
      %1001 = vmatpush1.bf16.msra.mxu0 0
      %1002 = vmatprep.subr.bf16.mxu0 0
      %1003 = vmatpush1.bf16.msra.mxu0 0
      %1004 = vmatprep.subr.bf16.mxu0 0
      %1005 = vmatpush1.bf16.msra.mxu0 0
      %1006 = vmatprep.mubr.bf16.mxu0 0
      %1007 = vmatmul.mubr.bf16.gmra.mrb[0].mxu0 %v926
      %v1008 = vpop.f32.mrb[0].mxu0
      %v1009 = vadd.f32 %v724, %v1008
      %v1010 = vpop.f32.mrb[0].mxu0
      %v1011 = vpop.f32.mrb[0].mxu0
      %v1012 = vadd.f32 %v727, %v1011
      %v1013 = vpop.f32.mrb[0].mxu0
      %1014 = vmatprep.mubr.bf16.mxu0 0
      %1015 = vmatmul.mubr.bf16.gmra.mrb[0].mxu0 %v928
      %v1016 = vpop.f32.mrb[0].mxu0
      %v1017 = vadd.f32 %v732, %v1016
      %v1018 = vpop.f32.mrb[0].mxu0
      %v1019 = vpop.f32.mrb[0].mxu0
      %v1020 = vadd.f32 %v735, %v1019
      %v1021 = vpop.f32.mrb[0].mxu0
      %1022 = vmatprep.mubr.bf16.mxu0 0
      %1023 = vmatmul.mubr.bf16.gmra.mrb[0].mxu0 %v930
      %v1024 = vpop.f32.mrb[0].mxu0
      %v1025 = vadd.f32 %v740, %v1024
      %v1026 = vpop.f32.mrb[0].mxu0
      %v1027 = vpop.f32.mrb[0].mxu0
      %v1028 = vadd.f32 %v743, %v1027
      %v1029 = vpop.f32.mrb[0].mxu0
      %1030 = vmatprep.mubr.bf16.mxu0 0
      %1031 = vmatmul.mubr.bf16.gmra.mrb[0].mxu0 %v932
      %v1032 = vpop.f32.mrb[0].mxu0
      %v1033 = vadd.f32 %v748, %v1032
      %v1034 = vpop.f32.mrb[0].mxu0
      %v1035 = vpop.f32.mrb[0].mxu0
      %v1036 = vadd.f32 %v751, %v1035
      %v1037 = vpop.f32.mrb[0].mxu0
      %1038 = vmatprep.mubr.bf16.mxu0 0
      %1039 = vmatmul.mubr.bf16.gmra.mrb[0].mxu0 %v934
      %v1040 = vpop.f32.mrb[0].mxu0
      %v1041 = vadd.f32 %v756, %v1040
      %v1042 = vpop.f32.mrb[0].mxu0
      %v1043 = vpop.f32.mrb[0].mxu0
      %v1044 = vadd.f32 %v759, %v1043
      %v1045 = vpop.f32.mrb[0].mxu0
      %1046 = vmatprep.mubr.bf16.mxu0 0
      %1047 = vmatmul.mubr.bf16.gmra.mrb[0].mxu0 %v936
      %v1048 = vpop.f32.mrb[0].mxu0
      %v1049 = vadd.f32 %v764, %v1048
      %v1050 = vpop.f32.mrb[0].mxu0
      %v1051 = vpop.f32.mrb[0].mxu0
      %v1052 = vadd.f32 %v767, %v1051
      %v1053 = vpop.f32.mrb[0].mxu0
      %1054 = vmatprep.mubr.bf16.mxu0 0
      %1055 = vmatmul.mubr.bf16.gmra.mrb[0].mxu0 %v938
      %v1056 = vpop.f32.mrb[0].mxu0
      %v1057 = vadd.f32 %v772, %v1056
      %v1058 = vpop.f32.mrb[0].mxu0
      %v1059 = vpop.f32.mrb[0].mxu0
      %v1060 = vadd.f32 %v775, %v1059
      %v1061 = vpop.f32.mrb[0].mxu0
      %1062 = vmatprep.mubr.bf16.mxu0 0
      %1063 = vmatmul.mubr.bf16.gmra.mrb[0].mxu0 %v940
      %v1064 = vpop.f32.mrb[0].mxu0
      %v1065 = vadd.f32 %v780, %v1064
      %v1066 = vpop.f32.mrb[0].mxu0
      %v1067 = vpop.f32.mrb[0].mxu0
      %v1068 = vadd.f32 %v783, %v1067
      %v1069 = vpop.f32.mrb[0].mxu0
      %1070 = vmatprep.mubr.bf16.mxu0 0
      %1071 = vmatmul.mubr.bf16.gmra.mrb[0].mxu0 %v942
      %v1072 = vpop.f32.mrb[0].mxu0
      %v1073 = vadd.f32 %v788, %v1072
      %v1074 = vpop.f32.mrb[0].mxu0
      %v1075 = vpop.f32.mrb[0].mxu0
      %v1076 = vadd.f32 %v791, %v1075
      %v1077 = vpop.f32.mrb[0].mxu0
      %1078 = vmatprep.mubr.bf16.mxu0 0
      %1079 = vmatmul.mubr.bf16.gmra.mrb[0].mxu0 %v944
      %v1080 = vpop.f32.mrb[0].mxu0
      %v1081 = vadd.f32 %v796, %v1080
      %v1082 = vpop.f32.mrb[0].mxu0
      %v1083 = vpop.f32.mrb[0].mxu0
      %v1084 = vadd.f32 %v799, %v1083
      %v1085 = vpop.f32.mrb[0].mxu0
      %1086 = vmatprep.mubr.bf16.mxu0 0
      %1087 = vmatmul.mubr.bf16.gmra.mrb[0].mxu0 %v946
      %v1088 = vpop.f32.mrb[0].mxu0
      %v1089 = vadd.f32 %v804, %v1088
      %v1090 = vpop.f32.mrb[0].mxu0
      %v1091 = vpop.f32.mrb[0].mxu0
      %v1092 = vadd.f32 %v807, %v1091
      %v1093 = vpop.f32.mrb[0].mxu0
      %1094 = vmatprep.mubr.bf16.mxu0 0
      %1095 = vmatmul.mubr.bf16.gmra.mrb[0].mxu0 %v948
      %v1096 = vpop.f32.mrb[0].mxu0
      %v1097 = vadd.f32 %v812, %v1096
      %v1098 = vpop.f32.mrb[0].mxu0
      %v1099 = vpop.f32.mrb[0].mxu0
      %v1100 = vadd.f32 %v815, %v1099
      %v1101 = vpop.f32.mrb[0].mxu0
      %1102 = vmatprep.mubr.bf16.mxu0 0
      %1103 = vmatmul.mubr.bf16.gmra.mrb[0].mxu0 %v950
      %v1104 = vpop.f32.mrb[0].mxu0
      %v1105 = vadd.f32 %v820, %v1104
      %v1106 = vpop.f32.mrb[0].mxu0
      %v1107 = vpop.f32.mrb[0].mxu0
      %v1108 = vadd.f32 %v823, %v1107
      %v1109 = vpop.f32.mrb[0].mxu0
      %1110 = vmatprep.mubr.bf16.mxu0 0
      %1111 = vmatmul.mubr.bf16.gmra.mrb[0].mxu0 %v952
      %v1112 = vpop.f32.mrb[0].mxu0
      %v1113 = vadd.f32 %v828, %v1112
      %v1114 = vpop.f32.mrb[0].mxu0
      %v1115 = vpop.f32.mrb[0].mxu0
      %v1116 = vadd.f32 %v831, %v1115
      %v1117 = vpop.f32.mrb[0].mxu0
      %1118 = vmatprep.mubr.bf16.mxu0 0
      %1119 = vmatmul.mubr.bf16.gmra.mrb[0].mxu0 %v954
      %v1120 = vpop.f32.mrb[0].mxu0
      %v1121 = vadd.f32 %v836, %v1120
      %v1122 = vpop.f32.mrb[0].mxu0
      %v1123 = vpop.f32.mrb[0].mxu0
      %v1124 = vadd.f32 %v839, %v1123
      %v1125 = vpop.f32.mrb[0].mxu0
      %1126 = vmatprep.mubr.bf16.mxu0 0
      %1127 = vmatmul.mubr.bf16.gmra.mrb[0].mxu0 %v956
      %v1128 = vpop.f32.mrb[0].mxu0
      %v1129 = vadd.f32 %v844, %v1128
      %v1130 = vpop.f32.mrb[0].mxu0
      %v1131 = vpop.f32.mrb[0].mxu0
      %v1132 = vadd.f32 %v847, %v1131
      %v1133 = vpop.f32.mrb[0].mxu0
      %1134 = vmatprep.mubr.bf16.mxu0 0
      %1135 = vmatmul.mubr.bf16.gmra.mrb[0].mxu0 %v958
      %v1136 = vpop.f32.mrb[0].mxu0
      %v1137 = vadd.f32 %v852, %v1136
      %v1138 = vpop.f32.mrb[0].mxu0
      %v1139 = vpop.f32.mrb[0].mxu0
      %v1140 = vadd.f32 %v855, %v1139
      %v1141 = vpop.f32.mrb[0].mxu0
      %1142 = vmatprep.mubr.bf16.mxu0 0
      %1143 = vmatmul.mubr.bf16.gmra.mrb[0].mxu0 %v960
      %v1144 = vpop.f32.mrb[0].mxu0
      %v1145 = vadd.f32 %v860, %v1144
      %v1146 = vpop.f32.mrb[0].mxu0
      %v1147 = vpop.f32.mrb[0].mxu0
      %v1148 = vadd.f32 %v863, %v1147
      %v1149 = vpop.f32.mrb[0].mxu0
      %1150 = vmatprep.mubr.bf16.mxu0 0
      %1151 = vmatmul.mubr.bf16.gmra.mrb[0].mxu0 %v962
      %v1152 = vpop.f32.mrb[0].mxu0
      %v1153 = vadd.f32 %v868, %v1152
      %v1154 = vpop.f32.mrb[0].mxu0
      %v1155 = vpop.f32.mrb[0].mxu0
      %v1156 = vadd.f32 %v871, %v1155
      %v1157 = vpop.f32.mrb[0].mxu0
      %1158 = vmatprep.mubr.bf16.mxu0 0
      %1159 = vmatmul.mubr.bf16.gmra.mrb[0].mxu0 %v964
      %v1160 = vpop.f32.mrb[0].mxu0
      %v1161 = vadd.f32 %v876, %v1160
      %v1162 = vpop.f32.mrb[0].mxu0
      %v1163 = vpop.f32.mrb[0].mxu0
      %v1164 = vadd.f32 %v879, %v1163
      %v1165 = vpop.f32.mrb[0].mxu0
      %1166 = vmatprep.mubr.bf16.mxu0 0
      %1167 = vmatmul.mubr.bf16.gmra.mrb[0].mxu0 %v966
      %v1168 = vpop.f32.mrb[0].mxu0
      %v1169 = vadd.f32 %v884, %v1168
      %v1170 = vpop.f32.mrb[0].mxu0
      %v1171 = vpop.f32.mrb[0].mxu0
      %v1172 = vadd.f32 %v887, %v1171
      %v1173 = vpop.f32.mrb[0].mxu0
      %1174 = vmatprep.mubr.bf16.mxu0 0
      %1175 = vmatmul.mubr.bf16.gmra.mrb[0].mxu0 %v968
      %v1176 = vpop.f32.mrb[0].mxu0
      %v1177 = vadd.f32 %v892, %v1176
      %v1178 = vpop.f32.mrb[0].mxu0
      %v1179 = vpop.f32.mrb[0].mxu0
      %v1180 = vadd.f32 %v895, %v1179
      %v1181 = vpop.f32.mrb[0].mxu0
      %1182 = vmatprep.mubr.bf16.mxu0 0
      %1183 = vmatmul.mubr.bf16.gmra.mrb[0].mxu0 %v970
      %v1184 = vpop.f32.mrb[0].mxu0
      %v1185 = vadd.f32 %v900, %v1184
      %v1186 = vpop.f32.mrb[0].mxu0
      %v1187 = vpop.f32.mrb[0].mxu0
      %v1188 = vadd.f32 %v903, %v1187
      %v1189 = vpop.f32.mrb[0].mxu0
      %1190 = vmatprep.mubr.bf16.mxu0 0
      %1191 = vmatmul.mubr.bf16.gmra.mrb[0].mxu0 %v972
      %v1192 = vpop.f32.mrb[0].mxu0
      %v1193 = vadd.f32 %v908, %v1192
      %v1194 = vpop.f32.mrb[0].mxu0
      %v1195 = vpop.f32.mrb[0].mxu0
      %v1196 = vadd.f32 %v911, %v1195
      %v1197 = vpop.f32.mrb[0].mxu0
      %1198 = vdwg.mxu0
      %vm1199 = vcmask 523264
      %1200 = vst.msk [vmem:[#allocation2] sm:$0xff] %vm1199, %v1009
      %1201 = vst.msk [vmem:[#allocation2 + $0x8] sm:$0xff] %vm1199, %v1012
      %1202 = vst.msk [vmem:[#allocation2 + $0x10] sm:$0xff] %vm1199, %v1017
      %1203 = vst.msk [vmem:[#allocation2 + $0x18] sm:$0xff] %vm1199, %v1020
      %1204 = vst.msk [vmem:[#allocation2 + $0x20] sm:$0xff] %vm1199, %v1025
      %1205 = vst.msk [vmem:[#allocation2 + $0x28] sm:$0xff] %vm1199, %v1028
      %1206 = vst.msk [vmem:[#allocation2 + $0x30] sm:$0xff] %vm1199, %v1033
      %1207 = vst.msk [vmem:[#allocation2 + $0x38] sm:$0xff] %vm1199, %v1036
      %1208 = vst.msk [vmem:[#allocation2 + $0x40] sm:$0xff] %vm1199, %v1041
      %1209 = vst.msk [vmem:[#allocation2 + $0x48] sm:$0xff] %vm1199, %v1044
      %1210 = vst.msk [vmem:[#allocation2 + $0x50] sm:$0xff] %vm1199, %v1049
      %1211 = vst.msk [vmem:[#allocation2 + $0x58] sm:$0xff] %vm1199, %v1052
      %1212 = vst.msk [vmem:[#allocation2 + $0x60] sm:$0xff] %vm1199, %v1057
      %1213 = vst.msk [vmem:[#allocation2 + $0x68] sm:$0xff] %vm1199, %v1060
      %1214 = vst.msk [vmem:[#allocation2 + $0x70] sm:$0xff] %vm1199, %v1065
      %1215 = vst.msk [vmem:[#allocation2 + $0x78] sm:$0xff] %vm1199, %v1068
      %1216 = vst.msk [vmem:[#allocation2 + $0x80] sm:$0xff] %vm1199, %v1073
      %1217 = vst.msk [vmem:[#allocation2 + $0x88] sm:$0xff] %vm1199, %v1076
      %1218 = vst.msk [vmem:[#allocation2 + $0x90] sm:$0xff] %vm1199, %v1081
      %1219 = vst.msk [vmem:[#allocation2 + $0x98] sm:$0xff] %vm1199, %v1084
      %1220 = vst.msk [vmem:[#allocation2 + $0xa0] sm:$0xff] %vm1199, %v1089
      %1221 = vst.msk [vmem:[#allocation2 + $0xa8] sm:$0xff] %vm1199, %v1092
      %1222 = vst.msk [vmem:[#allocation2 + $0xb0] sm:$0xff] %vm1199, %v1097
      %1223 = vst.msk [vmem:[#allocation2 + $0xb8] sm:$0xff] %vm1199, %v1100
      %1224 = vst.msk [vmem:[#allocation2 + $0xc0] sm:$0xff] %vm1199, %v1105
      %1225 = vst.msk [vmem:[#allocation2 + $0xc8] sm:$0xff] %vm1199, %v1108
      %1226 = vst.msk [vmem:[#allocation2 + $0xd0] sm:$0xff] %vm1199, %v1113
      %1227 = vst.msk [vmem:[#allocation2 + $0xd8] sm:$0xff] %vm1199, %v1116
      %1228 = vst.msk [vmem:[#allocation2 + $0xe0] sm:$0xff] %vm1199, %v1121
      %1229 = vst.msk [vmem:[#allocation2 + $0xe8] sm:$0xff] %vm1199, %v1124
      %1230 = vst.msk [vmem:[#allocation2 + $0xf0] sm:$0xff] %vm1199, %v1129
      %1231 = vst.msk [vmem:[#allocation2 + $0xf8] sm:$0xff] %vm1199, %v1132
      %1232 = vst.msk [vmem:[#allocation2 + $0x100] sm:$0xff] %vm1199, %v1137
      %1233 = vst.msk [vmem:[#allocation2 + $0x108] sm:$0xff] %vm1199, %v1140
      %1234 = vst.msk [vmem:[#allocation2 + $0x110] sm:$0xff] %vm1199, %v1145
      %1235 = vst.msk [vmem:[#allocation2 + $0x118] sm:$0xff] %vm1199, %v1148
      %1236 = vst.msk [vmem:[#allocation2 + $0x120] sm:$0xff] %vm1199, %v1153
      %1237 = vst.msk [vmem:[#allocation2 + $0x128] sm:$0xff] %vm1199, %v1156
      %1238 = vst.msk [vmem:[#allocation2 + $0x130] sm:$0xff] %vm1199, %v1161
      %1239 = vst.msk [vmem:[#allocation2 + $0x138] sm:$0xff] %vm1199, %v1164
      %1240 = vst.msk [vmem:[#allocation2 + $0x140] sm:$0xff] %vm1199, %v1169
      %1241 = vst.msk [vmem:[#allocation2 + $0x148] sm:$0xff] %vm1199, %v1172
      %1242 = vst.msk [vmem:[#allocation2 + $0x150] sm:$0xff] %vm1199, %v1177
      %1243 = vst.msk [vmem:[#allocation2 + $0x158] sm:$0xff] %vm1199, %v1180
      %1244 = vst.msk [vmem:[#allocation2 + $0x160] sm:$0xff] %vm1199, %v1185
      %1245 = vst.msk [vmem:[#allocation2 + $0x168] sm:$0xff] %vm1199, %v1188
      %1246 = vst.msk [vmem:[#allocation2 + $0x170] sm:$0xff] %vm1199, %v1193
      %1247 = vst.msk [vmem:[#allocation2 + $0x178] sm:$0xff] %vm1199, %v1196
      %v1248 = vld [vmem:[#allocation2] sm:$0xff]
      %v1249 = vld [vmem:[#allocation2 + $0x8] sm:$0xff]
      %v1250 = vld [vmem:[#allocation2 + $0x10] sm:$0xff]
      %v1251 = vld [vmem:[#allocation2 + $0x18] sm:$0xff]
      %v1252 = vld [vmem:[#allocation2 + $0x20] sm:$0xff]
      %v1253 = vld [vmem:[#allocation2 + $0x28] sm:$0xff]
      %v1254 = vld [vmem:[#allocation2 + $0x30] sm:$0xff]
      %v1255 = vld [vmem:[#allocation2 + $0x38] sm:$0xff]
      %v1256 = vld [vmem:[#allocation2 + $0x40] sm:$0xff]
      %v1257 = vld [vmem:[#allocation2 + $0x48] sm:$0xff]
      %v1258 = vld [vmem:[#allocation2 + $0x50] sm:$0xff]
      %v1259 = vld [vmem:[#allocation2 + $0x58] sm:$0xff]
      %v1260 = vld [vmem:[#allocation2 + $0x60] sm:$0xff]
      %v1261 = vld [vmem:[#allocation2 + $0x68] sm:$0xff]
      %v1262 = vld [vmem:[#allocation2 + $0x70] sm:$0xff]
      %v1263 = vld [vmem:[#allocation2 + $0x78] sm:$0xff]
      %v1264 = vld [vmem:[#allocation2 + $0x80] sm:$0xff]
      %v1265 = vld [vmem:[#allocation2 + $0x88] sm:$0xff]
      %v1266 = vld [vmem:[#allocation2 + $0x90] sm:$0xff]
      %v1267 = vld [vmem:[#allocation2 + $0x98] sm:$0xff]
      %v1268 = vld [vmem:[#allocation2 + $0xa0] sm:$0xff]
      %v1269 = vld [vmem:[#allocation2 + $0xa8] sm:$0xff]
      %v1270 = vld [vmem:[#allocation2 + $0xb0] sm:$0xff]
      %v1271 = vld [vmem:[#allocation2 + $0xb8] sm:$0xff]
      %v1272 = vld [vmem:[#allocation2 + $0xc0] sm:$0xff]
      %v1273 = vld [vmem:[#allocation2 + $0xc8] sm:$0xff]
      %v1274 = vld [vmem:[#allocation2 + $0xd0] sm:$0xff]
      %v1275 = vld [vmem:[#allocation2 + $0xd8] sm:$0xff]
      %v1276 = vld [vmem:[#allocation2 + $0xe0] sm:$0xff]
      %v1277 = vld [vmem:[#allocation2 + $0xe8] sm:$0xff]
      %v1278 = vld [vmem:[#allocation2 + $0xf0] sm:$0xff]
      %v1279 = vld [vmem:[#allocation2 + $0xf8] sm:$0xff]
      %v1280 = vld [vmem:[#allocation2 + $0x100] sm:$0xff]
      %v1281 = vld [vmem:[#allocation2 + $0x108] sm:$0xff]
      %v1282 = vld [vmem:[#allocation2 + $0x110] sm:$0xff]
      %v1283 = vld [vmem:[#allocation2 + $0x118] sm:$0xff]
      %v1284 = vld [vmem:[#allocation2 + $0x120] sm:$0xff]
      %v1285 = vld [vmem:[#allocation2 + $0x128] sm:$0xff]
      %v1286 = vld [vmem:[#allocation2 + $0x130] sm:$0xff]
      %v1287 = vld [vmem:[#allocation2 + $0x138] sm:$0xff]
      %v1288 = vld [vmem:[#allocation2 + $0x140] sm:$0xff]
      %v1289 = vld [vmem:[#allocation2 + $0x148] sm:$0xff]
      %v1290 = vld [vmem:[#allocation2 + $0x150] sm:$0xff]
      %v1291 = vld [vmem:[#allocation2 + $0x158] sm:$0xff]
      %v1292 = vld [vmem:[#allocation2 + $0x160] sm:$0xff]
      %v1293 = vld [vmem:[#allocation2 + $0x168] sm:$0xff]
      %v1294 = vld [vmem:[#allocation2 + $0x170] sm:$0xff]
      %v1295 = vld [vmem:[#allocation2 + $0x178] sm:$0xff]
      %v1296 = vld [vmem:[%s219] sm:$0xe]
      %v1297 = vld [vmem:[%s219 + $0x4] sm:$0xf]
      %v1298 = vld [vmem:[%s219 + $0x8] sm:$0xf]
      %v1299 = vld [vmem:[%s219 + $0xc] sm:$0xf]
      %v1300 = vld [vmem:[%s219 + $0x10] sm:$0xf]
      %v1301 = vld [vmem:[%s219 + $0x14] sm:$0xf]
      %v1302 = vld [vmem:[%s219 + $0x18] sm:$0xf]
      %v1303 = vld [vmem:[%s219 + $0x1c] sm:$0xf]
      %v1304 = vld [vmem:[%s219 + $0x20] sm:$0xf]
      %v1305 = vld [vmem:[%s219 + $0x24] sm:$0xf]
      %v1306 = vld [vmem:[%s219 + $0x28] sm:$0xf]
      %v1307 = vld [vmem:[%s219 + $0x2c] sm:$0xf]
      %v1308 = vld [vmem:[%s219 + $0x30] sm:$0xf]
      %v1309 = vld [vmem:[%s219 + $0x34] sm:$0xf]
      %v1310 = vld [vmem:[%s219 + $0x38] sm:$0xf]
      %v1311 = vld [vmem:[%s219 + $0x3c] sm:$0xf]
      %v1312 = vld [vmem:[%s219 + $0x40] sm:$0xf]
      %v1313 = vld [vmem:[%s219 + $0x44] sm:$0xf]
      %v1314 = vld [vmem:[%s219 + $0x48] sm:$0xf]
      %v1315 = vld [vmem:[%s219 + $0x4c] sm:$0xf]
      %v1316 = vld [vmem:[%s219 + $0x50] sm:$0xf]
      %v1317 = vld [vmem:[%s219 + $0x54] sm:$0xf]
      %v1318 = vld [vmem:[%s219 + $0x58] sm:$0xf]
      %v1319 = vld [vmem:[%s219 + $0x5c] sm:$0xf]
      %v1320 = vld [vmem:[%s219 + $0x60] sm:$0xf]
      %v1321 = vld [vmem:[%s219 + $0x64] sm:$0xf]
      %v1322 = vld [vmem:[%s219 + $0x68] sm:$0xf]
      %v1323 = vld [vmem:[%s219 + $0x6c] sm:$0xf]
      %v1324 = vld [vmem:[%s219 + $0x70] sm:$0xf]
      %v1325 = vld [vmem:[%s219 + $0x74] sm:$0xf]
      %v1326 = vld [vmem:[%s219 + $0x78] sm:$0xf]
      %v1327 = vld [vmem:[%s219 + $0x7c] sm:$0xf]
      %v1328 = vld [vmem:[%s219 + $0x80] sm:$0xf]
      %v1329 = vld [vmem:[%s219 + $0x84] sm:$0xf]
      %v1330 = vld [vmem:[%s219 + $0x88] sm:$0xf]
      %v1331 = vld [vmem:[%s219 + $0x8c] sm:$0xf]
      %v1332 = vld [vmem:[%s219 + $0x90] sm:$0xf]
      %v1333 = vld [vmem:[%s219 + $0x94] sm:$0xf]
      %v1334 = vld [vmem:[%s219 + $0x98] sm:$0xf]
      %v1335 = vld [vmem:[%s219 + $0x9c] sm:$0xf]
      %v1336 = vld [vmem:[%s219 + $0xa0] sm:$0xf]
      %v1337 = vld [vmem:[%s219 + $0xa4] sm:$0xf]
      %v1338 = vld [vmem:[%s219 + $0xa8] sm:$0xf]
      %v1339 = vld [vmem:[%s219 + $0xac] sm:$0xf]
      %v1340 = vld [vmem:[%s219 + $0xb0] sm:$0xf]
      %v1341 = vld [vmem:[%s219 + $0xb4] sm:$0xf]
      %v1342 = vld [vmem:[%s219 + $0xb8] sm:$0xf]
      %v1343 = vld [vmem:[%s219 + $0xbc] sm:$0xf]
      %v1344 = vld [vmem:[%s219 + $0xc0] sm:$0x1]
      %s1345 = scalar_lea.vmem %s1, 32
      %v1346 = vld [vmem:[%s1345] sm:$0xf]
      %v1347 = vld [vmem:[%s1345 + $0x4] sm:$0xf]
      %v1348 = vld [vmem:[%s1345 + $0x8] sm:$0xf]
      %v1349 = vld [vmem:[%s1345 + $0xc] sm:$0xf]
      %v1350 = vld [vmem:[%s219 + $0xc0] sm:$0xf]
      %v1351 = vld [vmem:[%s219 + $0xc4] sm:$0xf]
      %v1352 = vld [vmem:[%s219 + $0xc8] sm:$0xf]
      %s1353 = scalar_lea.vmem %s1, 48
      %v1354 = vld [vmem:[%s1353] sm:$0xf]
      %v1355 = vld [vmem:[%s1353 + $0x4] sm:$0xf]
      %v1356 = vld [vmem:[%s1353 + $0x8] sm:$0xf]
      %v1357 = vld [vmem:[%s1353 + $0xc] sm:$0xf]
      %v1406 = vunpack.c.l.b16 %v1299
      %v1407 = vunpack.c.l.b16 %v1300
      %v1408 = vunpack.c.l.b16 %v1301
      %v1409 = vunpack.c.l.b16 %v1302
      %v1410 = vunpack.c.l.b16 %v1303
      %v1411 = vunpack.c.l.b16 %v1304
      %v1412 = vunpack.c.l.b16 %v1305
      %v1413 = vunpack.c.l.b16 %v1306
      %v1414 = vunpack.c.l.b16 %v1307
      %v1415 = vunpack.c.l.b16 %v1308
      %v1416 = vunpack.c.l.b16 %v1309
      %v1417 = vunpack.c.l.b16 %v1310
      %v1418 = vunpack.c.l.b16 %v1311
      %v1419 = vunpack.c.l.b16 %v1312
      %v1420 = vunpack.c.l.b16 %v1313
      %v1421 = vunpack.c.l.b16 %v1314
      %v1422 = vunpack.c.l.b16 %v1315
      %v1423 = vunpack.c.l.b16 %v1316
      %v1424 = vunpack.c.l.b16 %v1317
      %v1425 = vunpack.c.l.b16 %v1318
      %v1426 = vunpack.c.l.b16 %v1319
      %v1427 = vunpack.c.l.b16 %v1320
      %v1428 = vunpack.c.l.b16 %v1321
      %v1429 = vunpack.c.l.b16 %v1322
      %v1430 = vunpack.c.l.b16 %v1323
      %v1431 = vunpack.c.l.b16 %v1324
      %v1432 = vunpack.c.l.b16 %v1325
      %v1433 = vunpack.c.l.b16 %v1326
      %v1434 = vunpack.c.l.b16 %v1327
      %v1435 = vunpack.c.l.b16 %v1328
      %v1436 = vunpack.c.l.b16 %v1329
      %v1437 = vunpack.c.l.b16 %v1330
      %v1438 = vunpack.c.l.b16 %v1331
      %v1439 = vunpack.c.l.b16 %v1332
      %v1440 = vunpack.c.l.b16 %v1333
      %v1441 = vunpack.c.l.b16 %v1334
      %v1442 = vunpack.c.l.b16 %v1335
      %v1443 = vunpack.c.l.b16 %v1336
      %v1444 = vunpack.c.l.b16 %v1337
      %v1445 = vunpack.c.l.b16 %v1338
      %v1446 = vunpack.c.l.b16 %v1339
      %v1447 = vunpack.c.l.b16 %v1340
      %v1448 = vunpack.c.l.b16 %v1341
      %v1449 = vunpack.c.l.b16 %v1342
      %v1450 = vunpack.c.l.b16 %v1343
      %v1451 = vunpack.c.l.b16 %v1350
      %v1452 = vunpack.c.l.b16 %v1351
      %v1453 = vunpack.c.l.b16 %v1352
      %v1454 = vpack.c.b16 %v1407, %v1406
      %v1455 = vpack.c.b16 %v1409, %v1408
      %v1456 = vpack.c.b16 %v1411, %v1410
      %v1457 = vpack.c.b16 %v1413, %v1412
      %v1458 = vpack.c.b16 %v1415, %v1414
      %v1459 = vpack.c.b16 %v1417, %v1416
      %v1460 = vpack.c.b16 %v1419, %v1418
      %v1461 = vpack.c.b16 %v1421, %v1420
      %v1462 = vpack.c.b16 %v1423, %v1422
      %v1463 = vpack.c.b16 %v1425, %v1424
      %v1464 = vpack.c.b16 %v1427, %v1426
      %v1465 = vpack.c.b16 %v1429, %v1428
      %v1466 = vpack.c.b16 %v1431, %v1430
      %v1467 = vpack.c.b16 %v1433, %v1432
      %v1468 = vpack.c.b16 %v1435, %v1434
      %v1469 = vpack.c.b16 %v1437, %v1436
      %v1470 = vpack.c.b16 %v1439, %v1438
      %v1471 = vpack.c.b16 %v1441, %v1440
      %v1472 = vpack.c.b16 %v1443, %v1442
      %v1473 = vpack.c.b16 %v1445, %v1444
      %v1474 = vpack.c.b16 %v1447, %v1446
      %v1475 = vpack.c.b16 %v1449, %v1448
      %v1476 = vpack.c.b16 %v1451, %v1450
      %v1477 = vpack.c.b16 %v1453, %v1452
      %v1482 = vunpack.c.l.b16 %v1354
      %v1483 = vunpack.c.l.b16 %v1355
      %v1484 = vunpack.c.l.b16 %v1356
      %v1485 = vunpack.c.l.b16 %v1357
      %v1486 = vpack.c.b16 %v1483, %v1482
      %v1487 = vpack.c.b16 %v1485, %v1484
      %v1491 = vsel %vm616, %v1454, 0
      %v1494 = vsel %vm616, %v1455, 0
      %v1497 = vsel %vm616, %v1456, 0
      %v1500 = vsel %vm616, %v1457, 0
      %v1503 = vsel %vm616, %v1458, 0
      %v1506 = vsel %vm616, %v1459, 0
      %v1509 = vsel %vm616, %v1460, 0
      %v1512 = vsel %vm616, %v1461, 0
      %v1515 = vsel %vm616, %v1462, 0
      %v1518 = vsel %vm616, %v1463, 0
      %v1521 = vsel %vm616, %v1464, 0
      %v1524 = vsel %vm616, %v1465, 0
      %v1527 = vsel %vm616, %v1466, 0
      %v1530 = vsel %vm616, %v1467, 0
      %v1533 = vsel %vm616, %v1468, 0
      %v1536 = vsel %vm616, %v1469, 0
      %v1539 = vsel %vm616, %v1470, 0
      %v1542 = vsel %vm616, %v1471, 0
      %v1545 = vsel %vm616, %v1472, 0
      %v1548 = vsel %vm616, %v1473, 0
      %v1551 = vsel %vm616, %v1474, 0
      %v1554 = vsel %vm616, %v1475, 0
      %v1557 = vsel %vm616, %v1476, 0
      %v1560 = vsel %vm616, %v1477, 0
      %1562 = vmatprep.subr.bf16.mxu0 0
      %1563 = vmatpush1.bf16.msra.mxu0 %v1486
      %1564 = vmatprep.subr.bf16.mxu0 0
      %1565 = vmatpush1.bf16.msra.mxu0 %v1487
      %1566 = vmatprep.subr.bf16.mxu0 0
      %1567 = vmatpush1.bf16.msra.mxu0 0
      %1568 = vmatprep.subr.bf16.mxu0 0
      %1569 = vmatpush1.bf16.msra.mxu0 0
      %1570 = vmatprep.subr.bf16.mxu0 0
      %1571 = vmatpush1.bf16.msra.mxu0 0
      %1572 = vmatprep.subr.bf16.mxu0 0
      %1573 = vmatpush1.bf16.msra.mxu0 0
      %1574 = vmatprep.subr.bf16.mxu0 0
      %1575 = vmatpush1.bf16.msra.mxu0 0
      %1576 = vmatprep.subr.bf16.mxu0 0
      %1577 = vmatpush1.bf16.msra.mxu0 0
      %1578 = vmatprep.subr.bf16.mxu0 0
      %1579 = vmatpush1.bf16.msra.mxu0 0
      %1580 = vmatprep.subr.bf16.mxu0 0
      %1581 = vmatpush1.bf16.msra.mxu0 0
      %1582 = vmatprep.subr.bf16.mxu0 0
      %1583 = vmatpush1.bf16.msra.mxu0 0
      %1584 = vmatprep.subr.bf16.mxu0 0
      %1585 = vmatpush1.bf16.msra.mxu0 0
      %1586 = vmatprep.subr.bf16.mxu0 0
      %1587 = vmatpush1.bf16.msra.mxu0 0
      %1588 = vmatprep.subr.bf16.mxu0 0
      %1589 = vmatpush1.bf16.msra.mxu0 0
      %1590 = vmatprep.subr.bf16.mxu0 0
      %1591 = vmatpush1.bf16.msra.mxu0 0
      %1592 = vmatprep.subr.bf16.mxu0 0
      %1593 = vmatpush1.bf16.msra.mxu0 0
      %1594 = vmatprep.mubr.bf16.mxu0 0
      %1595 = vmatmul.mubr.bf16.gmra.mrb[0].mxu0 %v1491
      %v1596 = vpop.f32.mrb[0].mxu0
      %v1597 = vadd.f32 0.0, %v1596
      %v1598 = vpop.f32.mrb[0].mxu0
      %v1599 = vpop.f32.mrb[0].mxu0
      %v1600 = vadd.f32 0.0, %v1599
      %v1601 = vpop.f32.mrb[0].mxu0
      %1602 = vmatprep.mubr.bf16.mxu0 0
      %1603 = vmatmul.mubr.bf16.gmra.mrb[0].mxu0 %v1494
      %v1604 = vpop.f32.mrb[0].mxu0
      %v1605 = vadd.f32 0.0, %v1604
      %v1606 = vpop.f32.mrb[0].mxu0
      %v1607 = vpop.f32.mrb[0].mxu0
      %v1608 = vadd.f32 0.0, %v1607
      %v1609 = vpop.f32.mrb[0].mxu0
      %1610 = vmatprep.mubr.bf16.mxu0 0
      %1611 = vmatmul.mubr.bf16.gmra.mrb[0].mxu0 %v1497
      %v1612 = vpop.f32.mrb[0].mxu0
      %v1613 = vadd.f32 0.0, %v1612
      %v1614 = vpop.f32.mrb[0].mxu0
      %v1615 = vpop.f32.mrb[0].mxu0
      %v1616 = vadd.f32 0.0, %v1615
      %v1617 = vpop.f32.mrb[0].mxu0
      %1618 = vmatprep.mubr.bf16.mxu0 0
      %1619 = vmatmul.mubr.bf16.gmra.mrb[0].mxu0 %v1500
      %v1620 = vpop.f32.mrb[0].mxu0
      %v1621 = vadd.f32 0.0, %v1620
      %v1622 = vpop.f32.mrb[0].mxu0
      %v1623 = vpop.f32.mrb[0].mxu0
      %v1624 = vadd.f32 0.0, %v1623
      %v1625 = vpop.f32.mrb[0].mxu0
      %1626 = vmatprep.mubr.bf16.mxu0 0
      %1627 = vmatmul.mubr.bf16.gmra.mrb[0].mxu0 %v1503
      %v1628 = vpop.f32.mrb[0].mxu0
      %v1629 = vadd.f32 0.0, %v1628
      %v1630 = vpop.f32.mrb[0].mxu0
      %v1631 = vpop.f32.mrb[0].mxu0
      %v1632 = vadd.f32 0.0, %v1631
      %v1633 = vpop.f32.mrb[0].mxu0
      %1634 = vmatprep.mubr.bf16.mxu0 0
      %1635 = vmatmul.mubr.bf16.gmra.mrb[0].mxu0 %v1506
      %v1636 = vpop.f32.mrb[0].mxu0
      %v1637 = vadd.f32 0.0, %v1636
      %v1638 = vpop.f32.mrb[0].mxu0
      %v1639 = vpop.f32.mrb[0].mxu0
      %v1640 = vadd.f32 0.0, %v1639
      %v1641 = vpop.f32.mrb[0].mxu0
      %1642 = vmatprep.mubr.bf16.mxu0 0
      %1643 = vmatmul.mubr.bf16.gmra.mrb[0].mxu0 %v1509
      %v1644 = vpop.f32.mrb[0].mxu0
      %v1645 = vadd.f32 0.0, %v1644
      %v1646 = vpop.f32.mrb[0].mxu0
      %v1647 = vpop.f32.mrb[0].mxu0
      %v1648 = vadd.f32 0.0, %v1647
      %v1649 = vpop.f32.mrb[0].mxu0
      %1650 = vmatprep.mubr.bf16.mxu0 0
      %1651 = vmatmul.mubr.bf16.gmra.mrb[0].mxu0 %v1512
      %v1652 = vpop.f32.mrb[0].mxu0
      %v1653 = vadd.f32 0.0, %v1652
      %v1654 = vpop.f32.mrb[0].mxu0
      %v1655 = vpop.f32.mrb[0].mxu0
      %v1656 = vadd.f32 0.0, %v1655
      %v1657 = vpop.f32.mrb[0].mxu0
      %1658 = vmatprep.mubr.bf16.mxu0 0
      %1659 = vmatmul.mubr.bf16.gmra.mrb[0].mxu0 %v1515
      %v1660 = vpop.f32.mrb[0].mxu0
      %v1661 = vadd.f32 0.0, %v1660
      %v1662 = vpop.f32.mrb[0].mxu0
      %v1663 = vpop.f32.mrb[0].mxu0
      %v1664 = vadd.f32 0.0, %v1663
      %v1665 = vpop.f32.mrb[0].mxu0
      %1666 = vmatprep.mubr.bf16.mxu0 0
      %1667 = vmatmul.mubr.bf16.gmra.mrb[0].mxu0 %v1518
      %v1668 = vpop.f32.mrb[0].mxu0
      %v1669 = vadd.f32 0.0, %v1668
      %v1670 = vpop.f32.mrb[0].mxu0
      %v1671 = vpop.f32.mrb[0].mxu0
      %v1672 = vadd.f32 0.0, %v1671
      %v1673 = vpop.f32.mrb[0].mxu0
      %1674 = vmatprep.mubr.bf16.mxu0 0
      %1675 = vmatmul.mubr.bf16.gmra.mrb[0].mxu0 %v1521
      %v1676 = vpop.f32.mrb[0].mxu0
      %v1677 = vadd.f32 0.0, %v1676
      %v1678 = vpop.f32.mrb[0].mxu0
      %v1679 = vpop.f32.mrb[0].mxu0
      %v1680 = vadd.f32 0.0, %v1679
      %v1681 = vpop.f32.mrb[0].mxu0
      %1682 = vmatprep.mubr.bf16.mxu0 0
      %1683 = vmatmul.mubr.bf16.gmra.mrb[0].mxu0 %v1524
      %v1684 = vpop.f32.mrb[0].mxu0
      %v1685 = vadd.f32 0.0, %v1684
      %v1686 = vpop.f32.mrb[0].mxu0
      %v1687 = vpop.f32.mrb[0].mxu0
      %v1688 = vadd.f32 0.0, %v1687
      %v1689 = vpop.f32.mrb[0].mxu0
      %1690 = vmatprep.mubr.bf16.mxu0 0
      %1691 = vmatmul.mubr.bf16.gmra.mrb[0].mxu0 %v1527
      %v1692 = vpop.f32.mrb[0].mxu0
      %v1693 = vadd.f32 0.0, %v1692
      %v1694 = vpop.f32.mrb[0].mxu0
      %v1695 = vpop.f32.mrb[0].mxu0
      %v1696 = vadd.f32 0.0, %v1695
      %v1697 = vpop.f32.mrb[0].mxu0
      %1698 = vmatprep.mubr.bf16.mxu0 0
      %1699 = vmatmul.mubr.bf16.gmra.mrb[0].mxu0 %v1530
      %v1700 = vpop.f32.mrb[0].mxu0
      %v1701 = vadd.f32 0.0, %v1700
      %v1702 = vpop.f32.mrb[0].mxu0
      %v1703 = vpop.f32.mrb[0].mxu0
      %v1704 = vadd.f32 0.0, %v1703
      %v1705 = vpop.f32.mrb[0].mxu0
      %1706 = vmatprep.mubr.bf16.mxu0 0
      %1707 = vmatmul.mubr.bf16.gmra.mrb[0].mxu0 %v1533
      %v1708 = vpop.f32.mrb[0].mxu0
      %v1709 = vadd.f32 0.0, %v1708
      %v1710 = vpop.f32.mrb[0].mxu0
      %v1711 = vpop.f32.mrb[0].mxu0
      %v1712 = vadd.f32 0.0, %v1711
      %v1713 = vpop.f32.mrb[0].mxu0
      %1714 = vmatprep.mubr.bf16.mxu0 0
      %1715 = vmatmul.mubr.bf16.gmra.mrb[0].mxu0 %v1536
      %v1716 = vpop.f32.mrb[0].mxu0
      %v1717 = vadd.f32 0.0, %v1716
      %v1718 = vpop.f32.mrb[0].mxu0
      %v1719 = vpop.f32.mrb[0].mxu0
      %v1720 = vadd.f32 0.0, %v1719
      %v1721 = vpop.f32.mrb[0].mxu0
      %1722 = vmatprep.mubr.bf16.mxu0 0
      %1723 = vmatmul.mubr.bf16.gmra.mrb[0].mxu0 %v1539
      %v1724 = vpop.f32.mrb[0].mxu0
      %v1725 = vadd.f32 0.0, %v1724
      %v1726 = vpop.f32.mrb[0].mxu0
      %v1727 = vpop.f32.mrb[0].mxu0
      %v1728 = vadd.f32 0.0, %v1727
      %v1729 = vpop.f32.mrb[0].mxu0
      %1730 = vmatprep.mubr.bf16.mxu0 0
      %1731 = vmatmul.mubr.bf16.gmra.mrb[0].mxu0 %v1542
      %v1732 = vpop.f32.mrb[0].mxu0
      %v1733 = vadd.f32 0.0, %v1732
      %v1734 = vpop.f32.mrb[0].mxu0
      %v1735 = vpop.f32.mrb[0].mxu0
      %v1736 = vadd.f32 0.0, %v1735
      %v1737 = vpop.f32.mrb[0].mxu0
      %1738 = vmatprep.mubr.bf16.mxu0 0
      %1739 = vmatmul.mubr.bf16.gmra.mrb[0].mxu0 %v1545
      %v1740 = vpop.f32.mrb[0].mxu0
      %v1741 = vadd.f32 0.0, %v1740
      %v1742 = vpop.f32.mrb[0].mxu0
      %v1743 = vpop.f32.mrb[0].mxu0
      %v1744 = vadd.f32 0.0, %v1743
      %v1745 = vpop.f32.mrb[0].mxu0
      %1746 = vmatprep.mubr.bf16.mxu0 0
      %1747 = vmatmul.mubr.bf16.gmra.mrb[0].mxu0 %v1548
      %v1748 = vpop.f32.mrb[0].mxu0
      %v1749 = vadd.f32 0.0, %v1748
      %v1750 = vpop.f32.mrb[0].mxu0
      %v1751 = vpop.f32.mrb[0].mxu0
      %v1752 = vadd.f32 0.0, %v1751
      %v1753 = vpop.f32.mrb[0].mxu0
      %1754 = vmatprep.mubr.bf16.mxu0 0
      %1755 = vmatmul.mubr.bf16.gmra.mrb[0].mxu0 %v1551
      %v1756 = vpop.f32.mrb[0].mxu0
      %v1757 = vadd.f32 0.0, %v1756
      %v1758 = vpop.f32.mrb[0].mxu0
      %v1759 = vpop.f32.mrb[0].mxu0
      %v1760 = vadd.f32 0.0, %v1759
      %v1761 = vpop.f32.mrb[0].mxu0
      %1762 = vmatprep.mubr.bf16.mxu0 0
      %1763 = vmatmul.mubr.bf16.gmra.mrb[0].mxu0 %v1554
      %v1764 = vpop.f32.mrb[0].mxu0
      %v1765 = vadd.f32 0.0, %v1764
      %v1766 = vpop.f32.mrb[0].mxu0
      %v1767 = vpop.f32.mrb[0].mxu0
      %v1768 = vadd.f32 0.0, %v1767
      %v1769 = vpop.f32.mrb[0].mxu0
      %1770 = vmatprep.mubr.bf16.mxu0 0
      %1771 = vmatmul.mubr.bf16.gmra.mrb[0].mxu0 %v1557
      %v1772 = vpop.f32.mrb[0].mxu0
      %v1773 = vadd.f32 0.0, %v1772
      %v1774 = vpop.f32.mrb[0].mxu0
      %v1775 = vpop.f32.mrb[0].mxu0
      %v1776 = vadd.f32 0.0, %v1775
      %v1777 = vpop.f32.mrb[0].mxu0
      %1778 = vmatprep.mubr.bf16.mxu0 0
      %1779 = vmatmul.mubr.bf16.gmra.mrb[0].mxu0 %v1560
      %v1780 = vpop.f32.mrb[0].mxu0
      %v1781 = vadd.f32 0.0, %v1780
      %v1782 = vpop.f32.mrb[0].mxu0
      %v1783 = vpop.f32.mrb[0].mxu0
      %v1784 = vadd.f32 0.0, %v1783
      %v1785 = vpop.f32.mrb[0].mxu0
      %1786 = vdwg.mxu0
      %v1791 = vunpack.c.l.b16 %v1296
      %v1792 = vunpack.c.l.b16 %v1297
      %v1793 = vunpack.c.l.b16 %v1298
      %v1794 = vunpack.c.l.b16 %v1344
      %v1795 = vpack.c.b16 %v1792, %v1791
      %v1796 = vpack.c.b16 %v1406, %v1793
      %v1797 = vpack.c.b16 %v1408, %v1407
      %v1798 = vpack.c.b16 %v1410, %v1409
      %v1799 = vpack.c.b16 %v1412, %v1411
      %v1800 = vpack.c.b16 %v1414, %v1413
      %v1801 = vpack.c.b16 %v1416, %v1415
      %v1802 = vpack.c.b16 %v1418, %v1417
      %v1803 = vpack.c.b16 %v1420, %v1419
      %v1804 = vpack.c.b16 %v1422, %v1421
      %v1805 = vpack.c.b16 %v1424, %v1423
      %v1806 = vpack.c.b16 %v1426, %v1425
      %v1807 = vpack.c.b16 %v1428, %v1427
      %v1808 = vpack.c.b16 %v1430, %v1429
      %v1809 = vpack.c.b16 %v1432, %v1431
      %v1810 = vpack.c.b16 %v1434, %v1433
      %v1811 = vpack.c.b16 %v1436, %v1435
      %v1812 = vpack.c.b16 %v1438, %v1437
      %v1813 = vpack.c.b16 %v1440, %v1439
      %v1814 = vpack.c.b16 %v1442, %v1441
      %v1815 = vpack.c.b16 %v1444, %v1443
      %v1816 = vpack.c.b16 %v1446, %v1445
      %v1817 = vpack.c.b16 %v1448, %v1447
      %v1818 = vpack.c.b16 %v1450, %v1449
      %v1819 = vpack.c.b16 %v1794, %v1794
      %vm1820 = vcmask 1046528
      %v1821 = vrot.slane %v1795, 1
      %v1822 = vrot.slane %v1796, 1
      %v1823 = vsel %vm1820, %v1821, %v1822
      %v1824 = vrot.slane %v1797, 1
      %v1825 = vsel %vm1820, %v1822, %v1824
      %v1826 = vrot.slane %v1798, 1
      %v1827 = vsel %vm1820, %v1824, %v1826
      %v1828 = vrot.slane %v1799, 1
      %v1829 = vsel %vm1820, %v1826, %v1828
      %v1830 = vrot.slane %v1800, 1
      %v1831 = vsel %vm1820, %v1828, %v1830
      %v1832 = vrot.slane %v1801, 1
      %v1833 = vsel %vm1820, %v1830, %v1832
      %v1834 = vrot.slane %v1802, 1
      %v1835 = vsel %vm1820, %v1832, %v1834
      %v1836 = vrot.slane %v1803, 1
      %v1837 = vsel %vm1820, %v1834, %v1836
      %v1838 = vrot.slane %v1804, 1
      %v1839 = vsel %vm1820, %v1836, %v1838
      %v1840 = vrot.slane %v1805, 1
      %v1841 = vsel %vm1820, %v1838, %v1840
      %v1842 = vrot.slane %v1806, 1
      %v1843 = vsel %vm1820, %v1840, %v1842
      %v1844 = vrot.slane %v1807, 1
      %v1845 = vsel %vm1820, %v1842, %v1844
      %v1846 = vrot.slane %v1808, 1
      %v1847 = vsel %vm1820, %v1844, %v1846
      %v1848 = vrot.slane %v1809, 1
      %v1849 = vsel %vm1820, %v1846, %v1848
      %v1850 = vrot.slane %v1810, 1
      %v1851 = vsel %vm1820, %v1848, %v1850
      %v1852 = vrot.slane %v1811, 1
      %v1853 = vsel %vm1820, %v1850, %v1852
      %v1854 = vrot.slane %v1812, 1
      %v1855 = vsel %vm1820, %v1852, %v1854
      %v1856 = vrot.slane %v1813, 1
      %v1857 = vsel %vm1820, %v1854, %v1856
      %v1858 = vrot.slane %v1814, 1
      %v1859 = vsel %vm1820, %v1856, %v1858
      %v1860 = vrot.slane %v1815, 1
      %v1861 = vsel %vm1820, %v1858, %v1860
      %v1862 = vrot.slane %v1816, 1
      %v1863 = vsel %vm1820, %v1860, %v1862
      %v1864 = vrot.slane %v1817, 1
      %v1865 = vsel %vm1820, %v1862, %v1864
      %v1866 = vrot.slane %v1818, 1
      %v1867 = vsel %vm1820, %v1864, %v1866
      %v1868 = vrot.slane %v1819, 1
      %v1869 = vsel %vm1820, %v1866, %v1868
      %v1874 = vunpack.c.l.b16 %v1346
      %v1875 = vunpack.c.l.b16 %v1347
      %v1876 = vunpack.c.l.b16 %v1348
      %v1877 = vunpack.c.l.b16 %v1349
      %v1878 = vpack.c.b16 %v1875, %v1874
      %v1879 = vpack.c.b16 %v1877, %v1876
      %v1883 = vsel %vm616, %v1823, 0
      %v1886 = vsel %vm616, %v1825, 0
      %v1889 = vsel %vm616, %v1827, 0
      %v1892 = vsel %vm616, %v1829, 0
      %v1895 = vsel %vm616, %v1831, 0
      %v1898 = vsel %vm616, %v1833, 0
      %v1901 = vsel %vm616, %v1835, 0
      %v1904 = vsel %vm616, %v1837, 0
      %v1907 = vsel %vm616, %v1839, 0
      %v1910 = vsel %vm616, %v1841, 0
      %v1913 = vsel %vm616, %v1843, 0
      %v1916 = vsel %vm616, %v1845, 0
      %v1919 = vsel %vm616, %v1847, 0
      %v1922 = vsel %vm616, %v1849, 0
      %v1925 = vsel %vm616, %v1851, 0
      %v1928 = vsel %vm616, %v1853, 0
      %v1931 = vsel %vm616, %v1855, 0
      %v1934 = vsel %vm616, %v1857, 0
      %v1937 = vsel %vm616, %v1859, 0
      %v1940 = vsel %vm616, %v1861, 0
      %v1943 = vsel %vm616, %v1863, 0
      %v1946 = vsel %vm616, %v1865, 0
      %v1949 = vsel %vm616, %v1867, 0
      %v1952 = vsel %vm616, %v1869, 0
      %1954 = vmatprep.subr.bf16.mxu0 0
      %1955 = vmatpush1.bf16.msra.mxu0 %v1878
      %1956 = vmatprep.subr.bf16.mxu0 0
      %1957 = vmatpush1.bf16.msra.mxu0 %v1879
      %1958 = vmatprep.subr.bf16.mxu0 0
      %1959 = vmatpush1.bf16.msra.mxu0 0
      %1960 = vmatprep.subr.bf16.mxu0 0
      %1961 = vmatpush1.bf16.msra.mxu0 0
      %1962 = vmatprep.subr.bf16.mxu0 0
      %1963 = vmatpush1.bf16.msra.mxu0 0
      %1964 = vmatprep.subr.bf16.mxu0 0
      %1965 = vmatpush1.bf16.msra.mxu0 0
      %1966 = vmatprep.subr.bf16.mxu0 0
      %1967 = vmatpush1.bf16.msra.mxu0 0
      %1968 = vmatprep.subr.bf16.mxu0 0
      %1969 = vmatpush1.bf16.msra.mxu0 0
      %1970 = vmatprep.subr.bf16.mxu0 0
      %1971 = vmatpush1.bf16.msra.mxu0 0
      %1972 = vmatprep.subr.bf16.mxu0 0
      %1973 = vmatpush1.bf16.msra.mxu0 0
      %1974 = vmatprep.subr.bf16.mxu0 0
      %1975 = vmatpush1.bf16.msra.mxu0 0
      %1976 = vmatprep.subr.bf16.mxu0 0
      %1977 = vmatpush1.bf16.msra.mxu0 0
      %1978 = vmatprep.subr.bf16.mxu0 0
      %1979 = vmatpush1.bf16.msra.mxu0 0
      %1980 = vmatprep.subr.bf16.mxu0 0
      %1981 = vmatpush1.bf16.msra.mxu0 0
      %1982 = vmatprep.subr.bf16.mxu0 0
      %1983 = vmatpush1.bf16.msra.mxu0 0
      %1984 = vmatprep.subr.bf16.mxu0 0
      %1985 = vmatpush1.bf16.msra.mxu0 0
      %1986 = vmatprep.mubr.bf16.mxu0 0
      %1987 = vmatmul.mubr.bf16.gmra.mrb[0].mxu0 %v1883
      %v1988 = vpop.f32.mrb[0].mxu0
      %v1989 = vadd.f32 %v1597, %v1988
      %v1990 = vpop.f32.mrb[0].mxu0
      %v1991 = vpop.f32.mrb[0].mxu0
      %v1992 = vadd.f32 %v1600, %v1991
      %v1993 = vpop.f32.mrb[0].mxu0
      %1994 = vmatprep.mubr.bf16.mxu0 0
      %1995 = vmatmul.mubr.bf16.gmra.mrb[0].mxu0 %v1886
      %v1996 = vpop.f32.mrb[0].mxu0
      %v1997 = vadd.f32 %v1605, %v1996
      %v1998 = vpop.f32.mrb[0].mxu0
      %v1999 = vpop.f32.mrb[0].mxu0
      %v2000 = vadd.f32 %v1608, %v1999
      %v2001 = vpop.f32.mrb[0].mxu0
      %2002 = vmatprep.mubr.bf16.mxu0 0
      %2003 = vmatmul.mubr.bf16.gmra.mrb[0].mxu0 %v1889
      %v2004 = vpop.f32.mrb[0].mxu0
      %v2005 = vadd.f32 %v1613, %v2004
      %v2006 = vpop.f32.mrb[0].mxu0
      %v2007 = vpop.f32.mrb[0].mxu0
      %v2008 = vadd.f32 %v1616, %v2007
      %v2009 = vpop.f32.mrb[0].mxu0
      %2010 = vmatprep.mubr.bf16.mxu0 0
      %2011 = vmatmul.mubr.bf16.gmra.mrb[0].mxu0 %v1892
      %v2012 = vpop.f32.mrb[0].mxu0
      %v2013 = vadd.f32 %v1621, %v2012
      %v2014 = vpop.f32.mrb[0].mxu0
      %v2015 = vpop.f32.mrb[0].mxu0
      %v2016 = vadd.f32 %v1624, %v2015
      %v2017 = vpop.f32.mrb[0].mxu0
      %2018 = vmatprep.mubr.bf16.mxu0 0
      %2019 = vmatmul.mubr.bf16.gmra.mrb[0].mxu0 %v1895
      %v2020 = vpop.f32.mrb[0].mxu0
      %v2021 = vadd.f32 %v1629, %v2020
      %v2022 = vpop.f32.mrb[0].mxu0
      %v2023 = vpop.f32.mrb[0].mxu0
      %v2024 = vadd.f32 %v1632, %v2023
      %v2025 = vpop.f32.mrb[0].mxu0
      %2026 = vmatprep.mubr.bf16.mxu0 0
      %2027 = vmatmul.mubr.bf16.gmra.mrb[0].mxu0 %v1898
      %v2028 = vpop.f32.mrb[0].mxu0
      %v2029 = vadd.f32 %v1637, %v2028
      %v2030 = vpop.f32.mrb[0].mxu0
      %v2031 = vpop.f32.mrb[0].mxu0
      %v2032 = vadd.f32 %v1640, %v2031
      %v2033 = vpop.f32.mrb[0].mxu0
      %2034 = vmatprep.mubr.bf16.mxu0 0
      %2035 = vmatmul.mubr.bf16.gmra.mrb[0].mxu0 %v1901
      %v2036 = vpop.f32.mrb[0].mxu0
      %v2037 = vadd.f32 %v1645, %v2036
      %v2038 = vpop.f32.mrb[0].mxu0
      %v2039 = vpop.f32.mrb[0].mxu0
      %v2040 = vadd.f32 %v1648, %v2039
      %v2041 = vpop.f32.mrb[0].mxu0
      %2042 = vmatprep.mubr.bf16.mxu0 0
      %2043 = vmatmul.mubr.bf16.gmra.mrb[0].mxu0 %v1904
      %v2044 = vpop.f32.mrb[0].mxu0
      %v2045 = vadd.f32 %v1653, %v2044
      %v2046 = vpop.f32.mrb[0].mxu0
      %v2047 = vpop.f32.mrb[0].mxu0
      %v2048 = vadd.f32 %v1656, %v2047
      %v2049 = vpop.f32.mrb[0].mxu0
      %2050 = vmatprep.mubr.bf16.mxu0 0
      %2051 = vmatmul.mubr.bf16.gmra.mrb[0].mxu0 %v1907
      %v2052 = vpop.f32.mrb[0].mxu0
      %v2053 = vadd.f32 %v1661, %v2052
      %v2054 = vpop.f32.mrb[0].mxu0
      %v2055 = vpop.f32.mrb[0].mxu0
      %v2056 = vadd.f32 %v1664, %v2055
      %v2057 = vpop.f32.mrb[0].mxu0
      %2058 = vmatprep.mubr.bf16.mxu0 0
      %2059 = vmatmul.mubr.bf16.gmra.mrb[0].mxu0 %v1910
      %v2060 = vpop.f32.mrb[0].mxu0
      %v2061 = vadd.f32 %v1669, %v2060
      %v2062 = vpop.f32.mrb[0].mxu0
      %v2063 = vpop.f32.mrb[0].mxu0
      %v2064 = vadd.f32 %v1672, %v2063
      %v2065 = vpop.f32.mrb[0].mxu0
      %2066 = vmatprep.mubr.bf16.mxu0 0
      %2067 = vmatmul.mubr.bf16.gmra.mrb[0].mxu0 %v1913
      %v2068 = vpop.f32.mrb[0].mxu0
      %v2069 = vadd.f32 %v1677, %v2068
      %v2070 = vpop.f32.mrb[0].mxu0
      %v2071 = vpop.f32.mrb[0].mxu0
      %v2072 = vadd.f32 %v1680, %v2071
      %v2073 = vpop.f32.mrb[0].mxu0
      %2074 = vmatprep.mubr.bf16.mxu0 0
      %2075 = vmatmul.mubr.bf16.gmra.mrb[0].mxu0 %v1916
      %v2076 = vpop.f32.mrb[0].mxu0
      %v2077 = vadd.f32 %v1685, %v2076
      %v2078 = vpop.f32.mrb[0].mxu0
      %v2079 = vpop.f32.mrb[0].mxu0
      %v2080 = vadd.f32 %v1688, %v2079
      %v2081 = vpop.f32.mrb[0].mxu0
      %2082 = vmatprep.mubr.bf16.mxu0 0
      %2083 = vmatmul.mubr.bf16.gmra.mrb[0].mxu0 %v1919
      %v2084 = vpop.f32.mrb[0].mxu0
      %v2085 = vadd.f32 %v1693, %v2084
      %v2086 = vpop.f32.mrb[0].mxu0
      %v2087 = vpop.f32.mrb[0].mxu0
      %v2088 = vadd.f32 %v1696, %v2087
      %v2089 = vpop.f32.mrb[0].mxu0
      %2090 = vmatprep.mubr.bf16.mxu0 0
      %2091 = vmatmul.mubr.bf16.gmra.mrb[0].mxu0 %v1922
      %v2092 = vpop.f32.mrb[0].mxu0
      %v2093 = vadd.f32 %v1701, %v2092
      %v2094 = vpop.f32.mrb[0].mxu0
      %v2095 = vpop.f32.mrb[0].mxu0
      %v2096 = vadd.f32 %v1704, %v2095
      %v2097 = vpop.f32.mrb[0].mxu0
      %2098 = vmatprep.mubr.bf16.mxu0 0
      %2099 = vmatmul.mubr.bf16.gmra.mrb[0].mxu0 %v1925
      %v2100 = vpop.f32.mrb[0].mxu0
      %v2101 = vadd.f32 %v1709, %v2100
      %v2102 = vpop.f32.mrb[0].mxu0
      %v2103 = vpop.f32.mrb[0].mxu0
      %v2104 = vadd.f32 %v1712, %v2103
      %v2105 = vpop.f32.mrb[0].mxu0
      %2106 = vmatprep.mubr.bf16.mxu0 0
      %2107 = vmatmul.mubr.bf16.gmra.mrb[0].mxu0 %v1928
      %v2108 = vpop.f32.mrb[0].mxu0
      %v2109 = vadd.f32 %v1717, %v2108
      %v2110 = vpop.f32.mrb[0].mxu0
      %v2111 = vpop.f32.mrb[0].mxu0
      %v2112 = vadd.f32 %v1720, %v2111
      %v2113 = vpop.f32.mrb[0].mxu0
      %2114 = vmatprep.mubr.bf16.mxu0 0
      %2115 = vmatmul.mubr.bf16.gmra.mrb[0].mxu0 %v1931
      %v2116 = vpop.f32.mrb[0].mxu0
      %v2117 = vadd.f32 %v1725, %v2116
      %v2118 = vpop.f32.mrb[0].mxu0
      %v2119 = vpop.f32.mrb[0].mxu0
      %v2120 = vadd.f32 %v1728, %v2119
      %v2121 = vpop.f32.mrb[0].mxu0
      %2122 = vmatprep.mubr.bf16.mxu0 0
      %2123 = vmatmul.mubr.bf16.gmra.mrb[0].mxu0 %v1934
      %v2124 = vpop.f32.mrb[0].mxu0
      %v2125 = vadd.f32 %v1733, %v2124
      %v2126 = vpop.f32.mrb[0].mxu0
      %v2127 = vpop.f32.mrb[0].mxu0
      %v2128 = vadd.f32 %v1736, %v2127
      %v2129 = vpop.f32.mrb[0].mxu0
      %2130 = vmatprep.mubr.bf16.mxu0 0
      %2131 = vmatmul.mubr.bf16.gmra.mrb[0].mxu0 %v1937
      %v2132 = vpop.f32.mrb[0].mxu0
      %v2133 = vadd.f32 %v1741, %v2132
      %v2134 = vpop.f32.mrb[0].mxu0
      %v2135 = vpop.f32.mrb[0].mxu0
      %v2136 = vadd.f32 %v1744, %v2135
      %v2137 = vpop.f32.mrb[0].mxu0
      %2138 = vmatprep.mubr.bf16.mxu0 0
      %2139 = vmatmul.mubr.bf16.gmra.mrb[0].mxu0 %v1940
      %v2140 = vpop.f32.mrb[0].mxu0
      %v2141 = vadd.f32 %v1749, %v2140
      %v2142 = vpop.f32.mrb[0].mxu0
      %v2143 = vpop.f32.mrb[0].mxu0
      %v2144 = vadd.f32 %v1752, %v2143
      %v2145 = vpop.f32.mrb[0].mxu0
      %2146 = vmatprep.mubr.bf16.mxu0 0
      %2147 = vmatmul.mubr.bf16.gmra.mrb[0].mxu0 %v1943
      %v2148 = vpop.f32.mrb[0].mxu0
      %v2149 = vadd.f32 %v1757, %v2148
      %v2150 = vpop.f32.mrb[0].mxu0
      %v2151 = vpop.f32.mrb[0].mxu0
      %v2152 = vadd.f32 %v1760, %v2151
      %v2153 = vpop.f32.mrb[0].mxu0
      %2154 = vmatprep.mubr.bf16.mxu0 0
      %2155 = vmatmul.mubr.bf16.gmra.mrb[0].mxu0 %v1946
      %v2156 = vpop.f32.mrb[0].mxu0
      %v2157 = vadd.f32 %v1765, %v2156
      %v2158 = vpop.f32.mrb[0].mxu0
      %v2159 = vpop.f32.mrb[0].mxu0
      %v2160 = vadd.f32 %v1768, %v2159
      %v2161 = vpop.f32.mrb[0].mxu0
      %2162 = vmatprep.mubr.bf16.mxu0 0
      %2163 = vmatmul.mubr.bf16.gmra.mrb[0].mxu0 %v1949
      %v2164 = vpop.f32.mrb[0].mxu0
      %v2165 = vadd.f32 %v1773, %v2164
      %v2166 = vpop.f32.mrb[0].mxu0
      %v2167 = vpop.f32.mrb[0].mxu0
      %v2168 = vadd.f32 %v1776, %v2167
      %v2169 = vpop.f32.mrb[0].mxu0
      %2170 = vmatprep.mubr.bf16.mxu0 0
      %2171 = vmatmul.mubr.bf16.gmra.mrb[0].mxu0 %v1952
      %v2172 = vpop.f32.mrb[0].mxu0
      %v2173 = vadd.f32 %v1781, %v2172
      %v2174 = vpop.f32.mrb[0].mxu0
      %v2175 = vpop.f32.mrb[0].mxu0
      %v2176 = vadd.f32 %v1784, %v2175
      %v2177 = vpop.f32.mrb[0].mxu0
      %2178 = vdwg.mxu0
      %v2179 = vadd.f32 %v1248, %v1989
      %v2180 = vadd.f32 %v1249, %v1992
      %v2181 = vadd.f32 %v1250, %v1997
      %v2182 = vadd.f32 %v1251, %v2000
      %v2183 = vadd.f32 %v1252, %v2005
      %v2184 = vadd.f32 %v1253, %v2008
      %v2185 = vadd.f32 %v1254, %v2013
      %v2186 = vadd.f32 %v1255, %v2016
      %v2187 = vadd.f32 %v1256, %v2021
      %v2188 = vadd.f32 %v1257, %v2024
      %v2189 = vadd.f32 %v1258, %v2029
      %v2190 = vadd.f32 %v1259, %v2032
      %v2191 = vadd.f32 %v1260, %v2037
      %v2192 = vadd.f32 %v1261, %v2040
      %v2193 = vadd.f32 %v1262, %v2045
      %v2194 = vadd.f32 %v1263, %v2048
      %v2195 = vadd.f32 %v1264, %v2053
      %v2196 = vadd.f32 %v1265, %v2056
      %v2197 = vadd.f32 %v1266, %v2061
      %v2198 = vadd.f32 %v1267, %v2064
      %v2199 = vadd.f32 %v1268, %v2069
      %v2200 = vadd.f32 %v1269, %v2072
      %v2201 = vadd.f32 %v1270, %v2077
      %v2202 = vadd.f32 %v1271, %v2080
      %v2203 = vadd.f32 %v1272, %v2085
      %v2204 = vadd.f32 %v1273, %v2088
      %v2205 = vadd.f32 %v1274, %v2093
      %v2206 = vadd.f32 %v1275, %v2096
      %v2207 = vadd.f32 %v1276, %v2101
      %v2208 = vadd.f32 %v1277, %v2104
      %v2209 = vadd.f32 %v1278, %v2109
      %v2210 = vadd.f32 %v1279, %v2112
      %v2211 = vadd.f32 %v1280, %v2117
      %v2212 = vadd.f32 %v1281, %v2120
      %v2213 = vadd.f32 %v1282, %v2125
      %v2214 = vadd.f32 %v1283, %v2128
      %v2215 = vadd.f32 %v1284, %v2133
      %v2216 = vadd.f32 %v1285, %v2136
      %v2217 = vadd.f32 %v1286, %v2141
      %v2218 = vadd.f32 %v1287, %v2144
      %v2219 = vadd.f32 %v1288, %v2149
      %v2220 = vadd.f32 %v1289, %v2152
      %v2221 = vadd.f32 %v1290, %v2157
      %v2222 = vadd.f32 %v1291, %v2160
      %v2223 = vadd.f32 %v1292, %v2165
      %v2224 = vadd.f32 %v1293, %v2168
      %v2225 = vadd.f32 %v1294, %v2173
      %v2226 = vadd.f32 %v1295, %v2176
      %2227 = vst.msk [vmem:[#allocation2] sm:$0xff] %vm1199, %v2179
      %2228 = vst.msk [vmem:[#allocation2 + $0x8] sm:$0xff] %vm1199, %v2180
      %2229 = vst.msk [vmem:[#allocation2 + $0x10] sm:$0xff] %vm1199, %v2181
      %2230 = vst.msk [vmem:[#allocation2 + $0x18] sm:$0xff] %vm1199, %v2182
      %2231 = vst.msk [vmem:[#allocation2 + $0x20] sm:$0xff] %vm1199, %v2183
      %2232 = vst.msk [vmem:[#allocation2 + $0x28] sm:$0xff] %vm1199, %v2184
      %2233 = vst.msk [vmem:[#allocation2 + $0x30] sm:$0xff] %vm1199, %v2185
      %2234 = vst.msk [vmem:[#allocation2 + $0x38] sm:$0xff] %vm1199, %v2186
      %2235 = vst.msk [vmem:[#allocation2 + $0x40] sm:$0xff] %vm1199, %v2187
      %2236 = vst.msk [vmem:[#allocation2 + $0x48] sm:$0xff] %vm1199, %v2188
      %2237 = vst.msk [vmem:[#allocation2 + $0x50] sm:$0xff] %vm1199, %v2189
      %2238 = vst.msk [vmem:[#allocation2 + $0x58] sm:$0xff] %vm1199, %v2190
      %2239 = vst.msk [vmem:[#allocation2 + $0x60] sm:$0xff] %vm1199, %v2191
      %2240 = vst.msk [vmem:[#allocation2 + $0x68] sm:$0xff] %vm1199, %v2192
      %2241 = vst.msk [vmem:[#allocation2 + $0x70] sm:$0xff] %vm1199, %v2193
      %2242 = vst.msk [vmem:[#allocation2 + $0x78] sm:$0xff] %vm1199, %v2194
      %2243 = vst.msk [vmem:[#allocation2 + $0x80] sm:$0xff] %vm1199, %v2195
      %2244 = vst.msk [vmem:[#allocation2 + $0x88] sm:$0xff] %vm1199, %v2196
      %2245 = vst.msk [vmem:[#allocation2 + $0x90] sm:$0xff] %vm1199, %v2197
      %2246 = vst.msk [vmem:[#allocation2 + $0x98] sm:$0xff] %vm1199, %v2198
      %2247 = vst.msk [vmem:[#allocation2 + $0xa0] sm:$0xff] %vm1199, %v2199
      %2248 = vst.msk [vmem:[#allocation2 + $0xa8] sm:$0xff] %vm1199, %v2200
      %2249 = vst.msk [vmem:[#allocation2 + $0xb0] sm:$0xff] %vm1199, %v2201
      %2250 = vst.msk [vmem:[#allocation2 + $0xb8] sm:$0xff] %vm1199, %v2202
      %2251 = vst.msk [vmem:[#allocation2 + $0xc0] sm:$0xff] %vm1199, %v2203
      %2252 = vst.msk [vmem:[#allocation2 + $0xc8] sm:$0xff] %vm1199, %v2204
      %2253 = vst.msk [vmem:[#allocation2 + $0xd0] sm:$0xff] %vm1199, %v2205
      %2254 = vst.msk [vmem:[#allocation2 + $0xd8] sm:$0xff] %vm1199, %v2206
      %2255 = vst.msk [vmem:[#allocation2 + $0xe0] sm:$0xff] %vm1199, %v2207
      %2256 = vst.msk [vmem:[#allocation2 + $0xe8] sm:$0xff] %vm1199, %v2208
      %2257 = vst.msk [vmem:[#allocation2 + $0xf0] sm:$0xff] %vm1199, %v2209
      %2258 = vst.msk [vmem:[#allocation2 + $0xf8] sm:$0xff] %vm1199, %v2210
      %2259 = vst.msk [vmem:[#allocation2 + $0x100] sm:$0xff] %vm1199, %v2211
      %2260 = vst.msk [vmem:[#allocation2 + $0x108] sm:$0xff] %vm1199, %v2212
      %2261 = vst.msk [vmem:[#allocation2 + $0x110] sm:$0xff] %vm1199, %v2213
      %2262 = vst.msk [vmem:[#allocation2 + $0x118] sm:$0xff] %vm1199, %v2214
      %2263 = vst.msk [vmem:[#allocation2 + $0x120] sm:$0xff] %vm1199, %v2215
      %2264 = vst.msk [vmem:[#allocation2 + $0x128] sm:$0xff] %vm1199, %v2216
      %2265 = vst.msk [vmem:[#allocation2 + $0x130] sm:$0xff] %vm1199, %v2217
      %2266 = vst.msk [vmem:[#allocation2 + $0x138] sm:$0xff] %vm1199, %v2218
      %2267 = vst.msk [vmem:[#allocation2 + $0x140] sm:$0xff] %vm1199, %v2219
      %2268 = vst.msk [vmem:[#allocation2 + $0x148] sm:$0xff] %vm1199, %v2220
      %2269 = vst.msk [vmem:[#allocation2 + $0x150] sm:$0xff] %vm1199, %v2221
      %2270 = vst.msk [vmem:[#allocation2 + $0x158] sm:$0xff] %vm1199, %v2222
      %2271 = vst.msk [vmem:[#allocation2 + $0x160] sm:$0xff] %vm1199, %v2223
      %2272 = vst.msk [vmem:[#allocation2 + $0x168] sm:$0xff] %vm1199, %v2224
      %2273 = vst.msk [vmem:[#allocation2 + $0x170] sm:$0xff] %vm1199, %v2225
      %2274 = vst.msk [vmem:[#allocation2 + $0x178] sm:$0xff] %vm1199, %v2226
      %v2275 = vld [vmem:[#allocation2] sm:$0xff]
      %v2276 = vld [vmem:[#allocation2 + $0x8] sm:$0xff]
      %v2277 = vld [vmem:[#allocation2 + $0x10] sm:$0xff]
      %v2278 = vld [vmem:[#allocation2 + $0x18] sm:$0xff]
      %v2279 = vld [vmem:[#allocation2 + $0x20] sm:$0xff]
      %v2280 = vld [vmem:[#allocation2 + $0x28] sm:$0xff]
      %v2281 = vld [vmem:[#allocation2 + $0x30] sm:$0xff]
      %v2282 = vld [vmem:[#allocation2 + $0x38] sm:$0xff]
      %v2283 = vld [vmem:[#allocation2 + $0x40] sm:$0xff]
      %v2284 = vld [vmem:[#allocation2 + $0x48] sm:$0xff]
      %v2285 = vld [vmem:[#allocation2 + $0x50] sm:$0xff]
      %v2286 = vld [vmem:[#allocation2 + $0x58] sm:$0xff]
      %v2287 = vld [vmem:[#allocation2 + $0x60] sm:$0xff]
      %v2288 = vld [vmem:[#allocation2 + $0x68] sm:$0xff]
      %v2289 = vld [vmem:[#allocation2 + $0x70] sm:$0xff]
      %v2290 = vld [vmem:[#allocation2 + $0x78] sm:$0xff]
      %v2291 = vld [vmem:[#allocation2 + $0x80] sm:$0xff]
      %v2292 = vld [vmem:[#allocation2 + $0x88] sm:$0xff]
      %v2293 = vld [vmem:[#allocation2 + $0x90] sm:$0xff]
      %v2294 = vld [vmem:[#allocation2 + $0x98] sm:$0xff]
      %v2295 = vld [vmem:[#allocation2 + $0xa0] sm:$0xff]
      %v2296 = vld [vmem:[#allocation2 + $0xa8] sm:$0xff]
      %v2297 = vld [vmem:[#allocation2 + $0xb0] sm:$0xff]
      %v2298 = vld [vmem:[#allocation2 + $0xb8] sm:$0xff]
      %v2299 = vld [vmem:[#allocation2 + $0xc0] sm:$0xff]
      %v2300 = vld [vmem:[#allocation2 + $0xc8] sm:$0xff]
      %v2301 = vld [vmem:[#allocation2 + $0xd0] sm:$0xff]
      %v2302 = vld [vmem:[#allocation2 + $0xd8] sm:$0xff]
      %v2303 = vld [vmem:[#allocation2 + $0xe0] sm:$0xff]
      %v2304 = vld [vmem:[#allocation2 + $0xe8] sm:$0xff]
      %v2305 = vld [vmem:[#allocation2 + $0xf0] sm:$0xff]
      %v2306 = vld [vmem:[#allocation2 + $0xf8] sm:$0xff]
      %v2307 = vld [vmem:[#allocation2 + $0x100] sm:$0xff]
      %v2308 = vld [vmem:[#allocation2 + $0x108] sm:$0xff]
      %v2309 = vld [vmem:[#allocation2 + $0x110] sm:$0xff]
      %v2310 = vld [vmem:[#allocation2 + $0x118] sm:$0xff]
      %v2311 = vld [vmem:[#allocation2 + $0x120] sm:$0xff]
      %v2312 = vld [vmem:[#allocation2 + $0x128] sm:$0xff]
      %v2313 = vld [vmem:[#allocation2 + $0x130] sm:$0xff]
      %v2314 = vld [vmem:[#allocation2 + $0x138] sm:$0xff]
      %v2315 = vld [vmem:[#allocation2 + $0x140] sm:$0xff]
      %v2316 = vld [vmem:[#allocation2 + $0x148] sm:$0xff]
      %v2317 = vld [vmem:[#allocation2 + $0x150] sm:$0xff]
      %v2318 = vld [vmem:[#allocation2 + $0x158] sm:$0xff]
      %v2319 = vld [vmem:[#allocation2 + $0x160] sm:$0xff]
      %v2320 = vld [vmem:[#allocation2 + $0x168] sm:$0xff]
      %v2321 = vld [vmem:[#allocation2 + $0x170] sm:$0xff]
      %v2322 = vld [vmem:[#allocation2 + $0x178] sm:$0xff]
      %v2323 = vld [vmem:[%s219 + $0xc] sm:$0xf]
      %v2324 = vld [vmem:[%s219 + $0x10] sm:$0xf]
      %v2325 = vld [vmem:[%s219 + $0x14] sm:$0xf]
      %v2326 = vld [vmem:[%s219 + $0x18] sm:$0xf]
      %v2327 = vld [vmem:[%s219 + $0x1c] sm:$0xf]
      %v2328 = vld [vmem:[%s219 + $0x20] sm:$0xf]
      %v2329 = vld [vmem:[%s219 + $0x24] sm:$0xf]
      %v2330 = vld [vmem:[%s219 + $0x28] sm:$0xf]
      %v2331 = vld [vmem:[%s219 + $0x2c] sm:$0xf]
      %v2332 = vld [vmem:[%s219 + $0x30] sm:$0xf]
      %v2333 = vld [vmem:[%s219 + $0x34] sm:$0xf]
      %v2334 = vld [vmem:[%s219 + $0x38] sm:$0xf]
      %v2335 = vld [vmem:[%s219 + $0x3c] sm:$0xf]
      %v2336 = vld [vmem:[%s219 + $0x40] sm:$0xf]
      %v2337 = vld [vmem:[%s219 + $0x44] sm:$0xf]
      %v2338 = vld [vmem:[%s219 + $0x48] sm:$0xf]
      %v2339 = vld [vmem:[%s219 + $0x4c] sm:$0xf]
      %v2340 = vld [vmem:[%s219 + $0x50] sm:$0xf]
      %v2341 = vld [vmem:[%s219 + $0x54] sm:$0xf]
      %v2342 = vld [vmem:[%s219 + $0x58] sm:$0xf]
      %v2343 = vld [vmem:[%s219 + $0x5c] sm:$0xf]
      %v2344 = vld [vmem:[%s219 + $0x60] sm:$0xf]
      %v2345 = vld [vmem:[%s219 + $0x64] sm:$0xf]
      %v2346 = vld [vmem:[%s219 + $0x68] sm:$0xf]
      %v2347 = vld [vmem:[%s219 + $0x6c] sm:$0xf]
      %v2348 = vld [vmem:[%s219 + $0x70] sm:$0xf]
      %v2349 = vld [vmem:[%s219 + $0x74] sm:$0xf]
      %v2350 = vld [vmem:[%s219 + $0x78] sm:$0xf]
      %v2351 = vld [vmem:[%s219 + $0x7c] sm:$0xf]
      %v2352 = vld [vmem:[%s219 + $0x80] sm:$0xf]
      %v2353 = vld [vmem:[%s219 + $0x84] sm:$0xf]
      %v2354 = vld [vmem:[%s219 + $0x88] sm:$0xf]
      %v2355 = vld [vmem:[%s219 + $0x8c] sm:$0xf]
      %v2356 = vld [vmem:[%s219 + $0x90] sm:$0xf]
      %v2357 = vld [vmem:[%s219 + $0x94] sm:$0xf]
      %v2358 = vld [vmem:[%s219 + $0x98] sm:$0xf]
      %v2359 = vld [vmem:[%s219 + $0x9c] sm:$0xf]
      %v2360 = vld [vmem:[%s219 + $0xa0] sm:$0xf]
      %v2361 = vld [vmem:[%s219 + $0xa4] sm:$0xf]
      %v2362 = vld [vmem:[%s219 + $0xa8] sm:$0xf]
      %v2363 = vld [vmem:[%s219 + $0xac] sm:$0xf]
      %v2364 = vld [vmem:[%s219 + $0xb0] sm:$0xf]
      %v2365 = vld [vmem:[%s219 + $0xb4] sm:$0xf]
      %v2366 = vld [vmem:[%s219 + $0xb8] sm:$0xf]
      %v2367 = vld [vmem:[%s219 + $0xbc] sm:$0xf]
      %v2368 = vld [vmem:[%s219 + $0xc0] sm:$0xf]
      %v2369 = vld [vmem:[%s219 + $0xc4] sm:$0xf]
      %v2370 = vld [vmem:[%s219 + $0xc8] sm:$0xf]
      %v2371 = vld [vmem:[%s219 + $0xcc] sm:$0x1]
      %s2372 = scalar_lea.vmem %s1, 64
      %v2373 = vld [vmem:[%s2372] sm:$0xf]
      %v2374 = vld [vmem:[%s2372 + $0x4] sm:$0xf]
      %v2375 = vld [vmem:[%s2372 + $0x8] sm:$0xf]
      %v2376 = vld [vmem:[%s2372 + $0xc] sm:$0xf]
      %v2377 = vld [vmem:[%s219 + $0xc] sm:$0xe]
      %s2378 = scalar_lea.vmem %s1, 80
      %v2379 = vld [vmem:[%s2378] sm:$0xf]
      %v2380 = vld [vmem:[%s2378 + $0x4] sm:$0xf]
      %v2381 = vld [vmem:[%s2378 + $0x8] sm:$0xf]
      %v2382 = vld [vmem:[%s2378 + $0xc] sm:$0xf]
      %v2432 = vunpack.c.l.b16 %v2377
      %v2433 = vunpack.c.l.b16 %v2324
      %v2434 = vunpack.c.l.b16 %v2325
      %v2435 = vunpack.c.l.b16 %v2326
      %v2436 = vunpack.c.l.b16 %v2327
      %v2437 = vunpack.c.l.b16 %v2328
      %v2438 = vunpack.c.l.b16 %v2329
      %v2439 = vunpack.c.l.b16 %v2330
      %v2440 = vunpack.c.l.b16 %v2331
      %v2441 = vunpack.c.l.b16 %v2332
      %v2442 = vunpack.c.l.b16 %v2333
      %v2443 = vunpack.c.l.b16 %v2334
      %v2444 = vunpack.c.l.b16 %v2335
      %v2445 = vunpack.c.l.b16 %v2336
      %v2446 = vunpack.c.l.b16 %v2337
      %v2447 = vunpack.c.l.b16 %v2338
      %v2448 = vunpack.c.l.b16 %v2339
      %v2449 = vunpack.c.l.b16 %v2340
      %v2450 = vunpack.c.l.b16 %v2341
      %v2451 = vunpack.c.l.b16 %v2342
      %v2452 = vunpack.c.l.b16 %v2343
      %v2453 = vunpack.c.l.b16 %v2344
      %v2454 = vunpack.c.l.b16 %v2345
      %v2455 = vunpack.c.l.b16 %v2346
      %v2456 = vunpack.c.l.b16 %v2347
      %v2457 = vunpack.c.l.b16 %v2348
      %v2458 = vunpack.c.l.b16 %v2349
      %v2459 = vunpack.c.l.b16 %v2350
      %v2460 = vunpack.c.l.b16 %v2351
      %v2461 = vunpack.c.l.b16 %v2352
      %v2462 = vunpack.c.l.b16 %v2353
      %v2463 = vunpack.c.l.b16 %v2354
      %v2464 = vunpack.c.l.b16 %v2355
      %v2465 = vunpack.c.l.b16 %v2356
      %v2466 = vunpack.c.l.b16 %v2357
      %v2467 = vunpack.c.l.b16 %v2358
      %v2468 = vunpack.c.l.b16 %v2359
      %v2469 = vunpack.c.l.b16 %v2360
      %v2470 = vunpack.c.l.b16 %v2361
      %v2471 = vunpack.c.l.b16 %v2362
      %v2472 = vunpack.c.l.b16 %v2363
      %v2473 = vunpack.c.l.b16 %v2364
      %v2474 = vunpack.c.l.b16 %v2365
      %v2475 = vunpack.c.l.b16 %v2366
      %v2476 = vunpack.c.l.b16 %v2367
      %v2477 = vunpack.c.l.b16 %v2368
      %v2478 = vunpack.c.l.b16 %v2369
      %v2479 = vunpack.c.l.b16 %v2370
      %v2480 = vunpack.c.l.b16 %v2371
      %v2481 = vpack.c.b16 %v2433, %v2432
      %v2482 = vpack.c.b16 %v2435, %v2434
      %v2483 = vpack.c.b16 %v2437, %v2436
      %v2484 = vpack.c.b16 %v2439, %v2438
      %v2485 = vpack.c.b16 %v2441, %v2440
      %v2486 = vpack.c.b16 %v2443, %v2442
      %v2487 = vpack.c.b16 %v2445, %v2444
      %v2488 = vpack.c.b16 %v2447, %v2446
      %v2489 = vpack.c.b16 %v2449, %v2448
      %v2490 = vpack.c.b16 %v2451, %v2450
      %v2491 = vpack.c.b16 %v2453, %v2452
      %v2492 = vpack.c.b16 %v2455, %v2454
      %v2493 = vpack.c.b16 %v2457, %v2456
      %v2494 = vpack.c.b16 %v2459, %v2458
      %v2495 = vpack.c.b16 %v2461, %v2460
      %v2496 = vpack.c.b16 %v2463, %v2462
      %v2497 = vpack.c.b16 %v2465, %v2464
      %v2498 = vpack.c.b16 %v2467, %v2466
      %v2499 = vpack.c.b16 %v2469, %v2468
      %v2500 = vpack.c.b16 %v2471, %v2470
      %v2501 = vpack.c.b16 %v2473, %v2472
      %v2502 = vpack.c.b16 %v2475, %v2474
      %v2503 = vpack.c.b16 %v2477, %v2476
      %v2504 = vpack.c.b16 %v2479, %v2478
      %v2505 = vpack.c.b16 %v2480, %v2480
      %v2506 = vrot.slane %v2481, 1
      %v2507 = vrot.slane %v2482, 1
      %v2508 = vsel %vm1820, %v2506, %v2507
      %v2509 = vrot.slane %v2483, 1
      %v2510 = vsel %vm1820, %v2507, %v2509
      %v2511 = vrot.slane %v2484, 1
      %v2512 = vsel %vm1820, %v2509, %v2511
      %v2513 = vrot.slane %v2485, 1
      %v2514 = vsel %vm1820, %v2511, %v2513
      %v2515 = vrot.slane %v2486, 1
      %v2516 = vsel %vm1820, %v2513, %v2515
      %v2517 = vrot.slane %v2487, 1
      %v2518 = vsel %vm1820, %v2515, %v2517
      %v2519 = vrot.slane %v2488, 1
      %v2520 = vsel %vm1820, %v2517, %v2519
      %v2521 = vrot.slane %v2489, 1
      %v2522 = vsel %vm1820, %v2519, %v2521
      %v2523 = vrot.slane %v2490, 1
      %v2524 = vsel %vm1820, %v2521, %v2523
      %v2525 = vrot.slane %v2491, 1
      %v2526 = vsel %vm1820, %v2523, %v2525
      %v2527 = vrot.slane %v2492, 1
      %v2528 = vsel %vm1820, %v2525, %v2527
      %v2529 = vrot.slane %v2493, 1
      %v2530 = vsel %vm1820, %v2527, %v2529
      %v2531 = vrot.slane %v2494, 1
      %v2532 = vsel %vm1820, %v2529, %v2531
      %v2533 = vrot.slane %v2495, 1
      %v2534 = vsel %vm1820, %v2531, %v2533
      %v2535 = vrot.slane %v2496, 1
      %v2536 = vsel %vm1820, %v2533, %v2535
      %v2537 = vrot.slane %v2497, 1
      %v2538 = vsel %vm1820, %v2535, %v2537
      %v2539 = vrot.slane %v2498, 1
      %v2540 = vsel %vm1820, %v2537, %v2539
      %v2541 = vrot.slane %v2499, 1
      %v2542 = vsel %vm1820, %v2539, %v2541
      %v2543 = vrot.slane %v2500, 1
      %v2544 = vsel %vm1820, %v2541, %v2543
      %v2545 = vrot.slane %v2501, 1
      %v2546 = vsel %vm1820, %v2543, %v2545
      %v2547 = vrot.slane %v2502, 1
      %v2548 = vsel %vm1820, %v2545, %v2547
      %v2549 = vrot.slane %v2503, 1
      %v2550 = vsel %vm1820, %v2547, %v2549
      %v2551 = vrot.slane %v2504, 1
      %v2552 = vsel %vm1820, %v2549, %v2551
      %v2553 = vrot.slane %v2505, 1
      %v2554 = vsel %vm1820, %v2551, %v2553
      %v2559 = vunpack.c.l.b16 %v2379
      %v2560 = vunpack.c.l.b16 %v2380
      %v2561 = vunpack.c.l.b16 %v2381
      %v2562 = vunpack.c.l.b16 %v2382
      %v2563 = vpack.c.b16 %v2560, %v2559
      %v2564 = vpack.c.b16 %v2562, %v2561
      %v2568 = vsel %vm616, %v2508, 0
      %v2571 = vsel %vm616, %v2510, 0
      %v2574 = vsel %vm616, %v2512, 0
      %v2577 = vsel %vm616, %v2514, 0
      %v2580 = vsel %vm616, %v2516, 0
      %v2583 = vsel %vm616, %v2518, 0
      %v2586 = vsel %vm616, %v2520, 0
      %v2589 = vsel %vm616, %v2522, 0
      %v2592 = vsel %vm616, %v2524, 0
      %v2595 = vsel %vm616, %v2526, 0
      %v2598 = vsel %vm616, %v2528, 0
      %v2601 = vsel %vm616, %v2530, 0
      %v2604 = vsel %vm616, %v2532, 0
      %v2607 = vsel %vm616, %v2534, 0
      %v2610 = vsel %vm616, %v2536, 0
      %v2613 = vsel %vm616, %v2538, 0
      %v2616 = vsel %vm616, %v2540, 0
      %v2619 = vsel %vm616, %v2542, 0
      %v2622 = vsel %vm616, %v2544, 0
      %v2625 = vsel %vm616, %v2546, 0
      %v2628 = vsel %vm616, %v2548, 0
      %v2631 = vsel %vm616, %v2550, 0
      %v2634 = vsel %vm616, %v2552, 0
      %v2637 = vsel %vm616, %v2554, 0
      %2639 = vmatprep.subr.bf16.mxu0 0
      %2640 = vmatpush1.bf16.msra.mxu0 %v2563
      %2641 = vmatprep.subr.bf16.mxu0 0
      %2642 = vmatpush1.bf16.msra.mxu0 %v2564
      %2643 = vmatprep.subr.bf16.mxu0 0
      %2644 = vmatpush1.bf16.msra.mxu0 0
      %2645 = vmatprep.subr.bf16.mxu0 0
      %2646 = vmatpush1.bf16.msra.mxu0 0
      %2647 = vmatprep.subr.bf16.mxu0 0
      %2648 = vmatpush1.bf16.msra.mxu0 0
      %2649 = vmatprep.subr.bf16.mxu0 0
      %2650 = vmatpush1.bf16.msra.mxu0 0
      %2651 = vmatprep.subr.bf16.mxu0 0
      %2652 = vmatpush1.bf16.msra.mxu0 0
      %2653 = vmatprep.subr.bf16.mxu0 0
      %2654 = vmatpush1.bf16.msra.mxu0 0
      %2655 = vmatprep.subr.bf16.mxu0 0
      %2656 = vmatpush1.bf16.msra.mxu0 0
      %2657 = vmatprep.subr.bf16.mxu0 0
      %2658 = vmatpush1.bf16.msra.mxu0 0
      %2659 = vmatprep.subr.bf16.mxu0 0
      %2660 = vmatpush1.bf16.msra.mxu0 0
      %2661 = vmatprep.subr.bf16.mxu0 0
      %2662 = vmatpush1.bf16.msra.mxu0 0
      %2663 = vmatprep.subr.bf16.mxu0 0
      %2664 = vmatpush1.bf16.msra.mxu0 0
      %2665 = vmatprep.subr.bf16.mxu0 0
      %2666 = vmatpush1.bf16.msra.mxu0 0
      %2667 = vmatprep.subr.bf16.mxu0 0
      %2668 = vmatpush1.bf16.msra.mxu0 0
      %2669 = vmatprep.subr.bf16.mxu0 0
      %2670 = vmatpush1.bf16.msra.mxu0 0
      %2671 = vmatprep.mubr.bf16.mxu0 0
      %2672 = vmatmul.mubr.bf16.gmra.mrb[0].mxu0 %v2568
      %v2673 = vpop.f32.mrb[0].mxu0
      %v2674 = vadd.f32 0.0, %v2673
      %v2675 = vpop.f32.mrb[0].mxu0
      %v2676 = vpop.f32.mrb[0].mxu0
      %v2677 = vadd.f32 0.0, %v2676
      %v2678 = vpop.f32.mrb[0].mxu0
      %2679 = vmatprep.mubr.bf16.mxu0 0
      %2680 = vmatmul.mubr.bf16.gmra.mrb[0].mxu0 %v2571
      %v2681 = vpop.f32.mrb[0].mxu0
      %v2682 = vadd.f32 0.0, %v2681
      %v2683 = vpop.f32.mrb[0].mxu0
      %v2684 = vpop.f32.mrb[0].mxu0
      %v2685 = vadd.f32 0.0, %v2684
      %v2686 = vpop.f32.mrb[0].mxu0
      %2687 = vmatprep.mubr.bf16.mxu0 0
      %2688 = vmatmul.mubr.bf16.gmra.mrb[0].mxu0 %v2574
      %v2689 = vpop.f32.mrb[0].mxu0
      %v2690 = vadd.f32 0.0, %v2689
      %v2691 = vpop.f32.mrb[0].mxu0
      %v2692 = vpop.f32.mrb[0].mxu0
      %v2693 = vadd.f32 0.0, %v2692
      %v2694 = vpop.f32.mrb[0].mxu0
      %2695 = vmatprep.mubr.bf16.mxu0 0
      %2696 = vmatmul.mubr.bf16.gmra.mrb[0].mxu0 %v2577
      %v2697 = vpop.f32.mrb[0].mxu0
      %v2698 = vadd.f32 0.0, %v2697
      %v2699 = vpop.f32.mrb[0].mxu0
      %v2700 = vpop.f32.mrb[0].mxu0
      %v2701 = vadd.f32 0.0, %v2700
      %v2702 = vpop.f32.mrb[0].mxu0
      %2703 = vmatprep.mubr.bf16.mxu0 0
      %2704 = vmatmul.mubr.bf16.gmra.mrb[0].mxu0 %v2580
      %v2705 = vpop.f32.mrb[0].mxu0
      %v2706 = vadd.f32 0.0, %v2705
      %v2707 = vpop.f32.mrb[0].mxu0
      %v2708 = vpop.f32.mrb[0].mxu0
      %v2709 = vadd.f32 0.0, %v2708
      %v2710 = vpop.f32.mrb[0].mxu0
      %2711 = vmatprep.mubr.bf16.mxu0 0
      %2712 = vmatmul.mubr.bf16.gmra.mrb[0].mxu0 %v2583
      %v2713 = vpop.f32.mrb[0].mxu0
      %v2714 = vadd.f32 0.0, %v2713
      %v2715 = vpop.f32.mrb[0].mxu0
      %v2716 = vpop.f32.mrb[0].mxu0
      %v2717 = vadd.f32 0.0, %v2716
      %v2718 = vpop.f32.mrb[0].mxu0
      %2719 = vmatprep.mubr.bf16.mxu0 0
      %2720 = vmatmul.mubr.bf16.gmra.mrb[0].mxu0 %v2586
      %v2721 = vpop.f32.mrb[0].mxu0
      %v2722 = vadd.f32 0.0, %v2721
      %v2723 = vpop.f32.mrb[0].mxu0
      %v2724 = vpop.f32.mrb[0].mxu0
      %v2725 = vadd.f32 0.0, %v2724
      %v2726 = vpop.f32.mrb[0].mxu0
      %2727 = vmatprep.mubr.bf16.mxu0 0
      %2728 = vmatmul.mubr.bf16.gmra.mrb[0].mxu0 %v2589
      %v2729 = vpop.f32.mrb[0].mxu0
      %v2730 = vadd.f32 0.0, %v2729
      %v2731 = vpop.f32.mrb[0].mxu0
      %v2732 = vpop.f32.mrb[0].mxu0
      %v2733 = vadd.f32 0.0, %v2732
      %v2734 = vpop.f32.mrb[0].mxu0
      %2735 = vmatprep.mubr.bf16.mxu0 0
      %2736 = vmatmul.mubr.bf16.gmra.mrb[0].mxu0 %v2592
      %v2737 = vpop.f32.mrb[0].mxu0
      %v2738 = vadd.f32 0.0, %v2737
      %v2739 = vpop.f32.mrb[0].mxu0
      %v2740 = vpop.f32.mrb[0].mxu0
      %v2741 = vadd.f32 0.0, %v2740
      %v2742 = vpop.f32.mrb[0].mxu0
      %2743 = vmatprep.mubr.bf16.mxu0 0
      %2744 = vmatmul.mubr.bf16.gmra.mrb[0].mxu0 %v2595
      %v2745 = vpop.f32.mrb[0].mxu0
      %v2746 = vadd.f32 0.0, %v2745
      %v2747 = vpop.f32.mrb[0].mxu0
      %v2748 = vpop.f32.mrb[0].mxu0
      %v2749 = vadd.f32 0.0, %v2748
      %v2750 = vpop.f32.mrb[0].mxu0
      %2751 = vmatprep.mubr.bf16.mxu0 0
      %2752 = vmatmul.mubr.bf16.gmra.mrb[0].mxu0 %v2598
      %v2753 = vpop.f32.mrb[0].mxu0
      %v2754 = vadd.f32 0.0, %v2753
      %v2755 = vpop.f32.mrb[0].mxu0
      %v2756 = vpop.f32.mrb[0].mxu0
      %v2757 = vadd.f32 0.0, %v2756
      %v2758 = vpop.f32.mrb[0].mxu0
      %2759 = vmatprep.mubr.bf16.mxu0 0
      %2760 = vmatmul.mubr.bf16.gmra.mrb[0].mxu0 %v2601
      %v2761 = vpop.f32.mrb[0].mxu0
      %v2762 = vadd.f32 0.0, %v2761
      %v2763 = vpop.f32.mrb[0].mxu0
      %v2764 = vpop.f32.mrb[0].mxu0
      %v2765 = vadd.f32 0.0, %v2764
      %v2766 = vpop.f32.mrb[0].mxu0
      %2767 = vmatprep.mubr.bf16.mxu0 0
      %2768 = vmatmul.mubr.bf16.gmra.mrb[0].mxu0 %v2604
      %v2769 = vpop.f32.mrb[0].mxu0
      %v2770 = vadd.f32 0.0, %v2769
      %v2771 = vpop.f32.mrb[0].mxu0
      %v2772 = vpop.f32.mrb[0].mxu0
      %v2773 = vadd.f32 0.0, %v2772
      %v2774 = vpop.f32.mrb[0].mxu0
      %2775 = vmatprep.mubr.bf16.mxu0 0
      %2776 = vmatmul.mubr.bf16.gmra.mrb[0].mxu0 %v2607
      %v2777 = vpop.f32.mrb[0].mxu0
      %v2778 = vadd.f32 0.0, %v2777
      %v2779 = vpop.f32.mrb[0].mxu0
      %v2780 = vpop.f32.mrb[0].mxu0
      %v2781 = vadd.f32 0.0, %v2780
      %v2782 = vpop.f32.mrb[0].mxu0
      %2783 = vmatprep.mubr.bf16.mxu0 0
      %2784 = vmatmul.mubr.bf16.gmra.mrb[0].mxu0 %v2610
      %v2785 = vpop.f32.mrb[0].mxu0
      %v2786 = vadd.f32 0.0, %v2785
      %v2787 = vpop.f32.mrb[0].mxu0
      %v2788 = vpop.f32.mrb[0].mxu0
      %v2789 = vadd.f32 0.0, %v2788
      %v2790 = vpop.f32.mrb[0].mxu0
      %2791 = vmatprep.mubr.bf16.mxu0 0
      %2792 = vmatmul.mubr.bf16.gmra.mrb[0].mxu0 %v2613
      %v2793 = vpop.f32.mrb[0].mxu0
      %v2794 = vadd.f32 0.0, %v2793
      %v2795 = vpop.f32.mrb[0].mxu0
      %v2796 = vpop.f32.mrb[0].mxu0
      %v2797 = vadd.f32 0.0, %v2796
      %v2798 = vpop.f32.mrb[0].mxu0
      %2799 = vmatprep.mubr.bf16.mxu0 0
      %2800 = vmatmul.mubr.bf16.gmra.mrb[0].mxu0 %v2616
      %v2801 = vpop.f32.mrb[0].mxu0
      %v2802 = vadd.f32 0.0, %v2801
      %v2803 = vpop.f32.mrb[0].mxu0
      %v2804 = vpop.f32.mrb[0].mxu0
      %v2805 = vadd.f32 0.0, %v2804
      %v2806 = vpop.f32.mrb[0].mxu0
      %2807 = vmatprep.mubr.bf16.mxu0 0
      %2808 = vmatmul.mubr.bf16.gmra.mrb[0].mxu0 %v2619
      %v2809 = vpop.f32.mrb[0].mxu0
      %v2810 = vadd.f32 0.0, %v2809
      %v2811 = vpop.f32.mrb[0].mxu0
      %v2812 = vpop.f32.mrb[0].mxu0
      %v2813 = vadd.f32 0.0, %v2812
      %v2814 = vpop.f32.mrb[0].mxu0
      %2815 = vmatprep.mubr.bf16.mxu0 0
      %2816 = vmatmul.mubr.bf16.gmra.mrb[0].mxu0 %v2622
      %v2817 = vpop.f32.mrb[0].mxu0
      %v2818 = vadd.f32 0.0, %v2817
      %v2819 = vpop.f32.mrb[0].mxu0
      %v2820 = vpop.f32.mrb[0].mxu0
      %v2821 = vadd.f32 0.0, %v2820
      %v2822 = vpop.f32.mrb[0].mxu0
      %2823 = vmatprep.mubr.bf16.mxu0 0
      %2824 = vmatmul.mubr.bf16.gmra.mrb[0].mxu0 %v2625
      %v2825 = vpop.f32.mrb[0].mxu0
      %v2826 = vadd.f32 0.0, %v2825
      %v2827 = vpop.f32.mrb[0].mxu0
      %v2828 = vpop.f32.mrb[0].mxu0
      %v2829 = vadd.f32 0.0, %v2828
      %v2830 = vpop.f32.mrb[0].mxu0
      %2831 = vmatprep.mubr.bf16.mxu0 0
      %2832 = vmatmul.mubr.bf16.gmra.mrb[0].mxu0 %v2628
      %v2833 = vpop.f32.mrb[0].mxu0
      %v2834 = vadd.f32 0.0, %v2833
      %v2835 = vpop.f32.mrb[0].mxu0
      %v2836 = vpop.f32.mrb[0].mxu0
      %v2837 = vadd.f32 0.0, %v2836
      %v2838 = vpop.f32.mrb[0].mxu0
      %2839 = vmatprep.mubr.bf16.mxu0 0
      %2840 = vmatmul.mubr.bf16.gmra.mrb[0].mxu0 %v2631
      %v2841 = vpop.f32.mrb[0].mxu0
      %v2842 = vadd.f32 0.0, %v2841
      %v2843 = vpop.f32.mrb[0].mxu0
      %v2844 = vpop.f32.mrb[0].mxu0
      %v2845 = vadd.f32 0.0, %v2844
      %v2846 = vpop.f32.mrb[0].mxu0
      %2847 = vmatprep.mubr.bf16.mxu0 0
      %2848 = vmatmul.mubr.bf16.gmra.mrb[0].mxu0 %v2634
      %v2849 = vpop.f32.mrb[0].mxu0
      %v2850 = vadd.f32 0.0, %v2849
      %v2851 = vpop.f32.mrb[0].mxu0
      %v2852 = vpop.f32.mrb[0].mxu0
      %v2853 = vadd.f32 0.0, %v2852
      %v2854 = vpop.f32.mrb[0].mxu0
      %2855 = vmatprep.mubr.bf16.mxu0 0
      %2856 = vmatmul.mubr.bf16.gmra.mrb[0].mxu0 %v2637
      %v2857 = vpop.f32.mrb[0].mxu0
      %v2858 = vadd.f32 0.0, %v2857
      %v2859 = vpop.f32.mrb[0].mxu0
      %v2860 = vpop.f32.mrb[0].mxu0
      %v2861 = vadd.f32 0.0, %v2860
      %v2862 = vpop.f32.mrb[0].mxu0
      %2863 = vdwg.mxu0
      %v2865 = vunpack.c.l.b16 %v2323
      %v2866 = vpack.c.b16 %v2433, %v2865
      %v2868 = vshrl.u32 %v2866, 16
      %v2870 = vshll.u32 %v2866, 16
      %v2872 = vrot.slane %v2870, 1
      %v2873 = vor.u32 %v2868, %v2872
      %v2875 = vshll.u32 %v2482, 16
      %v2877 = vrot.slane %v2875, 1
      %v2878 = vsel %vm407, %v2873, %v2877
      %v2879 = vshrl.u32 %v2482, 16
      %v2881 = vor.u32 %v2879, %v2877
      %v2883 = vshll.u32 %v2483, 16
      %v2885 = vrot.slane %v2883, 1
      %v2886 = vsel %vm407, %v2881, %v2885
      %v2887 = vshrl.u32 %v2483, 16
      %v2889 = vor.u32 %v2887, %v2885
      %v2891 = vshll.u32 %v2484, 16
      %v2893 = vrot.slane %v2891, 1
      %v2894 = vsel %vm407, %v2889, %v2893
      %v2895 = vshrl.u32 %v2484, 16
      %v2897 = vor.u32 %v2895, %v2893
      %v2899 = vshll.u32 %v2485, 16
      %v2901 = vrot.slane %v2899, 1
      %v2902 = vsel %vm407, %v2897, %v2901
      %v2903 = vshrl.u32 %v2485, 16
      %v2905 = vor.u32 %v2903, %v2901
      %v2907 = vshll.u32 %v2486, 16
      %v2909 = vrot.slane %v2907, 1
      %v2910 = vsel %vm407, %v2905, %v2909
      %v2911 = vshrl.u32 %v2486, 16
      %v2913 = vor.u32 %v2911, %v2909
      %v2915 = vshll.u32 %v2487, 16
      %v2917 = vrot.slane %v2915, 1
      %v2918 = vsel %vm407, %v2913, %v2917
      %v2919 = vshrl.u32 %v2487, 16
      %v2921 = vor.u32 %v2919, %v2917
      %v2923 = vshll.u32 %v2488, 16
      %v2925 = vrot.slane %v2923, 1
      %v2926 = vsel %vm407, %v2921, %v2925
      %v2927 = vshrl.u32 %v2488, 16
      %v2929 = vor.u32 %v2927, %v2925
      %v2931 = vshll.u32 %v2489, 16
      %v2933 = vrot.slane %v2931, 1
      %v2934 = vsel %vm407, %v2929, %v2933
      %v2935 = vshrl.u32 %v2489, 16
      %v2937 = vor.u32 %v2935, %v2933
      %v2939 = vshll.u32 %v2490, 16
      %v2941 = vrot.slane %v2939, 1
      %v2942 = vsel %vm407, %v2937, %v2941
      %v2943 = vshrl.u32 %v2490, 16
      %v2945 = vor.u32 %v2943, %v2941
      %v2947 = vshll.u32 %v2491, 16
      %v2949 = vrot.slane %v2947, 1
      %v2950 = vsel %vm407, %v2945, %v2949
      %v2951 = vshrl.u32 %v2491, 16
      %v2953 = vor.u32 %v2951, %v2949
      %v2955 = vshll.u32 %v2492, 16
      %v2957 = vrot.slane %v2955, 1
      %v2958 = vsel %vm407, %v2953, %v2957
      %v2959 = vshrl.u32 %v2492, 16
      %v2961 = vor.u32 %v2959, %v2957
      %v2963 = vshll.u32 %v2493, 16
      %v2965 = vrot.slane %v2963, 1
      %v2966 = vsel %vm407, %v2961, %v2965
      %v2967 = vshrl.u32 %v2493, 16
      %v2969 = vor.u32 %v2967, %v2965
      %v2971 = vshll.u32 %v2494, 16
      %v2973 = vrot.slane %v2971, 1
      %v2974 = vsel %vm407, %v2969, %v2973
      %v2975 = vshrl.u32 %v2494, 16
      %v2977 = vor.u32 %v2975, %v2973
      %v2979 = vshll.u32 %v2495, 16
      %v2981 = vrot.slane %v2979, 1
      %v2982 = vsel %vm407, %v2977, %v2981
      %v2983 = vshrl.u32 %v2495, 16
      %v2985 = vor.u32 %v2983, %v2981
      %v2987 = vshll.u32 %v2496, 16
      %v2989 = vrot.slane %v2987, 1
      %v2990 = vsel %vm407, %v2985, %v2989
      %v2991 = vshrl.u32 %v2496, 16
      %v2993 = vor.u32 %v2991, %v2989
      %v2995 = vshll.u32 %v2497, 16
      %v2997 = vrot.slane %v2995, 1
      %v2998 = vsel %vm407, %v2993, %v2997
      %v2999 = vshrl.u32 %v2497, 16
      %v3001 = vor.u32 %v2999, %v2997
      %v3003 = vshll.u32 %v2498, 16
      %v3005 = vrot.slane %v3003, 1
      %v3006 = vsel %vm407, %v3001, %v3005
      %v3007 = vshrl.u32 %v2498, 16
      %v3009 = vor.u32 %v3007, %v3005
      %v3011 = vshll.u32 %v2499, 16
      %v3013 = vrot.slane %v3011, 1
      %v3014 = vsel %vm407, %v3009, %v3013
      %v3015 = vshrl.u32 %v2499, 16
      %v3017 = vor.u32 %v3015, %v3013
      %v3019 = vshll.u32 %v2500, 16
      %v3021 = vrot.slane %v3019, 1
      %v3022 = vsel %vm407, %v3017, %v3021
      %v3023 = vshrl.u32 %v2500, 16
      %v3025 = vor.u32 %v3023, %v3021
      %v3027 = vshll.u32 %v2501, 16
      %v3029 = vrot.slane %v3027, 1
      %v3030 = vsel %vm407, %v3025, %v3029
      %v3031 = vshrl.u32 %v2501, 16
      %v3033 = vor.u32 %v3031, %v3029
      %v3035 = vshll.u32 %v2502, 16
      %v3037 = vrot.slane %v3035, 1
      %v3038 = vsel %vm407, %v3033, %v3037
      %v3039 = vshrl.u32 %v2502, 16
      %v3041 = vor.u32 %v3039, %v3037
      %v3043 = vshll.u32 %v2503, 16
      %v3045 = vrot.slane %v3043, 1
      %v3046 = vsel %vm407, %v3041, %v3045
      %v3047 = vshrl.u32 %v2503, 16
      %v3049 = vor.u32 %v3047, %v3045
      %v3051 = vshll.u32 %v2504, 16
      %v3053 = vrot.slane %v3051, 1
      %v3054 = vsel %vm407, %v3049, %v3053
      %v3055 = vshrl.u32 %v2504, 16
      %v3057 = vor.u32 %v3055, %v3053
      %v3059 = vshll.u32 %v2505, 16
      %v3061 = vrot.slane %v3059, 1
      %v3062 = vsel %vm407, %v3057, %v3061
      %v3067 = vunpack.c.l.b16 %v2373
      %v3068 = vunpack.c.l.b16 %v2374
      %v3069 = vunpack.c.l.b16 %v2375
      %v3070 = vunpack.c.l.b16 %v2376
      %v3071 = vpack.c.b16 %v3068, %v3067
      %v3072 = vpack.c.b16 %v3070, %v3069
      %v3076 = vsel %vm616, %v2878, 0
      %v3079 = vsel %vm616, %v2886, 0
      %v3082 = vsel %vm616, %v2894, 0
      %v3085 = vsel %vm616, %v2902, 0
      %v3088 = vsel %vm616, %v2910, 0
      %v3091 = vsel %vm616, %v2918, 0
      %v3094 = vsel %vm616, %v2926, 0
      %v3097 = vsel %vm616, %v2934, 0
      %v3100 = vsel %vm616, %v2942, 0
      %v3103 = vsel %vm616, %v2950, 0
      %v3106 = vsel %vm616, %v2958, 0
      %v3109 = vsel %vm616, %v2966, 0
      %v3112 = vsel %vm616, %v2974, 0
      %v3115 = vsel %vm616, %v2982, 0
      %v3118 = vsel %vm616, %v2990, 0
      %v3121 = vsel %vm616, %v2998, 0
      %v3124 = vsel %vm616, %v3006, 0
      %v3127 = vsel %vm616, %v3014, 0
      %v3130 = vsel %vm616, %v3022, 0
      %v3133 = vsel %vm616, %v3030, 0
      %v3136 = vsel %vm616, %v3038, 0
      %v3139 = vsel %vm616, %v3046, 0
      %v3142 = vsel %vm616, %v3054, 0
      %v3145 = vsel %vm616, %v3062, 0
      %3147 = vmatprep.subr.bf16.mxu0 0
      %3148 = vmatpush1.bf16.msra.mxu0 %v3071
      %3149 = vmatprep.subr.bf16.mxu0 0
      %3150 = vmatpush1.bf16.msra.mxu0 %v3072
      %3151 = vmatprep.subr.bf16.mxu0 0
      %3152 = vmatpush1.bf16.msra.mxu0 0
      %3153 = vmatprep.subr.bf16.mxu0 0
      %3154 = vmatpush1.bf16.msra.mxu0 0
      %3155 = vmatprep.subr.bf16.mxu0 0
      %3156 = vmatpush1.bf16.msra.mxu0 0
      %3157 = vmatprep.subr.bf16.mxu0 0
      %3158 = vmatpush1.bf16.msra.mxu0 0
      %3159 = vmatprep.subr.bf16.mxu0 0
      %3160 = vmatpush1.bf16.msra.mxu0 0
      %3161 = vmatprep.subr.bf16.mxu0 0
      %3162 = vmatpush1.bf16.msra.mxu0 0
      %3163 = vmatprep.subr.bf16.mxu0 0
      %3164 = vmatpush1.bf16.msra.mxu0 0
      %3165 = vmatprep.subr.bf16.mxu0 0
      %3166 = vmatpush1.bf16.msra.mxu0 0
      %3167 = vmatprep.subr.bf16.mxu0 0
      %3168 = vmatpush1.bf16.msra.mxu0 0
      %3169 = vmatprep.subr.bf16.mxu0 0
      %3170 = vmatpush1.bf16.msra.mxu0 0
      %3171 = vmatprep.subr.bf16.mxu0 0
      %3172 = vmatpush1.bf16.msra.mxu0 0
      %3173 = vmatprep.subr.bf16.mxu0 0
      %3174 = vmatpush1.bf16.msra.mxu0 0
      %3175 = vmatprep.subr.bf16.mxu0 0
      %3176 = vmatpush1.bf16.msra.mxu0 0
      %3177 = vmatprep.subr.bf16.mxu0 0
      %3178 = vmatpush1.bf16.msra.mxu0 0
      %3179 = vmatprep.mubr.bf16.mxu0 0
      %3180 = vmatmul.mubr.bf16.gmra.mrb[0].mxu0 %v3076
      %v3181 = vpop.f32.mrb[0].mxu0
      %v3182 = vadd.f32 %v2674, %v3181
      %v3183 = vpop.f32.mrb[0].mxu0
      %v3184 = vpop.f32.mrb[0].mxu0
      %v3185 = vadd.f32 %v2677, %v3184
      %v3186 = vpop.f32.mrb[0].mxu0
      %3187 = vmatprep.mubr.bf16.mxu0 0
      %3188 = vmatmul.mubr.bf16.gmra.mrb[0].mxu0 %v3079
      %v3189 = vpop.f32.mrb[0].mxu0
      %v3190 = vadd.f32 %v2682, %v3189
      %v3191 = vpop.f32.mrb[0].mxu0
      %v3192 = vpop.f32.mrb[0].mxu0
      %v3193 = vadd.f32 %v2685, %v3192
      %v3194 = vpop.f32.mrb[0].mxu0
      %3195 = vmatprep.mubr.bf16.mxu0 0
      %3196 = vmatmul.mubr.bf16.gmra.mrb[0].mxu0 %v3082
      %v3197 = vpop.f32.mrb[0].mxu0
      %v3198 = vadd.f32 %v2690, %v3197
      %v3199 = vpop.f32.mrb[0].mxu0
      %v3200 = vpop.f32.mrb[0].mxu0
      %v3201 = vadd.f32 %v2693, %v3200
      %v3202 = vpop.f32.mrb[0].mxu0
      %3203 = vmatprep.mubr.bf16.mxu0 0
      %3204 = vmatmul.mubr.bf16.gmra.mrb[0].mxu0 %v3085
      %v3205 = vpop.f32.mrb[0].mxu0
      %v3206 = vadd.f32 %v2698, %v3205
      %v3207 = vpop.f32.mrb[0].mxu0
      %v3208 = vpop.f32.mrb[0].mxu0
      %v3209 = vadd.f32 %v2701, %v3208
      %v3210 = vpop.f32.mrb[0].mxu0
      %3211 = vmatprep.mubr.bf16.mxu0 0
      %3212 = vmatmul.mubr.bf16.gmra.mrb[0].mxu0 %v3088
      %v3213 = vpop.f32.mrb[0].mxu0
      %v3214 = vadd.f32 %v2706, %v3213
      %v3215 = vpop.f32.mrb[0].mxu0
      %v3216 = vpop.f32.mrb[0].mxu0
      %v3217 = vadd.f32 %v2709, %v3216
      %v3218 = vpop.f32.mrb[0].mxu0
      %3219 = vmatprep.mubr.bf16.mxu0 0
      %3220 = vmatmul.mubr.bf16.gmra.mrb[0].mxu0 %v3091
      %v3221 = vpop.f32.mrb[0].mxu0
      %v3222 = vadd.f32 %v2714, %v3221
      %v3223 = vpop.f32.mrb[0].mxu0
      %v3224 = vpop.f32.mrb[0].mxu0
      %v3225 = vadd.f32 %v2717, %v3224
      %v3226 = vpop.f32.mrb[0].mxu0
      %3227 = vmatprep.mubr.bf16.mxu0 0
      %3228 = vmatmul.mubr.bf16.gmra.mrb[0].mxu0 %v3094
      %v3229 = vpop.f32.mrb[0].mxu0
      %v3230 = vadd.f32 %v2722, %v3229
      %v3231 = vpop.f32.mrb[0].mxu0
      %v3232 = vpop.f32.mrb[0].mxu0
      %v3233 = vadd.f32 %v2725, %v3232
      %v3234 = vpop.f32.mrb[0].mxu0
      %3235 = vmatprep.mubr.bf16.mxu0 0
      %3236 = vmatmul.mubr.bf16.gmra.mrb[0].mxu0 %v3097
      %v3237 = vpop.f32.mrb[0].mxu0
      %v3238 = vadd.f32 %v2730, %v3237
      %v3239 = vpop.f32.mrb[0].mxu0
      %v3240 = vpop.f32.mrb[0].mxu0
      %v3241 = vadd.f32 %v2733, %v3240
      %v3242 = vpop.f32.mrb[0].mxu0
      %3243 = vmatprep.mubr.bf16.mxu0 0
      %3244 = vmatmul.mubr.bf16.gmra.mrb[0].mxu0 %v3100
      %v3245 = vpop.f32.mrb[0].mxu0
      %v3246 = vadd.f32 %v2738, %v3245
      %v3247 = vpop.f32.mrb[0].mxu0
      %v3248 = vpop.f32.mrb[0].mxu0
      %v3249 = vadd.f32 %v2741, %v3248
      %v3250 = vpop.f32.mrb[0].mxu0
      %3251 = vmatprep.mubr.bf16.mxu0 0
      %3252 = vmatmul.mubr.bf16.gmra.mrb[0].mxu0 %v3103
      %v3253 = vpop.f32.mrb[0].mxu0
      %v3254 = vadd.f32 %v2746, %v3253
      %v3255 = vpop.f32.mrb[0].mxu0
      %v3256 = vpop.f32.mrb[0].mxu0
      %v3257 = vadd.f32 %v2749, %v3256
      %v3258 = vpop.f32.mrb[0].mxu0
      %3259 = vmatprep.mubr.bf16.mxu0 0
      %3260 = vmatmul.mubr.bf16.gmra.mrb[0].mxu0 %v3106
      %v3261 = vpop.f32.mrb[0].mxu0
      %v3262 = vadd.f32 %v2754, %v3261
      %v3263 = vpop.f32.mrb[0].mxu0
      %v3264 = vpop.f32.mrb[0].mxu0
      %v3265 = vadd.f32 %v2757, %v3264
      %v3266 = vpop.f32.mrb[0].mxu0
      %3267 = vmatprep.mubr.bf16.mxu0 0
      %3268 = vmatmul.mubr.bf16.gmra.mrb[0].mxu0 %v3109
      %v3269 = vpop.f32.mrb[0].mxu0
      %v3270 = vadd.f32 %v2762, %v3269
      %v3271 = vpop.f32.mrb[0].mxu0
      %v3272 = vpop.f32.mrb[0].mxu0
      %v3273 = vadd.f32 %v2765, %v3272
      %v3274 = vpop.f32.mrb[0].mxu0
      %3275 = vmatprep.mubr.bf16.mxu0 0
      %3276 = vmatmul.mubr.bf16.gmra.mrb[0].mxu0 %v3112
      %v3277 = vpop.f32.mrb[0].mxu0
      %v3278 = vadd.f32 %v2770, %v3277
      %v3279 = vpop.f32.mrb[0].mxu0
      %v3280 = vpop.f32.mrb[0].mxu0
      %v3281 = vadd.f32 %v2773, %v3280
      %v3282 = vpop.f32.mrb[0].mxu0
      %3283 = vmatprep.mubr.bf16.mxu0 0
      %3284 = vmatmul.mubr.bf16.gmra.mrb[0].mxu0 %v3115
      %v3285 = vpop.f32.mrb[0].mxu0
      %v3286 = vadd.f32 %v2778, %v3285
      %v3287 = vpop.f32.mrb[0].mxu0
      %v3288 = vpop.f32.mrb[0].mxu0
      %v3289 = vadd.f32 %v2781, %v3288
      %v3290 = vpop.f32.mrb[0].mxu0
      %3291 = vmatprep.mubr.bf16.mxu0 0
      %3292 = vmatmul.mubr.bf16.gmra.mrb[0].mxu0 %v3118
      %v3293 = vpop.f32.mrb[0].mxu0
      %v3294 = vadd.f32 %v2786, %v3293
      %v3295 = vpop.f32.mrb[0].mxu0
      %v3296 = vpop.f32.mrb[0].mxu0
      %v3297 = vadd.f32 %v2789, %v3296
      %v3298 = vpop.f32.mrb[0].mxu0
      %3299 = vmatprep.mubr.bf16.mxu0 0
      %3300 = vmatmul.mubr.bf16.gmra.mrb[0].mxu0 %v3121
      %v3301 = vpop.f32.mrb[0].mxu0
      %v3302 = vadd.f32 %v2794, %v3301
      %v3303 = vpop.f32.mrb[0].mxu0
      %v3304 = vpop.f32.mrb[0].mxu0
      %v3305 = vadd.f32 %v2797, %v3304
      %v3306 = vpop.f32.mrb[0].mxu0
      %3307 = vmatprep.mubr.bf16.mxu0 0
      %3308 = vmatmul.mubr.bf16.gmra.mrb[0].mxu0 %v3124
      %v3309 = vpop.f32.mrb[0].mxu0
      %v3310 = vadd.f32 %v2802, %v3309
      %v3311 = vpop.f32.mrb[0].mxu0
      %v3312 = vpop.f32.mrb[0].mxu0
      %v3313 = vadd.f32 %v2805, %v3312
      %v3314 = vpop.f32.mrb[0].mxu0
      %3315 = vmatprep.mubr.bf16.mxu0 0
      %3316 = vmatmul.mubr.bf16.gmra.mrb[0].mxu0 %v3127
      %v3317 = vpop.f32.mrb[0].mxu0
      %v3318 = vadd.f32 %v2810, %v3317
      %v3319 = vpop.f32.mrb[0].mxu0
      %v3320 = vpop.f32.mrb[0].mxu0
      %v3321 = vadd.f32 %v2813, %v3320
      %v3322 = vpop.f32.mrb[0].mxu0
      %3323 = vmatprep.mubr.bf16.mxu0 0
      %3324 = vmatmul.mubr.bf16.gmra.mrb[0].mxu0 %v3130
      %v3325 = vpop.f32.mrb[0].mxu0
      %v3326 = vadd.f32 %v2818, %v3325
      %v3327 = vpop.f32.mrb[0].mxu0
      %v3328 = vpop.f32.mrb[0].mxu0
      %v3329 = vadd.f32 %v2821, %v3328
      %v3330 = vpop.f32.mrb[0].mxu0
      %3331 = vmatprep.mubr.bf16.mxu0 0
      %3332 = vmatmul.mubr.bf16.gmra.mrb[0].mxu0 %v3133
      %v3333 = vpop.f32.mrb[0].mxu0
      %v3334 = vadd.f32 %v2826, %v3333
      %v3335 = vpop.f32.mrb[0].mxu0
      %v3336 = vpop.f32.mrb[0].mxu0
      %v3337 = vadd.f32 %v2829, %v3336
      %v3338 = vpop.f32.mrb[0].mxu0
      %3339 = vmatprep.mubr.bf16.mxu0 0
      %3340 = vmatmul.mubr.bf16.gmra.mrb[0].mxu0 %v3136
      %v3341 = vpop.f32.mrb[0].mxu0
      %v3342 = vadd.f32 %v2834, %v3341
      %v3343 = vpop.f32.mrb[0].mxu0
      %v3344 = vpop.f32.mrb[0].mxu0
      %v3345 = vadd.f32 %v2837, %v3344
      %v3346 = vpop.f32.mrb[0].mxu0
      %3347 = vmatprep.mubr.bf16.mxu0 0
      %3348 = vmatmul.mubr.bf16.gmra.mrb[0].mxu0 %v3139
      %v3349 = vpop.f32.mrb[0].mxu0
      %v3350 = vadd.f32 %v2842, %v3349
      %v3351 = vpop.f32.mrb[0].mxu0
      %v3352 = vpop.f32.mrb[0].mxu0
      %v3353 = vadd.f32 %v2845, %v3352
      %v3354 = vpop.f32.mrb[0].mxu0
      %3355 = vmatprep.mubr.bf16.mxu0 0
      %3356 = vmatmul.mubr.bf16.gmra.mrb[0].mxu0 %v3142
      %v3357 = vpop.f32.mrb[0].mxu0
      %v3358 = vadd.f32 %v2850, %v3357
      %v3359 = vpop.f32.mrb[0].mxu0
      %v3360 = vpop.f32.mrb[0].mxu0
      %v3361 = vadd.f32 %v2853, %v3360
      %v3362 = vpop.f32.mrb[0].mxu0
      %3363 = vmatprep.mubr.bf16.mxu0 0
      %3364 = vmatmul.mubr.bf16.gmra.mrb[0].mxu0 %v3145
      %v3365 = vpop.f32.mrb[0].mxu0
      %v3366 = vadd.f32 %v2858, %v3365
      %v3367 = vpop.f32.mrb[0].mxu0
      %v3368 = vpop.f32.mrb[0].mxu0
      %v3369 = vadd.f32 %v2861, %v3368
      %v3370 = vpop.f32.mrb[0].mxu0
      %3371 = vdwg.mxu0
      %v3372 = vadd.f32 %v2275, %v3182
      %v3373 = vadd.f32 %v2276, %v3185
      %v3374 = vadd.f32 %v2277, %v3190
      %v3375 = vadd.f32 %v2278, %v3193
      %v3376 = vadd.f32 %v2279, %v3198
      %v3377 = vadd.f32 %v2280, %v3201
      %v3378 = vadd.f32 %v2281, %v3206
      %v3379 = vadd.f32 %v2282, %v3209
      %v3380 = vadd.f32 %v2283, %v3214
      %v3381 = vadd.f32 %v2284, %v3217
      %v3382 = vadd.f32 %v2285, %v3222
      %v3383 = vadd.f32 %v2286, %v3225
      %v3384 = vadd.f32 %v2287, %v3230
      %v3385 = vadd.f32 %v2288, %v3233
      %v3386 = vadd.f32 %v2289, %v3238
      %v3387 = vadd.f32 %v2290, %v3241
      %v3388 = vadd.f32 %v2291, %v3246
      %v3389 = vadd.f32 %v2292, %v3249
      %v3390 = vadd.f32 %v2293, %v3254
      %v3391 = vadd.f32 %v2294, %v3257
      %v3392 = vadd.f32 %v2295, %v3262
      %v3393 = vadd.f32 %v2296, %v3265
      %v3394 = vadd.f32 %v2297, %v3270
      %v3395 = vadd.f32 %v2298, %v3273
      %v3396 = vadd.f32 %v2299, %v3278
      %v3397 = vadd.f32 %v2300, %v3281
      %v3398 = vadd.f32 %v2301, %v3286
      %v3399 = vadd.f32 %v2302, %v3289
      %v3400 = vadd.f32 %v2303, %v3294
      %v3401 = vadd.f32 %v2304, %v3297
      %v3402 = vadd.f32 %v2305, %v3302
      %v3403 = vadd.f32 %v2306, %v3305
      %v3404 = vadd.f32 %v2307, %v3310
      %v3405 = vadd.f32 %v2308, %v3313
      %v3406 = vadd.f32 %v2309, %v3318
      %v3407 = vadd.f32 %v2310, %v3321
      %v3408 = vadd.f32 %v2311, %v3326
      %v3409 = vadd.f32 %v2312, %v3329
      %v3410 = vadd.f32 %v2313, %v3334
      %v3411 = vadd.f32 %v2314, %v3337
      %v3412 = vadd.f32 %v2315, %v3342
      %v3413 = vadd.f32 %v2316, %v3345
      %v3414 = vadd.f32 %v2317, %v3350
      %v3415 = vadd.f32 %v2318, %v3353
      %v3416 = vadd.f32 %v2319, %v3358
      %v3417 = vadd.f32 %v2320, %v3361
      %v3418 = vadd.f32 %v2321, %v3366
      %v3419 = vadd.f32 %v2322, %v3369
      %3420 = vst.msk [vmem:[#allocation2] sm:$0xff] %vm1199, %v3372
      %3421 = vst.msk [vmem:[#allocation2 + $0x8] sm:$0xff] %vm1199, %v3373
      %3422 = vst.msk [vmem:[#allocation2 + $0x10] sm:$0xff] %vm1199, %v3374
      %3423 = vst.msk [vmem:[#allocation2 + $0x18] sm:$0xff] %vm1199, %v3375
      %3424 = vst.msk [vmem:[#allocation2 + $0x20] sm:$0xff] %vm1199, %v3376
      %3425 = vst.msk [vmem:[#allocation2 + $0x28] sm:$0xff] %vm1199, %v3377
      %3426 = vst.msk [vmem:[#allocation2 + $0x30] sm:$0xff] %vm1199, %v3378
      %3427 = vst.msk [vmem:[#allocation2 + $0x38] sm:$0xff] %vm1199, %v3379
      %3428 = vst.msk [vmem:[#allocation2 + $0x40] sm:$0xff] %vm1199, %v3380
      %3429 = vst.msk [vmem:[#allocation2 + $0x48] sm:$0xff] %vm1199, %v3381
      %3430 = vst.msk [vmem:[#allocation2 + $0x50] sm:$0xff] %vm1199, %v3382
      %3431 = vst.msk [vmem:[#allocation2 + $0x58] sm:$0xff] %vm1199, %v3383
      %3432 = vst.msk [vmem:[#allocation2 + $0x60] sm:$0xff] %vm1199, %v3384
      %3433 = vst.msk [vmem:[#allocation2 + $0x68] sm:$0xff] %vm1199, %v3385
      %3434 = vst.msk [vmem:[#allocation2 + $0x70] sm:$0xff] %vm1199, %v3386
      %3435 = vst.msk [vmem:[#allocation2 + $0x78] sm:$0xff] %vm1199, %v3387
      %3436 = vst.msk [vmem:[#allocation2 + $0x80] sm:$0xff] %vm1199, %v3388
      %3437 = vst.msk [vmem:[#allocation2 + $0x88] sm:$0xff] %vm1199, %v3389
      %3438 = vst.msk [vmem:[#allocation2 + $0x90] sm:$0xff] %vm1199, %v3390
      %3439 = vst.msk [vmem:[#allocation2 + $0x98] sm:$0xff] %vm1199, %v3391
      %3440 = vst.msk [vmem:[#allocation2 + $0xa0] sm:$0xff] %vm1199, %v3392
      %3441 = vst.msk [vmem:[#allocation2 + $0xa8] sm:$0xff] %vm1199, %v3393
      %3442 = vst.msk [vmem:[#allocation2 + $0xb0] sm:$0xff] %vm1199, %v3394
      %3443 = vst.msk [vmem:[#allocation2 + $0xb8] sm:$0xff] %vm1199, %v3395
      %3444 = vst.msk [vmem:[#allocation2 + $0xc0] sm:$0xff] %vm1199, %v3396
      %3445 = vst.msk [vmem:[#allocation2 + $0xc8] sm:$0xff] %vm1199, %v3397
      %3446 = vst.msk [vmem:[#allocation2 + $0xd0] sm:$0xff] %vm1199, %v3398
      %3447 = vst.msk [vmem:[#allocation2 + $0xd8] sm:$0xff] %vm1199, %v3399
      %3448 = vst.msk [vmem:[#allocation2 + $0xe0] sm:$0xff] %vm1199, %v3400
      %3449 = vst.msk [vmem:[#allocation2 + $0xe8] sm:$0xff] %vm1199, %v3401
      %3450 = vst.msk [vmem:[#allocation2 + $0xf0] sm:$0xff] %vm1199, %v3402
      %3451 = vst.msk [vmem:[#allocation2 + $0xf8] sm:$0xff] %vm1199, %v3403
      %3452 = vst.msk [vmem:[#allocation2 + $0x100] sm:$0xff] %vm1199, %v3404
      %3453 = vst.msk [vmem:[#allocation2 + $0x108] sm:$0xff] %vm1199, %v3405
      %3454 = vst.msk [vmem:[#allocation2 + $0x110] sm:$0xff] %vm1199, %v3406
      %3455 = vst.msk [vmem:[#allocation2 + $0x118] sm:$0xff] %vm1199, %v3407
      %3456 = vst.msk [vmem:[#allocation2 + $0x120] sm:$0xff] %vm1199, %v3408
      %3457 = vst.msk [vmem:[#allocation2 + $0x128] sm:$0xff] %vm1199, %v3409
      %3458 = vst.msk [vmem:[#allocation2 + $0x130] sm:$0xff] %vm1199, %v3410
      %3459 = vst.msk [vmem:[#allocation2 + $0x138] sm:$0xff] %vm1199, %v3411
      %3460 = vst.msk [vmem:[#allocation2 + $0x140] sm:$0xff] %vm1199, %v3412
      %3461 = vst.msk [vmem:[#allocation2 + $0x148] sm:$0xff] %vm1199, %v3413
      %3462 = vst.msk [vmem:[#allocation2 + $0x150] sm:$0xff] %vm1199, %v3414
      %3463 = vst.msk [vmem:[#allocation2 + $0x158] sm:$0xff] %vm1199, %v3415
      %3464 = vst.msk [vmem:[#allocation2 + $0x160] sm:$0xff] %vm1199, %v3416
      %3465 = vst.msk [vmem:[#allocation2 + $0x168] sm:$0xff] %vm1199, %v3417
      %3466 = vst.msk [vmem:[#allocation2 + $0x170] sm:$0xff] %vm1199, %v3418
      %3467 = vst.msk [vmem:[#allocation2 + $0x178] sm:$0xff] %vm1199, %v3419
      %v3468 = vld [vmem:[#allocation2] sm:$0xff]
      %v3469 = vld [vmem:[#allocation2 + $0x8] sm:$0xff]
      %v3470 = vld [vmem:[#allocation2 + $0x10] sm:$0xff]
      %v3471 = vld [vmem:[#allocation2 + $0x18] sm:$0xff]
      %v3472 = vld [vmem:[#allocation2 + $0x20] sm:$0xff]
      %v3473 = vld [vmem:[#allocation2 + $0x28] sm:$0xff]
      %v3474 = vld [vmem:[#allocation2 + $0x30] sm:$0xff]
      %v3475 = vld [vmem:[#allocation2 + $0x38] sm:$0xff]
      %v3476 = vld [vmem:[#allocation2 + $0x40] sm:$0xff]
      %v3477 = vld [vmem:[#allocation2 + $0x48] sm:$0xff]
      %v3478 = vld [vmem:[#allocation2 + $0x50] sm:$0xff]
      %v3479 = vld [vmem:[#allocation2 + $0x58] sm:$0xff]
      %v3480 = vld [vmem:[#allocation2 + $0x60] sm:$0xff]
      %v3481 = vld [vmem:[#allocation2 + $0x68] sm:$0xff]
      %v3482 = vld [vmem:[#allocation2 + $0x70] sm:$0xff]
      %v3483 = vld [vmem:[#allocation2 + $0x78] sm:$0xff]
      %v3484 = vld [vmem:[#allocation2 + $0x80] sm:$0xff]
      %v3485 = vld [vmem:[#allocation2 + $0x88] sm:$0xff]
      %v3486 = vld [vmem:[#allocation2 + $0x90] sm:$0xff]
      %v3487 = vld [vmem:[#allocation2 + $0x98] sm:$0xff]
      %v3488 = vld [vmem:[#allocation2 + $0xa0] sm:$0xff]
      %v3489 = vld [vmem:[#allocation2 + $0xa8] sm:$0xff]
      %v3490 = vld [vmem:[#allocation2 + $0xb0] sm:$0xff]
      %v3491 = vld [vmem:[#allocation2 + $0xb8] sm:$0xff]
      %v3492 = vld [vmem:[#allocation2 + $0xc0] sm:$0xff]
      %v3493 = vld [vmem:[#allocation2 + $0xc8] sm:$0xff]
      %v3494 = vld [vmem:[#allocation2 + $0xd0] sm:$0xff]
      %v3495 = vld [vmem:[#allocation2 + $0xd8] sm:$0xff]
      %v3496 = vld [vmem:[#allocation2 + $0xe0] sm:$0xff]
      %v3497 = vld [vmem:[#allocation2 + $0xe8] sm:$0xff]
      %v3498 = vld [vmem:[#allocation2 + $0xf0] sm:$0xff]
      %v3499 = vld [vmem:[#allocation2 + $0xf8] sm:$0xff]
      %v3500 = vld [vmem:[#allocation2 + $0x100] sm:$0xff]
      %v3501 = vld [vmem:[#allocation2 + $0x108] sm:$0xff]
      %v3502 = vld [vmem:[#allocation2 + $0x110] sm:$0xff]
      %v3503 = vld [vmem:[#allocation2 + $0x118] sm:$0xff]
      %v3504 = vld [vmem:[#allocation2 + $0x120] sm:$0xff]
      %v3505 = vld [vmem:[#allocation2 + $0x128] sm:$0xff]
      %v3506 = vld [vmem:[#allocation2 + $0x130] sm:$0xff]
      %v3507 = vld [vmem:[#allocation2 + $0x138] sm:$0xff]
      %v3508 = vld [vmem:[#allocation2 + $0x140] sm:$0xff]
      %v3509 = vld [vmem:[#allocation2 + $0x148] sm:$0xff]
      %v3510 = vld [vmem:[#allocation2 + $0x150] sm:$0xff]
      %v3511 = vld [vmem:[#allocation2 + $0x158] sm:$0xff]
      %v3512 = vld [vmem:[#allocation2 + $0x160] sm:$0xff]
      %v3513 = vld [vmem:[#allocation2 + $0x168] sm:$0xff]
      %v3514 = vld [vmem:[#allocation2 + $0x170] sm:$0xff]
      %v3515 = vld [vmem:[#allocation2 + $0x178] sm:$0xff]
      %v3516 = vld [vmem:[%s219 + $0x18] sm:$0xf]
      %v3517 = vld [vmem:[%s219 + $0x1c] sm:$0xf]
      %v3518 = vld [vmem:[%s219 + $0x20] sm:$0xf]
      %v3519 = vld [vmem:[%s219 + $0x24] sm:$0xf]
      %v3520 = vld [vmem:[%s219 + $0x28] sm:$0xf]
      %v3521 = vld [vmem:[%s219 + $0x2c] sm:$0xf]
      %v3522 = vld [vmem:[%s219 + $0x30] sm:$0xf]
      %v3523 = vld [vmem:[%s219 + $0x34] sm:$0xf]
      %v3524 = vld [vmem:[%s219 + $0x38] sm:$0xf]
      %v3525 = vld [vmem:[%s219 + $0x3c] sm:$0xf]
      %v3526 = vld [vmem:[%s219 + $0x40] sm:$0xf]
      %v3527 = vld [vmem:[%s219 + $0x44] sm:$0xf]
      %v3528 = vld [vmem:[%s219 + $0x48] sm:$0xf]
      %v3529 = vld [vmem:[%s219 + $0x4c] sm:$0xf]
      %v3530 = vld [vmem:[%s219 + $0x50] sm:$0xf]
      %v3531 = vld [vmem:[%s219 + $0x54] sm:$0xf]
      %v3532 = vld [vmem:[%s219 + $0x58] sm:$0xf]
      %v3533 = vld [vmem:[%s219 + $0x5c] sm:$0xf]
      %v3534 = vld [vmem:[%s219 + $0x60] sm:$0xf]
      %v3535 = vld [vmem:[%s219 + $0x64] sm:$0xf]
      %v3536 = vld [vmem:[%s219 + $0x68] sm:$0xf]
      %v3537 = vld [vmem:[%s219 + $0x6c] sm:$0xf]
      %v3538 = vld [vmem:[%s219 + $0x70] sm:$0xf]
      %v3539 = vld [vmem:[%s219 + $0x74] sm:$0xf]
      %v3540 = vld [vmem:[%s219 + $0x78] sm:$0xf]
      %v3541 = vld [vmem:[%s219 + $0x7c] sm:$0xf]
      %v3542 = vld [vmem:[%s219 + $0x80] sm:$0xf]
      %v3543 = vld [vmem:[%s219 + $0x84] sm:$0xf]
      %v3544 = vld [vmem:[%s219 + $0x88] sm:$0xf]
      %v3545 = vld [vmem:[%s219 + $0x8c] sm:$0xf]
      %v3546 = vld [vmem:[%s219 + $0x90] sm:$0xf]
      %v3547 = vld [vmem:[%s219 + $0x94] sm:$0xf]
      %v3548 = vld [vmem:[%s219 + $0x98] sm:$0xf]
      %v3549 = vld [vmem:[%s219 + $0x9c] sm:$0xf]
      %v3550 = vld [vmem:[%s219 + $0xa0] sm:$0xf]
      %v3551 = vld [vmem:[%s219 + $0xa4] sm:$0xf]
      %v3552 = vld [vmem:[%s219 + $0xa8] sm:$0xf]
      %v3553 = vld [vmem:[%s219 + $0xac] sm:$0xf]
      %v3554 = vld [vmem:[%s219 + $0xb0] sm:$0xf]
      %v3555 = vld [vmem:[%s219 + $0xb4] sm:$0xf]
      %v3556 = vld [vmem:[%s219 + $0xb8] sm:$0xf]
      %v3557 = vld [vmem:[%s219 + $0xbc] sm:$0xf]
      %v3558 = vld [vmem:[%s219 + $0xc0] sm:$0xf]
      %v3559 = vld [vmem:[%s219 + $0xc4] sm:$0xf]
      %v3560 = vld [vmem:[%s219 + $0xc8] sm:$0xf]
      %v3561 = vld [vmem:[%s219 + $0xcc] sm:$0xf]
      %v3562 = vld [vmem:[%s219 + $0xd0] sm:$0xf]
      %v3563 = vld [vmem:[%s219 + $0xd4] sm:$0xf]
      %s3564 = scalar_lea.vmem %s1, 96
      %v3565 = vld [vmem:[%s3564] sm:$0xf]
      %v3566 = vld [vmem:[%s3564 + $0x4] sm:$0xf]
      %v3567 = vld [vmem:[%s3564 + $0x8] sm:$0xf]
      %v3568 = vld [vmem:[%s3564 + $0xc] sm:$0xf]
      %v3569 = vld [vmem:[%s219 + $0xd8] sm:$0x1]
      %s3570 = scalar_lea.vmem %s1, 112
      %v3571 = vld [vmem:[%s3570] sm:$0xf]
      %v3572 = vld [vmem:[%s3570 + $0x4] sm:$0xf]
      %v3573 = vld [vmem:[%s3570 + $0x8] sm:$0xf]
      %v3574 = vld [vmem:[%s3570 + $0xc] sm:$0xf]
      %v3624 = vunpack.c.l.b16 %v3516
      %v3625 = vunpack.c.l.b16 %v3517
      %v3626 = vunpack.c.l.b16 %v3518
      %v3627 = vunpack.c.l.b16 %v3519
      %v3628 = vunpack.c.l.b16 %v3520
      %v3629 = vunpack.c.l.b16 %v3521
      %v3630 = vunpack.c.l.b16 %v3522
      %v3631 = vunpack.c.l.b16 %v3523
      %v3632 = vunpack.c.l.b16 %v3524
      %v3633 = vunpack.c.l.b16 %v3525
      %v3634 = vunpack.c.l.b16 %v3526
      %v3635 = vunpack.c.l.b16 %v3527
      %v3636 = vunpack.c.l.b16 %v3528
      %v3637 = vunpack.c.l.b16 %v3529
      %v3638 = vunpack.c.l.b16 %v3530
      %v3639 = vunpack.c.l.b16 %v3531
      %v3640 = vunpack.c.l.b16 %v3532
      %v3641 = vunpack.c.l.b16 %v3533
      %v3642 = vunpack.c.l.b16 %v3534
      %v3643 = vunpack.c.l.b16 %v3535
      %v3644 = vunpack.c.l.b16 %v3536
      %v3645 = vunpack.c.l.b16 %v3537
      %v3646 = vunpack.c.l.b16 %v3538
      %v3647 = vunpack.c.l.b16 %v3539
      %v3648 = vunpack.c.l.b16 %v3540
      %v3649 = vunpack.c.l.b16 %v3541
      %v3650 = vunpack.c.l.b16 %v3542
      %v3651 = vunpack.c.l.b16 %v3543
      %v3652 = vunpack.c.l.b16 %v3544
      %v3653 = vunpack.c.l.b16 %v3545
      %v3654 = vunpack.c.l.b16 %v3546
      %v3655 = vunpack.c.l.b16 %v3547
      %v3656 = vunpack.c.l.b16 %v3548
      %v3657 = vunpack.c.l.b16 %v3549
      %v3658 = vunpack.c.l.b16 %v3550
      %v3659 = vunpack.c.l.b16 %v3551
      %v3660 = vunpack.c.l.b16 %v3552
      %v3661 = vunpack.c.l.b16 %v3553
      %v3662 = vunpack.c.l.b16 %v3554
      %v3663 = vunpack.c.l.b16 %v3555
      %v3664 = vunpack.c.l.b16 %v3556
      %v3665 = vunpack.c.l.b16 %v3557
      %v3666 = vunpack.c.l.b16 %v3558
      %v3667 = vunpack.c.l.b16 %v3559
      %v3668 = vunpack.c.l.b16 %v3560
      %v3669 = vunpack.c.l.b16 %v3561
      %v3670 = vunpack.c.l.b16 %v3562
      %v3671 = vunpack.c.l.b16 %v3563
      %v3672 = vunpack.c.l.b16 %v3569
      %v3673 = vpack.c.b16 %v3625, %v3624
      %v3674 = vpack.c.b16 %v3627, %v3626
      %v3675 = vpack.c.b16 %v3629, %v3628
      %v3676 = vpack.c.b16 %v3631, %v3630
      %v3677 = vpack.c.b16 %v3633, %v3632
      %v3678 = vpack.c.b16 %v3635, %v3634
      %v3679 = vpack.c.b16 %v3637, %v3636
      %v3680 = vpack.c.b16 %v3639, %v3638
      %v3681 = vpack.c.b16 %v3641, %v3640
      %v3682 = vpack.c.b16 %v3643, %v3642
      %v3683 = vpack.c.b16 %v3645, %v3644
      %v3684 = vpack.c.b16 %v3647, %v3646
      %v3685 = vpack.c.b16 %v3649, %v3648
      %v3686 = vpack.c.b16 %v3651, %v3650
      %v3687 = vpack.c.b16 %v3653, %v3652
      %v3688 = vpack.c.b16 %v3655, %v3654
      %v3689 = vpack.c.b16 %v3657, %v3656
      %v3690 = vpack.c.b16 %v3659, %v3658
      %v3691 = vpack.c.b16 %v3661, %v3660
      %v3692 = vpack.c.b16 %v3663, %v3662
      %v3693 = vpack.c.b16 %v3665, %v3664
      %v3694 = vpack.c.b16 %v3667, %v3666
      %v3695 = vpack.c.b16 %v3669, %v3668
      %v3696 = vpack.c.b16 %v3671, %v3670
      %v3697 = vpack.c.b16 %v3672, %v3672
      %v3699 = vshrl.u32 %v3673, 16
      %v3701 = vshll.u32 %v3673, 16
      %v3703 = vrot.slane %v3701, 1
      %v3704 = vor.u32 %v3699, %v3703
      %v3706 = vshll.u32 %v3674, 16
      %v3708 = vrot.slane %v3706, 1
      %v3709 = vsel %vm407, %v3704, %v3708
      %v3710 = vshrl.u32 %v3674, 16
      %v3712 = vor.u32 %v3710, %v3708
      %v3714 = vshll.u32 %v3675, 16
      %v3716 = vrot.slane %v3714, 1
      %v3717 = vsel %vm407, %v3712, %v3716
      %v3718 = vshrl.u32 %v3675, 16
      %v3720 = vor.u32 %v3718, %v3716
      %v3722 = vshll.u32 %v3676, 16
      %v3724 = vrot.slane %v3722, 1
      %v3725 = vsel %vm407, %v3720, %v3724
      %v3726 = vshrl.u32 %v3676, 16
      %v3728 = vor.u32 %v3726, %v3724
      %v3730 = vshll.u32 %v3677, 16
      %v3732 = vrot.slane %v3730, 1
      %v3733 = vsel %vm407, %v3728, %v3732
      %v3734 = vshrl.u32 %v3677, 16
      %v3736 = vor.u32 %v3734, %v3732
      %v3738 = vshll.u32 %v3678, 16
      %v3740 = vrot.slane %v3738, 1
      %v3741 = vsel %vm407, %v3736, %v3740
      %v3742 = vshrl.u32 %v3678, 16
      %v3744 = vor.u32 %v3742, %v3740
      %v3746 = vshll.u32 %v3679, 16
      %v3748 = vrot.slane %v3746, 1
      %v3749 = vsel %vm407, %v3744, %v3748
      %v3750 = vshrl.u32 %v3679, 16
      %v3752 = vor.u32 %v3750, %v3748
      %v3754 = vshll.u32 %v3680, 16
      %v3756 = vrot.slane %v3754, 1
      %v3757 = vsel %vm407, %v3752, %v3756
      %v3758 = vshrl.u32 %v3680, 16
      %v3760 = vor.u32 %v3758, %v3756
      %v3762 = vshll.u32 %v3681, 16
      %v3764 = vrot.slane %v3762, 1
      %v3765 = vsel %vm407, %v3760, %v3764
      %v3766 = vshrl.u32 %v3681, 16
      %v3768 = vor.u32 %v3766, %v3764
      %v3770 = vshll.u32 %v3682, 16
      %v3772 = vrot.slane %v3770, 1
      %v3773 = vsel %vm407, %v3768, %v3772
      %v3774 = vshrl.u32 %v3682, 16
      %v3776 = vor.u32 %v3774, %v3772
      %v3778 = vshll.u32 %v3683, 16
      %v3780 = vrot.slane %v3778, 1
      %v3781 = vsel %vm407, %v3776, %v3780
      %v3782 = vshrl.u32 %v3683, 16
      %v3784 = vor.u32 %v3782, %v3780
      %v3786 = vshll.u32 %v3684, 16
      %v3788 = vrot.slane %v3786, 1
      %v3789 = vsel %vm407, %v3784, %v3788
      %v3790 = vshrl.u32 %v3684, 16
      %v3792 = vor.u32 %v3790, %v3788
      %v3794 = vshll.u32 %v3685, 16
      %v3796 = vrot.slane %v3794, 1
      %v3797 = vsel %vm407, %v3792, %v3796
      %v3798 = vshrl.u32 %v3685, 16
      %v3800 = vor.u32 %v3798, %v3796
      %v3802 = vshll.u32 %v3686, 16
      %v3804 = vrot.slane %v3802, 1
      %v3805 = vsel %vm407, %v3800, %v3804
      %v3806 = vshrl.u32 %v3686, 16
      %v3808 = vor.u32 %v3806, %v3804
      %v3810 = vshll.u32 %v3687, 16
      %v3812 = vrot.slane %v3810, 1
      %v3813 = vsel %vm407, %v3808, %v3812
      %v3814 = vshrl.u32 %v3687, 16
      %v3816 = vor.u32 %v3814, %v3812
      %v3818 = vshll.u32 %v3688, 16
      %v3820 = vrot.slane %v3818, 1
      %v3821 = vsel %vm407, %v3816, %v3820
      %v3822 = vshrl.u32 %v3688, 16
      %v3824 = vor.u32 %v3822, %v3820
      %v3826 = vshll.u32 %v3689, 16
      %v3828 = vrot.slane %v3826, 1
      %v3829 = vsel %vm407, %v3824, %v3828
      %v3830 = vshrl.u32 %v3689, 16
      %v3832 = vor.u32 %v3830, %v3828
      %v3834 = vshll.u32 %v3690, 16
      %v3836 = vrot.slane %v3834, 1
      %v3837 = vsel %vm407, %v3832, %v3836
      %v3838 = vshrl.u32 %v3690, 16
      %v3840 = vor.u32 %v3838, %v3836
      %v3842 = vshll.u32 %v3691, 16
      %v3844 = vrot.slane %v3842, 1
      %v3845 = vsel %vm407, %v3840, %v3844
      %v3846 = vshrl.u32 %v3691, 16
      %v3848 = vor.u32 %v3846, %v3844
      %v3850 = vshll.u32 %v3692, 16
      %v3852 = vrot.slane %v3850, 1
      %v3853 = vsel %vm407, %v3848, %v3852
      %v3854 = vshrl.u32 %v3692, 16
      %v3856 = vor.u32 %v3854, %v3852
      %v3858 = vshll.u32 %v3693, 16
      %v3860 = vrot.slane %v3858, 1
      %v3861 = vsel %vm407, %v3856, %v3860
      %v3862 = vshrl.u32 %v3693, 16
      %v3864 = vor.u32 %v3862, %v3860
      %v3866 = vshll.u32 %v3694, 16
      %v3868 = vrot.slane %v3866, 1
      %v3869 = vsel %vm407, %v3864, %v3868
      %v3870 = vshrl.u32 %v3694, 16
      %v3872 = vor.u32 %v3870, %v3868
      %v3874 = vshll.u32 %v3695, 16
      %v3876 = vrot.slane %v3874, 1
      %v3877 = vsel %vm407, %v3872, %v3876
      %v3878 = vshrl.u32 %v3695, 16
      %v3880 = vor.u32 %v3878, %v3876
      %v3882 = vshll.u32 %v3696, 16
      %v3884 = vrot.slane %v3882, 1
      %v3885 = vsel %vm407, %v3880, %v3884
      %v3886 = vshrl.u32 %v3696, 16
      %v3888 = vor.u32 %v3886, %v3884
      %v3890 = vshll.u32 %v3697, 16
      %v3892 = vrot.slane %v3890, 1
      %v3893 = vsel %vm407, %v3888, %v3892
      %v3898 = vunpack.c.l.b16 %v3571
      %v3899 = vunpack.c.l.b16 %v3572
      %v3900 = vunpack.c.l.b16 %v3573
      %v3901 = vunpack.c.l.b16 %v3574
      %v3902 = vpack.c.b16 %v3899, %v3898
      %v3903 = vpack.c.b16 %v3901, %v3900
      %v3907 = vsel %vm616, %v3709, 0
      %v3910 = vsel %vm616, %v3717, 0
      %v3913 = vsel %vm616, %v3725, 0
      %v3916 = vsel %vm616, %v3733, 0
      %v3919 = vsel %vm616, %v3741, 0
      %v3922 = vsel %vm616, %v3749, 0
      %v3925 = vsel %vm616, %v3757, 0
      %v3928 = vsel %vm616, %v3765, 0
      %v3931 = vsel %vm616, %v3773, 0
      %v3934 = vsel %vm616, %v3781, 0
      %v3937 = vsel %vm616, %v3789, 0
      %v3940 = vsel %vm616, %v3797, 0
      %v3943 = vsel %vm616, %v3805, 0
      %v3946 = vsel %vm616, %v3813, 0
      %v3949 = vsel %vm616, %v3821, 0
      %v3952 = vsel %vm616, %v3829, 0
      %v3955 = vsel %vm616, %v3837, 0
      %v3958 = vsel %vm616, %v3845, 0
      %v3961 = vsel %vm616, %v3853, 0
      %v3964 = vsel %vm616, %v3861, 0
      %v3967 = vsel %vm616, %v3869, 0
      %v3970 = vsel %vm616, %v3877, 0
      %v3973 = vsel %vm616, %v3885, 0
      %v3976 = vsel %vm616, %v3893, 0
      %3978 = vmatprep.subr.bf16.mxu0 0
      %3979 = vmatpush1.bf16.msra.mxu0 %v3902
      %3980 = vmatprep.subr.bf16.mxu0 0
      %3981 = vmatpush1.bf16.msra.mxu0 %v3903
      %3982 = vmatprep.subr.bf16.mxu0 0
      %3983 = vmatpush1.bf16.msra.mxu0 0
      %3984 = vmatprep.subr.bf16.mxu0 0
      %3985 = vmatpush1.bf16.msra.mxu0 0
      %3986 = vmatprep.subr.bf16.mxu0 0
      %3987 = vmatpush1.bf16.msra.mxu0 0
      %3988 = vmatprep.subr.bf16.mxu0 0
      %3989 = vmatpush1.bf16.msra.mxu0 0
      %3990 = vmatprep.subr.bf16.mxu0 0
      %3991 = vmatpush1.bf16.msra.mxu0 0
      %3992 = vmatprep.subr.bf16.mxu0 0
      %3993 = vmatpush1.bf16.msra.mxu0 0
      %3994 = vmatprep.subr.bf16.mxu0 0
      %3995 = vmatpush1.bf16.msra.mxu0 0
      %3996 = vmatprep.subr.bf16.mxu0 0
      %3997 = vmatpush1.bf16.msra.mxu0 0
      %3998 = vmatprep.subr.bf16.mxu0 0
      %3999 = vmatpush1.bf16.msra.mxu0 0
      %4000 = vmatprep.subr.bf16.mxu0 0
      %4001 = vmatpush1.bf16.msra.mxu0 0
      %4002 = vmatprep.subr.bf16.mxu0 0
      %4003 = vmatpush1.bf16.msra.mxu0 0
      %4004 = vmatprep.subr.bf16.mxu0 0
      %4005 = vmatpush1.bf16.msra.mxu0 0
      %4006 = vmatprep.subr.bf16.mxu0 0
      %4007 = vmatpush1.bf16.msra.mxu0 0
      %4008 = vmatprep.subr.bf16.mxu0 0
      %4009 = vmatpush1.bf16.msra.mxu0 0
      %4010 = vmatprep.mubr.bf16.mxu0 0
      %4011 = vmatmul.mubr.bf16.gmra.mrb[0].mxu0 %v3907
      %v4012 = vpop.f32.mrb[0].mxu0
      %v4013 = vadd.f32 0.0, %v4012
      %v4014 = vpop.f32.mrb[0].mxu0
      %v4015 = vpop.f32.mrb[0].mxu0
      %v4016 = vadd.f32 0.0, %v4015
      %v4017 = vpop.f32.mrb[0].mxu0
      %4018 = vmatprep.mubr.bf16.mxu0 0
      %4019 = vmatmul.mubr.bf16.gmra.mrb[0].mxu0 %v3910
      %v4020 = vpop.f32.mrb[0].mxu0
      %v4021 = vadd.f32 0.0, %v4020
      %v4022 = vpop.f32.mrb[0].mxu0
      %v4023 = vpop.f32.mrb[0].mxu0
      %v4024 = vadd.f32 0.0, %v4023
      %v4025 = vpop.f32.mrb[0].mxu0
      %4026 = vmatprep.mubr.bf16.mxu0 0
      %4027 = vmatmul.mubr.bf16.gmra.mrb[0].mxu0 %v3913
      %v4028 = vpop.f32.mrb[0].mxu0
      %v4029 = vadd.f32 0.0, %v4028
      %v4030 = vpop.f32.mrb[0].mxu0
      %v4031 = vpop.f32.mrb[0].mxu0
      %v4032 = vadd.f32 0.0, %v4031
      %v4033 = vpop.f32.mrb[0].mxu0
      %4034 = vmatprep.mubr.bf16.mxu0 0
      %4035 = vmatmul.mubr.bf16.gmra.mrb[0].mxu0 %v3916
      %v4036 = vpop.f32.mrb[0].mxu0
      %v4037 = vadd.f32 0.0, %v4036
      %v4038 = vpop.f32.mrb[0].mxu0
      %v4039 = vpop.f32.mrb[0].mxu0
      %v4040 = vadd.f32 0.0, %v4039
      %v4041 = vpop.f32.mrb[0].mxu0
      %4042 = vmatprep.mubr.bf16.mxu0 0
      %4043 = vmatmul.mubr.bf16.gmra.mrb[0].mxu0 %v3919
      %v4044 = vpop.f32.mrb[0].mxu0
      %v4045 = vadd.f32 0.0, %v4044
      %v4046 = vpop.f32.mrb[0].mxu0
      %v4047 = vpop.f32.mrb[0].mxu0
      %v4048 = vadd.f32 0.0, %v4047
      %v4049 = vpop.f32.mrb[0].mxu0
      %4050 = vmatprep.mubr.bf16.mxu0 0
      %4051 = vmatmul.mubr.bf16.gmra.mrb[0].mxu0 %v3922
      %v4052 = vpop.f32.mrb[0].mxu0
      %v4053 = vadd.f32 0.0, %v4052
      %v4054 = vpop.f32.mrb[0].mxu0
      %v4055 = vpop.f32.mrb[0].mxu0
      %v4056 = vadd.f32 0.0, %v4055
      %v4057 = vpop.f32.mrb[0].mxu0
      %4058 = vmatprep.mubr.bf16.mxu0 0
      %4059 = vmatmul.mubr.bf16.gmra.mrb[0].mxu0 %v3925
      %v4060 = vpop.f32.mrb[0].mxu0
      %v4061 = vadd.f32 0.0, %v4060
      %v4062 = vpop.f32.mrb[0].mxu0
      %v4063 = vpop.f32.mrb[0].mxu0
      %v4064 = vadd.f32 0.0, %v4063
      %v4065 = vpop.f32.mrb[0].mxu0
      %4066 = vmatprep.mubr.bf16.mxu0 0
      %4067 = vmatmul.mubr.bf16.gmra.mrb[0].mxu0 %v3928
      %v4068 = vpop.f32.mrb[0].mxu0
      %v4069 = vadd.f32 0.0, %v4068
      %v4070 = vpop.f32.mrb[0].mxu0
      %v4071 = vpop.f32.mrb[0].mxu0
      %v4072 = vadd.f32 0.0, %v4071
      %v4073 = vpop.f32.mrb[0].mxu0
      %4074 = vmatprep.mubr.bf16.mxu0 0
      %4075 = vmatmul.mubr.bf16.gmra.mrb[0].mxu0 %v3931
      %v4076 = vpop.f32.mrb[0].mxu0
      %v4077 = vadd.f32 0.0, %v4076
      %v4078 = vpop.f32.mrb[0].mxu0
      %v4079 = vpop.f32.mrb[0].mxu0
      %v4080 = vadd.f32 0.0, %v4079
      %v4081 = vpop.f32.mrb[0].mxu0
      %4082 = vmatprep.mubr.bf16.mxu0 0
      %4083 = vmatmul.mubr.bf16.gmra.mrb[0].mxu0 %v3934
      %v4084 = vpop.f32.mrb[0].mxu0
      %v4085 = vadd.f32 0.0, %v4084
      %v4086 = vpop.f32.mrb[0].mxu0
      %v4087 = vpop.f32.mrb[0].mxu0
      %v4088 = vadd.f32 0.0, %v4087
      %v4089 = vpop.f32.mrb[0].mxu0
      %4090 = vmatprep.mubr.bf16.mxu0 0
      %4091 = vmatmul.mubr.bf16.gmra.mrb[0].mxu0 %v3937
      %v4092 = vpop.f32.mrb[0].mxu0
      %v4093 = vadd.f32 0.0, %v4092
      %v4094 = vpop.f32.mrb[0].mxu0
      %v4095 = vpop.f32.mrb[0].mxu0
      %v4096 = vadd.f32 0.0, %v4095
      %v4097 = vpop.f32.mrb[0].mxu0
      %4098 = vmatprep.mubr.bf16.mxu0 0
      %4099 = vmatmul.mubr.bf16.gmra.mrb[0].mxu0 %v3940
      %v4100 = vpop.f32.mrb[0].mxu0
      %v4101 = vadd.f32 0.0, %v4100
      %v4102 = vpop.f32.mrb[0].mxu0
      %v4103 = vpop.f32.mrb[0].mxu0
      %v4104 = vadd.f32 0.0, %v4103
      %v4105 = vpop.f32.mrb[0].mxu0
      %4106 = vmatprep.mubr.bf16.mxu0 0
      %4107 = vmatmul.mubr.bf16.gmra.mrb[0].mxu0 %v3943
      %v4108 = vpop.f32.mrb[0].mxu0
      %v4109 = vadd.f32 0.0, %v4108
      %v4110 = vpop.f32.mrb[0].mxu0
      %v4111 = vpop.f32.mrb[0].mxu0
      %v4112 = vadd.f32 0.0, %v4111
      %v4113 = vpop.f32.mrb[0].mxu0
      %4114 = vmatprep.mubr.bf16.mxu0 0
      %4115 = vmatmul.mubr.bf16.gmra.mrb[0].mxu0 %v3946
      %v4116 = vpop.f32.mrb[0].mxu0
      %v4117 = vadd.f32 0.0, %v4116
      %v4118 = vpop.f32.mrb[0].mxu0
      %v4119 = vpop.f32.mrb[0].mxu0
      %v4120 = vadd.f32 0.0, %v4119
      %v4121 = vpop.f32.mrb[0].mxu0
      %4122 = vmatprep.mubr.bf16.mxu0 0
      %4123 = vmatmul.mubr.bf16.gmra.mrb[0].mxu0 %v3949
      %v4124 = vpop.f32.mrb[0].mxu0
      %v4125 = vadd.f32 0.0, %v4124
      %v4126 = vpop.f32.mrb[0].mxu0
      %v4127 = vpop.f32.mrb[0].mxu0
      %v4128 = vadd.f32 0.0, %v4127
      %v4129 = vpop.f32.mrb[0].mxu0
      %4130 = vmatprep.mubr.bf16.mxu0 0
      %4131 = vmatmul.mubr.bf16.gmra.mrb[0].mxu0 %v3952
      %v4132 = vpop.f32.mrb[0].mxu0
      %v4133 = vadd.f32 0.0, %v4132
      %v4134 = vpop.f32.mrb[0].mxu0
      %v4135 = vpop.f32.mrb[0].mxu0
      %v4136 = vadd.f32 0.0, %v4135
      %v4137 = vpop.f32.mrb[0].mxu0
      %4138 = vmatprep.mubr.bf16.mxu0 0
      %4139 = vmatmul.mubr.bf16.gmra.mrb[0].mxu0 %v3955
      %v4140 = vpop.f32.mrb[0].mxu0
      %v4141 = vadd.f32 0.0, %v4140
      %v4142 = vpop.f32.mrb[0].mxu0
      %v4143 = vpop.f32.mrb[0].mxu0
      %v4144 = vadd.f32 0.0, %v4143
      %v4145 = vpop.f32.mrb[0].mxu0
      %4146 = vmatprep.mubr.bf16.mxu0 0
      %4147 = vmatmul.mubr.bf16.gmra.mrb[0].mxu0 %v3958
      %v4148 = vpop.f32.mrb[0].mxu0
      %v4149 = vadd.f32 0.0, %v4148
      %v4150 = vpop.f32.mrb[0].mxu0
      %v4151 = vpop.f32.mrb[0].mxu0
      %v4152 = vadd.f32 0.0, %v4151
      %v4153 = vpop.f32.mrb[0].mxu0
      %4154 = vmatprep.mubr.bf16.mxu0 0
      %4155 = vmatmul.mubr.bf16.gmra.mrb[0].mxu0 %v3961
      %v4156 = vpop.f32.mrb[0].mxu0
      %v4157 = vadd.f32 0.0, %v4156
      %v4158 = vpop.f32.mrb[0].mxu0
      %v4159 = vpop.f32.mrb[0].mxu0
      %v4160 = vadd.f32 0.0, %v4159
      %v4161 = vpop.f32.mrb[0].mxu0
      %4162 = vmatprep.mubr.bf16.mxu0 0
      %4163 = vmatmul.mubr.bf16.gmra.mrb[0].mxu0 %v3964
      %v4164 = vpop.f32.mrb[0].mxu0
      %v4165 = vadd.f32 0.0, %v4164
      %v4166 = vpop.f32.mrb[0].mxu0
      %v4167 = vpop.f32.mrb[0].mxu0
      %v4168 = vadd.f32 0.0, %v4167
      %v4169 = vpop.f32.mrb[0].mxu0
      %4170 = vmatprep.mubr.bf16.mxu0 0
      %4171 = vmatmul.mubr.bf16.gmra.mrb[0].mxu0 %v3967
      %v4172 = vpop.f32.mrb[0].mxu0
      %v4173 = vadd.f32 0.0, %v4172
      %v4174 = vpop.f32.mrb[0].mxu0
      %v4175 = vpop.f32.mrb[0].mxu0
      %v4176 = vadd.f32 0.0, %v4175
      %v4177 = vpop.f32.mrb[0].mxu0
      %4178 = vmatprep.mubr.bf16.mxu0 0
      %4179 = vmatmul.mubr.bf16.gmra.mrb[0].mxu0 %v3970
      %v4180 = vpop.f32.mrb[0].mxu0
      %v4181 = vadd.f32 0.0, %v4180
      %v4182 = vpop.f32.mrb[0].mxu0
      %v4183 = vpop.f32.mrb[0].mxu0
      %v4184 = vadd.f32 0.0, %v4183
      %v4185 = vpop.f32.mrb[0].mxu0
      %4186 = vmatprep.mubr.bf16.mxu0 0
      %4187 = vmatmul.mubr.bf16.gmra.mrb[0].mxu0 %v3973
      %v4188 = vpop.f32.mrb[0].mxu0
      %v4189 = vadd.f32 0.0, %v4188
      %v4190 = vpop.f32.mrb[0].mxu0
      %v4191 = vpop.f32.mrb[0].mxu0
      %v4192 = vadd.f32 0.0, %v4191
      %v4193 = vpop.f32.mrb[0].mxu0
      %4194 = vmatprep.mubr.bf16.mxu0 0
      %4195 = vmatmul.mubr.bf16.gmra.mrb[0].mxu0 %v3976
      %v4196 = vpop.f32.mrb[0].mxu0
      %v4197 = vadd.f32 0.0, %v4196
      %v4198 = vpop.f32.mrb[0].mxu0
      %v4199 = vpop.f32.mrb[0].mxu0
      %v4200 = vadd.f32 0.0, %v4199
      %v4201 = vpop.f32.mrb[0].mxu0
      %4202 = vdwg.mxu0
      %v4207 = vunpack.c.l.b16 %v3565
      %v4208 = vunpack.c.l.b16 %v3566
      %v4209 = vunpack.c.l.b16 %v3567
      %v4210 = vunpack.c.l.b16 %v3568
      %v4211 = vpack.c.b16 %v4208, %v4207
      %v4212 = vpack.c.b16 %v4210, %v4209
      %v4215 = vsel %vm616, %v3673, 0
      %v4217 = vsel %vm616, %v3674, 0
      %v4219 = vsel %vm616, %v3675, 0
      %v4221 = vsel %vm616, %v3676, 0
      %v4223 = vsel %vm616, %v3677, 0
      %v4225 = vsel %vm616, %v3678, 0
      %v4227 = vsel %vm616, %v3679, 0
      %v4229 = vsel %vm616, %v3680, 0
      %v4231 = vsel %vm616, %v3681, 0
      %v4233 = vsel %vm616, %v3682, 0
      %v4235 = vsel %vm616, %v3683, 0
      %v4237 = vsel %vm616, %v3684, 0
      %v4239 = vsel %vm616, %v3685, 0
      %v4241 = vsel %vm616, %v3686, 0
      %v4243 = vsel %vm616, %v3687, 0
      %v4245 = vsel %vm616, %v3688, 0
      %v4247 = vsel %vm616, %v3689, 0
      %v4249 = vsel %vm616, %v3690, 0
      %v4251 = vsel %vm616, %v3691, 0
      %v4253 = vsel %vm616, %v3692, 0
      %v4255 = vsel %vm616, %v3693, 0
      %v4257 = vsel %vm616, %v3694, 0
      %v4259 = vsel %vm616, %v3695, 0
      %v4261 = vsel %vm616, %v3696, 0
      %4263 = vmatprep.subr.bf16.mxu0 0
      %4264 = vmatpush1.bf16.msra.mxu0 %v4211
      %4265 = vmatprep.subr.bf16.mxu0 0
      %4266 = vmatpush1.bf16.msra.mxu0 %v4212
      %4267 = vmatprep.subr.bf16.mxu0 0
      %4268 = vmatpush1.bf16.msra.mxu0 0
      %4269 = vmatprep.subr.bf16.mxu0 0
      %4270 = vmatpush1.bf16.msra.mxu0 0
      %4271 = vmatprep.subr.bf16.mxu0 0
      %4272 = vmatpush1.bf16.msra.mxu0 0
      %4273 = vmatprep.subr.bf16.mxu0 0
      %4274 = vmatpush1.bf16.msra.mxu0 0
      %4275 = vmatprep.subr.bf16.mxu0 0
      %4276 = vmatpush1.bf16.msra.mxu0 0
      %4277 = vmatprep.subr.bf16.mxu0 0
      %4278 = vmatpush1.bf16.msra.mxu0 0
      %4279 = vmatprep.subr.bf16.mxu0 0
      %4280 = vmatpush1.bf16.msra.mxu0 0
      %4281 = vmatprep.subr.bf16.mxu0 0
      %4282 = vmatpush1.bf16.msra.mxu0 0
      %4283 = vmatprep.subr.bf16.mxu0 0
      %4284 = vmatpush1.bf16.msra.mxu0 0
      %4285 = vmatprep.subr.bf16.mxu0 0
      %4286 = vmatpush1.bf16.msra.mxu0 0
      %4287 = vmatprep.subr.bf16.mxu0 0
      %4288 = vmatpush1.bf16.msra.mxu0 0
      %4289 = vmatprep.subr.bf16.mxu0 0
      %4290 = vmatpush1.bf16.msra.mxu0 0
      %4291 = vmatprep.subr.bf16.mxu0 0
      %4292 = vmatpush1.bf16.msra.mxu0 0
      %4293 = vmatprep.subr.bf16.mxu0 0
      %4294 = vmatpush1.bf16.msra.mxu0 0
      %4295 = vmatprep.mubr.bf16.mxu0 0
      %4296 = vmatmul.mubr.bf16.gmra.mrb[0].mxu0 %v4215
      %v4297 = vpop.f32.mrb[0].mxu0
      %v4298 = vadd.f32 %v4013, %v4297
      %v4299 = vpop.f32.mrb[0].mxu0
      %v4300 = vpop.f32.mrb[0].mxu0
      %v4301 = vadd.f32 %v4016, %v4300
      %v4302 = vpop.f32.mrb[0].mxu0
      %4303 = vmatprep.mubr.bf16.mxu0 0
      %4304 = vmatmul.mubr.bf16.gmra.mrb[0].mxu0 %v4217
      %v4305 = vpop.f32.mrb[0].mxu0
      %v4306 = vadd.f32 %v4021, %v4305
      %v4307 = vpop.f32.mrb[0].mxu0
      %v4308 = vpop.f32.mrb[0].mxu0
      %v4309 = vadd.f32 %v4024, %v4308
      %v4310 = vpop.f32.mrb[0].mxu0
      %4311 = vmatprep.mubr.bf16.mxu0 0
      %4312 = vmatmul.mubr.bf16.gmra.mrb[0].mxu0 %v4219
      %v4313 = vpop.f32.mrb[0].mxu0
      %v4314 = vadd.f32 %v4029, %v4313
      %v4315 = vpop.f32.mrb[0].mxu0
      %v4316 = vpop.f32.mrb[0].mxu0
      %v4317 = vadd.f32 %v4032, %v4316
      %v4318 = vpop.f32.mrb[0].mxu0
      %4319 = vmatprep.mubr.bf16.mxu0 0
      %4320 = vmatmul.mubr.bf16.gmra.mrb[0].mxu0 %v4221
      %v4321 = vpop.f32.mrb[0].mxu0
      %v4322 = vadd.f32 %v4037, %v4321
      %v4323 = vpop.f32.mrb[0].mxu0
      %v4324 = vpop.f32.mrb[0].mxu0
      %v4325 = vadd.f32 %v4040, %v4324
      %v4326 = vpop.f32.mrb[0].mxu0
      %4327 = vmatprep.mubr.bf16.mxu0 0
      %4328 = vmatmul.mubr.bf16.gmra.mrb[0].mxu0 %v4223
      %v4329 = vpop.f32.mrb[0].mxu0
      %v4330 = vadd.f32 %v4045, %v4329
      %v4331 = vpop.f32.mrb[0].mxu0
      %v4332 = vpop.f32.mrb[0].mxu0
      %v4333 = vadd.f32 %v4048, %v4332
      %v4334 = vpop.f32.mrb[0].mxu0
      %4335 = vmatprep.mubr.bf16.mxu0 0
      %4336 = vmatmul.mubr.bf16.gmra.mrb[0].mxu0 %v4225
      %v4337 = vpop.f32.mrb[0].mxu0
      %v4338 = vadd.f32 %v4053, %v4337
      %v4339 = vpop.f32.mrb[0].mxu0
      %v4340 = vpop.f32.mrb[0].mxu0
      %v4341 = vadd.f32 %v4056, %v4340
      %v4342 = vpop.f32.mrb[0].mxu0
      %4343 = vmatprep.mubr.bf16.mxu0 0
      %4344 = vmatmul.mubr.bf16.gmra.mrb[0].mxu0 %v4227
      %v4345 = vpop.f32.mrb[0].mxu0
      %v4346 = vadd.f32 %v4061, %v4345
      %v4347 = vpop.f32.mrb[0].mxu0
      %v4348 = vpop.f32.mrb[0].mxu0
      %v4349 = vadd.f32 %v4064, %v4348
      %v4350 = vpop.f32.mrb[0].mxu0
      %4351 = vmatprep.mubr.bf16.mxu0 0
      %4352 = vmatmul.mubr.bf16.gmra.mrb[0].mxu0 %v4229
      %v4353 = vpop.f32.mrb[0].mxu0
      %v4354 = vadd.f32 %v4069, %v4353
      %v4355 = vpop.f32.mrb[0].mxu0
      %v4356 = vpop.f32.mrb[0].mxu0
      %v4357 = vadd.f32 %v4072, %v4356
      %v4358 = vpop.f32.mrb[0].mxu0
      %4359 = vmatprep.mubr.bf16.mxu0 0
      %4360 = vmatmul.mubr.bf16.gmra.mrb[0].mxu0 %v4231
      %v4361 = vpop.f32.mrb[0].mxu0
      %v4362 = vadd.f32 %v4077, %v4361
      %v4363 = vpop.f32.mrb[0].mxu0
      %v4364 = vpop.f32.mrb[0].mxu0
      %v4365 = vadd.f32 %v4080, %v4364
      %v4366 = vpop.f32.mrb[0].mxu0
      %4367 = vmatprep.mubr.bf16.mxu0 0
      %4368 = vmatmul.mubr.bf16.gmra.mrb[0].mxu0 %v4233
      %v4369 = vpop.f32.mrb[0].mxu0
      %v4370 = vadd.f32 %v4085, %v4369
      %v4371 = vpop.f32.mrb[0].mxu0
      %v4372 = vpop.f32.mrb[0].mxu0
      %v4373 = vadd.f32 %v4088, %v4372
      %v4374 = vpop.f32.mrb[0].mxu0
      %4375 = vmatprep.mubr.bf16.mxu0 0
      %4376 = vmatmul.mubr.bf16.gmra.mrb[0].mxu0 %v4235
      %v4377 = vpop.f32.mrb[0].mxu0
      %v4378 = vadd.f32 %v4093, %v4377
      %v4379 = vpop.f32.mrb[0].mxu0
      %v4380 = vpop.f32.mrb[0].mxu0
      %v4381 = vadd.f32 %v4096, %v4380
      %v4382 = vpop.f32.mrb[0].mxu0
      %4383 = vmatprep.mubr.bf16.mxu0 0
      %4384 = vmatmul.mubr.bf16.gmra.mrb[0].mxu0 %v4237
      %v4385 = vpop.f32.mrb[0].mxu0
      %v4386 = vadd.f32 %v4101, %v4385
      %v4387 = vpop.f32.mrb[0].mxu0
      %v4388 = vpop.f32.mrb[0].mxu0
      %v4389 = vadd.f32 %v4104, %v4388
      %v4390 = vpop.f32.mrb[0].mxu0
      %4391 = vmatprep.mubr.bf16.mxu0 0
      %4392 = vmatmul.mubr.bf16.gmra.mrb[0].mxu0 %v4239
      %v4393 = vpop.f32.mrb[0].mxu0
      %v4394 = vadd.f32 %v4109, %v4393
      %v4395 = vpop.f32.mrb[0].mxu0
      %v4396 = vpop.f32.mrb[0].mxu0
      %v4397 = vadd.f32 %v4112, %v4396
      %v4398 = vpop.f32.mrb[0].mxu0
      %4399 = vmatprep.mubr.bf16.mxu0 0
      %4400 = vmatmul.mubr.bf16.gmra.mrb[0].mxu0 %v4241
      %v4401 = vpop.f32.mrb[0].mxu0
      %v4402 = vadd.f32 %v4117, %v4401
      %v4403 = vpop.f32.mrb[0].mxu0
      %v4404 = vpop.f32.mrb[0].mxu0
      %v4405 = vadd.f32 %v4120, %v4404
      %v4406 = vpop.f32.mrb[0].mxu0
      %4407 = vmatprep.mubr.bf16.mxu0 0
      %4408 = vmatmul.mubr.bf16.gmra.mrb[0].mxu0 %v4243
      %v4409 = vpop.f32.mrb[0].mxu0
      %v4410 = vadd.f32 %v4125, %v4409
      %v4411 = vpop.f32.mrb[0].mxu0
      %v4412 = vpop.f32.mrb[0].mxu0
      %v4413 = vadd.f32 %v4128, %v4412
      %v4414 = vpop.f32.mrb[0].mxu0
      %4415 = vmatprep.mubr.bf16.mxu0 0
      %4416 = vmatmul.mubr.bf16.gmra.mrb[0].mxu0 %v4245
      %v4417 = vpop.f32.mrb[0].mxu0
      %v4418 = vadd.f32 %v4133, %v4417
      %v4419 = vpop.f32.mrb[0].mxu0
      %v4420 = vpop.f32.mrb[0].mxu0
      %v4421 = vadd.f32 %v4136, %v4420
      %v4422 = vpop.f32.mrb[0].mxu0
      %4423 = vmatprep.mubr.bf16.mxu0 0
      %4424 = vmatmul.mubr.bf16.gmra.mrb[0].mxu0 %v4247
      %v4425 = vpop.f32.mrb[0].mxu0
      %v4426 = vadd.f32 %v4141, %v4425
      %v4427 = vpop.f32.mrb[0].mxu0
      %v4428 = vpop.f32.mrb[0].mxu0
      %v4429 = vadd.f32 %v4144, %v4428
      %v4430 = vpop.f32.mrb[0].mxu0
      %4431 = vmatprep.mubr.bf16.mxu0 0
      %4432 = vmatmul.mubr.bf16.gmra.mrb[0].mxu0 %v4249
      %v4433 = vpop.f32.mrb[0].mxu0
      %v4434 = vadd.f32 %v4149, %v4433
      %v4435 = vpop.f32.mrb[0].mxu0
      %v4436 = vpop.f32.mrb[0].mxu0
      %v4437 = vadd.f32 %v4152, %v4436
      %v4438 = vpop.f32.mrb[0].mxu0
      %4439 = vmatprep.mubr.bf16.mxu0 0
      %4440 = vmatmul.mubr.bf16.gmra.mrb[0].mxu0 %v4251
      %v4441 = vpop.f32.mrb[0].mxu0
      %v4442 = vadd.f32 %v4157, %v4441
      %v4443 = vpop.f32.mrb[0].mxu0
      %v4444 = vpop.f32.mrb[0].mxu0
      %v4445 = vadd.f32 %v4160, %v4444
      %v4446 = vpop.f32.mrb[0].mxu0
      %4447 = vmatprep.mubr.bf16.mxu0 0
      %4448 = vmatmul.mubr.bf16.gmra.mrb[0].mxu0 %v4253
      %v4449 = vpop.f32.mrb[0].mxu0
      %v4450 = vadd.f32 %v4165, %v4449
      %v4451 = vpop.f32.mrb[0].mxu0
      %v4452 = vpop.f32.mrb[0].mxu0
      %v4453 = vadd.f32 %v4168, %v4452
      %v4454 = vpop.f32.mrb[0].mxu0
      %4455 = vmatprep.mubr.bf16.mxu0 0
      %4456 = vmatmul.mubr.bf16.gmra.mrb[0].mxu0 %v4255
      %v4457 = vpop.f32.mrb[0].mxu0
      %v4458 = vadd.f32 %v4173, %v4457
      %v4459 = vpop.f32.mrb[0].mxu0
      %v4460 = vpop.f32.mrb[0].mxu0
      %v4461 = vadd.f32 %v4176, %v4460
      %v4462 = vpop.f32.mrb[0].mxu0
      %4463 = vmatprep.mubr.bf16.mxu0 0
      %4464 = vmatmul.mubr.bf16.gmra.mrb[0].mxu0 %v4257
      %v4465 = vpop.f32.mrb[0].mxu0
      %v4466 = vadd.f32 %v4181, %v4465
      %v4467 = vpop.f32.mrb[0].mxu0
      %v4468 = vpop.f32.mrb[0].mxu0
      %v4469 = vadd.f32 %v4184, %v4468
      %v4470 = vpop.f32.mrb[0].mxu0
      %4471 = vmatprep.mubr.bf16.mxu0 0
      %4472 = vmatmul.mubr.bf16.gmra.mrb[0].mxu0 %v4259
      %v4473 = vpop.f32.mrb[0].mxu0
      %v4474 = vadd.f32 %v4189, %v4473
      %v4475 = vpop.f32.mrb[0].mxu0
      %v4476 = vpop.f32.mrb[0].mxu0
      %v4477 = vadd.f32 %v4192, %v4476
      %v4478 = vpop.f32.mrb[0].mxu0
      %4479 = vmatprep.mubr.bf16.mxu0 0
      %4480 = vmatmul.mubr.bf16.gmra.mrb[0].mxu0 %v4261
      %v4481 = vpop.f32.mrb[0].mxu0
      %v4482 = vadd.f32 %v4197, %v4481
      %v4483 = vpop.f32.mrb[0].mxu0
      %v4484 = vpop.f32.mrb[0].mxu0
      %v4485 = vadd.f32 %v4200, %v4484
      %v4486 = vpop.f32.mrb[0].mxu0
      %4487 = vdwg.mxu0
      %v4488 = vadd.f32 %v3468, %v4298
      %v4489 = vadd.f32 %v3469, %v4301
      %v4490 = vadd.f32 %v3470, %v4306
      %v4491 = vadd.f32 %v3471, %v4309
      %v4492 = vadd.f32 %v3472, %v4314
      %v4493 = vadd.f32 %v3473, %v4317
      %v4494 = vadd.f32 %v3474, %v4322
      %v4495 = vadd.f32 %v3475, %v4325
      %v4496 = vadd.f32 %v3476, %v4330
      %v4497 = vadd.f32 %v3477, %v4333
      %v4498 = vadd.f32 %v3478, %v4338
      %v4499 = vadd.f32 %v3479, %v4341
      %v4500 = vadd.f32 %v3480, %v4346
      %v4501 = vadd.f32 %v3481, %v4349
      %v4502 = vadd.f32 %v3482, %v4354
      %v4503 = vadd.f32 %v3483, %v4357
      %v4504 = vadd.f32 %v3484, %v4362
      %v4505 = vadd.f32 %v3485, %v4365
      %v4506 = vadd.f32 %v3486, %v4370
      %v4507 = vadd.f32 %v3487, %v4373
      %v4508 = vadd.f32 %v3488, %v4378
      %v4509 = vadd.f32 %v3489, %v4381
      %v4510 = vadd.f32 %v3490, %v4386
      %v4511 = vadd.f32 %v3491, %v4389
      %v4512 = vadd.f32 %v3492, %v4394
      %v4513 = vadd.f32 %v3493, %v4397
      %v4514 = vadd.f32 %v3494, %v4402
      %v4515 = vadd.f32 %v3495, %v4405
      %v4516 = vadd.f32 %v3496, %v4410
      %v4517 = vadd.f32 %v3497, %v4413
      %v4518 = vadd.f32 %v3498, %v4418
      %v4519 = vadd.f32 %v3499, %v4421
      %v4520 = vadd.f32 %v3500, %v4426
      %v4521 = vadd.f32 %v3501, %v4429
      %v4522 = vadd.f32 %v3502, %v4434
      %v4523 = vadd.f32 %v3503, %v4437
      %v4524 = vadd.f32 %v3504, %v4442
      %v4525 = vadd.f32 %v3505, %v4445
      %v4526 = vadd.f32 %v3506, %v4450
      %v4527 = vadd.f32 %v3507, %v4453
      %v4528 = vadd.f32 %v3508, %v4458
      %v4529 = vadd.f32 %v3509, %v4461
      %v4530 = vadd.f32 %v3510, %v4466
      %v4531 = vadd.f32 %v3511, %v4469
      %v4532 = vadd.f32 %v3512, %v4474
      %v4533 = vadd.f32 %v3513, %v4477
      %v4534 = vadd.f32 %v3514, %v4482
      %v4535 = vadd.f32 %v3515, %v4485
      %4536 = vst.msk [vmem:[#allocation2] sm:$0xff] %vm1199, %v4488
      %4537 = vst.msk [vmem:[#allocation2 + $0x8] sm:$0xff] %vm1199, %v4489
      %4538 = vst.msk [vmem:[#allocation2 + $0x10] sm:$0xff] %vm1199, %v4490
      %4539 = vst.msk [vmem:[#allocation2 + $0x18] sm:$0xff] %vm1199, %v4491
      %4540 = vst.msk [vmem:[#allocation2 + $0x20] sm:$0xff] %vm1199, %v4492
      %4541 = vst.msk [vmem:[#allocation2 + $0x28] sm:$0xff] %vm1199, %v4493
      %4542 = vst.msk [vmem:[#allocation2 + $0x30] sm:$0xff] %vm1199, %v4494
      %4543 = vst.msk [vmem:[#allocation2 + $0x38] sm:$0xff] %vm1199, %v4495
      %4544 = vst.msk [vmem:[#allocation2 + $0x40] sm:$0xff] %vm1199, %v4496
      %4545 = vst.msk [vmem:[#allocation2 + $0x48] sm:$0xff] %vm1199, %v4497
      %4546 = vst.msk [vmem:[#allocation2 + $0x50] sm:$0xff] %vm1199, %v4498
      %4547 = vst.msk [vmem:[#allocation2 + $0x58] sm:$0xff] %vm1199, %v4499
      %4548 = vst.msk [vmem:[#allocation2 + $0x60] sm:$0xff] %vm1199, %v4500
      %4549 = vst.msk [vmem:[#allocation2 + $0x68] sm:$0xff] %vm1199, %v4501
      %4550 = vst.msk [vmem:[#allocation2 + $0x70] sm:$0xff] %vm1199, %v4502
      %4551 = vst.msk [vmem:[#allocation2 + $0x78] sm:$0xff] %vm1199, %v4503
      %4552 = vst.msk [vmem:[#allocation2 + $0x80] sm:$0xff] %vm1199, %v4504
      %4553 = vst.msk [vmem:[#allocation2 + $0x88] sm:$0xff] %vm1199, %v4505
      %4554 = vst.msk [vmem:[#allocation2 + $0x90] sm:$0xff] %vm1199, %v4506
      %4555 = vst.msk [vmem:[#allocation2 + $0x98] sm:$0xff] %vm1199, %v4507
      %4556 = vst.msk [vmem:[#allocation2 + $0xa0] sm:$0xff] %vm1199, %v4508
      %4557 = vst.msk [vmem:[#allocation2 + $0xa8] sm:$0xff] %vm1199, %v4509
      %4558 = vst.msk [vmem:[#allocation2 + $0xb0] sm:$0xff] %vm1199, %v4510
      %4559 = vst.msk [vmem:[#allocation2 + $0xb8] sm:$0xff] %vm1199, %v4511
      %4560 = vst.msk [vmem:[#allocation2 + $0xc0] sm:$0xff] %vm1199, %v4512
      %4561 = vst.msk [vmem:[#allocation2 + $0xc8] sm:$0xff] %vm1199, %v4513
      %4562 = vst.msk [vmem:[#allocation2 + $0xd0] sm:$0xff] %vm1199, %v4514
      %4563 = vst.msk [vmem:[#allocation2 + $0xd8] sm:$0xff] %vm1199, %v4515
      %4564 = vst.msk [vmem:[#allocation2 + $0xe0] sm:$0xff] %vm1199, %v4516
      %4565 = vst.msk [vmem:[#allocation2 + $0xe8] sm:$0xff] %vm1199, %v4517
      %4566 = vst.msk [vmem:[#allocation2 + $0xf0] sm:$0xff] %vm1199, %v4518
      %4567 = vst.msk [vmem:[#allocation2 + $0xf8] sm:$0xff] %vm1199, %v4519
      %4568 = vst.msk [vmem:[#allocation2 + $0x100] sm:$0xff] %vm1199, %v4520
      %4569 = vst.msk [vmem:[#allocation2 + $0x108] sm:$0xff] %vm1199, %v4521
      %4570 = vst.msk [vmem:[#allocation2 + $0x110] sm:$0xff] %vm1199, %v4522
      %4571 = vst.msk [vmem:[#allocation2 + $0x118] sm:$0xff] %vm1199, %v4523
      %4572 = vst.msk [vmem:[#allocation2 + $0x120] sm:$0xff] %vm1199, %v4524
      %4573 = vst.msk [vmem:[#allocation2 + $0x128] sm:$0xff] %vm1199, %v4525
      %4574 = vst.msk [vmem:[#allocation2 + $0x130] sm:$0xff] %vm1199, %v4526
      %4575 = vst.msk [vmem:[#allocation2 + $0x138] sm:$0xff] %vm1199, %v4527
      %4576 = vst.msk [vmem:[#allocation2 + $0x140] sm:$0xff] %vm1199, %v4528
      %4577 = vst.msk [vmem:[#allocation2 + $0x148] sm:$0xff] %vm1199, %v4529
      %4578 = vst.msk [vmem:[#allocation2 + $0x150] sm:$0xff] %vm1199, %v4530
      %4579 = vst.msk [vmem:[#allocation2 + $0x158] sm:$0xff] %vm1199, %v4531
      %4580 = vst.msk [vmem:[#allocation2 + $0x160] sm:$0xff] %vm1199, %v4532
      %4581 = vst.msk [vmem:[#allocation2 + $0x168] sm:$0xff] %vm1199, %v4533
      %4582 = vst.msk [vmem:[#allocation2 + $0x170] sm:$0xff] %vm1199, %v4534
      %4583 = vst.msk [vmem:[#allocation2 + $0x178] sm:$0xff] %vm1199, %v4535
      %v4584 = vld [vmem:[#allocation2] sm:$0xff]
      %v4585 = vld [vmem:[#allocation2 + $0x8] sm:$0xff]
      %v4586 = vld [vmem:[#allocation2 + $0x10] sm:$0xff]
      %v4587 = vld [vmem:[#allocation2 + $0x18] sm:$0xff]
      %v4588 = vld [vmem:[#allocation2 + $0x20] sm:$0xff]
      %v4589 = vld [vmem:[#allocation2 + $0x28] sm:$0xff]
      %v4590 = vld [vmem:[#allocation2 + $0x30] sm:$0xff]
      %v4591 = vld [vmem:[#allocation2 + $0x38] sm:$0xff]
      %v4592 = vld [vmem:[#allocation2 + $0x40] sm:$0xff]
      %v4593 = vld [vmem:[#allocation2 + $0x48] sm:$0xff]
      %v4594 = vld [vmem:[#allocation2 + $0x50] sm:$0xff]
      %v4595 = vld [vmem:[#allocation2 + $0x58] sm:$0xff]
      %v4596 = vld [vmem:[#allocation2 + $0x60] sm:$0xff]
      %v4597 = vld [vmem:[#allocation2 + $0x68] sm:$0xff]
      %v4598 = vld [vmem:[#allocation2 + $0x70] sm:$0xff]
      %v4599 = vld [vmem:[#allocation2 + $0x78] sm:$0xff]
      %v4600 = vld [vmem:[#allocation2 + $0x80] sm:$0xff]
      %v4601 = vld [vmem:[#allocation2 + $0x88] sm:$0xff]
      %v4602 = vld [vmem:[#allocation2 + $0x90] sm:$0xff]
      %v4603 = vld [vmem:[#allocation2 + $0x98] sm:$0xff]
      %v4604 = vld [vmem:[#allocation2 + $0xa0] sm:$0xff]
      %v4605 = vld [vmem:[#allocation2 + $0xa8] sm:$0xff]
      %v4606 = vld [vmem:[#allocation2 + $0xb0] sm:$0xff]
      %v4607 = vld [vmem:[#allocation2 + $0xb8] sm:$0xff]
      %v4608 = vld [vmem:[#allocation2 + $0xc0] sm:$0xff]
      %v4609 = vld [vmem:[#allocation2 + $0xc8] sm:$0xff]
      %v4610 = vld [vmem:[#allocation2 + $0xd0] sm:$0xff]
      %v4611 = vld [vmem:[#allocation2 + $0xd8] sm:$0xff]
      %v4612 = vld [vmem:[#allocation2 + $0xe0] sm:$0xff]
      %v4613 = vld [vmem:[#allocation2 + $0xe8] sm:$0xff]
      %v4614 = vld [vmem:[#allocation2 + $0xf0] sm:$0xff]
      %v4615 = vld [vmem:[#allocation2 + $0xf8] sm:$0xff]
      %v4616 = vld [vmem:[#allocation2 + $0x100] sm:$0xff]
      %v4617 = vld [vmem:[#allocation2 + $0x108] sm:$0xff]
      %v4618 = vld [vmem:[#allocation2 + $0x110] sm:$0xff]
      %v4619 = vld [vmem:[#allocation2 + $0x118] sm:$0xff]
      %v4620 = vld [vmem:[#allocation2 + $0x120] sm:$0xff]
      %v4621 = vld [vmem:[#allocation2 + $0x128] sm:$0xff]
      %v4622 = vld [vmem:[#allocation2 + $0x130] sm:$0xff]
      %v4623 = vld [vmem:[#allocation2 + $0x138] sm:$0xff]
      %v4624 = vld [vmem:[#allocation2 + $0x140] sm:$0xff]
      %v4625 = vld [vmem:[#allocation2 + $0x148] sm:$0xff]
      %v4626 = vld [vmem:[#allocation2 + $0x150] sm:$0xff]
      %v4627 = vld [vmem:[#allocation2 + $0x158] sm:$0xff]
      %v4628 = vld [vmem:[#allocation2 + $0x160] sm:$0xff]
      %v4629 = vld [vmem:[#allocation2 + $0x168] sm:$0xff]
      %v4630 = vld [vmem:[#allocation2 + $0x170] sm:$0xff]
      %v4631 = vld [vmem:[#allocation2 + $0x178] sm:$0xff]
      %v4632 = vld [vmem:[%s219 + $0x18] sm:$0xe]
      %v4633 = vld [vmem:[%s219 + $0x1c] sm:$0xf]
      %v4634 = vld [vmem:[%s219 + $0x20] sm:$0xf]
      %v4635 = vld [vmem:[%s219 + $0x24] sm:$0xf]
      %v4636 = vld [vmem:[%s219 + $0x28] sm:$0xf]
      %v4637 = vld [vmem:[%s219 + $0x2c] sm:$0xf]
      %v4638 = vld [vmem:[%s219 + $0x30] sm:$0xf]
      %v4639 = vld [vmem:[%s219 + $0x34] sm:$0xf]
      %v4640 = vld [vmem:[%s219 + $0x38] sm:$0xf]
      %v4641 = vld [vmem:[%s219 + $0x3c] sm:$0xf]
      %v4642 = vld [vmem:[%s219 + $0x40] sm:$0xf]
      %v4643 = vld [vmem:[%s219 + $0x44] sm:$0xf]
      %v4644 = vld [vmem:[%s219 + $0x48] sm:$0xf]
      %v4645 = vld [vmem:[%s219 + $0x4c] sm:$0xf]
      %v4646 = vld [vmem:[%s219 + $0x50] sm:$0xf]
      %v4647 = vld [vmem:[%s219 + $0x54] sm:$0xf]
      %v4648 = vld [vmem:[%s219 + $0x58] sm:$0xf]
      %v4649 = vld [vmem:[%s219 + $0x5c] sm:$0xf]
      %v4650 = vld [vmem:[%s219 + $0x60] sm:$0xf]
      %v4651 = vld [vmem:[%s219 + $0x64] sm:$0xf]
      %v4652 = vld [vmem:[%s219 + $0x68] sm:$0xf]
      %v4653 = vld [vmem:[%s219 + $0x6c] sm:$0xf]
      %v4654 = vld [vmem:[%s219 + $0x70] sm:$0xf]
      %v4655 = vld [vmem:[%s219 + $0x74] sm:$0xf]
      %v4656 = vld [vmem:[%s219 + $0x78] sm:$0xf]
      %v4657 = vld [vmem:[%s219 + $0x7c] sm:$0xf]
      %v4658 = vld [vmem:[%s219 + $0x80] sm:$0xf]
      %v4659 = vld [vmem:[%s219 + $0x84] sm:$0xf]
      %v4660 = vld [vmem:[%s219 + $0x88] sm:$0xf]
      %v4661 = vld [vmem:[%s219 + $0x8c] sm:$0xf]
      %v4662 = vld [vmem:[%s219 + $0x90] sm:$0xf]
      %v4663 = vld [vmem:[%s219 + $0x94] sm:$0xf]
      %v4664 = vld [vmem:[%s219 + $0x98] sm:$0xf]
      %v4665 = vld [vmem:[%s219 + $0x9c] sm:$0xf]
      %v4666 = vld [vmem:[%s219 + $0xa0] sm:$0xf]
      %v4667 = vld [vmem:[%s219 + $0xa4] sm:$0xf]
      %v4668 = vld [vmem:[%s219 + $0xa8] sm:$0xf]
      %v4669 = vld [vmem:[%s219 + $0xac] sm:$0xf]
      %v4670 = vld [vmem:[%s219 + $0xb0] sm:$0xf]
      %v4671 = vld [vmem:[%s219 + $0xb4] sm:$0xf]
      %v4672 = vld [vmem:[%s219 + $0xb8] sm:$0xf]
      %v4673 = vld [vmem:[%s219 + $0xbc] sm:$0xf]
      %v4674 = vld [vmem:[%s219 + $0xc0] sm:$0xf]
      %v4675 = vld [vmem:[%s219 + $0xc4] sm:$0xf]
      %v4676 = vld [vmem:[%s219 + $0xc8] sm:$0xf]
      %v4677 = vld [vmem:[%s219 + $0xcc] sm:$0xf]
      %v4678 = vld [vmem:[%s219 + $0xd0] sm:$0xf]
      %v4679 = vld [vmem:[%s219 + $0xd4] sm:$0xf]
      %v4680 = vld [vmem:[%s219 + $0xd8] sm:$0x1]
      %s4681 = scalar_lea.vmem %s1, 128
      %v4682 = vld [vmem:[%s4681] sm:$0xf]
      %v4683 = vld [vmem:[%s4681 + $0x4] sm:$0xf]
      %v4684 = vld [vmem:[%s4681 + $0x8] sm:$0xf]
      %v4685 = vld [vmem:[%s4681 + $0xc] sm:$0xf]
      %v4735 = vunpack.c.l.b16 %v4632
      %v4736 = vunpack.c.l.b16 %v4633
      %v4737 = vunpack.c.l.b16 %v4634
      %v4738 = vunpack.c.l.b16 %v4635
      %v4739 = vunpack.c.l.b16 %v4636
      %v4740 = vunpack.c.l.b16 %v4637
      %v4741 = vunpack.c.l.b16 %v4638
      %v4742 = vunpack.c.l.b16 %v4639
      %v4743 = vunpack.c.l.b16 %v4640
      %v4744 = vunpack.c.l.b16 %v4641
      %v4745 = vunpack.c.l.b16 %v4642
      %v4746 = vunpack.c.l.b16 %v4643
      %v4747 = vunpack.c.l.b16 %v4644
      %v4748 = vunpack.c.l.b16 %v4645
      %v4749 = vunpack.c.l.b16 %v4646
      %v4750 = vunpack.c.l.b16 %v4647
      %v4751 = vunpack.c.l.b16 %v4648
      %v4752 = vunpack.c.l.b16 %v4649
      %v4753 = vunpack.c.l.b16 %v4650
      %v4754 = vunpack.c.l.b16 %v4651
      %v4755 = vunpack.c.l.b16 %v4652
      %v4756 = vunpack.c.l.b16 %v4653
      %v4757 = vunpack.c.l.b16 %v4654
      %v4758 = vunpack.c.l.b16 %v4655
      %v4759 = vunpack.c.l.b16 %v4656
      %v4760 = vunpack.c.l.b16 %v4657
      %v4761 = vunpack.c.l.b16 %v4658
      %v4762 = vunpack.c.l.b16 %v4659
      %v4763 = vunpack.c.l.b16 %v4660
      %v4764 = vunpack.c.l.b16 %v4661
      %v4765 = vunpack.c.l.b16 %v4662
      %v4766 = vunpack.c.l.b16 %v4663
      %v4767 = vunpack.c.l.b16 %v4664
      %v4768 = vunpack.c.l.b16 %v4665
      %v4769 = vunpack.c.l.b16 %v4666
      %v4770 = vunpack.c.l.b16 %v4667
      %v4771 = vunpack.c.l.b16 %v4668
      %v4772 = vunpack.c.l.b16 %v4669
      %v4773 = vunpack.c.l.b16 %v4670
      %v4774 = vunpack.c.l.b16 %v4671
      %v4775 = vunpack.c.l.b16 %v4672
      %v4776 = vunpack.c.l.b16 %v4673
      %v4777 = vunpack.c.l.b16 %v4674
      %v4778 = vunpack.c.l.b16 %v4675
      %v4779 = vunpack.c.l.b16 %v4676
      %v4780 = vunpack.c.l.b16 %v4677
      %v4781 = vunpack.c.l.b16 %v4678
      %v4782 = vunpack.c.l.b16 %v4679
      %v4783 = vunpack.c.l.b16 %v4680
      %v4784 = vpack.c.b16 %v4736, %v4735
      %v4785 = vpack.c.b16 %v4738, %v4737
      %v4786 = vpack.c.b16 %v4740, %v4739
      %v4787 = vpack.c.b16 %v4742, %v4741
      %v4788 = vpack.c.b16 %v4744, %v4743
      %v4789 = vpack.c.b16 %v4746, %v4745
      %v4790 = vpack.c.b16 %v4748, %v4747
      %v4791 = vpack.c.b16 %v4750, %v4749
      %v4792 = vpack.c.b16 %v4752, %v4751
      %v4793 = vpack.c.b16 %v4754, %v4753
      %v4794 = vpack.c.b16 %v4756, %v4755
      %v4795 = vpack.c.b16 %v4758, %v4757
      %v4796 = vpack.c.b16 %v4760, %v4759
      %v4797 = vpack.c.b16 %v4762, %v4761
      %v4798 = vpack.c.b16 %v4764, %v4763
      %v4799 = vpack.c.b16 %v4766, %v4765
      %v4800 = vpack.c.b16 %v4768, %v4767
      %v4801 = vpack.c.b16 %v4770, %v4769
      %v4802 = vpack.c.b16 %v4772, %v4771
      %v4803 = vpack.c.b16 %v4774, %v4773
      %v4804 = vpack.c.b16 %v4776, %v4775
      %v4805 = vpack.c.b16 %v4778, %v4777
      %v4806 = vpack.c.b16 %v4780, %v4779
      %v4807 = vpack.c.b16 %v4782, %v4781
      %v4808 = vpack.c.b16 %v4783, %v4783
      %v4809 = vrot.slane %v4784, 1
      %v4810 = vrot.slane %v4785, 1
      %v4811 = vsel %vm1820, %v4809, %v4810
      %v4812 = vrot.slane %v4786, 1
      %v4813 = vsel %vm1820, %v4810, %v4812
      %v4814 = vrot.slane %v4787, 1
      %v4815 = vsel %vm1820, %v4812, %v4814
      %v4816 = vrot.slane %v4788, 1
      %v4817 = vsel %vm1820, %v4814, %v4816
      %v4818 = vrot.slane %v4789, 1
      %v4819 = vsel %vm1820, %v4816, %v4818
      %v4820 = vrot.slane %v4790, 1
      %v4821 = vsel %vm1820, %v4818, %v4820
      %v4822 = vrot.slane %v4791, 1
      %v4823 = vsel %vm1820, %v4820, %v4822
      %v4824 = vrot.slane %v4792, 1
      %v4825 = vsel %vm1820, %v4822, %v4824
      %v4826 = vrot.slane %v4793, 1
      %v4827 = vsel %vm1820, %v4824, %v4826
      %v4828 = vrot.slane %v4794, 1
      %v4829 = vsel %vm1820, %v4826, %v4828
      %v4830 = vrot.slane %v4795, 1
      %v4831 = vsel %vm1820, %v4828, %v4830
      %v4832 = vrot.slane %v4796, 1
      %v4833 = vsel %vm1820, %v4830, %v4832
      %v4834 = vrot.slane %v4797, 1
      %v4835 = vsel %vm1820, %v4832, %v4834
      %v4836 = vrot.slane %v4798, 1
      %v4837 = vsel %vm1820, %v4834, %v4836
      %v4838 = vrot.slane %v4799, 1
      %v4839 = vsel %vm1820, %v4836, %v4838
      %v4840 = vrot.slane %v4800, 1
      %v4841 = vsel %vm1820, %v4838, %v4840
      %v4842 = vrot.slane %v4801, 1
      %v4843 = vsel %vm1820, %v4840, %v4842
      %v4844 = vrot.slane %v4802, 1
      %v4845 = vsel %vm1820, %v4842, %v4844
      %v4846 = vrot.slane %v4803, 1
      %v4847 = vsel %vm1820, %v4844, %v4846
      %v4848 = vrot.slane %v4804, 1
      %v4849 = vsel %vm1820, %v4846, %v4848
      %v4850 = vrot.slane %v4805, 1
      %v4851 = vsel %vm1820, %v4848, %v4850
      %v4852 = vrot.slane %v4806, 1
      %v4853 = vsel %vm1820, %v4850, %v4852
      %v4854 = vrot.slane %v4807, 1
      %v4855 = vsel %vm1820, %v4852, %v4854
      %v4856 = vrot.slane %v4808, 1
      %v4857 = vsel %vm1820, %v4854, %v4856
      %v4862 = vunpack.c.l.b16 %v4682
      %v4863 = vunpack.c.l.b16 %v4683
      %v4864 = vunpack.c.l.b16 %v4684
      %v4865 = vunpack.c.l.b16 %v4685
      %v4866 = vpack.c.b16 %v4863, %v4862
      %v4867 = vpack.c.b16 %v4865, %v4864
      %v4871 = vsel %vm616, %v4811, 0
      %v4874 = vsel %vm616, %v4813, 0
      %v4877 = vsel %vm616, %v4815, 0
      %v4880 = vsel %vm616, %v4817, 0
      %v4883 = vsel %vm616, %v4819, 0
      %v4886 = vsel %vm616, %v4821, 0
      %v4889 = vsel %vm616, %v4823, 0
      %v4892 = vsel %vm616, %v4825, 0
      %v4895 = vsel %vm616, %v4827, 0
      %v4898 = vsel %vm616, %v4829, 0
      %v4901 = vsel %vm616, %v4831, 0
      %v4904 = vsel %vm616, %v4833, 0
      %v4907 = vsel %vm616, %v4835, 0
      %v4910 = vsel %vm616, %v4837, 0
      %v4913 = vsel %vm616, %v4839, 0
      %v4916 = vsel %vm616, %v4841, 0
      %v4919 = vsel %vm616, %v4843, 0
      %v4922 = vsel %vm616, %v4845, 0
      %v4925 = vsel %vm616, %v4847, 0
      %v4928 = vsel %vm616, %v4849, 0
      %v4931 = vsel %vm616, %v4851, 0
      %v4934 = vsel %vm616, %v4853, 0
      %v4937 = vsel %vm616, %v4855, 0
      %v4940 = vsel %vm616, %v4857, 0
      %4942 = vmatprep.subr.bf16.mxu0 0
      %4943 = vmatpush1.bf16.msra.mxu0 %v4866
      %4944 = vmatprep.subr.bf16.mxu0 0
      %4945 = vmatpush1.bf16.msra.mxu0 %v4867
      %4946 = vmatprep.subr.bf16.mxu0 0
      %4947 = vmatpush1.bf16.msra.mxu0 0
      %4948 = vmatprep.subr.bf16.mxu0 0
      %4949 = vmatpush1.bf16.msra.mxu0 0
      %4950 = vmatprep.subr.bf16.mxu0 0
      %4951 = vmatpush1.bf16.msra.mxu0 0
      %4952 = vmatprep.subr.bf16.mxu0 0
      %4953 = vmatpush1.bf16.msra.mxu0 0
      %4954 = vmatprep.subr.bf16.mxu0 0
      %4955 = vmatpush1.bf16.msra.mxu0 0
      %4956 = vmatprep.subr.bf16.mxu0 0
      %4957 = vmatpush1.bf16.msra.mxu0 0
      %4958 = vmatprep.subr.bf16.mxu0 0
      %4959 = vmatpush1.bf16.msra.mxu0 0
      %4960 = vmatprep.subr.bf16.mxu0 0
      %4961 = vmatpush1.bf16.msra.mxu0 0
      %4962 = vmatprep.subr.bf16.mxu0 0
      %4963 = vmatpush1.bf16.msra.mxu0 0
      %4964 = vmatprep.subr.bf16.mxu0 0
      %4965 = vmatpush1.bf16.msra.mxu0 0
      %4966 = vmatprep.subr.bf16.mxu0 0
      %4967 = vmatpush1.bf16.msra.mxu0 0
      %4968 = vmatprep.subr.bf16.mxu0 0
      %4969 = vmatpush1.bf16.msra.mxu0 0
      %4970 = vmatprep.subr.bf16.mxu0 0
      %4971 = vmatpush1.bf16.msra.mxu0 0
      %4972 = vmatprep.subr.bf16.mxu0 0
      %4973 = vmatpush1.bf16.msra.mxu0 0
      %4974 = vmatprep.mubr.bf16.mxu0 0
      %4975 = vmatmul.mubr.bf16.gmra.mrb[0].mxu0 %v4871
      %v4976 = vpop.f32.mrb[0].mxu0
      %v4977 = vadd.f32 0.0, %v4976
      %v4978 = vpop.f32.mrb[0].mxu0
      %v4979 = vpop.f32.mrb[0].mxu0
      %v4980 = vadd.f32 0.0, %v4979
      %v4981 = vpop.f32.mrb[0].mxu0
      %4982 = vmatprep.mubr.bf16.mxu0 0
      %4983 = vmatmul.mubr.bf16.gmra.mrb[0].mxu0 %v4874
      %v4984 = vpop.f32.mrb[0].mxu0
      %v4985 = vadd.f32 0.0, %v4984
      %v4986 = vpop.f32.mrb[0].mxu0
      %v4987 = vpop.f32.mrb[0].mxu0
      %v4988 = vadd.f32 0.0, %v4987
      %v4989 = vpop.f32.mrb[0].mxu0
      %4990 = vmatprep.mubr.bf16.mxu0 0
      %4991 = vmatmul.mubr.bf16.gmra.mrb[0].mxu0 %v4877
      %v4992 = vpop.f32.mrb[0].mxu0
      %v4993 = vadd.f32 0.0, %v4992
      %v4994 = vpop.f32.mrb[0].mxu0
      %v4995 = vpop.f32.mrb[0].mxu0
      %v4996 = vadd.f32 0.0, %v4995
      %v4997 = vpop.f32.mrb[0].mxu0
      %4998 = vmatprep.mubr.bf16.mxu0 0
      %4999 = vmatmul.mubr.bf16.gmra.mrb[0].mxu0 %v4880
      %v5000 = vpop.f32.mrb[0].mxu0
      %v5001 = vadd.f32 0.0, %v5000
      %v5002 = vpop.f32.mrb[0].mxu0
      %v5003 = vpop.f32.mrb[0].mxu0
      %v5004 = vadd.f32 0.0, %v5003
      %v5005 = vpop.f32.mrb[0].mxu0
      %5006 = vmatprep.mubr.bf16.mxu0 0
      %5007 = vmatmul.mubr.bf16.gmra.mrb[0].mxu0 %v4883
      %v5008 = vpop.f32.mrb[0].mxu0
      %v5009 = vadd.f32 0.0, %v5008
      %v5010 = vpop.f32.mrb[0].mxu0
      %v5011 = vpop.f32.mrb[0].mxu0
      %v5012 = vadd.f32 0.0, %v5011
      %v5013 = vpop.f32.mrb[0].mxu0
      %5014 = vmatprep.mubr.bf16.mxu0 0
      %5015 = vmatmul.mubr.bf16.gmra.mrb[0].mxu0 %v4886
      %v5016 = vpop.f32.mrb[0].mxu0
      %v5017 = vadd.f32 0.0, %v5016
      %v5018 = vpop.f32.mrb[0].mxu0
      %v5019 = vpop.f32.mrb[0].mxu0
      %v5020 = vadd.f32 0.0, %v5019
      %v5021 = vpop.f32.mrb[0].mxu0
      %5022 = vmatprep.mubr.bf16.mxu0 0
      %5023 = vmatmul.mubr.bf16.gmra.mrb[0].mxu0 %v4889
      %v5024 = vpop.f32.mrb[0].mxu0
      %v5025 = vadd.f32 0.0, %v5024
      %v5026 = vpop.f32.mrb[0].mxu0
      %v5027 = vpop.f32.mrb[0].mxu0
      %v5028 = vadd.f32 0.0, %v5027
      %v5029 = vpop.f32.mrb[0].mxu0
      %5030 = vmatprep.mubr.bf16.mxu0 0
      %5031 = vmatmul.mubr.bf16.gmra.mrb[0].mxu0 %v4892
      %v5032 = vpop.f32.mrb[0].mxu0
      %v5033 = vadd.f32 0.0, %v5032
      %v5034 = vpop.f32.mrb[0].mxu0
      %v5035 = vpop.f32.mrb[0].mxu0
      %v5036 = vadd.f32 0.0, %v5035
      %v5037 = vpop.f32.mrb[0].mxu0
      %5038 = vmatprep.mubr.bf16.mxu0 0
      %5039 = vmatmul.mubr.bf16.gmra.mrb[0].mxu0 %v4895
      %v5040 = vpop.f32.mrb[0].mxu0
      %v5041 = vadd.f32 0.0, %v5040
      %v5042 = vpop.f32.mrb[0].mxu0
      %v5043 = vpop.f32.mrb[0].mxu0
      %v5044 = vadd.f32 0.0, %v5043
      %v5045 = vpop.f32.mrb[0].mxu0
      %5046 = vmatprep.mubr.bf16.mxu0 0
      %5047 = vmatmul.mubr.bf16.gmra.mrb[0].mxu0 %v4898
      %v5048 = vpop.f32.mrb[0].mxu0
      %v5049 = vadd.f32 0.0, %v5048
      %v5050 = vpop.f32.mrb[0].mxu0
      %v5051 = vpop.f32.mrb[0].mxu0
      %v5052 = vadd.f32 0.0, %v5051
      %v5053 = vpop.f32.mrb[0].mxu0
      %5054 = vmatprep.mubr.bf16.mxu0 0
      %5055 = vmatmul.mubr.bf16.gmra.mrb[0].mxu0 %v4901
      %v5056 = vpop.f32.mrb[0].mxu0
      %v5057 = vadd.f32 0.0, %v5056
      %v5058 = vpop.f32.mrb[0].mxu0
      %v5059 = vpop.f32.mrb[0].mxu0
      %v5060 = vadd.f32 0.0, %v5059
      %v5061 = vpop.f32.mrb[0].mxu0
      %5062 = vmatprep.mubr.bf16.mxu0 0
      %5063 = vmatmul.mubr.bf16.gmra.mrb[0].mxu0 %v4904
      %v5064 = vpop.f32.mrb[0].mxu0
      %v5065 = vadd.f32 0.0, %v5064
      %v5066 = vpop.f32.mrb[0].mxu0
      %v5067 = vpop.f32.mrb[0].mxu0
      %v5068 = vadd.f32 0.0, %v5067
      %v5069 = vpop.f32.mrb[0].mxu0
      %5070 = vmatprep.mubr.bf16.mxu0 0
      %5071 = vmatmul.mubr.bf16.gmra.mrb[0].mxu0 %v4907
      %v5072 = vpop.f32.mrb[0].mxu0
      %v5073 = vadd.f32 0.0, %v5072
      %v5074 = vpop.f32.mrb[0].mxu0
      %v5075 = vpop.f32.mrb[0].mxu0
      %v5076 = vadd.f32 0.0, %v5075
      %v5077 = vpop.f32.mrb[0].mxu0
      %5078 = vmatprep.mubr.bf16.mxu0 0
      %5079 = vmatmul.mubr.bf16.gmra.mrb[0].mxu0 %v4910
      %v5080 = vpop.f32.mrb[0].mxu0
      %v5081 = vadd.f32 0.0, %v5080
      %v5082 = vpop.f32.mrb[0].mxu0
      %v5083 = vpop.f32.mrb[0].mxu0
      %v5084 = vadd.f32 0.0, %v5083
      %v5085 = vpop.f32.mrb[0].mxu0
      %5086 = vmatprep.mubr.bf16.mxu0 0
      %5087 = vmatmul.mubr.bf16.gmra.mrb[0].mxu0 %v4913
      %v5088 = vpop.f32.mrb[0].mxu0
      %v5089 = vadd.f32 0.0, %v5088
      %v5090 = vpop.f32.mrb[0].mxu0
      %v5091 = vpop.f32.mrb[0].mxu0
      %v5092 = vadd.f32 0.0, %v5091
      %v5093 = vpop.f32.mrb[0].mxu0
      %5094 = vmatprep.mubr.bf16.mxu0 0
      %5095 = vmatmul.mubr.bf16.gmra.mrb[0].mxu0 %v4916
      %v5096 = vpop.f32.mrb[0].mxu0
      %v5097 = vadd.f32 0.0, %v5096
      %v5098 = vpop.f32.mrb[0].mxu0
      %v5099 = vpop.f32.mrb[0].mxu0
      %v5100 = vadd.f32 0.0, %v5099
      %v5101 = vpop.f32.mrb[0].mxu0
      %5102 = vmatprep.mubr.bf16.mxu0 0
      %5103 = vmatmul.mubr.bf16.gmra.mrb[0].mxu0 %v4919
      %v5104 = vpop.f32.mrb[0].mxu0
      %v5105 = vadd.f32 0.0, %v5104
      %v5106 = vpop.f32.mrb[0].mxu0
      %v5107 = vpop.f32.mrb[0].mxu0
      %v5108 = vadd.f32 0.0, %v5107
      %v5109 = vpop.f32.mrb[0].mxu0
      %5110 = vmatprep.mubr.bf16.mxu0 0
      %5111 = vmatmul.mubr.bf16.gmra.mrb[0].mxu0 %v4922
      %v5112 = vpop.f32.mrb[0].mxu0
      %v5113 = vadd.f32 0.0, %v5112
      %v5114 = vpop.f32.mrb[0].mxu0
      %v5115 = vpop.f32.mrb[0].mxu0
      %v5116 = vadd.f32 0.0, %v5115
      %v5117 = vpop.f32.mrb[0].mxu0
      %5118 = vmatprep.mubr.bf16.mxu0 0
      %5119 = vmatmul.mubr.bf16.gmra.mrb[0].mxu0 %v4925
      %v5120 = vpop.f32.mrb[0].mxu0
      %v5121 = vadd.f32 0.0, %v5120
      %v5122 = vpop.f32.mrb[0].mxu0
      %v5123 = vpop.f32.mrb[0].mxu0
      %v5124 = vadd.f32 0.0, %v5123
      %v5125 = vpop.f32.mrb[0].mxu0
      %5126 = vmatprep.mubr.bf16.mxu0 0
      %5127 = vmatmul.mubr.bf16.gmra.mrb[0].mxu0 %v4928
      %v5128 = vpop.f32.mrb[0].mxu0
      %v5129 = vadd.f32 0.0, %v5128
      %v5130 = vpop.f32.mrb[0].mxu0
      %v5131 = vpop.f32.mrb[0].mxu0
      %v5132 = vadd.f32 0.0, %v5131
      %v5133 = vpop.f32.mrb[0].mxu0
      %5134 = vmatprep.mubr.bf16.mxu0 0
      %5135 = vmatmul.mubr.bf16.gmra.mrb[0].mxu0 %v4931
      %v5136 = vpop.f32.mrb[0].mxu0
      %v5137 = vadd.f32 0.0, %v5136
      %v5138 = vpop.f32.mrb[0].mxu0
      %v5139 = vpop.f32.mrb[0].mxu0
      %v5140 = vadd.f32 0.0, %v5139
      %v5141 = vpop.f32.mrb[0].mxu0
      %5142 = vmatprep.mubr.bf16.mxu0 0
      %5143 = vmatmul.mubr.bf16.gmra.mrb[0].mxu0 %v4934
      %v5144 = vpop.f32.mrb[0].mxu0
      %v5145 = vadd.f32 0.0, %v5144
      %v5146 = vpop.f32.mrb[0].mxu0
      %v5147 = vpop.f32.mrb[0].mxu0
      %v5148 = vadd.f32 0.0, %v5147
      %v5149 = vpop.f32.mrb[0].mxu0
      %5150 = vmatprep.mubr.bf16.mxu0 0
      %5151 = vmatmul.mubr.bf16.gmra.mrb[0].mxu0 %v4937
      %v5152 = vpop.f32.mrb[0].mxu0
      %v5153 = vadd.f32 0.0, %v5152
      %v5154 = vpop.f32.mrb[0].mxu0
      %v5155 = vpop.f32.mrb[0].mxu0
      %v5156 = vadd.f32 0.0, %v5155
      %v5157 = vpop.f32.mrb[0].mxu0
      %5158 = vmatprep.mubr.bf16.mxu0 0
      %5159 = vmatmul.mubr.bf16.gmra.mrb[0].mxu0 %v4940
      %v5160 = vpop.f32.mrb[0].mxu0
      %v5161 = vadd.f32 0.0, %v5160
      %v5162 = vpop.f32.mrb[0].mxu0
      %v5163 = vpop.f32.mrb[0].mxu0
      %v5164 = vadd.f32 0.0, %v5163
      %v5165 = vpop.f32.mrb[0].mxu0
      %5166 = vdwg.mxu0
      %v5167 = vadd.f32 %v4584, %v4977
      %v5168 = vadd.f32 %v4585, %v4980
      %v5169 = vadd.f32 %v4586, %v4985
      %v5170 = vadd.f32 %v4587, %v4988
      %v5171 = vadd.f32 %v4588, %v4993
      %v5172 = vadd.f32 %v4589, %v4996
      %v5173 = vadd.f32 %v4590, %v5001
      %v5174 = vadd.f32 %v4591, %v5004
      %v5175 = vadd.f32 %v4592, %v5009
      %v5176 = vadd.f32 %v4593, %v5012
      %v5177 = vadd.f32 %v4594, %v5017
      %v5178 = vadd.f32 %v4595, %v5020
      %v5179 = vadd.f32 %v4596, %v5025
      %v5180 = vadd.f32 %v4597, %v5028
      %v5181 = vadd.f32 %v4598, %v5033
      %v5182 = vadd.f32 %v4599, %v5036
      %v5183 = vadd.f32 %v4600, %v5041
      %v5184 = vadd.f32 %v4601, %v5044
      %v5185 = vadd.f32 %v4602, %v5049
      %v5186 = vadd.f32 %v4603, %v5052
      %v5187 = vadd.f32 %v4604, %v5057
      %v5188 = vadd.f32 %v4605, %v5060
      %v5189 = vadd.f32 %v4606, %v5065
      %v5190 = vadd.f32 %v4607, %v5068
      %v5191 = vadd.f32 %v4608, %v5073
      %v5192 = vadd.f32 %v4609, %v5076
      %v5193 = vadd.f32 %v4610, %v5081
      %v5194 = vadd.f32 %v4611, %v5084
      %v5195 = vadd.f32 %v4612, %v5089
      %v5196 = vadd.f32 %v4613, %v5092
      %v5197 = vadd.f32 %v4614, %v5097
      %v5198 = vadd.f32 %v4615, %v5100
      %v5199 = vadd.f32 %v4616, %v5105
      %v5200 = vadd.f32 %v4617, %v5108
      %v5201 = vadd.f32 %v4618, %v5113
      %v5202 = vadd.f32 %v4619, %v5116
      %v5203 = vadd.f32 %v4620, %v5121
      %v5204 = vadd.f32 %v4621, %v5124
      %v5205 = vadd.f32 %v4622, %v5129
      %v5206 = vadd.f32 %v4623, %v5132
      %v5207 = vadd.f32 %v4624, %v5137
      %v5208 = vadd.f32 %v4625, %v5140
      %v5209 = vadd.f32 %v4626, %v5145
      %v5210 = vadd.f32 %v4627, %v5148
      %v5211 = vadd.f32 %v4628, %v5153
      %v5212 = vadd.f32 %v4629, %v5156
      %v5213 = vadd.f32 %v4630, %v5161
      %v5214 = vadd.f32 %v4631, %v5164
      %v5215 = vld [vmem:[%s2] sm:$0x1]
      %v5217 = vlaneseq
      %v5218 = vshrl.u32 %v5217, 7
      %v5219 = vsub.s32 0, %v5218
      %v5220 = vrot.slane %v5215, %v5219
      %v5222 = vadd.f32 %v5167, %v5220
      %v5223 = vadd.f32 %v5168, %v5220
      %v5224 = vadd.f32 %v5169, %v5220
      %v5225 = vadd.f32 %v5170, %v5220
      %v5226 = vadd.f32 %v5171, %v5220
      %v5227 = vadd.f32 %v5172, %v5220
      %v5228 = vadd.f32 %v5173, %v5220
      %v5229 = vadd.f32 %v5174, %v5220
      %v5230 = vadd.f32 %v5175, %v5220
      %v5231 = vadd.f32 %v5176, %v5220
      %v5232 = vadd.f32 %v5177, %v5220
      %v5233 = vadd.f32 %v5178, %v5220
      %v5234 = vadd.f32 %v5179, %v5220
      %v5235 = vadd.f32 %v5180, %v5220
      %v5236 = vadd.f32 %v5181, %v5220
      %v5237 = vadd.f32 %v5182, %v5220
      %v5238 = vadd.f32 %v5183, %v5220
      %v5239 = vadd.f32 %v5184, %v5220
      %v5240 = vadd.f32 %v5185, %v5220
      %v5241 = vadd.f32 %v5186, %v5220
      %v5242 = vadd.f32 %v5187, %v5220
      %v5243 = vadd.f32 %v5188, %v5220
      %v5244 = vadd.f32 %v5189, %v5220
      %v5245 = vadd.f32 %v5190, %v5220
      %v5246 = vadd.f32 %v5191, %v5220
      %v5247 = vadd.f32 %v5192, %v5220
      %v5248 = vadd.f32 %v5193, %v5220
      %v5249 = vadd.f32 %v5194, %v5220
      %v5250 = vadd.f32 %v5195, %v5220
      %v5251 = vadd.f32 %v5196, %v5220
      %v5252 = vadd.f32 %v5197, %v5220
      %v5253 = vadd.f32 %v5198, %v5220
      %v5254 = vadd.f32 %v5199, %v5220
      %v5255 = vadd.f32 %v5200, %v5220
      %v5256 = vadd.f32 %v5201, %v5220
      %v5257 = vadd.f32 %v5202, %v5220
      %v5258 = vadd.f32 %v5203, %v5220
      %v5259 = vadd.f32 %v5204, %v5220
      %v5260 = vadd.f32 %v5205, %v5220
      %v5261 = vadd.f32 %v5206, %v5220
      %v5262 = vadd.f32 %v5207, %v5220
      %v5263 = vadd.f32 %v5208, %v5220
      %v5264 = vadd.f32 %v5209, %v5220
      %v5265 = vadd.f32 %v5210, %v5220
      %v5266 = vadd.f32 %v5211, %v5220
      %v5267 = vadd.f32 %v5212, %v5220
      %v5268 = vadd.f32 %v5213, %v5220
      %v5269 = vadd.f32 %v5214, %v5220
      %v5270 = vmax.f32 %v5222, 0.0
      %v5271 = vmax.f32 %v5223, 0.0
      %v5272 = vmax.f32 %v5224, 0.0
      %v5273 = vmax.f32 %v5225, 0.0
      %v5274 = vmax.f32 %v5226, 0.0
      %v5275 = vmax.f32 %v5227, 0.0
      %v5276 = vmax.f32 %v5228, 0.0
      %v5277 = vmax.f32 %v5229, 0.0
      %v5278 = vmax.f32 %v5230, 0.0
      %v5279 = vmax.f32 %v5231, 0.0
      %v5280 = vmax.f32 %v5232, 0.0
      %v5281 = vmax.f32 %v5233, 0.0
      %v5282 = vmax.f32 %v5234, 0.0
      %v5283 = vmax.f32 %v5235, 0.0
      %v5284 = vmax.f32 %v5236, 0.0
      %v5285 = vmax.f32 %v5237, 0.0
      %v5286 = vmax.f32 %v5238, 0.0
      %v5287 = vmax.f32 %v5239, 0.0
      %v5288 = vmax.f32 %v5240, 0.0
      %v5289 = vmax.f32 %v5241, 0.0
      %v5290 = vmax.f32 %v5242, 0.0
      %v5291 = vmax.f32 %v5243, 0.0
      %v5292 = vmax.f32 %v5244, 0.0
      %v5293 = vmax.f32 %v5245, 0.0
      %v5294 = vmax.f32 %v5246, 0.0
      %v5295 = vmax.f32 %v5247, 0.0
      %v5296 = vmax.f32 %v5248, 0.0
      %v5297 = vmax.f32 %v5249, 0.0
      %v5298 = vmax.f32 %v5250, 0.0
      %v5299 = vmax.f32 %v5251, 0.0
      %v5300 = vmax.f32 %v5252, 0.0
      %v5301 = vmax.f32 %v5253, 0.0
      %v5302 = vmax.f32 %v5254, 0.0
      %v5303 = vmax.f32 %v5255, 0.0
      %v5304 = vmax.f32 %v5256, 0.0
      %v5305 = vmax.f32 %v5257, 0.0
      %v5306 = vmax.f32 %v5258, 0.0
      %v5307 = vmax.f32 %v5259, 0.0
      %v5308 = vmax.f32 %v5260, 0.0
      %v5309 = vmax.f32 %v5261, 0.0
      %v5310 = vmax.f32 %v5262, 0.0
      %v5311 = vmax.f32 %v5263, 0.0
      %v5312 = vmax.f32 %v5264, 0.0
      %v5313 = vmax.f32 %v5265, 0.0
      %v5314 = vmax.f32 %v5266, 0.0
      %v5315 = vmax.f32 %v5267, 0.0
      %v5316 = vmax.f32 %v5268, 0.0
      %v5317 = vmax.f32 %v5269, 0.0
      %v5318 = vlaneseq
      %v5319 = vshrl.u32 %v5318, 7
      %v5320 = vadd.s32 %v5319, 8
      %v5321 = vadd.s32 %v5319, 16
      %v5322 = vadd.s32 %v5319, 24
      %v5323 = vadd.s32 %v5319, 32
      %v5324 = vadd.s32 %v5319, 40
      %v5325 = vadd.s32 %v5319, 48
      %v5326 = vadd.s32 %v5319, 56
      %v5327 = vadd.s32 %v5319, 64
      %v5328 = vadd.s32 %v5319, 72
      %v5329 = vadd.s32 %v5319, 80
      %v5330 = vadd.s32 %v5319, 88
      %v5331 = vadd.s32 %v5319, 96
      %v5332 = vadd.s32 %v5319, 104
      %v5333 = vadd.s32 %v5319, 112
      %v5334 = vadd.s32 %v5319, 120
      %v5335 = vadd.s32 %v5319, 128
      %v5336 = vadd.s32 %v5319, 136
      %v5337 = vadd.s32 %v5319, 144
      %v5338 = vadd.s32 %v5319, 152
      %v5339 = vadd.s32 %v5319, 160
      %v5340 = vadd.s32 %v5319, 168
      %v5341 = vadd.s32 %v5319, 176
      %v5342 = vadd.s32 %v5319, 184
      %v5343 = vadd.s32 %v5319, 192
      %v5344 = vadd.s32 %v5319, 200
      %v5345 = vadd.s32 %v5319, 208
      %v5346 = vadd.s32 %v5319, 216
      %v5347 = vadd.s32 %v5319, 224
      %v5348 = vadd.s32 %v5319, 232
      %v5349 = vadd.s32 %v5319, 240
      %v5350 = vadd.s32 %v5319, 248
      %v5351 = vadd.s32 %v5319, 256
      %v5352 = vadd.s32 %v5319, 264
      %v5353 = vadd.s32 %v5319, 272
      %v5354 = vadd.s32 %v5319, 280
      %v5355 = vadd.s32 %v5319, 288
      %v5356 = vadd.s32 %v5319, 296
      %v5357 = vadd.s32 %v5319, 304
      %v5358 = vadd.s32 %v5319, 312
      %v5359 = vadd.s32 %v5319, 320
      %v5360 = vadd.s32 %v5319, 328
      %v5361 = vadd.s32 %v5319, 336
      %v5362 = vadd.s32 %v5319, 344
      %v5363 = vadd.s32 %v5319, 352
      %v5364 = vadd.s32 %v5319, 360
      %v5365 = vadd.s32 %v5319, 368
      %v5366 = vadd.s32 %v5319, 376
      %vm5367 = vcmp.lt.s32.totalorder %v5319, 0
      %v5368 = vsub.s32 0, %v5319
      %v5369 = vsel %vm5367, %v5368, %v5319
      %v5370 = vmul.u32.u64.compose %v5369, 2863311531
      %v5371 = vextract.low.u32 %v5370
      %v5372 = vextract.high.u32 %v5370
      %v5373 = vshrl.u32 %v5372, 4
      %v5374 = vmul.u32 %v5373, 24
      %v5375 = vsub.s32 %v5369, %v5374
      %v5376 = vsub.s32 0, %v5375
      %v5377 = vsel %vm5367, %v5376, %v5375
      %vm5378 = vcmp.lt.s32.totalorder %v5320, 0
      %v5379 = vsub.s32 0, %v5320
      %v5380 = vsel %vm5378, %v5379, %v5320
      %v5381 = vmul.u32.u64.compose %v5380, 2863311531
      %v5382 = vextract.low.u32 %v5381
      %v5383 = vextract.high.u32 %v5381
      %v5384 = vshrl.u32 %v5383, 4
      %v5385 = vmul.u32 %v5384, 24
      %v5386 = vsub.s32 %v5380, %v5385
      %v5387 = vsub.s32 0, %v5386
      %v5388 = vsel %vm5378, %v5387, %v5386
      %vm5389 = vcmp.lt.s32.totalorder %v5321, 0
      %v5390 = vsub.s32 0, %v5321
      %v5391 = vsel %vm5389, %v5390, %v5321
      %v5392 = vmul.u32.u64.compose %v5391, 2863311531
      %v5393 = vextract.low.u32 %v5392
      %v5394 = vextract.high.u32 %v5392
      %v5395 = vshrl.u32 %v5394, 4
      %v5396 = vmul.u32 %v5395, 24
      %v5397 = vsub.s32 %v5391, %v5396
      %v5398 = vsub.s32 0, %v5397
      %v5399 = vsel %vm5389, %v5398, %v5397
      %vm5400 = vcmp.lt.s32.totalorder %v5322, 0
      %v5401 = vsub.s32 0, %v5322
      %v5402 = vsel %vm5400, %v5401, %v5322
      %v5403 = vmul.u32.u64.compose %v5402, 2863311531
      %v5404 = vextract.low.u32 %v5403
      %v5405 = vextract.high.u32 %v5403
      %v5406 = vshrl.u32 %v5405, 4
      %v5407 = vmul.u32 %v5406, 24
      %v5408 = vsub.s32 %v5402, %v5407
      %v5409 = vsub.s32 0, %v5408
      %v5410 = vsel %vm5400, %v5409, %v5408
      %vm5411 = vcmp.lt.s32.totalorder %v5323, 0
      %v5412 = vsub.s32 0, %v5323
      %v5413 = vsel %vm5411, %v5412, %v5323
      %v5414 = vmul.u32.u64.compose %v5413, 2863311531
      %v5415 = vextract.low.u32 %v5414
      %v5416 = vextract.high.u32 %v5414
      %v5417 = vshrl.u32 %v5416, 4
      %v5418 = vmul.u32 %v5417, 24
      %v5419 = vsub.s32 %v5413, %v5418
      %v5420 = vsub.s32 0, %v5419
      %v5421 = vsel %vm5411, %v5420, %v5419
      %vm5422 = vcmp.lt.s32.totalorder %v5324, 0
      %v5423 = vsub.s32 0, %v5324
      %v5424 = vsel %vm5422, %v5423, %v5324
      %v5425 = vmul.u32.u64.compose %v5424, 2863311531
      %v5426 = vextract.low.u32 %v5425
      %v5427 = vextract.high.u32 %v5425
      %v5428 = vshrl.u32 %v5427, 4
      %v5429 = vmul.u32 %v5428, 24
      %v5430 = vsub.s32 %v5424, %v5429
      %v5431 = vsub.s32 0, %v5430
      %v5432 = vsel %vm5422, %v5431, %v5430
      %vm5433 = vcmp.lt.s32.totalorder %v5325, 0
      %v5434 = vsub.s32 0, %v5325
      %v5435 = vsel %vm5433, %v5434, %v5325
      %v5436 = vmul.u32.u64.compose %v5435, 2863311531
      %v5437 = vextract.low.u32 %v5436
      %v5438 = vextract.high.u32 %v5436
      %v5439 = vshrl.u32 %v5438, 4
      %v5440 = vmul.u32 %v5439, 24
      %v5441 = vsub.s32 %v5435, %v5440
      %v5442 = vsub.s32 0, %v5441
      %v5443 = vsel %vm5433, %v5442, %v5441
      %vm5444 = vcmp.lt.s32.totalorder %v5326, 0
      %v5445 = vsub.s32 0, %v5326
      %v5446 = vsel %vm5444, %v5445, %v5326
      %v5447 = vmul.u32.u64.compose %v5446, 2863311531
      %v5448 = vextract.low.u32 %v5447
      %v5449 = vextract.high.u32 %v5447
      %v5450 = vshrl.u32 %v5449, 4
      %v5451 = vmul.u32 %v5450, 24
      %v5452 = vsub.s32 %v5446, %v5451
      %v5453 = vsub.s32 0, %v5452
      %v5454 = vsel %vm5444, %v5453, %v5452
      %vm5455 = vcmp.lt.s32.totalorder %v5327, 0
      %v5456 = vsub.s32 0, %v5327
      %v5457 = vsel %vm5455, %v5456, %v5327
      %v5458 = vmul.u32.u64.compose %v5457, 2863311531
      %v5459 = vextract.low.u32 %v5458
      %v5460 = vextract.high.u32 %v5458
      %v5461 = vshrl.u32 %v5460, 4
      %v5462 = vmul.u32 %v5461, 24
      %v5463 = vsub.s32 %v5457, %v5462
      %v5464 = vsub.s32 0, %v5463
      %v5465 = vsel %vm5455, %v5464, %v5463
      %vm5466 = vcmp.lt.s32.totalorder %v5328, 0
      %v5467 = vsub.s32 0, %v5328
      %v5468 = vsel %vm5466, %v5467, %v5328
      %v5469 = vmul.u32.u64.compose %v5468, 2863311531
      %v5470 = vextract.low.u32 %v5469
      %v5471 = vextract.high.u32 %v5469
      %v5472 = vshrl.u32 %v5471, 4
      %v5473 = vmul.u32 %v5472, 24
      %v5474 = vsub.s32 %v5468, %v5473
      %v5475 = vsub.s32 0, %v5474
      %v5476 = vsel %vm5466, %v5475, %v5474
      %vm5477 = vcmp.lt.s32.totalorder %v5329, 0
      %v5478 = vsub.s32 0, %v5329
      %v5479 = vsel %vm5477, %v5478, %v5329
      %v5480 = vmul.u32.u64.compose %v5479, 2863311531
      %v5481 = vextract.low.u32 %v5480
      %v5482 = vextract.high.u32 %v5480
      %v5483 = vshrl.u32 %v5482, 4
      %v5484 = vmul.u32 %v5483, 24
      %v5485 = vsub.s32 %v5479, %v5484
      %v5486 = vsub.s32 0, %v5485
      %v5487 = vsel %vm5477, %v5486, %v5485
      %vm5488 = vcmp.lt.s32.totalorder %v5330, 0
      %v5489 = vsub.s32 0, %v5330
      %v5490 = vsel %vm5488, %v5489, %v5330
      %v5491 = vmul.u32.u64.compose %v5490, 2863311531
      %v5492 = vextract.low.u32 %v5491
      %v5493 = vextract.high.u32 %v5491
      %v5494 = vshrl.u32 %v5493, 4
      %v5495 = vmul.u32 %v5494, 24
      %v5496 = vsub.s32 %v5490, %v5495
      %v5497 = vsub.s32 0, %v5496
      %v5498 = vsel %vm5488, %v5497, %v5496
      %vm5499 = vcmp.lt.s32.totalorder %v5331, 0
      %v5500 = vsub.s32 0, %v5331
      %v5501 = vsel %vm5499, %v5500, %v5331
      %v5502 = vmul.u32.u64.compose %v5501, 2863311531
      %v5503 = vextract.low.u32 %v5502
      %v5504 = vextract.high.u32 %v5502
      %v5505 = vshrl.u32 %v5504, 4
      %v5506 = vmul.u32 %v5505, 24
      %v5507 = vsub.s32 %v5501, %v5506
      %v5508 = vsub.s32 0, %v5507
      %v5509 = vsel %vm5499, %v5508, %v5507
      %vm5510 = vcmp.lt.s32.totalorder %v5332, 0
      %v5511 = vsub.s32 0, %v5332
      %v5512 = vsel %vm5510, %v5511, %v5332
      %v5513 = vmul.u32.u64.compose %v5512, 2863311531
      %v5514 = vextract.low.u32 %v5513
      %v5515 = vextract.high.u32 %v5513
      %v5516 = vshrl.u32 %v5515, 4
      %v5517 = vmul.u32 %v5516, 24
      %v5518 = vsub.s32 %v5512, %v5517
      %v5519 = vsub.s32 0, %v5518
      %v5520 = vsel %vm5510, %v5519, %v5518
      %vm5521 = vcmp.lt.s32.totalorder %v5333, 0
      %v5522 = vsub.s32 0, %v5333
      %v5523 = vsel %vm5521, %v5522, %v5333
      %v5524 = vmul.u32.u64.compose %v5523, 2863311531
      %v5525 = vextract.low.u32 %v5524
      %v5526 = vextract.high.u32 %v5524
      %v5527 = vshrl.u32 %v5526, 4
      %v5528 = vmul.u32 %v5527, 24
      %v5529 = vsub.s32 %v5523, %v5528
      %v5530 = vsub.s32 0, %v5529
      %v5531 = vsel %vm5521, %v5530, %v5529
      %vm5532 = vcmp.lt.s32.totalorder %v5334, 0
      %v5533 = vsub.s32 0, %v5334
      %v5534 = vsel %vm5532, %v5533, %v5334
      %v5535 = vmul.u32.u64.compose %v5534, 2863311531
      %v5536 = vextract.low.u32 %v5535
      %v5537 = vextract.high.u32 %v5535
      %v5538 = vshrl.u32 %v5537, 4
      %v5539 = vmul.u32 %v5538, 24
      %v5540 = vsub.s32 %v5534, %v5539
      %v5541 = vsub.s32 0, %v5540
      %v5542 = vsel %vm5532, %v5541, %v5540
      %vm5543 = vcmp.lt.s32.totalorder %v5335, 0
      %v5544 = vsub.s32 0, %v5335
      %v5545 = vsel %vm5543, %v5544, %v5335
      %v5546 = vmul.u32.u64.compose %v5545, 2863311531
      %v5547 = vextract.low.u32 %v5546
      %v5548 = vextract.high.u32 %v5546
      %v5549 = vshrl.u32 %v5548, 4
      %v5550 = vmul.u32 %v5549, 24
      %v5551 = vsub.s32 %v5545, %v5550
      %v5552 = vsub.s32 0, %v5551
      %v5553 = vsel %vm5543, %v5552, %v5551
      %vm5554 = vcmp.lt.s32.totalorder %v5336, 0
      %v5555 = vsub.s32 0, %v5336
      %v5556 = vsel %vm5554, %v5555, %v5336
      %v5557 = vmul.u32.u64.compose %v5556, 2863311531
      %v5558 = vextract.low.u32 %v5557
      %v5559 = vextract.high.u32 %v5557
      %v5560 = vshrl.u32 %v5559, 4
      %v5561 = vmul.u32 %v5560, 24
      %v5562 = vsub.s32 %v5556, %v5561
      %v5563 = vsub.s32 0, %v5562
      %v5564 = vsel %vm5554, %v5563, %v5562
      %vm5565 = vcmp.lt.s32.totalorder %v5337, 0
      %v5566 = vsub.s32 0, %v5337
      %v5567 = vsel %vm5565, %v5566, %v5337
      %v5568 = vmul.u32.u64.compose %v5567, 2863311531
      %v5569 = vextract.low.u32 %v5568
      %v5570 = vextract.high.u32 %v5568
      %v5571 = vshrl.u32 %v5570, 4
      %v5572 = vmul.u32 %v5571, 24
      %v5573 = vsub.s32 %v5567, %v5572
      %v5574 = vsub.s32 0, %v5573
      %v5575 = vsel %vm5565, %v5574, %v5573
      %vm5576 = vcmp.lt.s32.totalorder %v5338, 0
      %v5577 = vsub.s32 0, %v5338
      %v5578 = vsel %vm5576, %v5577, %v5338
      %v5579 = vmul.u32.u64.compose %v5578, 2863311531
      %v5580 = vextract.low.u32 %v5579
      %v5581 = vextract.high.u32 %v5579
      %v5582 = vshrl.u32 %v5581, 4
      %v5583 = vmul.u32 %v5582, 24
      %v5584 = vsub.s32 %v5578, %v5583
      %v5585 = vsub.s32 0, %v5584
      %v5586 = vsel %vm5576, %v5585, %v5584
      %vm5587 = vcmp.lt.s32.totalorder %v5339, 0
      %v5588 = vsub.s32 0, %v5339
      %v5589 = vsel %vm5587, %v5588, %v5339
      %v5590 = vmul.u32.u64.compose %v5589, 2863311531
      %v5591 = vextract.low.u32 %v5590
      %v5592 = vextract.high.u32 %v5590
      %v5593 = vshrl.u32 %v5592, 4
      %v5594 = vmul.u32 %v5593, 24
      %v5595 = vsub.s32 %v5589, %v5594
      %v5596 = vsub.s32 0, %v5595
      %v5597 = vsel %vm5587, %v5596, %v5595
      %vm5598 = vcmp.lt.s32.totalorder %v5340, 0
      %v5599 = vsub.s32 0, %v5340
      %v5600 = vsel %vm5598, %v5599, %v5340
      %v5601 = vmul.u32.u64.compose %v5600, 2863311531
      %v5602 = vextract.low.u32 %v5601
      %v5603 = vextract.high.u32 %v5601
      %v5604 = vshrl.u32 %v5603, 4
      %v5605 = vmul.u32 %v5604, 24
      %v5606 = vsub.s32 %v5600, %v5605
      %v5607 = vsub.s32 0, %v5606
      %v5608 = vsel %vm5598, %v5607, %v5606
      %vm5609 = vcmp.lt.s32.totalorder %v5341, 0
      %v5610 = vsub.s32 0, %v5341
      %v5611 = vsel %vm5609, %v5610, %v5341
      %v5612 = vmul.u32.u64.compose %v5611, 2863311531
      %v5613 = vextract.low.u32 %v5612
      %v5614 = vextract.high.u32 %v5612
      %v5615 = vshrl.u32 %v5614, 4
      %v5616 = vmul.u32 %v5615, 24
      %v5617 = vsub.s32 %v5611, %v5616
      %v5618 = vsub.s32 0, %v5617
      %v5619 = vsel %vm5609, %v5618, %v5617
      %vm5620 = vcmp.lt.s32.totalorder %v5342, 0
      %v5621 = vsub.s32 0, %v5342
      %v5622 = vsel %vm5620, %v5621, %v5342
      %v5623 = vmul.u32.u64.compose %v5622, 2863311531
      %v5624 = vextract.low.u32 %v5623
      %v5625 = vextract.high.u32 %v5623
      %v5626 = vshrl.u32 %v5625, 4
      %v5627 = vmul.u32 %v5626, 24
      %v5628 = vsub.s32 %v5622, %v5627
      %v5629 = vsub.s32 0, %v5628
      %v5630 = vsel %vm5620, %v5629, %v5628
      %vm5631 = vcmp.lt.s32.totalorder %v5343, 0
      %v5632 = vsub.s32 0, %v5343
      %v5633 = vsel %vm5631, %v5632, %v5343
      %v5634 = vmul.u32.u64.compose %v5633, 2863311531
      %v5635 = vextract.low.u32 %v5634
      %v5636 = vextract.high.u32 %v5634
      %v5637 = vshrl.u32 %v5636, 4
      %v5638 = vmul.u32 %v5637, 24
      %v5639 = vsub.s32 %v5633, %v5638
      %v5640 = vsub.s32 0, %v5639
      %v5641 = vsel %vm5631, %v5640, %v5639
      %vm5642 = vcmp.lt.s32.totalorder %v5344, 0
      %v5643 = vsub.s32 0, %v5344
      %v5644 = vsel %vm5642, %v5643, %v5344
      %v5645 = vmul.u32.u64.compose %v5644, 2863311531
      %v5646 = vextract.low.u32 %v5645
      %v5647 = vextract.high.u32 %v5645
      %v5648 = vshrl.u32 %v5647, 4
      %v5649 = vmul.u32 %v5648, 24
      %v5650 = vsub.s32 %v5644, %v5649
      %v5651 = vsub.s32 0, %v5650
      %v5652 = vsel %vm5642, %v5651, %v5650
      %vm5653 = vcmp.lt.s32.totalorder %v5345, 0
      %v5654 = vsub.s32 0, %v5345
      %v5655 = vsel %vm5653, %v5654, %v5345
      %v5656 = vmul.u32.u64.compose %v5655, 2863311531
      %v5657 = vextract.low.u32 %v5656
      %v5658 = vextract.high.u32 %v5656
      %v5659 = vshrl.u32 %v5658, 4
      %v5660 = vmul.u32 %v5659, 24
      %v5661 = vsub.s32 %v5655, %v5660
      %v5662 = vsub.s32 0, %v5661
      %v5663 = vsel %vm5653, %v5662, %v5661
      %vm5664 = vcmp.lt.s32.totalorder %v5346, 0
      %v5665 = vsub.s32 0, %v5346
      %v5666 = vsel %vm5664, %v5665, %v5346
      %v5667 = vmul.u32.u64.compose %v5666, 2863311531
      %v5668 = vextract.low.u32 %v5667
      %v5669 = vextract.high.u32 %v5667
      %v5670 = vshrl.u32 %v5669, 4
      %v5671 = vmul.u32 %v5670, 24
      %v5672 = vsub.s32 %v5666, %v5671
      %v5673 = vsub.s32 0, %v5672
      %v5674 = vsel %vm5664, %v5673, %v5672
      %vm5675 = vcmp.lt.s32.totalorder %v5347, 0
      %v5676 = vsub.s32 0, %v5347
      %v5677 = vsel %vm5675, %v5676, %v5347
      %v5678 = vmul.u32.u64.compose %v5677, 2863311531
      %v5679 = vextract.low.u32 %v5678
      %v5680 = vextract.high.u32 %v5678
      %v5681 = vshrl.u32 %v5680, 4
      %v5682 = vmul.u32 %v5681, 24
      %v5683 = vsub.s32 %v5677, %v5682
      %v5684 = vsub.s32 0, %v5683
      %v5685 = vsel %vm5675, %v5684, %v5683
      %vm5686 = vcmp.lt.s32.totalorder %v5348, 0
      %v5687 = vsub.s32 0, %v5348
      %v5688 = vsel %vm5686, %v5687, %v5348
      %v5689 = vmul.u32.u64.compose %v5688, 2863311531
      %v5690 = vextract.low.u32 %v5689
      %v5691 = vextract.high.u32 %v5689
      %v5692 = vshrl.u32 %v5691, 4
      %v5693 = vmul.u32 %v5692, 24
      %v5694 = vsub.s32 %v5688, %v5693
      %v5695 = vsub.s32 0, %v5694
      %v5696 = vsel %vm5686, %v5695, %v5694
      %vm5697 = vcmp.lt.s32.totalorder %v5349, 0
      %v5698 = vsub.s32 0, %v5349
      %v5699 = vsel %vm5697, %v5698, %v5349
      %v5700 = vmul.u32.u64.compose %v5699, 2863311531
      %v5701 = vextract.low.u32 %v5700
      %v5702 = vextract.high.u32 %v5700
      %v5703 = vshrl.u32 %v5702, 4
      %v5704 = vmul.u32 %v5703, 24
      %v5705 = vsub.s32 %v5699, %v5704
      %v5706 = vsub.s32 0, %v5705
      %v5707 = vsel %vm5697, %v5706, %v5705
      %vm5708 = vcmp.lt.s32.totalorder %v5350, 0
      %v5709 = vsub.s32 0, %v5350
      %v5710 = vsel %vm5708, %v5709, %v5350
      %v5711 = vmul.u32.u64.compose %v5710, 2863311531
      %v5712 = vextract.low.u32 %v5711
      %v5713 = vextract.high.u32 %v5711
      %v5714 = vshrl.u32 %v5713, 4
      %v5715 = vmul.u32 %v5714, 24
      %v5716 = vsub.s32 %v5710, %v5715
      %v5717 = vsub.s32 0, %v5716
      %v5718 = vsel %vm5708, %v5717, %v5716
      %vm5719 = vcmp.lt.s32.totalorder %v5351, 0
      %v5720 = vsub.s32 0, %v5351
      %v5721 = vsel %vm5719, %v5720, %v5351
      %v5722 = vmul.u32.u64.compose %v5721, 2863311531
      %v5723 = vextract.low.u32 %v5722
      %v5724 = vextract.high.u32 %v5722
      %v5725 = vshrl.u32 %v5724, 4
      %v5726 = vmul.u32 %v5725, 24
      %v5727 = vsub.s32 %v5721, %v5726
      %v5728 = vsub.s32 0, %v5727
      %v5729 = vsel %vm5719, %v5728, %v5727
      %vm5730 = vcmp.lt.s32.totalorder %v5352, 0
      %v5731 = vsub.s32 0, %v5352
      %v5732 = vsel %vm5730, %v5731, %v5352
      %v5733 = vmul.u32.u64.compose %v5732, 2863311531
      %v5734 = vextract.low.u32 %v5733
      %v5735 = vextract.high.u32 %v5733
      %v5736 = vshrl.u32 %v5735, 4
      %v5737 = vmul.u32 %v5736, 24
      %v5738 = vsub.s32 %v5732, %v5737
      %v5739 = vsub.s32 0, %v5738
      %v5740 = vsel %vm5730, %v5739, %v5738
      %vm5741 = vcmp.lt.s32.totalorder %v5353, 0
      %v5742 = vsub.s32 0, %v5353
      %v5743 = vsel %vm5741, %v5742, %v5353
      %v5744 = vmul.u32.u64.compose %v5743, 2863311531
      %v5745 = vextract.low.u32 %v5744
      %v5746 = vextract.high.u32 %v5744
      %v5747 = vshrl.u32 %v5746, 4
      %v5748 = vmul.u32 %v5747, 24
      %v5749 = vsub.s32 %v5743, %v5748
      %v5750 = vsub.s32 0, %v5749
      %v5751 = vsel %vm5741, %v5750, %v5749
      %vm5752 = vcmp.lt.s32.totalorder %v5354, 0
      %v5753 = vsub.s32 0, %v5354
      %v5754 = vsel %vm5752, %v5753, %v5354
      %v5755 = vmul.u32.u64.compose %v5754, 2863311531
      %v5756 = vextract.low.u32 %v5755
      %v5757 = vextract.high.u32 %v5755
      %v5758 = vshrl.u32 %v5757, 4
      %v5759 = vmul.u32 %v5758, 24
      %v5760 = vsub.s32 %v5754, %v5759
      %v5761 = vsub.s32 0, %v5760
      %v5762 = vsel %vm5752, %v5761, %v5760
      %vm5763 = vcmp.lt.s32.totalorder %v5355, 0
      %v5764 = vsub.s32 0, %v5355
      %v5765 = vsel %vm5763, %v5764, %v5355
      %v5766 = vmul.u32.u64.compose %v5765, 2863311531
      %v5767 = vextract.low.u32 %v5766
      %v5768 = vextract.high.u32 %v5766
      %v5769 = vshrl.u32 %v5768, 4
      %v5770 = vmul.u32 %v5769, 24
      %v5771 = vsub.s32 %v5765, %v5770
      %v5772 = vsub.s32 0, %v5771
      %v5773 = vsel %vm5763, %v5772, %v5771
      %vm5774 = vcmp.lt.s32.totalorder %v5356, 0
      %v5775 = vsub.s32 0, %v5356
      %v5776 = vsel %vm5774, %v5775, %v5356
      %v5777 = vmul.u32.u64.compose %v5776, 2863311531
      %v5778 = vextract.low.u32 %v5777
      %v5779 = vextract.high.u32 %v5777
      %v5780 = vshrl.u32 %v5779, 4
      %v5781 = vmul.u32 %v5780, 24
      %v5782 = vsub.s32 %v5776, %v5781
      %v5783 = vsub.s32 0, %v5782
      %v5784 = vsel %vm5774, %v5783, %v5782
      %vm5785 = vcmp.lt.s32.totalorder %v5357, 0
      %v5786 = vsub.s32 0, %v5357
      %v5787 = vsel %vm5785, %v5786, %v5357
      %v5788 = vmul.u32.u64.compose %v5787, 2863311531
      %v5789 = vextract.low.u32 %v5788
      %v5790 = vextract.high.u32 %v5788
      %v5791 = vshrl.u32 %v5790, 4
      %v5792 = vmul.u32 %v5791, 24
      %v5793 = vsub.s32 %v5787, %v5792
      %v5794 = vsub.s32 0, %v5793
      %v5795 = vsel %vm5785, %v5794, %v5793
      %vm5796 = vcmp.lt.s32.totalorder %v5358, 0
      %v5797 = vsub.s32 0, %v5358
      %v5798 = vsel %vm5796, %v5797, %v5358
      %v5799 = vmul.u32.u64.compose %v5798, 2863311531
      %v5800 = vextract.low.u32 %v5799
      %v5801 = vextract.high.u32 %v5799
      %v5802 = vshrl.u32 %v5801, 4
      %v5803 = vmul.u32 %v5802, 24
      %v5804 = vsub.s32 %v5798, %v5803
      %v5805 = vsub.s32 0, %v5804
      %v5806 = vsel %vm5796, %v5805, %v5804
      %vm5807 = vcmp.lt.s32.totalorder %v5359, 0
      %v5808 = vsub.s32 0, %v5359
      %v5809 = vsel %vm5807, %v5808, %v5359
      %v5810 = vmul.u32.u64.compose %v5809, 2863311531
      %v5811 = vextract.low.u32 %v5810
      %v5812 = vextract.high.u32 %v5810
      %v5813 = vshrl.u32 %v5812, 4
      %v5814 = vmul.u32 %v5813, 24
      %v5815 = vsub.s32 %v5809, %v5814
      %v5816 = vsub.s32 0, %v5815
      %v5817 = vsel %vm5807, %v5816, %v5815
      %vm5818 = vcmp.lt.s32.totalorder %v5360, 0
      %v5819 = vsub.s32 0, %v5360
      %v5820 = vsel %vm5818, %v5819, %v5360
      %v5821 = vmul.u32.u64.compose %v5820, 2863311531
      %v5822 = vextract.low.u32 %v5821
      %v5823 = vextract.high.u32 %v5821
      %v5824 = vshrl.u32 %v5823, 4
      %v5825 = vmul.u32 %v5824, 24
      %v5826 = vsub.s32 %v5820, %v5825
      %v5827 = vsub.s32 0, %v5826
      %v5828 = vsel %vm5818, %v5827, %v5826
      %vm5829 = vcmp.lt.s32.totalorder %v5361, 0
      %v5830 = vsub.s32 0, %v5361
      %v5831 = vsel %vm5829, %v5830, %v5361
      %v5832 = vmul.u32.u64.compose %v5831, 2863311531
      %v5833 = vextract.low.u32 %v5832
      %v5834 = vextract.high.u32 %v5832
      %v5835 = vshrl.u32 %v5834, 4
      %v5836 = vmul.u32 %v5835, 24
      %v5837 = vsub.s32 %v5831, %v5836
      %v5838 = vsub.s32 0, %v5837
      %v5839 = vsel %vm5829, %v5838, %v5837
      %vm5840 = vcmp.lt.s32.totalorder %v5362, 0
      %v5841 = vsub.s32 0, %v5362
      %v5842 = vsel %vm5840, %v5841, %v5362
      %v5843 = vmul.u32.u64.compose %v5842, 2863311531
      %v5844 = vextract.low.u32 %v5843
      %v5845 = vextract.high.u32 %v5843
      %v5846 = vshrl.u32 %v5845, 4
      %v5847 = vmul.u32 %v5846, 24
      %v5848 = vsub.s32 %v5842, %v5847
      %v5849 = vsub.s32 0, %v5848
      %v5850 = vsel %vm5840, %v5849, %v5848
      %vm5851 = vcmp.lt.s32.totalorder %v5363, 0
      %v5852 = vsub.s32 0, %v5363
      %v5853 = vsel %vm5851, %v5852, %v5363
      %v5854 = vmul.u32.u64.compose %v5853, 2863311531
      %v5855 = vextract.low.u32 %v5854
      %v5856 = vextract.high.u32 %v5854
      %v5857 = vshrl.u32 %v5856, 4
      %v5858 = vmul.u32 %v5857, 24
      %v5859 = vsub.s32 %v5853, %v5858
      %v5860 = vsub.s32 0, %v5859
      %v5861 = vsel %vm5851, %v5860, %v5859
      %vm5862 = vcmp.lt.s32.totalorder %v5364, 0
      %v5863 = vsub.s32 0, %v5364
      %v5864 = vsel %vm5862, %v5863, %v5364
      %v5865 = vmul.u32.u64.compose %v5864, 2863311531
      %v5866 = vextract.low.u32 %v5865
      %v5867 = vextract.high.u32 %v5865
      %v5868 = vshrl.u32 %v5867, 4
      %v5869 = vmul.u32 %v5868, 24
      %v5870 = vsub.s32 %v5864, %v5869
      %v5871 = vsub.s32 0, %v5870
      %v5872 = vsel %vm5862, %v5871, %v5870
      %vm5873 = vcmp.lt.s32.totalorder %v5365, 0
      %v5874 = vsub.s32 0, %v5365
      %v5875 = vsel %vm5873, %v5874, %v5365
      %v5876 = vmul.u32.u64.compose %v5875, 2863311531
      %v5877 = vextract.low.u32 %v5876
      %v5878 = vextract.high.u32 %v5876
      %v5879 = vshrl.u32 %v5878, 4
      %v5880 = vmul.u32 %v5879, 24
      %v5881 = vsub.s32 %v5875, %v5880
      %v5882 = vsub.s32 0, %v5881
      %v5883 = vsel %vm5873, %v5882, %v5881
      %vm5884 = vcmp.lt.s32.totalorder %v5366, 0
      %v5885 = vsub.s32 0, %v5366
      %v5886 = vsel %vm5884, %v5885, %v5366
      %v5887 = vmul.u32.u64.compose %v5886, 2863311531
      %v5888 = vextract.low.u32 %v5887
      %v5889 = vextract.high.u32 %v5887
      %v5890 = vshrl.u32 %v5889, 4
      %v5891 = vmul.u32 %v5890, 24
      %v5892 = vsub.s32 %v5886, %v5891
      %v5893 = vsub.s32 0, %v5892
      %v5894 = vsel %vm5884, %v5893, %v5892
      %vm5895 = vcmp.ne.s32.totalorder %v5377, 0
      %vm5896 = vcmp.ne.s32.totalorder %v5388, 0
      %vm5897 = vcmp.ne.s32.totalorder %v5399, 0
      %vm5898 = vcmp.ne.s32.totalorder %v5410, 0
      %vm5899 = vcmp.ne.s32.totalorder %v5421, 0
      %vm5900 = vcmp.ne.s32.totalorder %v5432, 0
      %vm5901 = vcmp.ne.s32.totalorder %v5443, 0
      %vm5902 = vcmp.ne.s32.totalorder %v5454, 0
      %vm5903 = vcmp.ne.s32.totalorder %v5465, 0
      %vm5904 = vcmp.ne.s32.totalorder %v5476, 0
      %vm5905 = vcmp.ne.s32.totalorder %v5487, 0
      %vm5906 = vcmp.ne.s32.totalorder %v5498, 0
      %vm5907 = vcmp.ne.s32.totalorder %v5509, 0
      %vm5908 = vcmp.ne.s32.totalorder %v5520, 0
      %vm5909 = vcmp.ne.s32.totalorder %v5531, 0
      %vm5910 = vcmp.ne.s32.totalorder %v5542, 0
      %vm5911 = vcmp.ne.s32.totalorder %v5553, 0
      %vm5912 = vcmp.ne.s32.totalorder %v5564, 0
      %vm5913 = vcmp.ne.s32.totalorder %v5575, 0
      %vm5914 = vcmp.ne.s32.totalorder %v5586, 0
      %vm5915 = vcmp.ne.s32.totalorder %v5597, 0
      %vm5916 = vcmp.ne.s32.totalorder %v5608, 0
      %vm5917 = vcmp.ne.s32.totalorder %v5619, 0
      %vm5918 = vcmp.ne.s32.totalorder %v5630, 0
      %vm5919 = vcmp.ne.s32.totalorder %v5641, 0
      %vm5920 = vcmp.ne.s32.totalorder %v5652, 0
      %vm5921 = vcmp.ne.s32.totalorder %v5663, 0
      %vm5922 = vcmp.ne.s32.totalorder %v5674, 0
      %vm5923 = vcmp.ne.s32.totalorder %v5685, 0
      %vm5924 = vcmp.ne.s32.totalorder %v5696, 0
      %vm5925 = vcmp.ne.s32.totalorder %v5707, 0
      %vm5926 = vcmp.ne.s32.totalorder %v5718, 0
      %vm5927 = vcmp.ne.s32.totalorder %v5729, 0
      %vm5928 = vcmp.ne.s32.totalorder %v5740, 0
      %vm5929 = vcmp.ne.s32.totalorder %v5751, 0
      %vm5930 = vcmp.ne.s32.totalorder %v5762, 0
      %vm5931 = vcmp.ne.s32.totalorder %v5773, 0
      %vm5932 = vcmp.ne.s32.totalorder %v5784, 0
      %vm5933 = vcmp.ne.s32.totalorder %v5795, 0
      %vm5934 = vcmp.ne.s32.totalorder %v5806, 0
      %vm5935 = vcmp.ne.s32.totalorder %v5817, 0
      %vm5936 = vcmp.ne.s32.totalorder %v5828, 0
      %vm5937 = vcmp.ne.s32.totalorder %v5839, 0
      %vm5938 = vcmp.ne.s32.totalorder %v5850, 0
      %vm5939 = vcmp.ne.s32.totalorder %v5861, 0
      %vm5940 = vcmp.ne.s32.totalorder %v5872, 0
      %vm5941 = vcmp.ne.s32.totalorder %v5883, 0
      %vm5942 = vcmp.ne.s32.totalorder %v5894, 0
      %vm5943 = vcmp.lt.s32.totalorder %v5377, 0
      %vm5944 = vcmp.lt.s32.totalorder %v5388, 0
      %vm5945 = vcmp.lt.s32.totalorder %v5399, 0
      %vm5946 = vcmp.lt.s32.totalorder %v5410, 0
      %vm5947 = vcmp.lt.s32.totalorder %v5421, 0
      %vm5948 = vcmp.lt.s32.totalorder %v5432, 0
      %vm5949 = vcmp.lt.s32.totalorder %v5443, 0
      %vm5950 = vcmp.lt.s32.totalorder %v5454, 0
      %vm5951 = vcmp.lt.s32.totalorder %v5465, 0
      %vm5952 = vcmp.lt.s32.totalorder %v5476, 0
      %vm5953 = vcmp.lt.s32.totalorder %v5487, 0
      %vm5954 = vcmp.lt.s32.totalorder %v5498, 0
      %vm5955 = vcmp.lt.s32.totalorder %v5509, 0
      %vm5956 = vcmp.lt.s32.totalorder %v5520, 0
      %vm5957 = vcmp.lt.s32.totalorder %v5531, 0
      %vm5958 = vcmp.lt.s32.totalorder %v5542, 0
      %vm5959 = vcmp.lt.s32.totalorder %v5553, 0
      %vm5960 = vcmp.lt.s32.totalorder %v5564, 0
      %vm5961 = vcmp.lt.s32.totalorder %v5575, 0
      %vm5962 = vcmp.lt.s32.totalorder %v5586, 0
      %vm5963 = vcmp.lt.s32.totalorder %v5597, 0
      %vm5964 = vcmp.lt.s32.totalorder %v5608, 0
      %vm5965 = vcmp.lt.s32.totalorder %v5619, 0
      %vm5966 = vcmp.lt.s32.totalorder %v5630, 0
      %vm5967 = vcmp.lt.s32.totalorder %v5641, 0
      %vm5968 = vcmp.lt.s32.totalorder %v5652, 0
      %vm5969 = vcmp.lt.s32.totalorder %v5663, 0
      %vm5970 = vcmp.lt.s32.totalorder %v5674, 0
      %vm5971 = vcmp.lt.s32.totalorder %v5685, 0
      %vm5972 = vcmp.lt.s32.totalorder %v5696, 0
      %vm5973 = vcmp.lt.s32.totalorder %v5707, 0
      %vm5974 = vcmp.lt.s32.totalorder %v5718, 0
      %vm5975 = vcmp.lt.s32.totalorder %v5729, 0
      %vm5976 = vcmp.lt.s32.totalorder %v5740, 0
      %vm5977 = vcmp.lt.s32.totalorder %v5751, 0
      %vm5978 = vcmp.lt.s32.totalorder %v5762, 0
      %vm5979 = vcmp.lt.s32.totalorder %v5773, 0
      %vm5980 = vcmp.lt.s32.totalorder %v5784, 0
      %vm5981 = vcmp.lt.s32.totalorder %v5795, 0
      %vm5982 = vcmp.lt.s32.totalorder %v5806, 0
      %vm5983 = vcmp.lt.s32.totalorder %v5817, 0
      %vm5984 = vcmp.lt.s32.totalorder %v5828, 0
      %vm5985 = vcmp.lt.s32.totalorder %v5839, 0
      %vm5986 = vcmp.lt.s32.totalorder %v5850, 0
      %vm5987 = vcmp.lt.s32.totalorder %v5861, 0
      %vm5988 = vcmp.lt.s32.totalorder %v5872, 0
      %vm5989 = vcmp.lt.s32.totalorder %v5883, 0
      %vm5990 = vcmp.lt.s32.totalorder %v5894, 0
      %vm5991 = vmand %vm5943, %vm5895
      %vm5992 = vmand %vm5944, %vm5896
      %vm5993 = vmand %vm5945, %vm5897
      %vm5994 = vmand %vm5946, %vm5898
      %vm5995 = vmand %vm5947, %vm5899
      %vm5996 = vmand %vm5948, %vm5900
      %vm5997 = vmand %vm5949, %vm5901
      %vm5998 = vmand %vm5950, %vm5902
      %vm5999 = vmand %vm5951, %vm5903
      %vm6000 = vmand %vm5952, %vm5904
      %vm6001 = vmand %vm5953, %vm5905
      %vm6002 = vmand %vm5954, %vm5906
      %vm6003 = vmand %vm5955, %vm5907
      %vm6004 = vmand %vm5956, %vm5908
      %vm6005 = vmand %vm5957, %vm5909
      %vm6006 = vmand %vm5958, %vm5910
      %vm6007 = vmand %vm5959, %vm5911
      %vm6008 = vmand %vm5960, %vm5912
      %vm6009 = vmand %vm5961, %vm5913
      %vm6010 = vmand %vm5962, %vm5914
      %vm6011 = vmand %vm5963, %vm5915
      %vm6012 = vmand %vm5964, %vm5916
      %vm6013 = vmand %vm5965, %vm5917
      %vm6014 = vmand %vm5966, %vm5918
      %vm6015 = vmand %vm5967, %vm5919
      %vm6016 = vmand %vm5968, %vm5920
      %vm6017 = vmand %vm5969, %vm5921
      %vm6018 = vmand %vm5970, %vm5922
      %vm6019 = vmand %vm5971, %vm5923
      %vm6020 = vmand %vm5972, %vm5924
      %vm6021 = vmand %vm5973, %vm5925
      %vm6022 = vmand %vm5974, %vm5926
      %vm6023 = vmand %vm5975, %vm5927
      %vm6024 = vmand %vm5976, %vm5928
      %vm6025 = vmand %vm5977, %vm5929
      %vm6026 = vmand %vm5978, %vm5930
      %vm6027 = vmand %vm5979, %vm5931
      %vm6028 = vmand %vm5980, %vm5932
      %vm6029 = vmand %vm5981, %vm5933
      %vm6030 = vmand %vm5982, %vm5934
      %vm6031 = vmand %vm5983, %vm5935
      %vm6032 = vmand %vm5984, %vm5936
      %vm6033 = vmand %vm5985, %vm5937
      %vm6034 = vmand %vm5986, %vm5938
      %vm6035 = vmand %vm5987, %vm5939
      %vm6036 = vmand %vm5988, %vm5940
      %vm6037 = vmand %vm5989, %vm5941
      %vm6038 = vmand %vm5990, %vm5942
      %v6039 = vadd.s32 %v5377, 24
      %v6040 = vadd.s32 %v5388, 24
      %v6041 = vadd.s32 %v5399, 24
      %v6042 = vadd.s32 %v5410, 24
      %v6043 = vadd.s32 %v5421, 24
      %v6044 = vadd.s32 %v5432, 24
      %v6045 = vadd.s32 %v5443, 24
      %v6046 = vadd.s32 %v5454, 24
      %v6047 = vadd.s32 %v5465, 24
      %v6048 = vadd.s32 %v5476, 24
      %v6049 = vadd.s32 %v5487, 24
      %v6050 = vadd.s32 %v5498, 24
      %v6051 = vadd.s32 %v5509, 24
      %v6052 = vadd.s32 %v5520, 24
      %v6053 = vadd.s32 %v5531, 24
      %v6054 = vadd.s32 %v5542, 24
      %v6055 = vadd.s32 %v5553, 24
      %v6056 = vadd.s32 %v5564, 24
      %v6057 = vadd.s32 %v5575, 24
      %v6058 = vadd.s32 %v5586, 24
      %v6059 = vadd.s32 %v5597, 24
      %v6060 = vadd.s32 %v5608, 24
      %v6061 = vadd.s32 %v5619, 24
      %v6062 = vadd.s32 %v5630, 24
      %v6063 = vadd.s32 %v5641, 24
      %v6064 = vadd.s32 %v5652, 24
      %v6065 = vadd.s32 %v5663, 24
      %v6066 = vadd.s32 %v5674, 24
      %v6067 = vadd.s32 %v5685, 24
      %v6068 = vadd.s32 %v5696, 24
      %v6069 = vadd.s32 %v5707, 24
      %v6070 = vadd.s32 %v5718, 24
      %v6071 = vadd.s32 %v5729, 24
      %v6072 = vadd.s32 %v5740, 24
      %v6073 = vadd.s32 %v5751, 24
      %v6074 = vadd.s32 %v5762, 24
      %v6075 = vadd.s32 %v5773, 24
      %v6076 = vadd.s32 %v5784, 24
      %v6077 = vadd.s32 %v5795, 24
      %v6078 = vadd.s32 %v5806, 24
      %v6079 = vadd.s32 %v5817, 24
      %v6080 = vadd.s32 %v5828, 24
      %v6081 = vadd.s32 %v5839, 24
      %v6082 = vadd.s32 %v5850, 24
      %v6083 = vadd.s32 %v5861, 24
      %v6084 = vadd.s32 %v5872, 24
      %v6085 = vadd.s32 %v5883, 24
      %v6086 = vadd.s32 %v5894, 24
      %v6087 = vsel %vm5991, %v6039, %v5377
      %v6088 = vsel %vm5992, %v6040, %v5388
      %v6089 = vsel %vm5993, %v6041, %v5399
      %v6090 = vsel %vm5994, %v6042, %v5410
      %v6091 = vsel %vm5995, %v6043, %v5421
      %v6092 = vsel %vm5996, %v6044, %v5432
      %v6093 = vsel %vm5997, %v6045, %v5443
      %v6094 = vsel %vm5998, %v6046, %v5454
      %v6095 = vsel %vm5999, %v6047, %v5465
      %v6096 = vsel %vm6000, %v6048, %v5476
      %v6097 = vsel %vm6001, %v6049, %v5487
      %v6098 = vsel %vm6002, %v6050, %v5498
      %v6099 = vsel %vm6003, %v6051, %v5509
      %v6100 = vsel %vm6004, %v6052, %v5520
      %v6101 = vsel %vm6005, %v6053, %v5531
      %v6102 = vsel %vm6006, %v6054, %v5542
      %v6103 = vsel %vm6007, %v6055, %v5553
      %v6104 = vsel %vm6008, %v6056, %v5564
      %v6105 = vsel %vm6009, %v6057, %v5575
      %v6106 = vsel %vm6010, %v6058, %v5586
      %v6107 = vsel %vm6011, %v6059, %v5597
      %v6108 = vsel %vm6012, %v6060, %v5608
      %v6109 = vsel %vm6013, %v6061, %v5619
      %v6110 = vsel %vm6014, %v6062, %v5630
      %v6111 = vsel %vm6015, %v6063, %v5641
      %v6112 = vsel %vm6016, %v6064, %v5652
      %v6113 = vsel %vm6017, %v6065, %v5663
      %v6114 = vsel %vm6018, %v6066, %v5674
      %v6115 = vsel %vm6019, %v6067, %v5685
      %v6116 = vsel %vm6020, %v6068, %v5696
      %v6117 = vsel %vm6021, %v6069, %v5707
      %v6118 = vsel %vm6022, %v6070, %v5718
      %v6119 = vsel %vm6023, %v6071, %v5729
      %v6120 = vsel %vm6024, %v6072, %v5740
      %v6121 = vsel %vm6025, %v6073, %v5751
      %v6122 = vsel %vm6026, %v6074, %v5762
      %v6123 = vsel %vm6027, %v6075, %v5773
      %v6124 = vsel %vm6028, %v6076, %v5784
      %v6125 = vsel %vm6029, %v6077, %v5795
      %v6126 = vsel %vm6030, %v6078, %v5806
      %v6127 = vsel %vm6031, %v6079, %v5817
      %v6128 = vsel %vm6032, %v6080, %v5828
      %v6129 = vsel %vm6033, %v6081, %v5839
      %v6130 = vsel %vm6034, %v6082, %v5850
      %v6131 = vsel %vm6035, %v6083, %v5861
      %v6132 = vsel %vm6036, %v6084, %v5872
      %v6133 = vsel %vm6037, %v6085, %v5883
      %v6134 = vsel %vm6038, %v6086, %v5894
      %vm6135 = vcmp.lt.s32.totalorder %v6087, 16
      %vm6136 = vcmp.lt.s32.totalorder %v6088, 16
      %vm6137 = vcmp.lt.s32.totalorder %v6089, 16
      %vm6138 = vcmp.lt.s32.totalorder %v6090, 16
      %vm6139 = vcmp.lt.s32.totalorder %v6091, 16
      %vm6140 = vcmp.lt.s32.totalorder %v6092, 16
      %vm6141 = vcmp.lt.s32.totalorder %v6093, 16
      %vm6142 = vcmp.lt.s32.totalorder %v6094, 16
      %vm6143 = vcmp.lt.s32.totalorder %v6095, 16
      %vm6144 = vcmp.lt.s32.totalorder %v6096, 16
      %vm6145 = vcmp.lt.s32.totalorder %v6097, 16
      %vm6146 = vcmp.lt.s32.totalorder %v6098, 16
      %vm6147 = vcmp.lt.s32.totalorder %v6099, 16
      %vm6148 = vcmp.lt.s32.totalorder %v6100, 16
      %vm6149 = vcmp.lt.s32.totalorder %v6101, 16
      %vm6150 = vcmp.lt.s32.totalorder %v6102, 16
      %vm6151 = vcmp.lt.s32.totalorder %v6103, 16
      %vm6152 = vcmp.lt.s32.totalorder %v6104, 16
      %vm6153 = vcmp.lt.s32.totalorder %v6105, 16
      %vm6154 = vcmp.lt.s32.totalorder %v6106, 16
      %vm6155 = vcmp.lt.s32.totalorder %v6107, 16
      %vm6156 = vcmp.lt.s32.totalorder %v6108, 16
      %vm6157 = vcmp.lt.s32.totalorder %v6109, 16
      %vm6158 = vcmp.lt.s32.totalorder %v6110, 16
      %vm6159 = vcmp.lt.s32.totalorder %v6111, 16
      %vm6160 = vcmp.lt.s32.totalorder %v6112, 16
      %vm6161 = vcmp.lt.s32.totalorder %v6113, 16
      %vm6162 = vcmp.lt.s32.totalorder %v6114, 16
      %vm6163 = vcmp.lt.s32.totalorder %v6115, 16
      %vm6164 = vcmp.lt.s32.totalorder %v6116, 16
      %vm6165 = vcmp.lt.s32.totalorder %v6117, 16
      %vm6166 = vcmp.lt.s32.totalorder %v6118, 16
      %vm6167 = vcmp.lt.s32.totalorder %v6119, 16
      %vm6168 = vcmp.lt.s32.totalorder %v6120, 16
      %vm6169 = vcmp.lt.s32.totalorder %v6121, 16
      %vm6170 = vcmp.lt.s32.totalorder %v6122, 16
      %vm6171 = vcmp.lt.s32.totalorder %v6123, 16
      %vm6172 = vcmp.lt.s32.totalorder %v6124, 16
      %vm6173 = vcmp.lt.s32.totalorder %v6125, 16
      %vm6174 = vcmp.lt.s32.totalorder %v6126, 16
      %vm6175 = vcmp.lt.s32.totalorder %v6127, 16
      %vm6176 = vcmp.lt.s32.totalorder %v6128, 16
      %vm6177 = vcmp.lt.s32.totalorder %v6129, 16
      %vm6178 = vcmp.lt.s32.totalorder %v6130, 16
      %vm6179 = vcmp.lt.s32.totalorder %v6131, 16
      %vm6180 = vcmp.lt.s32.totalorder %v6132, 16
      %vm6181 = vcmp.lt.s32.totalorder %v6133, 16
      %vm6182 = vcmp.lt.s32.totalorder %v6134, 16
      %v6183 = vsel %vm6135, 1, 0
      %v6184 = vsel %vm6136, 1, 0
      %v6185 = vsel %vm6137, 1, 0
      %v6186 = vsel %vm6138, 1, 0
      %v6187 = vsel %vm6139, 1, 0
      %v6188 = vsel %vm6140, 1, 0
      %v6189 = vsel %vm6141, 1, 0
      %v6190 = vsel %vm6142, 1, 0
      %v6191 = vsel %vm6143, 1, 0
      %v6192 = vsel %vm6144, 1, 0
      %v6193 = vsel %vm6145, 1, 0
      %v6194 = vsel %vm6146, 1, 0
      %v6195 = vsel %vm6147, 1, 0
      %v6196 = vsel %vm6148, 1, 0
      %v6197 = vsel %vm6149, 1, 0
      %v6198 = vsel %vm6150, 1, 0
      %v6199 = vsel %vm6151, 1, 0
      %v6200 = vsel %vm6152, 1, 0
      %v6201 = vsel %vm6153, 1, 0
      %v6202 = vsel %vm6154, 1, 0
      %v6203 = vsel %vm6155, 1, 0
      %v6204 = vsel %vm6156, 1, 0
      %v6205 = vsel %vm6157, 1, 0
      %v6206 = vsel %vm6158, 1, 0
      %v6207 = vsel %vm6159, 1, 0
      %v6208 = vsel %vm6160, 1, 0
      %v6209 = vsel %vm6161, 1, 0
      %v6210 = vsel %vm6162, 1, 0
      %v6211 = vsel %vm6163, 1, 0
      %v6212 = vsel %vm6164, 1, 0
      %v6213 = vsel %vm6165, 1, 0
      %v6214 = vsel %vm6166, 1, 0
      %v6215 = vsel %vm6167, 1, 0
      %v6216 = vsel %vm6168, 1, 0
      %v6217 = vsel %vm6169, 1, 0
      %v6218 = vsel %vm6170, 1, 0
      %v6219 = vsel %vm6171, 1, 0
      %v6220 = vsel %vm6172, 1, 0
      %v6221 = vsel %vm6173, 1, 0
      %v6222 = vsel %vm6174, 1, 0
      %v6223 = vsel %vm6175, 1, 0
      %v6224 = vsel %vm6176, 1, 0
      %v6225 = vsel %vm6177, 1, 0
      %v6226 = vsel %vm6178, 1, 0
      %v6227 = vsel %vm6179, 1, 0
      %v6228 = vsel %vm6180, 1, 0
      %v6229 = vsel %vm6181, 1, 0
      %v6230 = vsel %vm6182, 1, 0
      %vm6231 = vcmp.eq.s32.totalorder %v6183, 1
      %vm6232 = vcmp.eq.s32.totalorder %v6184, 1
      %vm6233 = vcmp.eq.s32.totalorder %v6185, 1
      %vm6234 = vcmp.eq.s32.totalorder %v6186, 1
      %vm6235 = vcmp.eq.s32.totalorder %v6187, 1
      %vm6236 = vcmp.eq.s32.totalorder %v6188, 1
      %vm6237 = vcmp.eq.s32.totalorder %v6189, 1
      %vm6238 = vcmp.eq.s32.totalorder %v6190, 1
      %vm6239 = vcmp.eq.s32.totalorder %v6191, 1
      %vm6240 = vcmp.eq.s32.totalorder %v6192, 1
      %vm6241 = vcmp.eq.s32.totalorder %v6193, 1
      %vm6242 = vcmp.eq.s32.totalorder %v6194, 1
      %vm6243 = vcmp.eq.s32.totalorder %v6195, 1
      %vm6244 = vcmp.eq.s32.totalorder %v6196, 1
      %vm6245 = vcmp.eq.s32.totalorder %v6197, 1
      %vm6246 = vcmp.eq.s32.totalorder %v6198, 1
      %vm6247 = vcmp.eq.s32.totalorder %v6199, 1
      %vm6248 = vcmp.eq.s32.totalorder %v6200, 1
      %vm6249 = vcmp.eq.s32.totalorder %v6201, 1
      %vm6250 = vcmp.eq.s32.totalorder %v6202, 1
      %vm6251 = vcmp.eq.s32.totalorder %v6203, 1
      %vm6252 = vcmp.eq.s32.totalorder %v6204, 1
      %vm6253 = vcmp.eq.s32.totalorder %v6205, 1
      %vm6254 = vcmp.eq.s32.totalorder %v6206, 1
      %vm6255 = vcmp.eq.s32.totalorder %v6207, 1
      %vm6256 = vcmp.eq.s32.totalorder %v6208, 1
      %vm6257 = vcmp.eq.s32.totalorder %v6209, 1
      %vm6258 = vcmp.eq.s32.totalorder %v6210, 1
      %vm6259 = vcmp.eq.s32.totalorder %v6211, 1
      %vm6260 = vcmp.eq.s32.totalorder %v6212, 1
      %vm6261 = vcmp.eq.s32.totalorder %v6213, 1
      %vm6262 = vcmp.eq.s32.totalorder %v6214, 1
      %vm6263 = vcmp.eq.s32.totalorder %v6215, 1
      %vm6264 = vcmp.eq.s32.totalorder %v6216, 1
      %vm6265 = vcmp.eq.s32.totalorder %v6217, 1
      %vm6266 = vcmp.eq.s32.totalorder %v6218, 1
      %vm6267 = vcmp.eq.s32.totalorder %v6219, 1
      %vm6268 = vcmp.eq.s32.totalorder %v6220, 1
      %vm6269 = vcmp.eq.s32.totalorder %v6221, 1
      %vm6270 = vcmp.eq.s32.totalorder %v6222, 1
      %vm6271 = vcmp.eq.s32.totalorder %v6223, 1
      %vm6272 = vcmp.eq.s32.totalorder %v6224, 1
      %vm6273 = vcmp.eq.s32.totalorder %v6225, 1
      %vm6274 = vcmp.eq.s32.totalorder %v6226, 1
      %vm6275 = vcmp.eq.s32.totalorder %v6227, 1
      %vm6276 = vcmp.eq.s32.totalorder %v6228, 1
      %vm6277 = vcmp.eq.s32.totalorder %v6229, 1
      %vm6278 = vcmp.eq.s32.totalorder %v6230, 1
      %v6279 = vsel %vm6231, %v5270, 0.0
      %v6280 = vsel %vm6232, %v5271, 0.0
      %v6281 = vsel %vm6233, %v5272, 0.0
      %v6282 = vsel %vm6234, %v5273, 0.0
      %v6283 = vsel %vm6235, %v5274, 0.0
      %v6284 = vsel %vm6236, %v5275, 0.0
      %v6285 = vsel %vm6237, %v5276, 0.0
      %v6286 = vsel %vm6238, %v5277, 0.0
      %v6287 = vsel %vm6239, %v5278, 0.0
      %v6288 = vsel %vm6240, %v5279, 0.0
      %v6289 = vsel %vm6241, %v5280, 0.0
      %v6290 = vsel %vm6242, %v5281, 0.0
      %v6291 = vsel %vm6243, %v5282, 0.0
      %v6292 = vsel %vm6244, %v5283, 0.0
      %v6293 = vsel %vm6245, %v5284, 0.0
      %v6294 = vsel %vm6246, %v5285, 0.0
      %v6295 = vsel %vm6247, %v5286, 0.0
      %v6296 = vsel %vm6248, %v5287, 0.0
      %v6297 = vsel %vm6249, %v5288, 0.0
      %v6298 = vsel %vm6250, %v5289, 0.0
      %v6299 = vsel %vm6251, %v5290, 0.0
      %v6300 = vsel %vm6252, %v5291, 0.0
      %v6301 = vsel %vm6253, %v5292, 0.0
      %v6302 = vsel %vm6254, %v5293, 0.0
      %v6303 = vsel %vm6255, %v5294, 0.0
      %v6304 = vsel %vm6256, %v5295, 0.0
      %v6305 = vsel %vm6257, %v5296, 0.0
      %v6306 = vsel %vm6258, %v5297, 0.0
      %v6307 = vsel %vm6259, %v5298, 0.0
      %v6308 = vsel %vm6260, %v5299, 0.0
      %v6309 = vsel %vm6261, %v5300, 0.0
      %v6310 = vsel %vm6262, %v5301, 0.0
      %v6311 = vsel %vm6263, %v5302, 0.0
      %v6312 = vsel %vm6264, %v5303, 0.0
      %v6313 = vsel %vm6265, %v5304, 0.0
      %v6314 = vsel %vm6266, %v5305, 0.0
      %v6315 = vsel %vm6267, %v5306, 0.0
      %v6316 = vsel %vm6268, %v5307, 0.0
      %v6317 = vsel %vm6269, %v5308, 0.0
      %v6318 = vsel %vm6270, %v5309, 0.0
      %v6319 = vsel %vm6271, %v5310, 0.0
      %v6320 = vsel %vm6272, %v5311, 0.0
      %v6321 = vsel %vm6273, %v5312, 0.0
      %v6322 = vsel %vm6274, %v5313, 0.0
      %v6323 = vsel %vm6275, %v5314, 0.0
      %v6324 = vsel %vm6276, %v5315, 0.0
      %v6325 = vsel %vm6277, %v5316, 0.0
      %v6326 = vsel %vm6278, %v5317, 0.0
      %6327 = vst.msk [vmem:[#allocation3] sm:$0xff] %vm1199, 0
      %6328 = vst.msk [vmem:[#allocation3 + $0x8] sm:$0xff] %vm1199, 0
      %6329 = vst.msk [vmem:[#allocation3 + $0xd0] sm:$0xff] %vm1199, 0
      %6330 = vst.msk [vmem:[#allocation3 + $0xd8] sm:$0xff] %vm1199, 0
      %6331 = vst.msk [vmem:[#allocation3 + $0xe0] sm:$0xff] %vm1199, 0
      %v6332 = vpack.c.bf16 %v6280, %v6279
      %v6333 = vpack.c.bf16 %v6282, %v6281
      %v6334 = vpack.c.bf16 %v6284, %v6283
      %v6335 = vpack.c.bf16 %v6286, %v6285
      %v6336 = vpack.c.bf16 %v6288, %v6287
      %v6337 = vpack.c.bf16 %v6290, %v6289
      %v6338 = vpack.c.bf16 %v6292, %v6291
      %v6339 = vpack.c.bf16 %v6294, %v6293
      %v6340 = vpack.c.bf16 %v6296, %v6295
      %v6341 = vpack.c.bf16 %v6298, %v6297
      %v6342 = vpack.c.bf16 %v6300, %v6299
      %v6343 = vpack.c.bf16 %v6302, %v6301
      %v6344 = vpack.c.bf16 %v6304, %v6303
      %v6345 = vpack.c.bf16 %v6306, %v6305
      %v6346 = vpack.c.bf16 %v6308, %v6307
      %v6347 = vpack.c.bf16 %v6310, %v6309
      %v6348 = vpack.c.bf16 %v6312, %v6311
      %v6349 = vpack.c.bf16 %v6314, %v6313
      %v6350 = vpack.c.bf16 %v6316, %v6315
      %v6351 = vpack.c.bf16 %v6318, %v6317
      %v6352 = vpack.c.bf16 %v6320, %v6319
      %v6353 = vpack.c.bf16 %v6322, %v6321
      %v6354 = vpack.c.bf16 %v6324, %v6323
      %v6355 = vpack.c.bf16 %v6326, %v6325
      %6356 = vst.msk [vmem:[#allocation3 + $0x10] sm:$0xff] %vm1199, %v6332
      %6357 = vst.msk [vmem:[#allocation3 + $0x18] sm:$0xff] %vm1199, %v6333
      %6358 = vst.msk [vmem:[#allocation3 + $0x20] sm:$0xff] %vm1199, %v6334
      %6359 = vst.msk [vmem:[#allocation3 + $0x28] sm:$0xff] %vm1199, %v6335
      %6360 = vst.msk [vmem:[#allocation3 + $0x30] sm:$0xff] %vm1199, %v6336
      %6361 = vst.msk [vmem:[#allocation3 + $0x38] sm:$0xff] %vm1199, %v6337
      %6362 = vst.msk [vmem:[#allocation3 + $0x40] sm:$0xff] %vm1199, %v6338
      %6363 = vst.msk [vmem:[#allocation3 + $0x48] sm:$0xff] %vm1199, %v6339
      %6364 = vst.msk [vmem:[#allocation3 + $0x50] sm:$0xff] %vm1199, %v6340
      %6365 = vst.msk [vmem:[#allocation3 + $0x58] sm:$0xff] %vm1199, %v6341
      %6366 = vst.msk [vmem:[#allocation3 + $0x60] sm:$0xff] %vm1199, %v6342
      %6367 = vst.msk [vmem:[#allocation3 + $0x68] sm:$0xff] %vm1199, %v6343
      %6368 = vst.msk [vmem:[#allocation3 + $0x70] sm:$0xff] %vm1199, %v6344
      %6369 = vst.msk [vmem:[#allocation3 + $0x78] sm:$0xff] %vm1199, %v6345
      %6370 = vst.msk [vmem:[#allocation3 + $0x80] sm:$0xff] %vm1199, %v6346
      %6371 = vst.msk [vmem:[#allocation3 + $0x88] sm:$0xff] %vm1199, %v6347
      %6372 = vst.msk [vmem:[#allocation3 + $0x90] sm:$0xff] %vm1199, %v6348
      %6373 = vst.msk [vmem:[#allocation3 + $0x98] sm:$0xff] %vm1199, %v6349
      %6374 = vst.msk [vmem:[#allocation3 + $0xa0] sm:$0xff] %vm1199, %v6350
      %6375 = vst.msk [vmem:[#allocation3 + $0xa8] sm:$0xff] %vm1199, %v6351
      %6376 = vst.msk [vmem:[#allocation3 + $0xb0] sm:$0xff] %vm1199, %v6352
      %6377 = vst.msk [vmem:[#allocation3 + $0xb8] sm:$0xff] %vm1199, %v6353
      %6378 = vst.msk [vmem:[#allocation3 + $0xc0] sm:$0xff] %vm1199, %v6354
      %6379 = vst.msk [vmem:[#allocation3 + $0xc8] sm:$0xff] %vm1199, %v6355
      %v6380 = vld [vmem:[#allocation3] sm:$0xff]
      %v6381 = vld [vmem:[#allocation3 + $0x8] sm:$0xff]
      %v6382 = vld [vmem:[#allocation3 + $0x10] sm:$0xff]
      %v6383 = vld [vmem:[#allocation3 + $0x18] sm:$0xff]
      %v6384 = vld [vmem:[#allocation3 + $0x20] sm:$0xff]
      %v6385 = vld [vmem:[#allocation3 + $0x28] sm:$0xff]
      %v6386 = vld [vmem:[#allocation3 + $0x30] sm:$0xff]
      %v6387 = vld [vmem:[#allocation3 + $0x38] sm:$0xff]
      %v6388 = vld [vmem:[#allocation3 + $0x40] sm:$0xff]
      %v6389 = vld [vmem:[#allocation3 + $0x48] sm:$0xff]
      %v6390 = vld [vmem:[#allocation3 + $0x50] sm:$0xff]
      %v6391 = vld [vmem:[#allocation3 + $0x58] sm:$0xff]
      %v6392 = vld [vmem:[#allocation3 + $0x60] sm:$0xff]
      %v6393 = vld [vmem:[#allocation3 + $0x68] sm:$0xff]
      %v6394 = vld [vmem:[#allocation3 + $0x70] sm:$0xff]
      %v6395 = vld [vmem:[#allocation3 + $0x78] sm:$0xff]
      %v6396 = vld [vmem:[#allocation3 + $0x80] sm:$0xff]
      %v6397 = vld [vmem:[#allocation3 + $0x88] sm:$0xff]
      %v6398 = vld [vmem:[#allocation3 + $0x90] sm:$0xff]
      %v6399 = vld [vmem:[#allocation3 + $0x98] sm:$0xff]
      %v6400 = vld [vmem:[#allocation3 + $0xa0] sm:$0xff]
      %v6401 = vld [vmem:[#allocation3 + $0xa8] sm:$0xff]
      %v6402 = vld [vmem:[#allocation3 + $0xb0] sm:$0xff]
      %v6403 = vld [vmem:[#allocation3 + $0xb8] sm:$0xff]
      %v6404 = vld [vmem:[#allocation3 + $0xc0] sm:$0xff]
      %v6405 = vld [vmem:[#allocation3 + $0xc8] sm:$0xff]
      %v6406 = vld [vmem:[#allocation3 + $0xd0] sm:$0xff]
      %v6407 = vld [vmem:[#allocation3 + $0xd8] sm:$0xff]
      %v6408 = vld [vmem:[#allocation3 + $0xe0] sm:$0xff]
      %v6409 = vld [vmem:[%s3] sm:$0xf]
      %v6410 = vld [vmem:[%s3 + $0x4] sm:$0xf]
      %v6411 = vld [vmem:[%s3 + $0x8] sm:$0xf]
      %v6412 = vld [vmem:[%s3 + $0xc] sm:$0xf]
      %v6413 = vld [vmem:[%s3 + $0x10] sm:$0xf]
      %v6414 = vld [vmem:[%s3 + $0x14] sm:$0xf]
      %v6415 = vld [vmem:[%s3 + $0x18] sm:$0xf]
      %v6416 = vld [vmem:[%s3 + $0x1c] sm:$0xf]
      %v6425 = vunpack.c.l.b16 %v6409
      %v6426 = vunpack.c.l.b16 %v6410
      %v6427 = vunpack.c.l.b16 %v6411
      %v6428 = vunpack.c.l.b16 %v6412
      %v6429 = vunpack.c.l.b16 %v6413
      %v6430 = vunpack.c.l.b16 %v6414
      %v6431 = vunpack.c.l.b16 %v6415
      %v6432 = vunpack.c.l.b16 %v6416
      %v6433 = vpack.c.b16 %v6426, %v6425
      %v6434 = vpack.c.b16 %v6428, %v6427
      %v6435 = vpack.c.b16 %v6430, %v6429
      %v6436 = vpack.c.b16 %v6432, %v6431
      %v6442 = vsel %vm1199, %v6380, 0
      %v6445 = vsel %vm1199, %v6381, 0
      %v6448 = vsel %vm1199, %v6382, 0
      %v6451 = vsel %vm1199, %v6383, 0
      %v6454 = vsel %vm1199, %v6384, 0
      %v6457 = vsel %vm1199, %v6385, 0
      %v6460 = vsel %vm1199, %v6386, 0
      %v6463 = vsel %vm1199, %v6387, 0
      %v6466 = vsel %vm1199, %v6388, 0
      %v6469 = vsel %vm1199, %v6389, 0
      %v6472 = vsel %vm1199, %v6390, 0
      %v6475 = vsel %vm1199, %v6391, 0
      %v6478 = vsel %vm1199, %v6392, 0
      %v6481 = vsel %vm1199, %v6393, 0
      %v6484 = vsel %vm1199, %v6394, 0
      %v6487 = vsel %vm1199, %v6395, 0
      %v6490 = vsel %vm1199, %v6396, 0
      %v6493 = vsel %vm1199, %v6397, 0
      %v6496 = vsel %vm1199, %v6398, 0
      %v6499 = vsel %vm1199, %v6399, 0
      %v6502 = vsel %vm1199, %v6400, 0
      %v6505 = vsel %vm1199, %v6401, 0
      %v6508 = vsel %vm1199, %v6402, 0
      %v6511 = vsel %vm1199, %v6403, 0
      %v6514 = vsel %vm1199, %v6404, 0
      %v6517 = vsel %vm1199, %v6405, 0
      %v6520 = vsel %vm1199, %v6406, 0
      %v6523 = vsel %vm1199, %v6407, 0
      %v6526 = vsel %vm1199, %v6408, 0
      %6528 = vmatprep.subr.bf16.mxu0 0
      %6529 = vmatpush1.bf16.msra.mxu0 %v6433
      %6530 = vmatprep.subr.bf16.mxu0 0
      %6531 = vmatpush1.bf16.msra.mxu0 %v6434
      %6532 = vmatprep.subr.bf16.mxu0 0
      %6533 = vmatpush1.bf16.msra.mxu0 %v6435
      %6534 = vmatprep.subr.bf16.mxu0 0
      %6535 = vmatpush1.bf16.msra.mxu0 %v6436
      %6536 = vmatprep.subr.bf16.mxu0 0
      %6537 = vmatpush1.bf16.msra.mxu0 0
      %6538 = vmatprep.subr.bf16.mxu0 0
      %6539 = vmatpush1.bf16.msra.mxu0 0
      %6540 = vmatprep.subr.bf16.mxu0 0
      %6541 = vmatpush1.bf16.msra.mxu0 0
      %6542 = vmatprep.subr.bf16.mxu0 0
      %6543 = vmatpush1.bf16.msra.mxu0 0
      %6544 = vmatprep.subr.bf16.mxu0 0
      %6545 = vmatpush1.bf16.msra.mxu0 0
      %6546 = vmatprep.subr.bf16.mxu0 0
      %6547 = vmatpush1.bf16.msra.mxu0 0
      %6548 = vmatprep.subr.bf16.mxu0 0
      %6549 = vmatpush1.bf16.msra.mxu0 0
      %6550 = vmatprep.subr.bf16.mxu0 0
      %6551 = vmatpush1.bf16.msra.mxu0 0
      %6552 = vmatprep.subr.bf16.mxu0 0
      %6553 = vmatpush1.bf16.msra.mxu0 0
      %6554 = vmatprep.subr.bf16.mxu0 0
      %6555 = vmatpush1.bf16.msra.mxu0 0
      %6556 = vmatprep.subr.bf16.mxu0 0
      %6557 = vmatpush1.bf16.msra.mxu0 0
      %6558 = vmatprep.subr.bf16.mxu0 0
      %6559 = vmatpush1.bf16.msra.mxu0 0
      %6560 = vmatprep.mubr.bf16.mxu0 0
      %6561 = vmatmul.mubr.bf16.gmra.mrb[0].mxu0 %v6442
      %v6562 = vpop.f32.mrb[0].mxu0
      %v6563 = vadd.f32 0.0, %v6562
      %v6564 = vpop.f32.mrb[0].mxu0
      %v6565 = vpop.f32.mrb[0].mxu0
      %v6566 = vadd.f32 0.0, %v6565
      %v6567 = vpop.f32.mrb[0].mxu0
      %6568 = vmatprep.mubr.bf16.mxu0 0
      %6569 = vmatmul.mubr.bf16.gmra.mrb[0].mxu0 %v6445
      %v6570 = vpop.f32.mrb[0].mxu0
      %v6571 = vadd.f32 0.0, %v6570
      %v6572 = vpop.f32.mrb[0].mxu0
      %v6573 = vpop.f32.mrb[0].mxu0
      %v6574 = vadd.f32 0.0, %v6573
      %v6575 = vpop.f32.mrb[0].mxu0
      %6576 = vmatprep.mubr.bf16.mxu0 0
      %6577 = vmatmul.mubr.bf16.gmra.mrb[0].mxu0 %v6448
      %v6578 = vpop.f32.mrb[0].mxu0
      %v6579 = vadd.f32 0.0, %v6578
      %v6580 = vpop.f32.mrb[0].mxu0
      %v6581 = vpop.f32.mrb[0].mxu0
      %v6582 = vadd.f32 0.0, %v6581
      %v6583 = vpop.f32.mrb[0].mxu0
      %6584 = vmatprep.mubr.bf16.mxu0 0
      %6585 = vmatmul.mubr.bf16.gmra.mrb[0].mxu0 %v6451
      %v6586 = vpop.f32.mrb[0].mxu0
      %v6587 = vadd.f32 0.0, %v6586
      %v6588 = vpop.f32.mrb[0].mxu0
      %v6589 = vpop.f32.mrb[0].mxu0
      %v6590 = vadd.f32 0.0, %v6589
      %v6591 = vpop.f32.mrb[0].mxu0
      %6592 = vmatprep.mubr.bf16.mxu0 0
      %6593 = vmatmul.mubr.bf16.gmra.mrb[0].mxu0 %v6454
      %v6594 = vpop.f32.mrb[0].mxu0
      %v6595 = vadd.f32 0.0, %v6594
      %v6596 = vpop.f32.mrb[0].mxu0
      %v6597 = vpop.f32.mrb[0].mxu0
      %v6598 = vadd.f32 0.0, %v6597
      %v6599 = vpop.f32.mrb[0].mxu0
      %6600 = vmatprep.mubr.bf16.mxu0 0
      %6601 = vmatmul.mubr.bf16.gmra.mrb[0].mxu0 %v6457
      %v6602 = vpop.f32.mrb[0].mxu0
      %v6603 = vadd.f32 0.0, %v6602
      %v6604 = vpop.f32.mrb[0].mxu0
      %v6605 = vpop.f32.mrb[0].mxu0
      %v6606 = vadd.f32 0.0, %v6605
      %v6607 = vpop.f32.mrb[0].mxu0
      %6608 = vmatprep.mubr.bf16.mxu0 0
      %6609 = vmatmul.mubr.bf16.gmra.mrb[0].mxu0 %v6460
      %v6610 = vpop.f32.mrb[0].mxu0
      %v6611 = vadd.f32 0.0, %v6610
      %v6612 = vpop.f32.mrb[0].mxu0
      %v6613 = vpop.f32.mrb[0].mxu0
      %v6614 = vadd.f32 0.0, %v6613
      %v6615 = vpop.f32.mrb[0].mxu0
      %6616 = vmatprep.mubr.bf16.mxu0 0
      %6617 = vmatmul.mubr.bf16.gmra.mrb[0].mxu0 %v6463
      %v6618 = vpop.f32.mrb[0].mxu0
      %v6619 = vadd.f32 0.0, %v6618
      %v6620 = vpop.f32.mrb[0].mxu0
      %v6621 = vpop.f32.mrb[0].mxu0
      %v6622 = vadd.f32 0.0, %v6621
      %v6623 = vpop.f32.mrb[0].mxu0
      %6624 = vmatprep.mubr.bf16.mxu0 0
      %6625 = vmatmul.mubr.bf16.gmra.mrb[0].mxu0 %v6466
      %v6626 = vpop.f32.mrb[0].mxu0
      %v6627 = vadd.f32 0.0, %v6626
      %v6628 = vpop.f32.mrb[0].mxu0
      %v6629 = vpop.f32.mrb[0].mxu0
      %v6630 = vadd.f32 0.0, %v6629
      %v6631 = vpop.f32.mrb[0].mxu0
      %6632 = vmatprep.mubr.bf16.mxu0 0
      %6633 = vmatmul.mubr.bf16.gmra.mrb[0].mxu0 %v6469
      %v6634 = vpop.f32.mrb[0].mxu0
      %v6635 = vadd.f32 0.0, %v6634
      %v6636 = vpop.f32.mrb[0].mxu0
      %v6637 = vpop.f32.mrb[0].mxu0
      %v6638 = vadd.f32 0.0, %v6637
      %v6639 = vpop.f32.mrb[0].mxu0
      %6640 = vmatprep.mubr.bf16.mxu0 0
      %6641 = vmatmul.mubr.bf16.gmra.mrb[0].mxu0 %v6472
      %v6642 = vpop.f32.mrb[0].mxu0
      %v6643 = vadd.f32 0.0, %v6642
      %v6644 = vpop.f32.mrb[0].mxu0
      %v6645 = vpop.f32.mrb[0].mxu0
      %v6646 = vadd.f32 0.0, %v6645
      %v6647 = vpop.f32.mrb[0].mxu0
      %6648 = vmatprep.mubr.bf16.mxu0 0
      %6649 = vmatmul.mubr.bf16.gmra.mrb[0].mxu0 %v6475
      %v6650 = vpop.f32.mrb[0].mxu0
      %v6651 = vadd.f32 0.0, %v6650
      %v6652 = vpop.f32.mrb[0].mxu0
      %v6653 = vpop.f32.mrb[0].mxu0
      %v6654 = vadd.f32 0.0, %v6653
      %v6655 = vpop.f32.mrb[0].mxu0
      %6656 = vmatprep.mubr.bf16.mxu0 0
      %6657 = vmatmul.mubr.bf16.gmra.mrb[0].mxu0 %v6478
      %v6658 = vpop.f32.mrb[0].mxu0
      %v6659 = vadd.f32 0.0, %v6658
      %v6660 = vpop.f32.mrb[0].mxu0
      %v6661 = vpop.f32.mrb[0].mxu0
      %v6662 = vadd.f32 0.0, %v6661
      %v6663 = vpop.f32.mrb[0].mxu0
      %6664 = vmatprep.mubr.bf16.mxu0 0
      %6665 = vmatmul.mubr.bf16.gmra.mrb[0].mxu0 %v6481
      %v6666 = vpop.f32.mrb[0].mxu0
      %v6667 = vadd.f32 0.0, %v6666
      %v6668 = vpop.f32.mrb[0].mxu0
      %v6669 = vpop.f32.mrb[0].mxu0
      %v6670 = vadd.f32 0.0, %v6669
      %v6671 = vpop.f32.mrb[0].mxu0
      %6672 = vmatprep.mubr.bf16.mxu0 0
      %6673 = vmatmul.mubr.bf16.gmra.mrb[0].mxu0 %v6484
      %v6674 = vpop.f32.mrb[0].mxu0
      %v6675 = vadd.f32 0.0, %v6674
      %v6676 = vpop.f32.mrb[0].mxu0
      %v6677 = vpop.f32.mrb[0].mxu0
      %v6678 = vadd.f32 0.0, %v6677
      %v6679 = vpop.f32.mrb[0].mxu0
      %6680 = vmatprep.mubr.bf16.mxu0 0
      %6681 = vmatmul.mubr.bf16.gmra.mrb[0].mxu0 %v6487
      %v6682 = vpop.f32.mrb[0].mxu0
      %v6683 = vadd.f32 0.0, %v6682
      %v6684 = vpop.f32.mrb[0].mxu0
      %v6685 = vpop.f32.mrb[0].mxu0
      %v6686 = vadd.f32 0.0, %v6685
      %v6687 = vpop.f32.mrb[0].mxu0
      %6688 = vmatprep.mubr.bf16.mxu0 0
      %6689 = vmatmul.mubr.bf16.gmra.mrb[0].mxu0 %v6490
      %v6690 = vpop.f32.mrb[0].mxu0
      %v6691 = vadd.f32 0.0, %v6690
      %v6692 = vpop.f32.mrb[0].mxu0
      %v6693 = vpop.f32.mrb[0].mxu0
      %v6694 = vadd.f32 0.0, %v6693
      %v6695 = vpop.f32.mrb[0].mxu0
      %6696 = vmatprep.mubr.bf16.mxu0 0
      %6697 = vmatmul.mubr.bf16.gmra.mrb[0].mxu0 %v6493
      %v6698 = vpop.f32.mrb[0].mxu0
      %v6699 = vadd.f32 0.0, %v6698
      %v6700 = vpop.f32.mrb[0].mxu0
      %v6701 = vpop.f32.mrb[0].mxu0
      %v6702 = vadd.f32 0.0, %v6701
      %v6703 = vpop.f32.mrb[0].mxu0
      %6704 = vmatprep.mubr.bf16.mxu0 0
      %6705 = vmatmul.mubr.bf16.gmra.mrb[0].mxu0 %v6496
      %v6706 = vpop.f32.mrb[0].mxu0
      %v6707 = vadd.f32 0.0, %v6706
      %v6708 = vpop.f32.mrb[0].mxu0
      %v6709 = vpop.f32.mrb[0].mxu0
      %v6710 = vadd.f32 0.0, %v6709
      %v6711 = vpop.f32.mrb[0].mxu0
      %6712 = vmatprep.mubr.bf16.mxu0 0
      %6713 = vmatmul.mubr.bf16.gmra.mrb[0].mxu0 %v6499
      %v6714 = vpop.f32.mrb[0].mxu0
      %v6715 = vadd.f32 0.0, %v6714
      %v6716 = vpop.f32.mrb[0].mxu0
      %v6717 = vpop.f32.mrb[0].mxu0
      %v6718 = vadd.f32 0.0, %v6717
      %v6719 = vpop.f32.mrb[0].mxu0
      %6720 = vmatprep.mubr.bf16.mxu0 0
      %6721 = vmatmul.mubr.bf16.gmra.mrb[0].mxu0 %v6502
      %v6722 = vpop.f32.mrb[0].mxu0
      %v6723 = vadd.f32 0.0, %v6722
      %v6724 = vpop.f32.mrb[0].mxu0
      %v6725 = vpop.f32.mrb[0].mxu0
      %v6726 = vadd.f32 0.0, %v6725
      %v6727 = vpop.f32.mrb[0].mxu0
      %6728 = vmatprep.mubr.bf16.mxu0 0
      %6729 = vmatmul.mubr.bf16.gmra.mrb[0].mxu0 %v6505
      %v6730 = vpop.f32.mrb[0].mxu0
      %v6731 = vadd.f32 0.0, %v6730
      %v6732 = vpop.f32.mrb[0].mxu0
      %v6733 = vpop.f32.mrb[0].mxu0
      %v6734 = vadd.f32 0.0, %v6733
      %v6735 = vpop.f32.mrb[0].mxu0
      %6736 = vmatprep.mubr.bf16.mxu0 0
      %6737 = vmatmul.mubr.bf16.gmra.mrb[0].mxu0 %v6508
      %v6738 = vpop.f32.mrb[0].mxu0
      %v6739 = vadd.f32 0.0, %v6738
      %v6740 = vpop.f32.mrb[0].mxu0
      %v6741 = vpop.f32.mrb[0].mxu0
      %v6742 = vadd.f32 0.0, %v6741
      %v6743 = vpop.f32.mrb[0].mxu0
      %6744 = vmatprep.mubr.bf16.mxu0 0
      %6745 = vmatmul.mubr.bf16.gmra.mrb[0].mxu0 %v6511
      %v6746 = vpop.f32.mrb[0].mxu0
      %v6747 = vadd.f32 0.0, %v6746
      %v6748 = vpop.f32.mrb[0].mxu0
      %v6749 = vpop.f32.mrb[0].mxu0
      %v6750 = vadd.f32 0.0, %v6749
      %v6751 = vpop.f32.mrb[0].mxu0
      %6752 = vmatprep.mubr.bf16.mxu0 0
      %6753 = vmatmul.mubr.bf16.gmra.mrb[0].mxu0 %v6514
      %v6754 = vpop.f32.mrb[0].mxu0
      %v6755 = vadd.f32 0.0, %v6754
      %v6756 = vpop.f32.mrb[0].mxu0
      %v6757 = vpop.f32.mrb[0].mxu0
      %v6758 = vadd.f32 0.0, %v6757
      %v6759 = vpop.f32.mrb[0].mxu0
      %6760 = vmatprep.mubr.bf16.mxu0 0
      %6761 = vmatmul.mubr.bf16.gmra.mrb[0].mxu0 %v6517
      %v6762 = vpop.f32.mrb[0].mxu0
      %v6763 = vadd.f32 0.0, %v6762
      %v6764 = vpop.f32.mrb[0].mxu0
      %v6765 = vpop.f32.mrb[0].mxu0
      %v6766 = vadd.f32 0.0, %v6765
      %v6767 = vpop.f32.mrb[0].mxu0
      %6768 = vmatprep.mubr.bf16.mxu0 0
      %6769 = vmatmul.mubr.bf16.gmra.mrb[0].mxu0 %v6520
      %v6770 = vpop.f32.mrb[0].mxu0
      %v6771 = vadd.f32 0.0, %v6770
      %v6772 = vpop.f32.mrb[0].mxu0
      %v6773 = vpop.f32.mrb[0].mxu0
      %v6774 = vadd.f32 0.0, %v6773
      %v6775 = vpop.f32.mrb[0].mxu0
      %6776 = vmatprep.mubr.bf16.mxu0 0
      %6777 = vmatmul.mubr.bf16.gmra.mrb[0].mxu0 %v6523
      %v6778 = vpop.f32.mrb[0].mxu0
      %v6779 = vadd.f32 0.0, %v6778
      %v6780 = vpop.f32.mrb[0].mxu0
      %v6781 = vpop.f32.mrb[0].mxu0
      %v6782 = vadd.f32 0.0, %v6781
      %v6783 = vpop.f32.mrb[0].mxu0
      %6784 = vmatprep.mubr.bf16.mxu0 0
      %6785 = vmatmul.mubr.bf16.gmra.mrb[0].mxu0 %v6526
      %v6786 = vpop.f32.mrb[0].mxu0
      %v6787 = vadd.f32 0.0, %v6786
      %v6788 = vpop.f32.mrb[0].mxu0
      %v6789 = vpop.f32.mrb[0].mxu0
      %v6790 = vadd.f32 0.0, %v6789
      %v6791 = vpop.f32.mrb[0].mxu0
      %6792 = vdwg.mxu0
      %vm6793 = vcmask 146432
      %6794 = vst.msk [vmem:[#allocation4] sm:$0xff] %vm6793, %v6563
      %6795 = vst.msk [vmem:[#allocation4 + $0x8] sm:$0xff] %vm6793, %v6566
      %6796 = vst.msk [vmem:[#allocation4 + $0x10] sm:$0xff] %vm6793, %v6571
      %6797 = vst.msk [vmem:[#allocation4 + $0x18] sm:$0xff] %vm6793, %v6574
      %6798 = vst.msk [vmem:[#allocation4 + $0x20] sm:$0xff] %vm6793, %v6579
      %6799 = vst.msk [vmem:[#allocation4 + $0x28] sm:$0xff] %vm6793, %v6582
      %6800 = vst.msk [vmem:[#allocation4 + $0x30] sm:$0xff] %vm6793, %v6587
      %6801 = vst.msk [vmem:[#allocation4 + $0x38] sm:$0xff] %vm6793, %v6590
      %6802 = vst.msk [vmem:[#allocation4 + $0x40] sm:$0xff] %vm6793, %v6595
      %6803 = vst.msk [vmem:[#allocation4 + $0x48] sm:$0xff] %vm6793, %v6598
      %6804 = vst.msk [vmem:[#allocation4 + $0x50] sm:$0xff] %vm6793, %v6603
      %6805 = vst.msk [vmem:[#allocation4 + $0x58] sm:$0xff] %vm6793, %v6606
      %6806 = vst.msk [vmem:[#allocation4 + $0x60] sm:$0xff] %vm6793, %v6611
      %6807 = vst.msk [vmem:[#allocation4 + $0x68] sm:$0xff] %vm6793, %v6614
      %6808 = vst.msk [vmem:[#allocation4 + $0x70] sm:$0xff] %vm6793, %v6619
      %6809 = vst.msk [vmem:[#allocation4 + $0x78] sm:$0xff] %vm6793, %v6622
      %6810 = vst.msk [vmem:[#allocation4 + $0x80] sm:$0xff] %vm6793, %v6627
      %6811 = vst.msk [vmem:[#allocation4 + $0x88] sm:$0xff] %vm6793, %v6630
      %6812 = vst.msk [vmem:[#allocation4 + $0x90] sm:$0xff] %vm6793, %v6635
      %6813 = vst.msk [vmem:[#allocation4 + $0x98] sm:$0xff] %vm6793, %v6638
      %6814 = vst.msk [vmem:[#allocation4 + $0xa0] sm:$0xff] %vm6793, %v6643
      %6815 = vst.msk [vmem:[#allocation4 + $0xa8] sm:$0xff] %vm6793, %v6646
      %6816 = vst.msk [vmem:[#allocation4 + $0xb0] sm:$0xff] %vm6793, %v6651
      %6817 = vst.msk [vmem:[#allocation4 + $0xb8] sm:$0xff] %vm6793, %v6654
      %6818 = vst.msk [vmem:[#allocation4 + $0xc0] sm:$0xff] %vm6793, %v6659
      %6819 = vst.msk [vmem:[#allocation4 + $0xc8] sm:$0xff] %vm6793, %v6662
      %6820 = vst.msk [vmem:[#allocation4 + $0xd0] sm:$0xff] %vm6793, %v6667
      %6821 = vst.msk [vmem:[#allocation4 + $0xd8] sm:$0xff] %vm6793, %v6670
      %6822 = vst.msk [vmem:[#allocation4 + $0xe0] sm:$0xff] %vm6793, %v6675
      %6823 = vst.msk [vmem:[#allocation4 + $0xe8] sm:$0xff] %vm6793, %v6678
      %6824 = vst.msk [vmem:[#allocation4 + $0xf0] sm:$0xff] %vm6793, %v6683
      %6825 = vst.msk [vmem:[#allocation4 + $0xf8] sm:$0xff] %vm6793, %v6686
      %6826 = vst.msk [vmem:[#allocation4 + $0x100] sm:$0xff] %vm6793, %v6691
      %6827 = vst.msk [vmem:[#allocation4 + $0x108] sm:$0xff] %vm6793, %v6694
      %6828 = vst.msk [vmem:[#allocation4 + $0x110] sm:$0xff] %vm6793, %v6699
      %6829 = vst.msk [vmem:[#allocation4 + $0x118] sm:$0xff] %vm6793, %v6702
      %6830 = vst.msk [vmem:[#allocation4 + $0x120] sm:$0xff] %vm6793, %v6707
      %6831 = vst.msk [vmem:[#allocation4 + $0x128] sm:$0xff] %vm6793, %v6710
      %6832 = vst.msk [vmem:[#allocation4 + $0x130] sm:$0xff] %vm6793, %v6715
      %6833 = vst.msk [vmem:[#allocation4 + $0x138] sm:$0xff] %vm6793, %v6718
      %6834 = vst.msk [vmem:[#allocation4 + $0x140] sm:$0xff] %vm6793, %v6723
      %6835 = vst.msk [vmem:[#allocation4 + $0x148] sm:$0xff] %vm6793, %v6726
      %6836 = vst.msk [vmem:[#allocation4 + $0x150] sm:$0xff] %vm6793, %v6731
      %6837 = vst.msk [vmem:[#allocation4 + $0x158] sm:$0xff] %vm6793, %v6734
      %6838 = vst.msk [vmem:[#allocation4 + $0x160] sm:$0xff] %vm6793, %v6739
      %6839 = vst.msk [vmem:[#allocation4 + $0x168] sm:$0xff] %vm6793, %v6742
      %6840 = vst.msk [vmem:[#allocation4 + $0x170] sm:$0xff] %vm6793, %v6747
      %6841 = vst.msk [vmem:[#allocation4 + $0x178] sm:$0xff] %vm6793, %v6750
      %6842 = vst.msk [vmem:[#allocation4 + $0x180] sm:$0xff] %vm6793, %v6755
      %6843 = vst.msk [vmem:[#allocation4 + $0x188] sm:$0xff] %vm6793, %v6758
      %6844 = vst.msk [vmem:[#allocation4 + $0x190] sm:$0xff] %vm6793, %v6763
      %6845 = vst.msk [vmem:[#allocation4 + $0x198] sm:$0xff] %vm6793, %v6766
      %6846 = vst.msk [vmem:[#allocation4 + $0x1a0] sm:$0xff] %vm6793, %v6771
      %6847 = vst.msk [vmem:[#allocation4 + $0x1a8] sm:$0xff] %vm6793, %v6774
      %6848 = vst.msk [vmem:[#allocation4 + $0x1b0] sm:$0xff] %vm6793, %v6779
      %6849 = vst.msk [vmem:[#allocation4 + $0x1b8] sm:$0xff] %vm6793, %v6782
      %6850 = vst.msk [vmem:[#allocation4 + $0x1c0] sm:$0xff] %vm6793, %v6787
      %6851 = vst.msk [vmem:[#allocation4 + $0x1c8] sm:$0xff] %vm6793, %v6790
      %v6852 = vld [vmem:[#allocation4 + $0x7] sm:$0xff]
      %v6853 = vld [vmem:[#allocation4 + $0xf] sm:$0xff]
      %v6854 = vld [vmem:[#allocation4 + $0x17] sm:$0xff]
      %v6855 = vld [vmem:[#allocation4 + $0x1f] sm:$0xff]
      %v6856 = vld [vmem:[#allocation4 + $0x27] sm:$0xff]
      %v6857 = vld [vmem:[#allocation4 + $0x2f] sm:$0xff]
      %v6858 = vld [vmem:[#allocation4 + $0x37] sm:$0xff]
      %v6859 = vld [vmem:[#allocation4 + $0x3f] sm:$0xff]
      %v6860 = vld [vmem:[#allocation4 + $0x47] sm:$0xff]
      %v6861 = vld [vmem:[#allocation4 + $0x4f] sm:$0xff]
      %v6862 = vld [vmem:[#allocation4 + $0x57] sm:$0xff]
      %v6863 = vld [vmem:[#allocation4 + $0x5f] sm:$0xff]
      %v6864 = vld [vmem:[#allocation4 + $0x67] sm:$0xff]
      %v6865 = vld [vmem:[#allocation4 + $0x6f] sm:$0xff]
      %v6866 = vld [vmem:[#allocation4 + $0x77] sm:$0xff]
      %v6867 = vld [vmem:[#allocation4 + $0x7f] sm:$0xff]
      %v6868 = vld [vmem:[#allocation4 + $0x87] sm:$0xff]
      %v6869 = vld [vmem:[#allocation4 + $0x8f] sm:$0xff]
      %v6870 = vld [vmem:[#allocation4 + $0x97] sm:$0xff]
      %v6871 = vld [vmem:[#allocation4 + $0x9f] sm:$0xff]
      %v6872 = vld [vmem:[#allocation4 + $0xa7] sm:$0xff]
      %v6873 = vld [vmem:[#allocation4 + $0xaf] sm:$0xff]
      %v6874 = vld [vmem:[#allocation4 + $0xb7] sm:$0xff]
      %v6875 = vld [vmem:[#allocation4 + $0xbf] sm:$0xff]
      %v6876 = vld [vmem:[#allocation4 + $0xc7] sm:$0xff]
      %v6877 = vld [vmem:[#allocation4 + $0xcf] sm:$0xff]
      %v6878 = vld [vmem:[#allocation4 + $0xd7] sm:$0xff]
      %v6879 = vld [vmem:[#allocation4 + $0xdf] sm:$0xff]
      %v6880 = vld [vmem:[#allocation4 + $0xe7] sm:$0xff]
      %v6881 = vld [vmem:[#allocation4 + $0xef] sm:$0xff]
      %v6882 = vld [vmem:[#allocation4 + $0xf7] sm:$0xff]
      %v6883 = vld [vmem:[#allocation4 + $0xff] sm:$0xff]
      %v6884 = vld [vmem:[#allocation4 + $0x107] sm:$0xff]
      %v6885 = vld [vmem:[#allocation4 + $0x10f] sm:$0xff]
      %v6886 = vld [vmem:[#allocation4 + $0x117] sm:$0xff]
      %v6887 = vld [vmem:[#allocation4 + $0x11f] sm:$0xff]
      %v6888 = vld [vmem:[#allocation4 + $0x127] sm:$0xff]
      %v6889 = vld [vmem:[#allocation4 + $0x12f] sm:$0xff]
      %v6890 = vld [vmem:[#allocation4 + $0x137] sm:$0xff]
      %v6891 = vld [vmem:[#allocation4 + $0x13f] sm:$0xff]
      %v6892 = vld [vmem:[#allocation4 + $0x147] sm:$0xff]
      %v6893 = vld [vmem:[#allocation4 + $0x14f] sm:$0xff]
      %v6894 = vld [vmem:[#allocation4 + $0x157] sm:$0xff]
      %v6895 = vld [vmem:[#allocation4 + $0x15f] sm:$0xff]
      %v6896 = vld [vmem:[#allocation4 + $0x167] sm:$0xff]
      %v6897 = vld [vmem:[#allocation4 + $0x16f] sm:$0xff]
      %v6898 = vld [vmem:[#allocation4 + $0x177] sm:$0xff]
      %v6899 = vld [vmem:[#allocation4 + $0x17f] sm:$0xff]
      %v6900 = vld [vmem:[#allocation4 + $0x8] sm:$0xff]
      %v6901 = vld [vmem:[#allocation4 + $0x10] sm:$0xff]
      %v6902 = vld [vmem:[#allocation4 + $0x18] sm:$0xff]
      %v6903 = vld [vmem:[#allocation4 + $0x20] sm:$0xff]
      %v6904 = vld [vmem:[#allocation4 + $0x28] sm:$0xff]
      %v6905 = vld [vmem:[#allocation4 + $0x30] sm:$0xff]
      %v6906 = vld [vmem:[#allocation4 + $0x38] sm:$0xff]
      %v6907 = vld [vmem:[#allocation4 + $0x40] sm:$0xff]
      %v6908 = vld [vmem:[#allocation4 + $0x48] sm:$0xff]
      %v6909 = vld [vmem:[#allocation4 + $0x50] sm:$0xff]
      %v6910 = vld [vmem:[#allocation4 + $0x58] sm:$0xff]
      %v6911 = vld [vmem:[#allocation4 + $0x60] sm:$0xff]
      %v6912 = vld [vmem:[#allocation4 + $0x68] sm:$0xff]
      %v6913 = vld [vmem:[#allocation4 + $0x70] sm:$0xff]
      %v6914 = vld [vmem:[#allocation4 + $0x78] sm:$0xff]
      %v6915 = vld [vmem:[#allocation4 + $0x80] sm:$0xff]
      %v6916 = vld [vmem:[#allocation4 + $0x88] sm:$0xff]
      %v6917 = vld [vmem:[#allocation4 + $0x90] sm:$0xff]
      %v6918 = vld [vmem:[#allocation4 + $0x98] sm:$0xff]
      %v6919 = vld [vmem:[#allocation4 + $0xa0] sm:$0xff]
      %v6920 = vld [vmem:[#allocation4 + $0xa8] sm:$0xff]
      %v6921 = vld [vmem:[#allocation4 + $0xb0] sm:$0xff]
      %v6922 = vld [vmem:[#allocation4 + $0xb8] sm:$0xff]
      %v6923 = vld [vmem:[#allocation4 + $0xc0] sm:$0xff]
      %v6924 = vld [vmem:[#allocation4 + $0xc8] sm:$0xff]
      %v6925 = vld [vmem:[#allocation4 + $0xd0] sm:$0xff]
      %v6926 = vld [vmem:[#allocation4 + $0xd8] sm:$0xff]
      %v6927 = vld [vmem:[#allocation4 + $0xe0] sm:$0xff]
      %v6928 = vld [vmem:[#allocation4 + $0xe8] sm:$0xff]
      %v6929 = vld [vmem:[#allocation4 + $0xf0] sm:$0xff]
      %v6930 = vld [vmem:[#allocation4 + $0xf8] sm:$0xff]
      %v6931 = vld [vmem:[#allocation4 + $0x100] sm:$0xff]
      %v6932 = vld [vmem:[#allocation4 + $0x108] sm:$0xff]
      %v6933 = vld [vmem:[#allocation4 + $0x110] sm:$0xff]
      %v6934 = vld [vmem:[#allocation4 + $0x118] sm:$0xff]
      %v6935 = vld [vmem:[#allocation4 + $0x120] sm:$0xff]
      %v6936 = vld [vmem:[#allocation4 + $0x128] sm:$0xff]
      %v6937 = vld [vmem:[#allocation4 + $0x130] sm:$0xff]
      %v6938 = vld [vmem:[#allocation4 + $0x138] sm:$0xff]
      %v6939 = vld [vmem:[#allocation4 + $0x140] sm:$0xff]
      %v6940 = vld [vmem:[#allocation4 + $0x148] sm:$0xff]
      %v6941 = vld [vmem:[#allocation4 + $0x150] sm:$0xff]
      %v6942 = vld [vmem:[#allocation4 + $0x158] sm:$0xff]
      %v6943 = vld [vmem:[#allocation4 + $0x160] sm:$0xff]
      %v6944 = vld [vmem:[#allocation4 + $0x168] sm:$0xff]
      %v6945 = vld [vmem:[#allocation4 + $0x170] sm:$0xff]
      %v6946 = vld [vmem:[#allocation4 + $0x178] sm:$0xff]
      %v6947 = vld [vmem:[#allocation4 + $0x180] sm:$0xff]
      %6996 = vrot.lane.b32.xlu0 %v6900, 126
      %v6997 = vpop.permute.xlu0 %6996
      %6998 = vrot.lane.b32.xlu0 %v6901, 126
      %v6999 = vpop.permute.xlu0 %6998
      %7000 = vrot.lane.b32.xlu0 %v6902, 126
      %v7001 = vpop.permute.xlu0 %7000
      %7002 = vrot.lane.b32.xlu0 %v6903, 126
      %v7003 = vpop.permute.xlu0 %7002
      %7004 = vrot.lane.b32.xlu0 %v6904, 126
      %v7005 = vpop.permute.xlu0 %7004
      %7006 = vrot.lane.b32.xlu0 %v6905, 126
      %v7007 = vpop.permute.xlu0 %7006
      %7008 = vrot.lane.b32.xlu0 %v6906, 126
      %v7009 = vpop.permute.xlu0 %7008
      %7010 = vrot.lane.b32.xlu0 %v6907, 126
      %v7011 = vpop.permute.xlu0 %7010
      %7012 = vrot.lane.b32.xlu0 %v6908, 126
      %v7013 = vpop.permute.xlu0 %7012
      %7014 = vrot.lane.b32.xlu0 %v6909, 126
      %v7015 = vpop.permute.xlu0 %7014
      %7016 = vrot.lane.b32.xlu0 %v6910, 126
      %v7017 = vpop.permute.xlu0 %7016
      %7018 = vrot.lane.b32.xlu0 %v6911, 126
      %v7019 = vpop.permute.xlu0 %7018
      %7020 = vrot.lane.b32.xlu0 %v6912, 126
      %v7021 = vpop.permute.xlu0 %7020
      %7022 = vrot.lane.b32.xlu0 %v6913, 126
      %v7023 = vpop.permute.xlu0 %7022
      %7024 = vrot.lane.b32.xlu0 %v6914, 126
      %v7025 = vpop.permute.xlu0 %7024
      %7026 = vrot.lane.b32.xlu0 %v6915, 126
      %v7027 = vpop.permute.xlu0 %7026
      %7028 = vrot.lane.b32.xlu0 %v6916, 126
      %v7029 = vpop.permute.xlu0 %7028
      %7030 = vrot.lane.b32.xlu0 %v6917, 126
      %v7031 = vpop.permute.xlu0 %7030
      %7032 = vrot.lane.b32.xlu0 %v6918, 126
      %v7033 = vpop.permute.xlu0 %7032
      %7034 = vrot.lane.b32.xlu0 %v6919, 126
      %v7035 = vpop.permute.xlu0 %7034
      %7036 = vrot.lane.b32.xlu0 %v6920, 126
      %v7037 = vpop.permute.xlu0 %7036
      %7038 = vrot.lane.b32.xlu0 %v6921, 126
      %v7039 = vpop.permute.xlu0 %7038
      %7040 = vrot.lane.b32.xlu0 %v6922, 126
      %v7041 = vpop.permute.xlu0 %7040
      %7042 = vrot.lane.b32.xlu0 %v6923, 126
      %v7043 = vpop.permute.xlu0 %7042
      %7044 = vrot.lane.b32.xlu0 %v6924, 126
      %v7045 = vpop.permute.xlu0 %7044
      %7046 = vrot.lane.b32.xlu0 %v6925, 126
      %v7047 = vpop.permute.xlu0 %7046
      %7048 = vrot.lane.b32.xlu0 %v6926, 126
      %v7049 = vpop.permute.xlu0 %7048
      %7050 = vrot.lane.b32.xlu0 %v6927, 126
      %v7051 = vpop.permute.xlu0 %7050
      %7052 = vrot.lane.b32.xlu0 %v6928, 126
      %v7053 = vpop.permute.xlu0 %7052
      %7054 = vrot.lane.b32.xlu0 %v6929, 126
      %v7055 = vpop.permute.xlu0 %7054
      %7056 = vrot.lane.b32.xlu0 %v6930, 126
      %v7057 = vpop.permute.xlu0 %7056
      %7058 = vrot.lane.b32.xlu0 %v6931, 126
      %v7059 = vpop.permute.xlu0 %7058
      %7060 = vrot.lane.b32.xlu0 %v6932, 126
      %v7061 = vpop.permute.xlu0 %7060
      %7062 = vrot.lane.b32.xlu0 %v6933, 126
      %v7063 = vpop.permute.xlu0 %7062
      %7064 = vrot.lane.b32.xlu0 %v6934, 126
      %v7065 = vpop.permute.xlu0 %7064
      %7066 = vrot.lane.b32.xlu0 %v6935, 126
      %v7067 = vpop.permute.xlu0 %7066
      %7068 = vrot.lane.b32.xlu0 %v6936, 126
      %v7069 = vpop.permute.xlu0 %7068
      %7070 = vrot.lane.b32.xlu0 %v6937, 126
      %v7071 = vpop.permute.xlu0 %7070
      %7072 = vrot.lane.b32.xlu0 %v6938, 126
      %v7073 = vpop.permute.xlu0 %7072
      %7074 = vrot.lane.b32.xlu0 %v6939, 126
      %v7075 = vpop.permute.xlu0 %7074
      %7076 = vrot.lane.b32.xlu0 %v6940, 126
      %v7077 = vpop.permute.xlu0 %7076
      %7078 = vrot.lane.b32.xlu0 %v6941, 126
      %v7079 = vpop.permute.xlu0 %7078
      %7080 = vrot.lane.b32.xlu0 %v6942, 126
      %v7081 = vpop.permute.xlu0 %7080
      %7082 = vrot.lane.b32.xlu0 %v6943, 126
      %v7083 = vpop.permute.xlu0 %7082
      %7084 = vrot.lane.b32.xlu0 %v6944, 126
      %v7085 = vpop.permute.xlu0 %7084
      %7086 = vrot.lane.b32.xlu0 %v6945, 126
      %v7087 = vpop.permute.xlu0 %7086
      %7088 = vrot.lane.b32.xlu0 %v6946, 126
      %v7089 = vpop.permute.xlu0 %7088
      %7090 = vrot.lane.b32.xlu0 %v6947, 126
      %v7091 = vpop.permute.xlu0 %7090
      %v7140 = vadd.f32 %v6852, %v6997
      %v7141 = vadd.f32 %v6853, %v6999
      %v7142 = vadd.f32 %v6854, %v7001
      %v7143 = vadd.f32 %v6855, %v7003
      %v7144 = vadd.f32 %v6856, %v7005
      %v7145 = vadd.f32 %v6857, %v7007
      %v7146 = vadd.f32 %v6858, %v7009
      %v7147 = vadd.f32 %v6859, %v7011
      %v7148 = vadd.f32 %v6860, %v7013
      %v7149 = vadd.f32 %v6861, %v7015
      %v7150 = vadd.f32 %v6862, %v7017
      %v7151 = vadd.f32 %v6863, %v7019
      %v7152 = vadd.f32 %v6864, %v7021
      %v7153 = vadd.f32 %v6865, %v7023
      %v7154 = vadd.f32 %v6866, %v7025
      %v7155 = vadd.f32 %v6867, %v7027
      %v7156 = vadd.f32 %v6868, %v7029
      %v7157 = vadd.f32 %v6869, %v7031
      %v7158 = vadd.f32 %v6870, %v7033
      %v7159 = vadd.f32 %v6871, %v7035
      %v7160 = vadd.f32 %v6872, %v7037
      %v7161 = vadd.f32 %v6873, %v7039
      %v7162 = vadd.f32 %v6874, %v7041
      %v7163 = vadd.f32 %v6875, %v7043
      %v7164 = vadd.f32 %v6876, %v7045
      %v7165 = vadd.f32 %v6877, %v7047
      %v7166 = vadd.f32 %v6878, %v7049
      %v7167 = vadd.f32 %v6879, %v7051
      %v7168 = vadd.f32 %v6880, %v7053
      %v7169 = vadd.f32 %v6881, %v7055
      %v7170 = vadd.f32 %v6882, %v7057
      %v7171 = vadd.f32 %v6883, %v7059
      %v7172 = vadd.f32 %v6884, %v7061
      %v7173 = vadd.f32 %v6885, %v7063
      %v7174 = vadd.f32 %v6886, %v7065
      %v7175 = vadd.f32 %v6887, %v7067
      %v7176 = vadd.f32 %v6888, %v7069
      %v7177 = vadd.f32 %v6889, %v7071
      %v7178 = vadd.f32 %v6890, %v7073
      %v7179 = vadd.f32 %v6891, %v7075
      %v7180 = vadd.f32 %v6892, %v7077
      %v7181 = vadd.f32 %v6893, %v7079
      %v7182 = vadd.f32 %v6894, %v7081
      %v7183 = vadd.f32 %v6895, %v7083
      %v7184 = vadd.f32 %v6896, %v7085
      %v7185 = vadd.f32 %v6897, %v7087
      %v7186 = vadd.f32 %v6898, %v7089
      %v7187 = vadd.f32 %v6899, %v7091
      %v7188 = vld [vmem:[#allocation4 + $0x9] sm:$0xff]
      %v7189 = vld [vmem:[#allocation4 + $0x11] sm:$0xff]
      %v7190 = vld [vmem:[#allocation4 + $0x19] sm:$0xff]
      %v7191 = vld [vmem:[#allocation4 + $0x21] sm:$0xff]
      %v7192 = vld [vmem:[#allocation4 + $0x29] sm:$0xff]
      %v7193 = vld [vmem:[#allocation4 + $0x31] sm:$0xff]
      %v7194 = vld [vmem:[#allocation4 + $0x39] sm:$0xff]
      %v7195 = vld [vmem:[#allocation4 + $0x41] sm:$0xff]
      %v7196 = vld [vmem:[#allocation4 + $0x49] sm:$0xff]
      %v7197 = vld [vmem:[#allocation4 + $0x51] sm:$0xff]
      %v7198 = vld [vmem:[#allocation4 + $0x59] sm:$0xff]
      %v7199 = vld [vmem:[#allocation4 + $0x61] sm:$0xff]
      %v7200 = vld [vmem:[#allocation4 + $0x69] sm:$0xff]
      %v7201 = vld [vmem:[#allocation4 + $0x71] sm:$0xff]
      %v7202 = vld [vmem:[#allocation4 + $0x79] sm:$0xff]
      %v7203 = vld [vmem:[#allocation4 + $0x81] sm:$0xff]
      %v7204 = vld [vmem:[#allocation4 + $0x89] sm:$0xff]
      %v7205 = vld [vmem:[#allocation4 + $0x91] sm:$0xff]
      %v7206 = vld [vmem:[#allocation4 + $0x99] sm:$0xff]
      %v7207 = vld [vmem:[#allocation4 + $0xa1] sm:$0xff]
      %v7208 = vld [vmem:[#allocation4 + $0xa9] sm:$0xff]
      %v7209 = vld [vmem:[#allocation4 + $0xb1] sm:$0xff]
      %v7210 = vld [vmem:[#allocation4 + $0xb9] sm:$0xff]
      %v7211 = vld [vmem:[#allocation4 + $0xc1] sm:$0xff]
      %v7212 = vld [vmem:[#allocation4 + $0xc9] sm:$0xff]
      %v7213 = vld [vmem:[#allocation4 + $0xd1] sm:$0xff]
      %v7214 = vld [vmem:[#allocation4 + $0xd9] sm:$0xff]
      %v7215 = vld [vmem:[#allocation4 + $0xe1] sm:$0xff]
      %v7216 = vld [vmem:[#allocation4 + $0xe9] sm:$0xff]
      %v7217 = vld [vmem:[#allocation4 + $0xf1] sm:$0xff]
      %v7218 = vld [vmem:[#allocation4 + $0xf9] sm:$0xff]
      %v7219 = vld [vmem:[#allocation4 + $0x101] sm:$0xff]
      %v7220 = vld [vmem:[#allocation4 + $0x109] sm:$0xff]
      %v7221 = vld [vmem:[#allocation4 + $0x111] sm:$0xff]
      %v7222 = vld [vmem:[#allocation4 + $0x119] sm:$0xff]
      %v7223 = vld [vmem:[#allocation4 + $0x121] sm:$0xff]
      %v7224 = vld [vmem:[#allocation4 + $0x129] sm:$0xff]
      %v7225 = vld [vmem:[#allocation4 + $0x131] sm:$0xff]
      %v7226 = vld [vmem:[#allocation4 + $0x139] sm:$0xff]
      %v7227 = vld [vmem:[#allocation4 + $0x141] sm:$0xff]
      %v7228 = vld [vmem:[#allocation4 + $0x149] sm:$0xff]
      %v7229 = vld [vmem:[#allocation4 + $0x151] sm:$0xff]
      %v7230 = vld [vmem:[#allocation4 + $0x159] sm:$0xff]
      %v7231 = vld [vmem:[#allocation4 + $0x161] sm:$0xff]
      %v7232 = vld [vmem:[#allocation4 + $0x169] sm:$0xff]
      %v7233 = vld [vmem:[#allocation4 + $0x171] sm:$0xff]
      %v7234 = vld [vmem:[#allocation4 + $0x179] sm:$0xff]
      %v7235 = vld [vmem:[#allocation4 + $0x181] sm:$0xff]
      %7284 = vrot.lane.b32.xlu0 %v7188, 124
      %v7285 = vpop.permute.xlu0 %7284
      %7286 = vrot.lane.b32.xlu0 %v7189, 124
      %v7287 = vpop.permute.xlu0 %7286
      %7288 = vrot.lane.b32.xlu0 %v7190, 124
      %v7289 = vpop.permute.xlu0 %7288
      %7290 = vrot.lane.b32.xlu0 %v7191, 124
      %v7291 = vpop.permute.xlu0 %7290
      %7292 = vrot.lane.b32.xlu0 %v7192, 124
      %v7293 = vpop.permute.xlu0 %7292
      %7294 = vrot.lane.b32.xlu0 %v7193, 124
      %v7295 = vpop.permute.xlu0 %7294
      %7296 = vrot.lane.b32.xlu0 %v7194, 124
      %v7297 = vpop.permute.xlu0 %7296
      %7298 = vrot.lane.b32.xlu0 %v7195, 124
      %v7299 = vpop.permute.xlu0 %7298
      %7300 = vrot.lane.b32.xlu0 %v7196, 124
      %v7301 = vpop.permute.xlu0 %7300
      %7302 = vrot.lane.b32.xlu0 %v7197, 124
      %v7303 = vpop.permute.xlu0 %7302
      %7304 = vrot.lane.b32.xlu0 %v7198, 124
      %v7305 = vpop.permute.xlu0 %7304
      %7306 = vrot.lane.b32.xlu0 %v7199, 124
      %v7307 = vpop.permute.xlu0 %7306
      %7308 = vrot.lane.b32.xlu0 %v7200, 124
      %v7309 = vpop.permute.xlu0 %7308
      %7310 = vrot.lane.b32.xlu0 %v7201, 124
      %v7311 = vpop.permute.xlu0 %7310
      %7312 = vrot.lane.b32.xlu0 %v7202, 124
      %v7313 = vpop.permute.xlu0 %7312
      %7314 = vrot.lane.b32.xlu0 %v7203, 124
      %v7315 = vpop.permute.xlu0 %7314
      %7316 = vrot.lane.b32.xlu0 %v7204, 124
      %v7317 = vpop.permute.xlu0 %7316
      %7318 = vrot.lane.b32.xlu0 %v7205, 124
      %v7319 = vpop.permute.xlu0 %7318
      %7320 = vrot.lane.b32.xlu0 %v7206, 124
      %v7321 = vpop.permute.xlu0 %7320
      %7322 = vrot.lane.b32.xlu0 %v7207, 124
      %v7323 = vpop.permute.xlu0 %7322
      %7324 = vrot.lane.b32.xlu0 %v7208, 124
      %v7325 = vpop.permute.xlu0 %7324
      %7326 = vrot.lane.b32.xlu0 %v7209, 124
      %v7327 = vpop.permute.xlu0 %7326
      %7328 = vrot.lane.b32.xlu0 %v7210, 124
      %v7329 = vpop.permute.xlu0 %7328
      %7330 = vrot.lane.b32.xlu0 %v7211, 124
      %v7331 = vpop.permute.xlu0 %7330
      %7332 = vrot.lane.b32.xlu0 %v7212, 124
      %v7333 = vpop.permute.xlu0 %7332
      %7334 = vrot.lane.b32.xlu0 %v7213, 124
      %v7335 = vpop.permute.xlu0 %7334
      %7336 = vrot.lane.b32.xlu0 %v7214, 124
      %v7337 = vpop.permute.xlu0 %7336
      %7338 = vrot.lane.b32.xlu0 %v7215, 124
      %v7339 = vpop.permute.xlu0 %7338
      %7340 = vrot.lane.b32.xlu0 %v7216, 124
      %v7341 = vpop.permute.xlu0 %7340
      %7342 = vrot.lane.b32.xlu0 %v7217, 124
      %v7343 = vpop.permute.xlu0 %7342
      %7344 = vrot.lane.b32.xlu0 %v7218, 124
      %v7345 = vpop.permute.xlu0 %7344
      %7346 = vrot.lane.b32.xlu0 %v7219, 124
      %v7347 = vpop.permute.xlu0 %7346
      %7348 = vrot.lane.b32.xlu0 %v7220, 124
      %v7349 = vpop.permute.xlu0 %7348
      %7350 = vrot.lane.b32.xlu0 %v7221, 124
      %v7351 = vpop.permute.xlu0 %7350
      %7352 = vrot.lane.b32.xlu0 %v7222, 124
      %v7353 = vpop.permute.xlu0 %7352
      %7354 = vrot.lane.b32.xlu0 %v7223, 124
      %v7355 = vpop.permute.xlu0 %7354
      %7356 = vrot.lane.b32.xlu0 %v7224, 124
      %v7357 = vpop.permute.xlu0 %7356
      %7358 = vrot.lane.b32.xlu0 %v7225, 124
      %v7359 = vpop.permute.xlu0 %7358
      %7360 = vrot.lane.b32.xlu0 %v7226, 124
      %v7361 = vpop.permute.xlu0 %7360
      %7362 = vrot.lane.b32.xlu0 %v7227, 124
      %v7363 = vpop.permute.xlu0 %7362
      %7364 = vrot.lane.b32.xlu0 %v7228, 124
      %v7365 = vpop.permute.xlu0 %7364
      %7366 = vrot.lane.b32.xlu0 %v7229, 124
      %v7367 = vpop.permute.xlu0 %7366
      %7368 = vrot.lane.b32.xlu0 %v7230, 124
      %v7369 = vpop.permute.xlu0 %7368
      %7370 = vrot.lane.b32.xlu0 %v7231, 124
      %v7371 = vpop.permute.xlu0 %7370
      %7372 = vrot.lane.b32.xlu0 %v7232, 124
      %v7373 = vpop.permute.xlu0 %7372
      %7374 = vrot.lane.b32.xlu0 %v7233, 124
      %v7375 = vpop.permute.xlu0 %7374
      %7376 = vrot.lane.b32.xlu0 %v7234, 124
      %v7377 = vpop.permute.xlu0 %7376
      %7378 = vrot.lane.b32.xlu0 %v7235, 124
      %v7379 = vpop.permute.xlu0 %7378
      %v7428 = vadd.f32 %v7140, %v7285
      %v7429 = vadd.f32 %v7141, %v7287
      %v7430 = vadd.f32 %v7142, %v7289
      %v7431 = vadd.f32 %v7143, %v7291
      %v7432 = vadd.f32 %v7144, %v7293
      %v7433 = vadd.f32 %v7145, %v7295
      %v7434 = vadd.f32 %v7146, %v7297
      %v7435 = vadd.f32 %v7147, %v7299
      %v7436 = vadd.f32 %v7148, %v7301
      %v7437 = vadd.f32 %v7149, %v7303
      %v7438 = vadd.f32 %v7150, %v7305
      %v7439 = vadd.f32 %v7151, %v7307
      %v7440 = vadd.f32 %v7152, %v7309
      %v7441 = vadd.f32 %v7153, %v7311
      %v7442 = vadd.f32 %v7154, %v7313
      %v7443 = vadd.f32 %v7155, %v7315
      %v7444 = vadd.f32 %v7156, %v7317
      %v7445 = vadd.f32 %v7157, %v7319
      %v7446 = vadd.f32 %v7158, %v7321
      %v7447 = vadd.f32 %v7159, %v7323
      %v7448 = vadd.f32 %v7160, %v7325
      %v7449 = vadd.f32 %v7161, %v7327
      %v7450 = vadd.f32 %v7162, %v7329
      %v7451 = vadd.f32 %v7163, %v7331
      %v7452 = vadd.f32 %v7164, %v7333
      %v7453 = vadd.f32 %v7165, %v7335
      %v7454 = vadd.f32 %v7166, %v7337
      %v7455 = vadd.f32 %v7167, %v7339
      %v7456 = vadd.f32 %v7168, %v7341
      %v7457 = vadd.f32 %v7169, %v7343
      %v7458 = vadd.f32 %v7170, %v7345
      %v7459 = vadd.f32 %v7171, %v7347
      %v7460 = vadd.f32 %v7172, %v7349
      %v7461 = vadd.f32 %v7173, %v7351
      %v7462 = vadd.f32 %v7174, %v7353
      %v7463 = vadd.f32 %v7175, %v7355
      %v7464 = vadd.f32 %v7176, %v7357
      %v7465 = vadd.f32 %v7177, %v7359
      %v7466 = vadd.f32 %v7178, %v7361
      %v7467 = vadd.f32 %v7179, %v7363
      %v7468 = vadd.f32 %v7180, %v7365
      %v7469 = vadd.f32 %v7181, %v7367
      %v7470 = vadd.f32 %v7182, %v7369
      %v7471 = vadd.f32 %v7183, %v7371
      %v7472 = vadd.f32 %v7184, %v7373
      %v7473 = vadd.f32 %v7185, %v7375
      %v7474 = vadd.f32 %v7186, %v7377
      %v7475 = vadd.f32 %v7187, %v7379
      %v7476 = vld [vmem:[#allocation4 + $0x187] sm:$0xff]
      %v7477 = vld [vmem:[#allocation4 + $0x18f] sm:$0xff]
      %v7478 = vld [vmem:[#allocation4 + $0x197] sm:$0xff]
      %7527 = vrot.lane.b32.xlu0 %v6855, 122
      %v7528 = vpop.permute.xlu0 %7527
      %7529 = vrot.lane.b32.xlu0 %v6856, 122
      %v7530 = vpop.permute.xlu0 %7529
      %7531 = vrot.lane.b32.xlu0 %v6857, 122
      %v7532 = vpop.permute.xlu0 %7531
      %7533 = vrot.lane.b32.xlu0 %v6858, 122
      %v7534 = vpop.permute.xlu0 %7533
      %7535 = vrot.lane.b32.xlu0 %v6859, 122
      %v7536 = vpop.permute.xlu0 %7535
      %7537 = vrot.lane.b32.xlu0 %v6860, 122
      %v7538 = vpop.permute.xlu0 %7537
      %7539 = vrot.lane.b32.xlu0 %v6861, 122
      %v7540 = vpop.permute.xlu0 %7539
      %7541 = vrot.lane.b32.xlu0 %v6862, 122
      %v7542 = vpop.permute.xlu0 %7541
      %7543 = vrot.lane.b32.xlu0 %v6863, 122
      %v7544 = vpop.permute.xlu0 %7543
      %7545 = vrot.lane.b32.xlu0 %v6864, 122
      %v7546 = vpop.permute.xlu0 %7545
      %7547 = vrot.lane.b32.xlu0 %v6865, 122
      %v7548 = vpop.permute.xlu0 %7547
      %7549 = vrot.lane.b32.xlu0 %v6866, 122
      %v7550 = vpop.permute.xlu0 %7549
      %7551 = vrot.lane.b32.xlu0 %v6867, 122
      %v7552 = vpop.permute.xlu0 %7551
      %7553 = vrot.lane.b32.xlu0 %v6868, 122
      %v7554 = vpop.permute.xlu0 %7553
      %7555 = vrot.lane.b32.xlu0 %v6869, 122
      %v7556 = vpop.permute.xlu0 %7555
      %7557 = vrot.lane.b32.xlu0 %v6870, 122
      %v7558 = vpop.permute.xlu0 %7557
      %7559 = vrot.lane.b32.xlu0 %v6871, 122
      %v7560 = vpop.permute.xlu0 %7559
      %7561 = vrot.lane.b32.xlu0 %v6872, 122
      %v7562 = vpop.permute.xlu0 %7561
      %7563 = vrot.lane.b32.xlu0 %v6873, 122
      %v7564 = vpop.permute.xlu0 %7563
      %7565 = vrot.lane.b32.xlu0 %v6874, 122
      %v7566 = vpop.permute.xlu0 %7565
      %7567 = vrot.lane.b32.xlu0 %v6875, 122
      %v7568 = vpop.permute.xlu0 %7567
      %7569 = vrot.lane.b32.xlu0 %v6876, 122
      %v7570 = vpop.permute.xlu0 %7569
      %7571 = vrot.lane.b32.xlu0 %v6877, 122
      %v7572 = vpop.permute.xlu0 %7571
      %7573 = vrot.lane.b32.xlu0 %v6878, 122
      %v7574 = vpop.permute.xlu0 %7573
      %7575 = vrot.lane.b32.xlu0 %v6879, 122
      %v7576 = vpop.permute.xlu0 %7575
      %7577 = vrot.lane.b32.xlu0 %v6880, 122
      %v7578 = vpop.permute.xlu0 %7577
      %7579 = vrot.lane.b32.xlu0 %v6881, 122
      %v7580 = vpop.permute.xlu0 %7579
      %7581 = vrot.lane.b32.xlu0 %v6882, 122
      %v7582 = vpop.permute.xlu0 %7581
      %7583 = vrot.lane.b32.xlu0 %v6883, 122
      %v7584 = vpop.permute.xlu0 %7583
      %7585 = vrot.lane.b32.xlu0 %v6884, 122
      %v7586 = vpop.permute.xlu0 %7585
      %7587 = vrot.lane.b32.xlu0 %v6885, 122
      %v7588 = vpop.permute.xlu0 %7587
      %7589 = vrot.lane.b32.xlu0 %v6886, 122
      %v7590 = vpop.permute.xlu0 %7589
      %7591 = vrot.lane.b32.xlu0 %v6887, 122
      %v7592 = vpop.permute.xlu0 %7591
      %7593 = vrot.lane.b32.xlu0 %v6888, 122
      %v7594 = vpop.permute.xlu0 %7593
      %7595 = vrot.lane.b32.xlu0 %v6889, 122
      %v7596 = vpop.permute.xlu0 %7595
      %7597 = vrot.lane.b32.xlu0 %v6890, 122
      %v7598 = vpop.permute.xlu0 %7597
      %7599 = vrot.lane.b32.xlu0 %v6891, 122
      %v7600 = vpop.permute.xlu0 %7599
      %7601 = vrot.lane.b32.xlu0 %v6892, 122
      %v7602 = vpop.permute.xlu0 %7601
      %7603 = vrot.lane.b32.xlu0 %v6893, 122
      %v7604 = vpop.permute.xlu0 %7603
      %7605 = vrot.lane.b32.xlu0 %v6894, 122
      %v7606 = vpop.permute.xlu0 %7605
      %7607 = vrot.lane.b32.xlu0 %v6895, 122
      %v7608 = vpop.permute.xlu0 %7607
      %7609 = vrot.lane.b32.xlu0 %v6896, 122
      %v7610 = vpop.permute.xlu0 %7609
      %7611 = vrot.lane.b32.xlu0 %v6897, 122
      %v7612 = vpop.permute.xlu0 %7611
      %7613 = vrot.lane.b32.xlu0 %v6898, 122
      %v7614 = vpop.permute.xlu0 %7613
      %7615 = vrot.lane.b32.xlu0 %v6899, 122
      %v7616 = vpop.permute.xlu0 %7615
      %7617 = vrot.lane.b32.xlu0 %v7476, 122
      %v7618 = vpop.permute.xlu0 %7617
      %7619 = vrot.lane.b32.xlu0 %v7477, 122
      %v7620 = vpop.permute.xlu0 %7619
      %7621 = vrot.lane.b32.xlu0 %v7478, 122
      %v7622 = vpop.permute.xlu0 %7621
      %v7671 = vadd.f32 %v7428, %v7528
      %v7672 = vadd.f32 %v7429, %v7530
      %v7673 = vadd.f32 %v7430, %v7532
      %v7674 = vadd.f32 %v7431, %v7534
      %v7675 = vadd.f32 %v7432, %v7536
      %v7676 = vadd.f32 %v7433, %v7538
      %v7677 = vadd.f32 %v7434, %v7540
      %v7678 = vadd.f32 %v7435, %v7542
      %v7679 = vadd.f32 %v7436, %v7544
      %v7680 = vadd.f32 %v7437, %v7546
      %v7681 = vadd.f32 %v7438, %v7548
      %v7682 = vadd.f32 %v7439, %v7550
      %v7683 = vadd.f32 %v7440, %v7552
      %v7684 = vadd.f32 %v7441, %v7554
      %v7685 = vadd.f32 %v7442, %v7556
      %v7686 = vadd.f32 %v7443, %v7558
      %v7687 = vadd.f32 %v7444, %v7560
      %v7688 = vadd.f32 %v7445, %v7562
      %v7689 = vadd.f32 %v7446, %v7564
      %v7690 = vadd.f32 %v7447, %v7566
      %v7691 = vadd.f32 %v7448, %v7568
      %v7692 = vadd.f32 %v7449, %v7570
      %v7693 = vadd.f32 %v7450, %v7572
      %v7694 = vadd.f32 %v7451, %v7574
      %v7695 = vadd.f32 %v7452, %v7576
      %v7696 = vadd.f32 %v7453, %v7578
      %v7697 = vadd.f32 %v7454, %v7580
      %v7698 = vadd.f32 %v7455, %v7582
      %v7699 = vadd.f32 %v7456, %v7584
      %v7700 = vadd.f32 %v7457, %v7586
      %v7701 = vadd.f32 %v7458, %v7588
      %v7702 = vadd.f32 %v7459, %v7590
      %v7703 = vadd.f32 %v7460, %v7592
      %v7704 = vadd.f32 %v7461, %v7594
      %v7705 = vadd.f32 %v7462, %v7596
      %v7706 = vadd.f32 %v7463, %v7598
      %v7707 = vadd.f32 %v7464, %v7600
      %v7708 = vadd.f32 %v7465, %v7602
      %v7709 = vadd.f32 %v7466, %v7604
      %v7710 = vadd.f32 %v7467, %v7606
      %v7711 = vadd.f32 %v7468, %v7608
      %v7712 = vadd.f32 %v7469, %v7610
      %v7713 = vadd.f32 %v7470, %v7612
      %v7714 = vadd.f32 %v7471, %v7614
      %v7715 = vadd.f32 %v7472, %v7616
      %v7716 = vadd.f32 %v7473, %v7618
      %v7717 = vadd.f32 %v7474, %v7620
      %v7718 = vadd.f32 %v7475, %v7622
      %v7719 = vld [vmem:[#allocation4 + $0x188] sm:$0xff]
      %v7720 = vld [vmem:[#allocation4 + $0x190] sm:$0xff]
      %v7721 = vld [vmem:[#allocation4 + $0x198] sm:$0xff]
      %7725 = vrot.lane.b32.xlu0 %v6903, 120
      %v7726 = vpop.permute.xlu0 %7725
      %7727 = vrot.lane.b32.xlu0 %v6904, 120
      %v7728 = vpop.permute.xlu0 %7727
      %7729 = vrot.lane.b32.xlu0 %v6905, 120
      %v7730 = vpop.permute.xlu0 %7729
      %7731 = vrot.lane.b32.xlu0 %v6906, 120
      %v7732 = vpop.permute.xlu0 %7731
      %7733 = vrot.lane.b32.xlu0 %v6907, 120
      %v7734 = vpop.permute.xlu0 %7733
      %7735 = vrot.lane.b32.xlu0 %v6908, 120
      %v7736 = vpop.permute.xlu0 %7735
      %7737 = vrot.lane.b32.xlu0 %v6909, 120
      %v7738 = vpop.permute.xlu0 %7737
      %7739 = vrot.lane.b32.xlu0 %v6910, 120
      %v7740 = vpop.permute.xlu0 %7739
      %7741 = vrot.lane.b32.xlu0 %v6911, 120
      %v7742 = vpop.permute.xlu0 %7741
      %7743 = vrot.lane.b32.xlu0 %v6912, 120
      %v7744 = vpop.permute.xlu0 %7743
      %7745 = vrot.lane.b32.xlu0 %v6913, 120
      %v7746 = vpop.permute.xlu0 %7745
      %7747 = vrot.lane.b32.xlu0 %v6914, 120
      %v7748 = vpop.permute.xlu0 %7747
      %7749 = vrot.lane.b32.xlu0 %v6915, 120
      %v7750 = vpop.permute.xlu0 %7749
      %7751 = vrot.lane.b32.xlu0 %v6916, 120
      %v7752 = vpop.permute.xlu0 %7751
      %7753 = vrot.lane.b32.xlu0 %v6917, 120
      %v7754 = vpop.permute.xlu0 %7753
      %7755 = vrot.lane.b32.xlu0 %v6918, 120
      %v7756 = vpop.permute.xlu0 %7755
      %7757 = vrot.lane.b32.xlu0 %v6919, 120
      %v7758 = vpop.permute.xlu0 %7757
      %7759 = vrot.lane.b32.xlu0 %v6920, 120
      %v7760 = vpop.permute.xlu0 %7759
      %7761 = vrot.lane.b32.xlu0 %v6921, 120
      %v7762 = vpop.permute.xlu0 %7761
      %7763 = vrot.lane.b32.xlu0 %v6922, 120
      %v7764 = vpop.permute.xlu0 %7763
      %7765 = vrot.lane.b32.xlu0 %v6923, 120
      %v7766 = vpop.permute.xlu0 %7765
      %7767 = vrot.lane.b32.xlu0 %v6924, 120
      %v7768 = vpop.permute.xlu0 %7767
      %7769 = vrot.lane.b32.xlu0 %v6925, 120
      %v7770 = vpop.permute.xlu0 %7769
      %7771 = vrot.lane.b32.xlu0 %v6926, 120
      %v7772 = vpop.permute.xlu0 %7771
      %7773 = vrot.lane.b32.xlu0 %v6927, 120
      %v7774 = vpop.permute.xlu0 %7773
      %7775 = vrot.lane.b32.xlu0 %v6928, 120
      %v7776 = vpop.permute.xlu0 %7775
      %7777 = vrot.lane.b32.xlu0 %v6929, 120
      %v7778 = vpop.permute.xlu0 %7777
      %7779 = vrot.lane.b32.xlu0 %v6930, 120
      %v7780 = vpop.permute.xlu0 %7779
      %7781 = vrot.lane.b32.xlu0 %v6931, 120
      %v7782 = vpop.permute.xlu0 %7781
      %7783 = vrot.lane.b32.xlu0 %v6932, 120
      %v7784 = vpop.permute.xlu0 %7783
      %7785 = vrot.lane.b32.xlu0 %v6933, 120
      %v7786 = vpop.permute.xlu0 %7785
      %7787 = vrot.lane.b32.xlu0 %v6934, 120
      %v7788 = vpop.permute.xlu0 %7787
      %7789 = vrot.lane.b32.xlu0 %v6935, 120
      %v7790 = vpop.permute.xlu0 %7789
      %7791 = vrot.lane.b32.xlu0 %v6936, 120
      %v7792 = vpop.permute.xlu0 %7791
      %7793 = vrot.lane.b32.xlu0 %v6937, 120
      %v7794 = vpop.permute.xlu0 %7793
      %7795 = vrot.lane.b32.xlu0 %v6938, 120
      %v7796 = vpop.permute.xlu0 %7795
      %7797 = vrot.lane.b32.xlu0 %v6939, 120
      %v7798 = vpop.permute.xlu0 %7797
      %7799 = vrot.lane.b32.xlu0 %v6940, 120
      %v7800 = vpop.permute.xlu0 %7799
      %7801 = vrot.lane.b32.xlu0 %v6941, 120
      %v7802 = vpop.permute.xlu0 %7801
      %7803 = vrot.lane.b32.xlu0 %v6942, 120
      %v7804 = vpop.permute.xlu0 %7803
      %7805 = vrot.lane.b32.xlu0 %v6943, 120
      %v7806 = vpop.permute.xlu0 %7805
      %7807 = vrot.lane.b32.xlu0 %v6944, 120
      %v7808 = vpop.permute.xlu0 %7807
      %7809 = vrot.lane.b32.xlu0 %v6945, 120
      %v7810 = vpop.permute.xlu0 %7809
      %7811 = vrot.lane.b32.xlu0 %v6946, 120
      %v7812 = vpop.permute.xlu0 %7811
      %7813 = vrot.lane.b32.xlu0 %v6947, 120
      %v7814 = vpop.permute.xlu0 %7813
      %7815 = vrot.lane.b32.xlu0 %v7719, 120
      %v7816 = vpop.permute.xlu0 %7815
      %7817 = vrot.lane.b32.xlu0 %v7720, 120
      %v7818 = vpop.permute.xlu0 %7817
      %7819 = vrot.lane.b32.xlu0 %v7721, 120
      %v7820 = vpop.permute.xlu0 %7819
      %v7869 = vadd.f32 %v7671, %v7726
      %v7870 = vadd.f32 %v7672, %v7728
      %v7871 = vadd.f32 %v7673, %v7730
      %v7872 = vadd.f32 %v7674, %v7732
      %v7873 = vadd.f32 %v7675, %v7734
      %v7874 = vadd.f32 %v7676, %v7736
      %v7875 = vadd.f32 %v7677, %v7738
      %v7876 = vadd.f32 %v7678, %v7740
      %v7877 = vadd.f32 %v7679, %v7742
      %v7878 = vadd.f32 %v7680, %v7744
      %v7879 = vadd.f32 %v7681, %v7746
      %v7880 = vadd.f32 %v7682, %v7748
      %v7881 = vadd.f32 %v7683, %v7750
      %v7882 = vadd.f32 %v7684, %v7752
      %v7883 = vadd.f32 %v7685, %v7754
      %v7884 = vadd.f32 %v7686, %v7756
      %v7885 = vadd.f32 %v7687, %v7758
      %v7886 = vadd.f32 %v7688, %v7760
      %v7887 = vadd.f32 %v7689, %v7762
      %v7888 = vadd.f32 %v7690, %v7764
      %v7889 = vadd.f32 %v7691, %v7766
      %v7890 = vadd.f32 %v7692, %v7768
      %v7891 = vadd.f32 %v7693, %v7770
      %v7892 = vadd.f32 %v7694, %v7772
      %v7893 = vadd.f32 %v7695, %v7774
      %v7894 = vadd.f32 %v7696, %v7776
      %v7895 = vadd.f32 %v7697, %v7778
      %v7896 = vadd.f32 %v7698, %v7780
      %v7897 = vadd.f32 %v7699, %v7782
      %v7898 = vadd.f32 %v7700, %v7784
      %v7899 = vadd.f32 %v7701, %v7786
      %v7900 = vadd.f32 %v7702, %v7788
      %v7901 = vadd.f32 %v7703, %v7790
      %v7902 = vadd.f32 %v7704, %v7792
      %v7903 = vadd.f32 %v7705, %v7794
      %v7904 = vadd.f32 %v7706, %v7796
      %v7905 = vadd.f32 %v7707, %v7798
      %v7906 = vadd.f32 %v7708, %v7800
      %v7907 = vadd.f32 %v7709, %v7802
      %v7908 = vadd.f32 %v7710, %v7804
      %v7909 = vadd.f32 %v7711, %v7806
      %v7910 = vadd.f32 %v7712, %v7808
      %v7911 = vadd.f32 %v7713, %v7810
      %v7912 = vadd.f32 %v7714, %v7812
      %v7913 = vadd.f32 %v7715, %v7814
      %v7914 = vadd.f32 %v7716, %v7816
      %v7915 = vadd.f32 %v7717, %v7818
      %v7916 = vadd.f32 %v7718, %v7820
      %v7917 = vld [vmem:[#allocation4 + $0x189] sm:$0xff]
      %v7918 = vld [vmem:[#allocation4 + $0x191] sm:$0xff]
      %v7919 = vld [vmem:[#allocation4 + $0x199] sm:$0xff]
      %7923 = vrot.lane.b32.xlu0 %v7191, 118
      %v7924 = vpop.permute.xlu0 %7923
      %7925 = vrot.lane.b32.xlu0 %v7192, 118
      %v7926 = vpop.permute.xlu0 %7925
      %7927 = vrot.lane.b32.xlu0 %v7193, 118
      %v7928 = vpop.permute.xlu0 %7927
      %7929 = vrot.lane.b32.xlu0 %v7194, 118
      %v7930 = vpop.permute.xlu0 %7929
      %7931 = vrot.lane.b32.xlu0 %v7195, 118
      %v7932 = vpop.permute.xlu0 %7931
      %7933 = vrot.lane.b32.xlu0 %v7196, 118
      %v7934 = vpop.permute.xlu0 %7933
      %7935 = vrot.lane.b32.xlu0 %v7197, 118
      %v7936 = vpop.permute.xlu0 %7935
      %7937 = vrot.lane.b32.xlu0 %v7198, 118
      %v7938 = vpop.permute.xlu0 %7937
      %7939 = vrot.lane.b32.xlu0 %v7199, 118
      %v7940 = vpop.permute.xlu0 %7939
      %7941 = vrot.lane.b32.xlu0 %v7200, 118
      %v7942 = vpop.permute.xlu0 %7941
      %7943 = vrot.lane.b32.xlu0 %v7201, 118
      %v7944 = vpop.permute.xlu0 %7943
      %7945 = vrot.lane.b32.xlu0 %v7202, 118
      %v7946 = vpop.permute.xlu0 %7945
      %7947 = vrot.lane.b32.xlu0 %v7203, 118
      %v7948 = vpop.permute.xlu0 %7947
      %7949 = vrot.lane.b32.xlu0 %v7204, 118
      %v7950 = vpop.permute.xlu0 %7949
      %7951 = vrot.lane.b32.xlu0 %v7205, 118
      %v7952 = vpop.permute.xlu0 %7951
      %7953 = vrot.lane.b32.xlu0 %v7206, 118
      %v7954 = vpop.permute.xlu0 %7953
      %7955 = vrot.lane.b32.xlu0 %v7207, 118
      %v7956 = vpop.permute.xlu0 %7955
      %7957 = vrot.lane.b32.xlu0 %v7208, 118
      %v7958 = vpop.permute.xlu0 %7957
      %7959 = vrot.lane.b32.xlu0 %v7209, 118
      %v7960 = vpop.permute.xlu0 %7959
      %7961 = vrot.lane.b32.xlu0 %v7210, 118
      %v7962 = vpop.permute.xlu0 %7961
      %7963 = vrot.lane.b32.xlu0 %v7211, 118
      %v7964 = vpop.permute.xlu0 %7963
      %7965 = vrot.lane.b32.xlu0 %v7212, 118
      %v7966 = vpop.permute.xlu0 %7965
      %7967 = vrot.lane.b32.xlu0 %v7213, 118
      %v7968 = vpop.permute.xlu0 %7967
      %7969 = vrot.lane.b32.xlu0 %v7214, 118
      %v7970 = vpop.permute.xlu0 %7969
      %7971 = vrot.lane.b32.xlu0 %v7215, 118
      %v7972 = vpop.permute.xlu0 %7971
      %7973 = vrot.lane.b32.xlu0 %v7216, 118
      %v7974 = vpop.permute.xlu0 %7973
      %7975 = vrot.lane.b32.xlu0 %v7217, 118
      %v7976 = vpop.permute.xlu0 %7975
      %7977 = vrot.lane.b32.xlu0 %v7218, 118
      %v7978 = vpop.permute.xlu0 %7977
      %7979 = vrot.lane.b32.xlu0 %v7219, 118
      %v7980 = vpop.permute.xlu0 %7979
      %7981 = vrot.lane.b32.xlu0 %v7220, 118
      %v7982 = vpop.permute.xlu0 %7981
      %7983 = vrot.lane.b32.xlu0 %v7221, 118
      %v7984 = vpop.permute.xlu0 %7983
      %7985 = vrot.lane.b32.xlu0 %v7222, 118
      %v7986 = vpop.permute.xlu0 %7985
      %7987 = vrot.lane.b32.xlu0 %v7223, 118
      %v7988 = vpop.permute.xlu0 %7987
      %7989 = vrot.lane.b32.xlu0 %v7224, 118
      %v7990 = vpop.permute.xlu0 %7989
      %7991 = vrot.lane.b32.xlu0 %v7225, 118
      %v7992 = vpop.permute.xlu0 %7991
      %7993 = vrot.lane.b32.xlu0 %v7226, 118
      %v7994 = vpop.permute.xlu0 %7993
      %7995 = vrot.lane.b32.xlu0 %v7227, 118
      %v7996 = vpop.permute.xlu0 %7995
      %7997 = vrot.lane.b32.xlu0 %v7228, 118
      %v7998 = vpop.permute.xlu0 %7997
      %7999 = vrot.lane.b32.xlu0 %v7229, 118
      %v8000 = vpop.permute.xlu0 %7999
      %8001 = vrot.lane.b32.xlu0 %v7230, 118
      %v8002 = vpop.permute.xlu0 %8001
      %8003 = vrot.lane.b32.xlu0 %v7231, 118
      %v8004 = vpop.permute.xlu0 %8003
      %8005 = vrot.lane.b32.xlu0 %v7232, 118
      %v8006 = vpop.permute.xlu0 %8005
      %8007 = vrot.lane.b32.xlu0 %v7233, 118
      %v8008 = vpop.permute.xlu0 %8007
      %8009 = vrot.lane.b32.xlu0 %v7234, 118
      %v8010 = vpop.permute.xlu0 %8009
      %8011 = vrot.lane.b32.xlu0 %v7235, 118
      %v8012 = vpop.permute.xlu0 %8011
      %8013 = vrot.lane.b32.xlu0 %v7917, 118
      %v8014 = vpop.permute.xlu0 %8013
      %8015 = vrot.lane.b32.xlu0 %v7918, 118
      %v8016 = vpop.permute.xlu0 %8015
      %8017 = vrot.lane.b32.xlu0 %v7919, 118
      %v8018 = vpop.permute.xlu0 %8017
      %v8067 = vadd.f32 %v7869, %v7924
      %v8068 = vadd.f32 %v7870, %v7926
      %v8069 = vadd.f32 %v7871, %v7928
      %v8070 = vadd.f32 %v7872, %v7930
      %v8071 = vadd.f32 %v7873, %v7932
      %v8072 = vadd.f32 %v7874, %v7934
      %v8073 = vadd.f32 %v7875, %v7936
      %v8074 = vadd.f32 %v7876, %v7938
      %v8075 = vadd.f32 %v7877, %v7940
      %v8076 = vadd.f32 %v7878, %v7942
      %v8077 = vadd.f32 %v7879, %v7944
      %v8078 = vadd.f32 %v7880, %v7946
      %v8079 = vadd.f32 %v7881, %v7948
      %v8080 = vadd.f32 %v7882, %v7950
      %v8081 = vadd.f32 %v7883, %v7952
      %v8082 = vadd.f32 %v7884, %v7954
      %v8083 = vadd.f32 %v7885, %v7956
      %v8084 = vadd.f32 %v7886, %v7958
      %v8085 = vadd.f32 %v7887, %v7960
      %v8086 = vadd.f32 %v7888, %v7962
      %v8087 = vadd.f32 %v7889, %v7964
      %v8088 = vadd.f32 %v7890, %v7966
      %v8089 = vadd.f32 %v7891, %v7968
      %v8090 = vadd.f32 %v7892, %v7970
      %v8091 = vadd.f32 %v7893, %v7972
      %v8092 = vadd.f32 %v7894, %v7974
      %v8093 = vadd.f32 %v7895, %v7976
      %v8094 = vadd.f32 %v7896, %v7978
      %v8095 = vadd.f32 %v7897, %v7980
      %v8096 = vadd.f32 %v7898, %v7982
      %v8097 = vadd.f32 %v7899, %v7984
      %v8098 = vadd.f32 %v7900, %v7986
      %v8099 = vadd.f32 %v7901, %v7988
      %v8100 = vadd.f32 %v7902, %v7990
      %v8101 = vadd.f32 %v7903, %v7992
      %v8102 = vadd.f32 %v7904, %v7994
      %v8103 = vadd.f32 %v7905, %v7996
      %v8104 = vadd.f32 %v7906, %v7998
      %v8105 = vadd.f32 %v7907, %v8000
      %v8106 = vadd.f32 %v7908, %v8002
      %v8107 = vadd.f32 %v7909, %v8004
      %v8108 = vadd.f32 %v7910, %v8006
      %v8109 = vadd.f32 %v7911, %v8008
      %v8110 = vadd.f32 %v7912, %v8010
      %v8111 = vadd.f32 %v7913, %v8012
      %v8112 = vadd.f32 %v7914, %v8014
      %v8113 = vadd.f32 %v7915, %v8016
      %v8114 = vadd.f32 %v7916, %v8018
      %v8115 = vld [vmem:[#allocation4 + $0x19f] sm:$0xff]
      %v8116 = vld [vmem:[#allocation4 + $0x1a7] sm:$0xff]
      %v8117 = vld [vmem:[#allocation4 + $0x1af] sm:$0xff]
      %8121 = vrot.lane.b32.xlu0 %v6858, 116
      %v8122 = vpop.permute.xlu0 %8121
      %8123 = vrot.lane.b32.xlu0 %v6859, 116
      %v8124 = vpop.permute.xlu0 %8123
      %8125 = vrot.lane.b32.xlu0 %v6860, 116
      %v8126 = vpop.permute.xlu0 %8125
      %8127 = vrot.lane.b32.xlu0 %v6861, 116
      %v8128 = vpop.permute.xlu0 %8127
      %8129 = vrot.lane.b32.xlu0 %v6862, 116
      %v8130 = vpop.permute.xlu0 %8129
      %8131 = vrot.lane.b32.xlu0 %v6863, 116
      %v8132 = vpop.permute.xlu0 %8131
      %8133 = vrot.lane.b32.xlu0 %v6864, 116
      %v8134 = vpop.permute.xlu0 %8133
      %8135 = vrot.lane.b32.xlu0 %v6865, 116
      %v8136 = vpop.permute.xlu0 %8135
      %8137 = vrot.lane.b32.xlu0 %v6866, 116
      %v8138 = vpop.permute.xlu0 %8137
      %8139 = vrot.lane.b32.xlu0 %v6867, 116
      %v8140 = vpop.permute.xlu0 %8139
      %8141 = vrot.lane.b32.xlu0 %v6868, 116
      %v8142 = vpop.permute.xlu0 %8141
      %8143 = vrot.lane.b32.xlu0 %v6869, 116
      %v8144 = vpop.permute.xlu0 %8143
      %8145 = vrot.lane.b32.xlu0 %v6870, 116
      %v8146 = vpop.permute.xlu0 %8145
      %8147 = vrot.lane.b32.xlu0 %v6871, 116
      %v8148 = vpop.permute.xlu0 %8147
      %8149 = vrot.lane.b32.xlu0 %v6872, 116
      %v8150 = vpop.permute.xlu0 %8149
      %8151 = vrot.lane.b32.xlu0 %v6873, 116
      %v8152 = vpop.permute.xlu0 %8151
      %8153 = vrot.lane.b32.xlu0 %v6874, 116
      %v8154 = vpop.permute.xlu0 %8153
      %8155 = vrot.lane.b32.xlu0 %v6875, 116
      %v8156 = vpop.permute.xlu0 %8155
      %8157 = vrot.lane.b32.xlu0 %v6876, 116
      %v8158 = vpop.permute.xlu0 %8157
      %8159 = vrot.lane.b32.xlu0 %v6877, 116
      %v8160 = vpop.permute.xlu0 %8159
      %8161 = vrot.lane.b32.xlu0 %v6878, 116
      %v8162 = vpop.permute.xlu0 %8161
      %8163 = vrot.lane.b32.xlu0 %v6879, 116
      %v8164 = vpop.permute.xlu0 %8163
      %8165 = vrot.lane.b32.xlu0 %v6880, 116
      %v8166 = vpop.permute.xlu0 %8165
      %8167 = vrot.lane.b32.xlu0 %v6881, 116
      %v8168 = vpop.permute.xlu0 %8167
      %8169 = vrot.lane.b32.xlu0 %v6882, 116
      %v8170 = vpop.permute.xlu0 %8169
      %8171 = vrot.lane.b32.xlu0 %v6883, 116
      %v8172 = vpop.permute.xlu0 %8171
      %8173 = vrot.lane.b32.xlu0 %v6884, 116
      %v8174 = vpop.permute.xlu0 %8173
      %8175 = vrot.lane.b32.xlu0 %v6885, 116
      %v8176 = vpop.permute.xlu0 %8175
      %8177 = vrot.lane.b32.xlu0 %v6886, 116
      %v8178 = vpop.permute.xlu0 %8177
      %8179 = vrot.lane.b32.xlu0 %v6887, 116
      %v8180 = vpop.permute.xlu0 %8179
      %8181 = vrot.lane.b32.xlu0 %v6888, 116
      %v8182 = vpop.permute.xlu0 %8181
      %8183 = vrot.lane.b32.xlu0 %v6889, 116
      %v8184 = vpop.permute.xlu0 %8183
      %8185 = vrot.lane.b32.xlu0 %v6890, 116
      %v8186 = vpop.permute.xlu0 %8185
      %8187 = vrot.lane.b32.xlu0 %v6891, 116
      %v8188 = vpop.permute.xlu0 %8187
      %8189 = vrot.lane.b32.xlu0 %v6892, 116
      %v8190 = vpop.permute.xlu0 %8189
      %8191 = vrot.lane.b32.xlu0 %v6893, 116
      %v8192 = vpop.permute.xlu0 %8191
      %8193 = vrot.lane.b32.xlu0 %v6894, 116
      %v8194 = vpop.permute.xlu0 %8193
      %8195 = vrot.lane.b32.xlu0 %v6895, 116
      %v8196 = vpop.permute.xlu0 %8195
      %8197 = vrot.lane.b32.xlu0 %v6896, 116
      %v8198 = vpop.permute.xlu0 %8197
      %8199 = vrot.lane.b32.xlu0 %v6897, 116
      %v8200 = vpop.permute.xlu0 %8199
      %8201 = vrot.lane.b32.xlu0 %v6898, 116
      %v8202 = vpop.permute.xlu0 %8201
      %8203 = vrot.lane.b32.xlu0 %v6899, 116
      %v8204 = vpop.permute.xlu0 %8203
      %8205 = vrot.lane.b32.xlu0 %v7476, 116
      %v8206 = vpop.permute.xlu0 %8205
      %8207 = vrot.lane.b32.xlu0 %v7477, 116
      %v8208 = vpop.permute.xlu0 %8207
      %8209 = vrot.lane.b32.xlu0 %v7478, 116
      %v8210 = vpop.permute.xlu0 %8209
      %8211 = vrot.lane.b32.xlu0 %v8115, 116
      %v8212 = vpop.permute.xlu0 %8211
      %8213 = vrot.lane.b32.xlu0 %v8116, 116
      %v8214 = vpop.permute.xlu0 %8213
      %8215 = vrot.lane.b32.xlu0 %v8117, 116
      %v8216 = vpop.permute.xlu0 %8215
      %v8265 = vadd.f32 %v8067, %v8122
      %v8266 = vadd.f32 %v8068, %v8124
      %v8267 = vadd.f32 %v8069, %v8126
      %v8268 = vadd.f32 %v8070, %v8128
      %v8269 = vadd.f32 %v8071, %v8130
      %v8270 = vadd.f32 %v8072, %v8132
      %v8271 = vadd.f32 %v8073, %v8134
      %v8272 = vadd.f32 %v8074, %v8136
      %v8273 = vadd.f32 %v8075, %v8138
      %v8274 = vadd.f32 %v8076, %v8140
      %v8275 = vadd.f32 %v8077, %v8142
      %v8276 = vadd.f32 %v8078, %v8144
      %v8277 = vadd.f32 %v8079, %v8146
      %v8278 = vadd.f32 %v8080, %v8148
      %v8279 = vadd.f32 %v8081, %v8150
      %v8280 = vadd.f32 %v8082, %v8152
      %v8281 = vadd.f32 %v8083, %v8154
      %v8282 = vadd.f32 %v8084, %v8156
      %v8283 = vadd.f32 %v8085, %v8158
      %v8284 = vadd.f32 %v8086, %v8160
      %v8285 = vadd.f32 %v8087, %v8162
      %v8286 = vadd.f32 %v8088, %v8164
      %v8287 = vadd.f32 %v8089, %v8166
      %v8288 = vadd.f32 %v8090, %v8168
      %v8289 = vadd.f32 %v8091, %v8170
      %v8290 = vadd.f32 %v8092, %v8172
      %v8291 = vadd.f32 %v8093, %v8174
      %v8292 = vadd.f32 %v8094, %v8176
      %v8293 = vadd.f32 %v8095, %v8178
      %v8294 = vadd.f32 %v8096, %v8180
      %v8295 = vadd.f32 %v8097, %v8182
      %v8296 = vadd.f32 %v8098, %v8184
      %v8297 = vadd.f32 %v8099, %v8186
      %v8298 = vadd.f32 %v8100, %v8188
      %v8299 = vadd.f32 %v8101, %v8190
      %v8300 = vadd.f32 %v8102, %v8192
      %v8301 = vadd.f32 %v8103, %v8194
      %v8302 = vadd.f32 %v8104, %v8196
      %v8303 = vadd.f32 %v8105, %v8198
      %v8304 = vadd.f32 %v8106, %v8200
      %v8305 = vadd.f32 %v8107, %v8202
      %v8306 = vadd.f32 %v8108, %v8204
      %v8307 = vadd.f32 %v8109, %v8206
      %v8308 = vadd.f32 %v8110, %v8208
      %v8309 = vadd.f32 %v8111, %v8210
      %v8310 = vadd.f32 %v8112, %v8212
      %v8311 = vadd.f32 %v8113, %v8214
      %v8312 = vadd.f32 %v8114, %v8216
      %v8313 = vld [vmem:[#allocation4 + $0x1a0] sm:$0xff]
      %v8314 = vld [vmem:[#allocation4 + $0x1a8] sm:$0xff]
      %v8315 = vld [vmem:[#allocation4 + $0x1b0] sm:$0xff]
      %8319 = vrot.lane.b32.xlu0 %v6906, 114
      %v8320 = vpop.permute.xlu0 %8319
      %8321 = vrot.lane.b32.xlu0 %v6907, 114
      %v8322 = vpop.permute.xlu0 %8321
      %8323 = vrot.lane.b32.xlu0 %v6908, 114
      %v8324 = vpop.permute.xlu0 %8323
      %8325 = vrot.lane.b32.xlu0 %v6909, 114
      %v8326 = vpop.permute.xlu0 %8325
      %8327 = vrot.lane.b32.xlu0 %v6910, 114
      %v8328 = vpop.permute.xlu0 %8327
      %8329 = vrot.lane.b32.xlu0 %v6911, 114
      %v8330 = vpop.permute.xlu0 %8329
      %8331 = vrot.lane.b32.xlu0 %v6912, 114
      %v8332 = vpop.permute.xlu0 %8331
      %8333 = vrot.lane.b32.xlu0 %v6913, 114
      %v8334 = vpop.permute.xlu0 %8333
      %8335 = vrot.lane.b32.xlu0 %v6914, 114
      %v8336 = vpop.permute.xlu0 %8335
      %8337 = vrot.lane.b32.xlu0 %v6915, 114
      %v8338 = vpop.permute.xlu0 %8337
      %8339 = vrot.lane.b32.xlu0 %v6916, 114
      %v8340 = vpop.permute.xlu0 %8339
      %8341 = vrot.lane.b32.xlu0 %v6917, 114
      %v8342 = vpop.permute.xlu0 %8341
      %8343 = vrot.lane.b32.xlu0 %v6918, 114
      %v8344 = vpop.permute.xlu0 %8343
      %8345 = vrot.lane.b32.xlu0 %v6919, 114
      %v8346 = vpop.permute.xlu0 %8345
      %8347 = vrot.lane.b32.xlu0 %v6920, 114
      %v8348 = vpop.permute.xlu0 %8347
      %8349 = vrot.lane.b32.xlu0 %v6921, 114
      %v8350 = vpop.permute.xlu0 %8349
      %8351 = vrot.lane.b32.xlu0 %v6922, 114
      %v8352 = vpop.permute.xlu0 %8351
      %8353 = vrot.lane.b32.xlu0 %v6923, 114
      %v8354 = vpop.permute.xlu0 %8353
      %8355 = vrot.lane.b32.xlu0 %v6924, 114
      %v8356 = vpop.permute.xlu0 %8355
      %8357 = vrot.lane.b32.xlu0 %v6925, 114
      %v8358 = vpop.permute.xlu0 %8357
      %8359 = vrot.lane.b32.xlu0 %v6926, 114
      %v8360 = vpop.permute.xlu0 %8359
      %8361 = vrot.lane.b32.xlu0 %v6927, 114
      %v8362 = vpop.permute.xlu0 %8361
      %8363 = vrot.lane.b32.xlu0 %v6928, 114
      %v8364 = vpop.permute.xlu0 %8363
      %8365 = vrot.lane.b32.xlu0 %v6929, 114
      %v8366 = vpop.permute.xlu0 %8365
      %8367 = vrot.lane.b32.xlu0 %v6930, 114
      %v8368 = vpop.permute.xlu0 %8367
      %8369 = vrot.lane.b32.xlu0 %v6931, 114
      %v8370 = vpop.permute.xlu0 %8369
      %8371 = vrot.lane.b32.xlu0 %v6932, 114
      %v8372 = vpop.permute.xlu0 %8371
      %8373 = vrot.lane.b32.xlu0 %v6933, 114
      %v8374 = vpop.permute.xlu0 %8373
      %8375 = vrot.lane.b32.xlu0 %v6934, 114
      %v8376 = vpop.permute.xlu0 %8375
      %8377 = vrot.lane.b32.xlu0 %v6935, 114
      %v8378 = vpop.permute.xlu0 %8377
      %8379 = vrot.lane.b32.xlu0 %v6936, 114
      %v8380 = vpop.permute.xlu0 %8379
      %8381 = vrot.lane.b32.xlu0 %v6937, 114
      %v8382 = vpop.permute.xlu0 %8381
      %8383 = vrot.lane.b32.xlu0 %v6938, 114
      %v8384 = vpop.permute.xlu0 %8383
      %8385 = vrot.lane.b32.xlu0 %v6939, 114
      %v8386 = vpop.permute.xlu0 %8385
      %8387 = vrot.lane.b32.xlu0 %v6940, 114
      %v8388 = vpop.permute.xlu0 %8387
      %8389 = vrot.lane.b32.xlu0 %v6941, 114
      %v8390 = vpop.permute.xlu0 %8389
      %8391 = vrot.lane.b32.xlu0 %v6942, 114
      %v8392 = vpop.permute.xlu0 %8391
      %8393 = vrot.lane.b32.xlu0 %v6943, 114
      %v8394 = vpop.permute.xlu0 %8393
      %8395 = vrot.lane.b32.xlu0 %v6944, 114
      %v8396 = vpop.permute.xlu0 %8395
      %8397 = vrot.lane.b32.xlu0 %v6945, 114
      %v8398 = vpop.permute.xlu0 %8397
      %8399 = vrot.lane.b32.xlu0 %v6946, 114
      %v8400 = vpop.permute.xlu0 %8399
      %8401 = vrot.lane.b32.xlu0 %v6947, 114
      %v8402 = vpop.permute.xlu0 %8401
      %8403 = vrot.lane.b32.xlu0 %v7719, 114
      %v8404 = vpop.permute.xlu0 %8403
      %8405 = vrot.lane.b32.xlu0 %v7720, 114
      %v8406 = vpop.permute.xlu0 %8405
      %8407 = vrot.lane.b32.xlu0 %v7721, 114
      %v8408 = vpop.permute.xlu0 %8407
      %8409 = vrot.lane.b32.xlu0 %v8313, 114
      %v8410 = vpop.permute.xlu0 %8409
      %8411 = vrot.lane.b32.xlu0 %v8314, 114
      %v8412 = vpop.permute.xlu0 %8411
      %8413 = vrot.lane.b32.xlu0 %v8315, 114
      %v8414 = vpop.permute.xlu0 %8413
      %v8463 = vadd.f32 %v8265, %v8320
      %v8464 = vadd.f32 %v8266, %v8322
      %v8465 = vadd.f32 %v8267, %v8324
      %v8466 = vadd.f32 %v8268, %v8326
      %v8467 = vadd.f32 %v8269, %v8328
      %v8468 = vadd.f32 %v8270, %v8330
      %v8469 = vadd.f32 %v8271, %v8332
      %v8470 = vadd.f32 %v8272, %v8334
      %v8471 = vadd.f32 %v8273, %v8336
      %v8472 = vadd.f32 %v8274, %v8338
      %v8473 = vadd.f32 %v8275, %v8340
      %v8474 = vadd.f32 %v8276, %v8342
      %v8475 = vadd.f32 %v8277, %v8344
      %v8476 = vadd.f32 %v8278, %v8346
      %v8477 = vadd.f32 %v8279, %v8348
      %v8478 = vadd.f32 %v8280, %v8350
      %v8479 = vadd.f32 %v8281, %v8352
      %v8480 = vadd.f32 %v8282, %v8354
      %v8481 = vadd.f32 %v8283, %v8356
      %v8482 = vadd.f32 %v8284, %v8358
      %v8483 = vadd.f32 %v8285, %v8360
      %v8484 = vadd.f32 %v8286, %v8362
      %v8485 = vadd.f32 %v8287, %v8364
      %v8486 = vadd.f32 %v8288, %v8366
      %v8487 = vadd.f32 %v8289, %v8368
      %v8488 = vadd.f32 %v8290, %v8370
      %v8489 = vadd.f32 %v8291, %v8372
      %v8490 = vadd.f32 %v8292, %v8374
      %v8491 = vadd.f32 %v8293, %v8376
      %v8492 = vadd.f32 %v8294, %v8378
      %v8493 = vadd.f32 %v8295, %v8380
      %v8494 = vadd.f32 %v8296, %v8382
      %v8495 = vadd.f32 %v8297, %v8384
      %v8496 = vadd.f32 %v8298, %v8386
      %v8497 = vadd.f32 %v8299, %v8388
      %v8498 = vadd.f32 %v8300, %v8390
      %v8499 = vadd.f32 %v8301, %v8392
      %v8500 = vadd.f32 %v8302, %v8394
      %v8501 = vadd.f32 %v8303, %v8396
      %v8502 = vadd.f32 %v8304, %v8398
      %v8503 = vadd.f32 %v8305, %v8400
      %v8504 = vadd.f32 %v8306, %v8402
      %v8505 = vadd.f32 %v8307, %v8404
      %v8506 = vadd.f32 %v8308, %v8406
      %v8507 = vadd.f32 %v8309, %v8408
      %v8508 = vadd.f32 %v8310, %v8410
      %v8509 = vadd.f32 %v8311, %v8412
      %v8510 = vadd.f32 %v8312, %v8414
      %v8511 = vld [vmem:[#allocation4 + $0x1a1] sm:$0xff]
      %v8512 = vld [vmem:[#allocation4 + $0x1a9] sm:$0xff]
      %v8513 = vld [vmem:[#allocation4 + $0x1b1] sm:$0xff]
      %8517 = vrot.lane.b32.xlu0 %v7194, 112
      %v8518 = vpop.permute.xlu0 %8517
      %8519 = vrot.lane.b32.xlu0 %v7195, 112
      %v8520 = vpop.permute.xlu0 %8519
      %8521 = vrot.lane.b32.xlu0 %v7196, 112
      %v8522 = vpop.permute.xlu0 %8521
      %8523 = vrot.lane.b32.xlu0 %v7197, 112
      %v8524 = vpop.permute.xlu0 %8523
      %8525 = vrot.lane.b32.xlu0 %v7198, 112
      %v8526 = vpop.permute.xlu0 %8525
      %8527 = vrot.lane.b32.xlu0 %v7199, 112
      %v8528 = vpop.permute.xlu0 %8527
      %8529 = vrot.lane.b32.xlu0 %v7200, 112
      %v8530 = vpop.permute.xlu0 %8529
      %8531 = vrot.lane.b32.xlu0 %v7201, 112
      %v8532 = vpop.permute.xlu0 %8531
      %8533 = vrot.lane.b32.xlu0 %v7202, 112
      %v8534 = vpop.permute.xlu0 %8533
      %8535 = vrot.lane.b32.xlu0 %v7203, 112
      %v8536 = vpop.permute.xlu0 %8535
      %8537 = vrot.lane.b32.xlu0 %v7204, 112
      %v8538 = vpop.permute.xlu0 %8537
      %8539 = vrot.lane.b32.xlu0 %v7205, 112
      %v8540 = vpop.permute.xlu0 %8539
      %8541 = vrot.lane.b32.xlu0 %v7206, 112
      %v8542 = vpop.permute.xlu0 %8541
      %8543 = vrot.lane.b32.xlu0 %v7207, 112
      %v8544 = vpop.permute.xlu0 %8543
      %8545 = vrot.lane.b32.xlu0 %v7208, 112
      %v8546 = vpop.permute.xlu0 %8545
      %8547 = vrot.lane.b32.xlu0 %v7209, 112
      %v8548 = vpop.permute.xlu0 %8547
      %8549 = vrot.lane.b32.xlu0 %v7210, 112
      %v8550 = vpop.permute.xlu0 %8549
      %8551 = vrot.lane.b32.xlu0 %v7211, 112
      %v8552 = vpop.permute.xlu0 %8551
      %8553 = vrot.lane.b32.xlu0 %v7212, 112
      %v8554 = vpop.permute.xlu0 %8553
      %8555 = vrot.lane.b32.xlu0 %v7213, 112
      %v8556 = vpop.permute.xlu0 %8555
      %8557 = vrot.lane.b32.xlu0 %v7214, 112
      %v8558 = vpop.permute.xlu0 %8557
      %8559 = vrot.lane.b32.xlu0 %v7215, 112
      %v8560 = vpop.permute.xlu0 %8559
      %8561 = vrot.lane.b32.xlu0 %v7216, 112
      %v8562 = vpop.permute.xlu0 %8561
      %8563 = vrot.lane.b32.xlu0 %v7217, 112
      %v8564 = vpop.permute.xlu0 %8563
      %8565 = vrot.lane.b32.xlu0 %v7218, 112
      %v8566 = vpop.permute.xlu0 %8565
      %8567 = vrot.lane.b32.xlu0 %v7219, 112
      %v8568 = vpop.permute.xlu0 %8567
      %8569 = vrot.lane.b32.xlu0 %v7220, 112
      %v8570 = vpop.permute.xlu0 %8569
      %8571 = vrot.lane.b32.xlu0 %v7221, 112
      %v8572 = vpop.permute.xlu0 %8571
      %8573 = vrot.lane.b32.xlu0 %v7222, 112
      %v8574 = vpop.permute.xlu0 %8573
      %8575 = vrot.lane.b32.xlu0 %v7223, 112
      %v8576 = vpop.permute.xlu0 %8575
      %8577 = vrot.lane.b32.xlu0 %v7224, 112
      %v8578 = vpop.permute.xlu0 %8577
      %8579 = vrot.lane.b32.xlu0 %v7225, 112
      %v8580 = vpop.permute.xlu0 %8579
      %8581 = vrot.lane.b32.xlu0 %v7226, 112
      %v8582 = vpop.permute.xlu0 %8581
      %8583 = vrot.lane.b32.xlu0 %v7227, 112
      %v8584 = vpop.permute.xlu0 %8583
      %8585 = vrot.lane.b32.xlu0 %v7228, 112
      %v8586 = vpop.permute.xlu0 %8585
      %8587 = vrot.lane.b32.xlu0 %v7229, 112
      %v8588 = vpop.permute.xlu0 %8587
      %8589 = vrot.lane.b32.xlu0 %v7230, 112
      %v8590 = vpop.permute.xlu0 %8589
      %8591 = vrot.lane.b32.xlu0 %v7231, 112
      %v8592 = vpop.permute.xlu0 %8591
      %8593 = vrot.lane.b32.xlu0 %v7232, 112
      %v8594 = vpop.permute.xlu0 %8593
      %8595 = vrot.lane.b32.xlu0 %v7233, 112
      %v8596 = vpop.permute.xlu0 %8595
      %8597 = vrot.lane.b32.xlu0 %v7234, 112
      %v8598 = vpop.permute.xlu0 %8597
      %8599 = vrot.lane.b32.xlu0 %v7235, 112
      %v8600 = vpop.permute.xlu0 %8599
      %8601 = vrot.lane.b32.xlu0 %v7917, 112
      %v8602 = vpop.permute.xlu0 %8601
      %8603 = vrot.lane.b32.xlu0 %v7918, 112
      %v8604 = vpop.permute.xlu0 %8603
      %8605 = vrot.lane.b32.xlu0 %v7919, 112
      %v8606 = vpop.permute.xlu0 %8605
      %8607 = vrot.lane.b32.xlu0 %v8511, 112
      %v8608 = vpop.permute.xlu0 %8607
      %8609 = vrot.lane.b32.xlu0 %v8512, 112
      %v8610 = vpop.permute.xlu0 %8609
      %8611 = vrot.lane.b32.xlu0 %v8513, 112
      %v8612 = vpop.permute.xlu0 %8611
      %v8661 = vadd.f32 %v8463, %v8518
      %v8662 = vadd.f32 %v8464, %v8520
      %v8663 = vadd.f32 %v8465, %v8522
      %v8664 = vadd.f32 %v8466, %v8524
      %v8665 = vadd.f32 %v8467, %v8526
      %v8666 = vadd.f32 %v8468, %v8528
      %v8667 = vadd.f32 %v8469, %v8530
      %v8668 = vadd.f32 %v8470, %v8532
      %v8669 = vadd.f32 %v8471, %v8534
      %v8670 = vadd.f32 %v8472, %v8536
      %v8671 = vadd.f32 %v8473, %v8538
      %v8672 = vadd.f32 %v8474, %v8540
      %v8673 = vadd.f32 %v8475, %v8542
      %v8674 = vadd.f32 %v8476, %v8544
      %v8675 = vadd.f32 %v8477, %v8546
      %v8676 = vadd.f32 %v8478, %v8548
      %v8677 = vadd.f32 %v8479, %v8550
      %v8678 = vadd.f32 %v8480, %v8552
      %v8679 = vadd.f32 %v8481, %v8554
      %v8680 = vadd.f32 %v8482, %v8556
      %v8681 = vadd.f32 %v8483, %v8558
      %v8682 = vadd.f32 %v8484, %v8560
      %v8683 = vadd.f32 %v8485, %v8562
      %v8684 = vadd.f32 %v8486, %v8564
      %v8685 = vadd.f32 %v8487, %v8566
      %v8686 = vadd.f32 %v8488, %v8568
      %v8687 = vadd.f32 %v8489, %v8570
      %v8688 = vadd.f32 %v8490, %v8572
      %v8689 = vadd.f32 %v8491, %v8574
      %v8690 = vadd.f32 %v8492, %v8576
      %v8691 = vadd.f32 %v8493, %v8578
      %v8692 = vadd.f32 %v8494, %v8580
      %v8693 = vadd.f32 %v8495, %v8582
      %v8694 = vadd.f32 %v8496, %v8584
      %v8695 = vadd.f32 %v8497, %v8586
      %v8696 = vadd.f32 %v8498, %v8588
      %v8697 = vadd.f32 %v8499, %v8590
      %v8698 = vadd.f32 %v8500, %v8592
      %v8699 = vadd.f32 %v8501, %v8594
      %v8700 = vadd.f32 %v8502, %v8596
      %v8701 = vadd.f32 %v8503, %v8598
      %v8702 = vadd.f32 %v8504, %v8600
      %v8703 = vadd.f32 %v8505, %v8602
      %v8704 = vadd.f32 %v8506, %v8604
      %v8705 = vadd.f32 %v8507, %v8606
      %v8706 = vadd.f32 %v8508, %v8608
      %v8707 = vadd.f32 %v8509, %v8610
      %v8708 = vadd.f32 %v8510, %v8612
      %v8709 = vld [vmem:[%s4] sm:$0x1]
      %v8711 = vlaneseq
      %v8712 = vshrl.u32 %v8711, 7
      %v8713 = vsub.s32 0, %v8712
      %v8714 = vrot.slane %v8709, %v8713
      %v8716 = vadd.f32 %v8661, %v8714
      %v8717 = vadd.f32 %v8662, %v8714
      %v8718 = vadd.f32 %v8663, %v8714
      %v8719 = vadd.f32 %v8664, %v8714
      %v8720 = vadd.f32 %v8665, %v8714
      %v8721 = vadd.f32 %v8666, %v8714
      %v8722 = vadd.f32 %v8667, %v8714
      %v8723 = vadd.f32 %v8668, %v8714
      %v8724 = vadd.f32 %v8669, %v8714
      %v8725 = vadd.f32 %v8670, %v8714
      %v8726 = vadd.f32 %v8671, %v8714
      %v8727 = vadd.f32 %v8672, %v8714
      %v8728 = vadd.f32 %v8673, %v8714
      %v8729 = vadd.f32 %v8674, %v8714
      %v8730 = vadd.f32 %v8675, %v8714
      %v8731 = vadd.f32 %v8676, %v8714
      %v8732 = vadd.f32 %v8677, %v8714
      %v8733 = vadd.f32 %v8678, %v8714
      %v8734 = vadd.f32 %v8679, %v8714
      %v8735 = vadd.f32 %v8680, %v8714
      %v8736 = vadd.f32 %v8681, %v8714
      %v8737 = vadd.f32 %v8682, %v8714
      %v8738 = vadd.f32 %v8683, %v8714
      %v8739 = vadd.f32 %v8684, %v8714
      %v8740 = vadd.f32 %v8685, %v8714
      %v8741 = vadd.f32 %v8686, %v8714
      %v8742 = vadd.f32 %v8687, %v8714
      %v8743 = vadd.f32 %v8688, %v8714
      %v8744 = vadd.f32 %v8689, %v8714
      %v8745 = vadd.f32 %v8690, %v8714
      %v8746 = vadd.f32 %v8691, %v8714
      %v8747 = vadd.f32 %v8692, %v8714
      %v8748 = vadd.f32 %v8693, %v8714
      %v8749 = vadd.f32 %v8694, %v8714
      %v8750 = vadd.f32 %v8695, %v8714
      %v8751 = vadd.f32 %v8696, %v8714
      %v8752 = vadd.f32 %v8697, %v8714
      %v8753 = vadd.f32 %v8698, %v8714
      %v8754 = vadd.f32 %v8699, %v8714
      %v8755 = vadd.f32 %v8700, %v8714
      %v8756 = vadd.f32 %v8701, %v8714
      %v8757 = vadd.f32 %v8702, %v8714
      %v8758 = vadd.f32 %v8703, %v8714
      %v8759 = vadd.f32 %v8704, %v8714
      %v8760 = vadd.f32 %v8705, %v8714
      %v8761 = vadd.f32 %v8706, %v8714
      %v8762 = vadd.f32 %v8707, %v8714
      %v8763 = vadd.f32 %v8708, %v8714
      %vm8764 = vcmask 15360
      %8765 = vst.msk [vmem:[%s224] sm:$0xff] %vm8764, %v8716
      %8766 = vst.msk [vmem:[%s224 + $0x8] sm:$0xff] %vm8764, %v8717
      %8767 = vst.msk [vmem:[%s224 + $0x10] sm:$0xff] %vm8764, %v8718
      %8768 = vst.msk [vmem:[%s224 + $0x18] sm:$0xff] %vm8764, %v8719
      %8769 = vst.msk [vmem:[%s224 + $0x20] sm:$0xff] %vm8764, %v8720
      %8770 = vst.msk [vmem:[%s224 + $0x28] sm:$0xff] %vm8764, %v8721
      %8771 = vst.msk [vmem:[%s224 + $0x30] sm:$0xff] %vm8764, %v8722
      %8772 = vst.msk [vmem:[%s224 + $0x38] sm:$0xff] %vm8764, %v8723
      %8773 = vst.msk [vmem:[%s224 + $0x40] sm:$0xff] %vm8764, %v8724
      %8774 = vst.msk [vmem:[%s224 + $0x48] sm:$0xff] %vm8764, %v8725
      %8775 = vst.msk [vmem:[%s224 + $0x50] sm:$0xff] %vm8764, %v8726
      %8776 = vst.msk [vmem:[%s224 + $0x58] sm:$0xff] %vm8764, %v8727
      %8777 = vst.msk [vmem:[%s224 + $0x60] sm:$0xff] %vm8764, %v8728
      %8778 = vst.msk [vmem:[%s224 + $0x68] sm:$0xff] %vm8764, %v8729
      %8779 = vst.msk [vmem:[%s224 + $0x70] sm:$0xff] %vm8764, %v8730
      %8780 = vst.msk [vmem:[%s224 + $0x78] sm:$0xff] %vm8764, %v8731
      %8781 = vst.msk [vmem:[%s224 + $0x80] sm:$0xff] %vm8764, %v8732
      %8782 = vst.msk [vmem:[%s224 + $0x88] sm:$0xff] %vm8764, %v8733
      %8783 = vst.msk [vmem:[%s224 + $0x90] sm:$0xff] %vm8764, %v8734
      %8784 = vst.msk [vmem:[%s224 + $0x98] sm:$0xff] %vm8764, %v8735
      %8785 = vst.msk [vmem:[%s224 + $0xa0] sm:$0xff] %vm8764, %v8736
      %8786 = vst.msk [vmem:[%s224 + $0xa8] sm:$0xff] %vm8764, %v8737
      %8787 = vst.msk [vmem:[%s224 + $0xb0] sm:$0xff] %vm8764, %v8738
      %8788 = vst.msk [vmem:[%s224 + $0xb8] sm:$0xff] %vm8764, %v8739
      %8789 = vst.msk [vmem:[%s224 + $0xc0] sm:$0xff] %vm8764, %v8740
      %8790 = vst.msk [vmem:[%s224 + $0xc8] sm:$0xff] %vm8764, %v8741
      %8791 = vst.msk [vmem:[%s224 + $0xd0] sm:$0xff] %vm8764, %v8742
      %8792 = vst.msk [vmem:[%s224 + $0xd8] sm:$0xff] %vm8764, %v8743
      %8793 = vst.msk [vmem:[%s224 + $0xe0] sm:$0xff] %vm8764, %v8744
      %8794 = vst.msk [vmem:[%s224 + $0xe8] sm:$0xff] %vm8764, %v8745
      %8795 = vst.msk [vmem:[%s224 + $0xf0] sm:$0xff] %vm8764, %v8746
      %8796 = vst.msk [vmem:[%s224 + $0xf8] sm:$0xff] %vm8764, %v8747
      %8797 = vst.msk [vmem:[%s224 + $0x100] sm:$0xff] %vm8764, %v8748
      %8798 = vst.msk [vmem:[%s224 + $0x108] sm:$0xff] %vm8764, %v8749
      %8799 = vst.msk [vmem:[%s224 + $0x110] sm:$0xff] %vm8764, %v8750
      %8800 = vst.msk [vmem:[%s224 + $0x118] sm:$0xff] %vm8764, %v8751
      %8801 = vst.msk [vmem:[%s224 + $0x120] sm:$0xff] %vm8764, %v8752
      %8802 = vst.msk [vmem:[%s224 + $0x128] sm:$0xff] %vm8764, %v8753
      %8803 = vst.msk [vmem:[%s224 + $0x130] sm:$0xff] %vm8764, %v8754
      %8804 = vst.msk [vmem:[%s224 + $0x138] sm:$0xff] %vm8764, %v8755
      %8805 = vst.msk [vmem:[%s224 + $0x140] sm:$0xff] %vm8764, %v8756
      %8806 = vst.msk [vmem:[%s224 + $0x148] sm:$0xff] %vm8764, %v8757
      %8807 = vst.msk [vmem:[%s224 + $0x150] sm:$0xff] %vm8764, %v8758
      %8808 = vst.msk [vmem:[%s224 + $0x158] sm:$0xff] %vm8764, %v8759
      %8809 = vst.msk [vmem:[%s224 + $0x160] sm:$0xff] %vm8764, %v8760
      %8810 = vst.msk [vmem:[%s224 + $0x168] sm:$0xff] %vm8764, %v8761
      %8811 = vst.msk [vmem:[%s224 + $0x170] sm:$0xff] %vm8764, %v8762
      %8812 = vst.msk [vmem:[%s224 + $0x178] sm:$0xff] %vm8764, %v8763
      %p8813 = scmp.lt.s32.totalorder %s16, 1
      %s8814 = scalar_select %p8813, %s16, 1
      %s8815 = smul.addr %s8814, 48
      %s8816 = smul.addr %s8815, 8
      %s8817 = scalar_lea.vmem %s5, %s8816
      // Predicated region
      $region41: #{tpu_custom_call.1} parent=39 // pred_check
        %p8818 = pneg %p144
      $region42: #{tpu_custom_call.1} parent=39 // pred_check_branch
        %8820 = sbr.rel (%p8818) target = $region44
      $region43: #{tpu_custom_call.1} parent=39 // pred_region
        _
      $region44: #{tpu_custom_call.1} parent=39 // pred_fallthru
        _
    $region40: #{tpu_custom_call.1} parent=5 // pred_fallthru
      _
    %p8821 = scmp.le.s32.totalorder 2, %s11
    // Predicated region
    $region45: #{tpu_custom_call.1} parent=5 // pred_check
      %p8822 = pneg %p8821
    $region46: #{tpu_custom_call.1} parent=5 // pred_check_branch
      %8824 = sbr.rel (%p8822) target = $region48
    $region47: #{tpu_custom_call.1} parent=5 // pred_region
      %s8825 = ssub.s32 %s11, 2
      // Predicated region
      $region49: #{tpu_custom_call.1} parent=47 // pred_check
        %p8826 = pneg %p150
      $region50: #{tpu_custom_call.1} parent=47 // pred_check_branch
        %8828 = sbr.rel (%p8826) target = $region52
      $region51: #{tpu_custom_call.1} parent=47 // pred_region
        %p8829 = scmp.lt.s32.totalorder %s17, 1
        %s8830 = scalar_select %p8829, %s17, 1
        %s8831 = smul.addr %s8830, 48
        %s8832 = smul.addr %s8831, 8
        %s8833 = scalar_lea.vmem %s5, %s8832
      $region52: #{tpu_custom_call.1} parent=47 // pred_fallthru
        _
    $region48: #{tpu_custom_call.1} parent=5 // pred_fallthru
      _
  $region6: #{tpu_custom_call.1} parent=0 // loop_footer
    %s15 = sadd.s32 1, %s11
  $region7: #{tpu_custom_call.1} parent=0 // loop_footer_branch
    %10 = sbr.rel target = $region3
  $region8: #{tpu_custom_call.1} parent=0 // loop_exit
    _

</llo_original>
